<compile_context>
chip_gen: v7x
topology: tpu7x:2x2x1
jax: 0.10.0
libtpu: 0.0.40
codegen_flags: <defaults>
</compile_context>

<pallas_src>
import functools

import jax
import jax.numpy as jnp
from jax.experimental import pallas as pl
from jax.experimental.pallas import tpu as pltpu

NEG_INF = -1e30  # finite mask-fill value (avoids NaN on fully-masked rows)


def _vmem_spec():
    return pl.BlockSpec(memory_space=pltpu.MemorySpace.VMEM)


# ---------------------- in-kernel math helpers (on values) --------------------
def _lin2d(x2, w, b=None):
    # x2: [M, K], w: [K, N] (pre-transposed), b: [1, N] or None
    y = jnp.dot(x2, w, preferred_element_type=jnp.float32)
    return y if b is None else y + b


def _lin3d(x3, w, b=None):
    # [B, S, K] -> [B, S, N]; matmul runs on a 2-D [B*S, K] slab.
    B, S, K = x3.shape
    N = w.shape[1]
    return _lin2d(x3.reshape(B * S, K), w, b).reshape(B, S, N)


def _sigmoid(x):
    return pl.reciprocal(1.0 + jnp.exp(-x), approx=True)


def _mha(qry, key, val, bias, num_head):
    """Masked multi-head attention on VMEM-resident values.

    qry [B,Nt,O], key/val [B,Ns,O] (1/sqrt(d) already folded into the key
    projection weights), bias [B,1,Ns] additive key-pad mask (0 / NEG_INF).
    """
    O = qry.shape[-1]
    D = O // num_head
    outs = []
    # TODO(synk): a single (B*H)-batched contraction ('bthd,bshd->bhts') would drop
    # the per-head lane slices/concat, but multi-batch-dim dot_general is not
    # reliably lowered by Mosaic; rank-3 per-head einsums are known-good here.
    for h in range(num_head):
        lo = h * D
        s = jnp.einsum("btd,bsd->bts", qry[..., lo:lo + D], key[..., lo:lo + D],
                       preferred_element_type=jnp.float32) + bias
        smax = jnp.max(s, axis=-1, keepdims=True)
        e = jnp.exp(s - smax)
        p = e * pl.reciprocal(jnp.sum(e, axis=-1, keepdims=True), approx=True)
        outs.append(jnp.einsum("bts,bsd->btd", p, val[..., lo:lo + D],
                               preferred_element_type=jnp.float32))
    return jnp.concatenate(outs, axis=-1)


# -------------------------- fully fused forward kernel ------------------------
def _single_block_kernel(*refs, treedef, n_leaves, num_block,
                         num_inter_head, num_intra_head):
    v_ref, q_ref, vm_ref, qm_ref = refs[:4]
    param_refs = refs[4:4 + n_leaves]
    ov_ref, oq_ref = refs[4 + n_leaves:]

    # All weights loaded once; VMEM-resident for the whole (unrolled) block loop.
    P = jax.tree_util.tree_unflatten(treedef, [r[...] for r in param_refs])

    v_in = v_ref[...]            # [B, No, F]
    q_in = q_ref[...]            # [B, Nl, F]
    vm = vm_ref[...]             # [B, No] float 0/1
    qm = qm_ref[...]             # [B, Nl] float 0/1

    vm3 = vm[:, :, None]
    qm3 = qm[:, :, None]
    # Additive key-padding biases, computed ONCE and reused by every attention.
    v_bias = ((1.0 - vm) * NEG_INF)[:, None, :]   # [B,1,No]
    q_bias = ((1.0 - qm) * NEG_INF)[:, None, :]   # [B,1,Nl]

    def one_side(pp, src, tgt, src_m3, tgt_m3, src_bias, num_head):
        key = _lin3d(src, pp["key"]["w"], pp["key"]["b"]) * src_m3
        val = _lin3d(src, pp["val"]["w"], pp["val"]["b"]) * src_m3
        qry = _lin3d(tgt, pp["qry"]["w"], pp["qry"]["b"]) * tgt_m3
        upd = _mha(qry, key, val, src_bias, num_head)
        # tgt_output(cat(tgt, upd)) with the weight pre-split -> no lane concat.
        return (_lin3d(tgt, pp["out_tgt_w"]) +
                _lin3d(upd, pp["out_upd_w"], pp["out_b"]))

    def intra(pp, v, q, num_head):
        # masked means (APPLY_MASK branch of the reference)
        v_mean = jnp.sum(v * vm3, axis=1) / jnp.sum(vm, axis=1, keepdims=True)
        q_mean = jnp.sum(q * qm3, axis=1) / jnp.sum(qm, axis=1, keepdims=True)
        v4q_gate = _sigmoid(_lin2d(v_mean, pp["v4q_gate"]["w"],
                                   pp["v4q_gate"]["b"]))[:, None, :]
        q4v_gate = _sigmoid(_lin2d(q_mean, pp["q4v_gate"]["w"],
                                   pp["q4v_gate"]["b"]))[:, None, :]
        gv = 1.0 + q4v_gate   # gates the v-side q/k/v (as in the reference)
        gq = 1.0 + v4q_gate   # gates the q-side q/k/v
        pv, pq = pp["v"], pp["q"]
        v_key = gv * (_lin3d(v, pv["key"]["w"], pv["key"]["b"]) * vm3)
        v_qry = gv * (_lin3d(v, pv["qry"]["w"], pv["qry"]["b"]) * vm3)
        v_val = gv * (_lin3d(v, pv["val"]["w"], pv["val"]["b"]) * vm3)
        q_key = gq * (_lin3d(q, pq["key"]["w"], pq["key"]["b"]) * qm3)
        q_qry = gq * (_lin3d(q, pq["qry"]["w"], pq["qry"]["b"]) * qm3)
        q_val = gq * (_lin3d(q, pq["val"]["w"], pq["val"]["b"]) * qm3)
        v_upd = _mha(v_qry, v_key, v_val, v_bias, num_head)
        q_upd = _mha(q_qry, q_key, q_val, q_bias, num_head)
        return (_lin3d(v + v_upd, pp["v_output"]["w"], pp["v_output"]["b"]),
                _lin3d(q + q_upd, pp["q_output"]["w"], pp["q_output"]["b"]))

    # Top-level projections (previously a separate "dual linear" pallas_call).
    v = _lin3d(v_in, P["v_lin"]["w"], P["v_lin"]["b"])
    q = _lin3d(q_in, P["q_lin"]["w"], P["q_lin"]["b"])

    v_container = [v]
    q_container = [q]
    result_v = v
    result_q = q
    for _ in range(num_block):   # static unroll; everything stays on-chip
        q1 = one_side(P["v2q_interBlock"], v_container[-1], q_container[-1],
                      vm3, qm3, v_bias, num_inter_head)
        q_container.append(q1)
        v1 = one_side(P["q2v_interBlock"], q_container[-1] + q_container[-2],
                      v_container[-1], qm3, vm3, q_bias, num_inter_head)
        v_container.append(v1)
        v2, q2 = intra(P["intraBlock"], v_container[-1] + v_container[-2],
                       q_container[-1] + q_container[-2], num_intra_head)
        v_container.append(v2)
        q_container.append(q2)
        result_v = result_v + v1 + v2
        result_q = result_q + q1 + q2
        v_container.append(v_container[-1] + v_container[-2] + v_container[-3])
        q_container.append(q_container[-1] + q_container[-2] + q_container[-3])

    ov_ref[...] = result_v
    oq_ref[...] = result_q


# --------------------------------- wrapper ------------------------------------
def single_block_forward(params, v, q, v_mask, q_mask, *, num_block,
                         output_size, num_inter_head, num_intra_head):
    leaves, treedef = jax.tree_util.tree_flatten(params)
    B, No, _ = v.shape
    _, Nl, _ = q.shape
    kern = functools.partial(
        _single_block_kernel, treedef=treedef, n_leaves=len(leaves),
        num_block=num_block, num_inter_head=num_inter_head,
        num_intra_head=num_intra_head)
    # TODO(synk): on v7x the independent v/q halves could be sharded over the 2
    # TensorCores (core_map / 2-wide parallel grid); kept single-core since it is
    # a serial loop on v5e/v6e.  Shapes fit VMEM trivially so no grid/tiling.
    return pl.pallas_call(
        kern,
        out_shape=(jax.ShapeDtypeStruct((B, No, output_size), jnp.float32),
                   jax.ShapeDtypeStruct((B, Nl, output_size), jnp.float32)),
        in_specs=[_vmem_spec() for _ in range(4 + len(leaves))],
        out_specs=(_vmem_spec(), _vmem_spec()),
    )(v.astype(jnp.float32), q.astype(jnp.float32),
      v_mask.astype(jnp.float32), q_mask.astype(jnp.float32), *leaves)


# ------------------------------ parameters -----------------------------------
def init_fc(key, in_size, out_size, scale=0.05):
    # TODO(synk): weight_norm is only a reparameterization of the Linear weight;
    # with synthetic weights it is folded into a plain (W, b).  Stored
    # pre-transposed as [in, out]; bias as [1, out]; drop=0.0 -> identity.
    kw, kb = jax.random.split(key)
    return {
        "w": scale * jax.random.normal(kw, (in_size, out_size), jnp.float32),
        "b": scale * jax.random.normal(kb, (1, out_size), jnp.float32),
    }


def _split_cols(fc, sizes):
    outs, off = [], 0
    for s in sizes:
        outs.append({"w": fc["w"][:, off:off + s], "b": fc["b"][:, off:off + s]})
        off += s
    return outs


def init_one_side(key, src_size, tgt_size, output_size, num_head):
    k1, k2, k3 = jax.random.split(key, 3)
    src_lin = init_fc(k1, src_size, output_size * 2)        # [key | val]
    tgt_lin = init_fc(k2, tgt_size, output_size)            # qry
    tgt_output = init_fc(k3, output_size + tgt_size, output_size)
    key_fc, val_fc = _split_cols(src_lin, [output_size, output_size])
    inv_scale = 1.0 / float(output_size // num_head) ** 0.5
    return {
        # 1/sqrt(d) folded into the key projection (attention scores unchanged).
        "key": {"w": key_fc["w"] * inv_scale, "b": key_fc["b"] * inv_scale},
        "val": val_fc,
        "qry": tgt_lin,
        # tgt_output weight split along its input dim: rows for tgt / tgt_update.
        "out_tgt_w": tgt_output["w"][:tgt_size, :],
        "out_upd_w": tgt_output["w"][tgt_size:, :],
        "out_b": tgt_output["b"],
    }


def init_intra(key, v_size, q_size, output_size, num_head):
    ks = jax.random.split(key, 6)
    O = output_size
    inv_scale = 1.0 / float(O // num_head) ** 0.5

    def split3(fc):  # reference split order: key, qry, val
        key_fc, qry_fc, val_fc = _split_cols(fc, [O, O, O])
        return {
            "key": {"w": key_fc["w"] * inv_scale, "b": key_fc["b"] * inv_scale},
            "qry": qry_fc,
            "val": val_fc,
        }

    return {
        "v4q_gate": init_fc(ks[0], v_size, O),
        "q4v_gate": init_fc(ks[1], q_size, O),
        "v": split3(init_fc(ks[2], v_size, O * 3)),
        "q": split3(init_fc(ks[3], q_size, O * 3)),
        "v_output": init_fc(ks[4], O, O),
        "q_output": init_fc(ks[5], O, O),
    }


def init_single_block(key, v_size, q_size, output_size, num_inter_head,
                      num_intra_head):
    ks = jax.random.split(key, 5)
    return {
        "v_lin": init_fc(ks[0], v_size, output_size),
        "q_lin": init_fc(ks[1], q_size, output_size),
        "v2q_interBlock": init_one_side(ks[2], output_size, output_size,
                                        output_size, num_inter_head),
        "q2v_interBlock": init_one_side(ks[3], output_size, output_size,
                                        output_size, num_inter_head),
        "intraBlock": init_intra(ks[4], output_size, output_size, output_size,
                                 num_intra_head),
    }


# --------------------------------- main ---------------------------------------
if __name__ == "__main__":
    key = jax.random.PRNGKey(0)
    B, num_obj, max_len = 2, 8, 8
    v_size = q_size = 32
    output_size = 32
    num_inter_head = 2
    num_intra_head = 2
    num_block = 1

    kp, kv, kq = jax.random.split(key, 3)
    params = init_single_block(kp, v_size, q_size, output_size,
                               num_inter_head, num_intra_head)
    v = jax.random.normal(kv, (B, num_obj, v_size), jnp.float32)
    q = jax.random.normal(kq, (B, max_len, q_size), jnp.float32)
    v_lens = jnp.array([num_obj, 5])
    q_lens = jnp.array([max_len, 6])
    v_mask = (jnp.arange(num_obj)[None, :] < v_lens[:, None]).astype(jnp.float32)
    q_mask = (jnp.arange(max_len)[None, :] < q_lens[:, None]).astype(jnp.float32)

    forward = jax.jit(functools.partial(
        single_block_forward, num_block=num_block, output_size=output_size,
        num_inter_head=num_inter_head, num_intra_head=num_intra_head))

    out_v, out_q = forward(params, v, q, v_mask, q_mask)
    jax.block_until_ready((out_v, out_q))

    assert out_v.shape == (B, num_obj, output_size)
    assert out_q.shape == (B, max_len, output_size)
    assert bool(jnp.all(jnp.isfinite(out_v))) and bool(jnp.all(jnp.isfinite(out_q)))
    print("KERNEL_OK")
</pallas_src>

<mosaic_0001>
module attributes {stable_mosaic.version = 11 : i64} {
  func.func @_single_block_kernel(%arg0: memref<2x8x32xf32, #tpu.memory_space<vmem>>, %arg1: memref<2x8x32xf32, #tpu.memory_space<vmem>>, %arg2: memref<2x8xf32, #tpu.memory_space<vmem>>, %arg3: memref<2x8xf32, #tpu.memory_space<vmem>>, %arg4: memref<1x32xf32, #tpu.memory_space<vmem>>, %arg5: memref<32x32xf32, #tpu.memory_space<vmem>>, %arg6: memref<1x32xf32, #tpu.memory_space<vmem>>, %arg7: memref<32x32xf32, #tpu.memory_space<vmem>>, %arg8: memref<1x32xf32, #tpu.memory_space<vmem>>, %arg9: memref<32x32xf32, #tpu.memory_space<vmem>>, %arg10: memref<1x32xf32, #tpu.memory_space<vmem>>, %arg11: memref<32x32xf32, #tpu.memory_space<vmem>>, %arg12: memref<1x32xf32, #tpu.memory_space<vmem>>, %arg13: memref<32x32xf32, #tpu.memory_space<vmem>>, %arg14: memref<1x32xf32, #tpu.memory_space<vmem>>, %arg15: memref<32x32xf32, #tpu.memory_space<vmem>>, %arg16: memref<1x32xf32, #tpu.memory_space<vmem>>, %arg17: memref<32x32xf32, #tpu.memory_space<vmem>>, %arg18: memref<1x32xf32, #tpu.memory_space<vmem>>, %arg19: memref<32x32xf32, #tpu.memory_space<vmem>>, %arg20: memref<1x32xf32, #tpu.memory_space<vmem>>, %arg21: memref<32x32xf32, #tpu.memory_space<vmem>>, %arg22: memref<1x32xf32, #tpu.memory_space<vmem>>, %arg23: memref<32x32xf32, #tpu.memory_space<vmem>>, %arg24: memref<1x32xf32, #tpu.memory_space<vmem>>, %arg25: memref<32x32xf32, #tpu.memory_space<vmem>>, %arg26: memref<1x32xf32, #tpu.memory_space<vmem>>, %arg27: memref<32x32xf32, #tpu.memory_space<vmem>>, %arg28: memref<32x32xf32, #tpu.memory_space<vmem>>, %arg29: memref<1x32xf32, #tpu.memory_space<vmem>>, %arg30: memref<32x32xf32, #tpu.memory_space<vmem>>, %arg31: memref<1x32xf32, #tpu.memory_space<vmem>>, %arg32: memref<32x32xf32, #tpu.memory_space<vmem>>, %arg33: memref<1x32xf32, #tpu.memory_space<vmem>>, %arg34: memref<32x32xf32, #tpu.memory_space<vmem>>, %arg35: memref<1x32xf32, #tpu.memory_space<vmem>>, %arg36: memref<32x32xf32, #tpu.memory_space<vmem>>, %arg37: memref<1x32xf32, #tpu.memory_space<vmem>>, %arg38: memref<32x32xf32, #tpu.memory_space<vmem>>, %arg39: memref<32x32xf32, #tpu.memory_space<vmem>>, %arg40: memref<1x32xf32, #tpu.memory_space<vmem>>, %arg41: memref<32x32xf32, #tpu.memory_space<vmem>>, %arg42: memref<1x32xf32, #tpu.memory_space<vmem>>, %arg43: memref<32x32xf32, #tpu.memory_space<vmem>>, %arg44: memref<1x32xf32, #tpu.memory_space<vmem>>, %arg45: memref<32x32xf32, #tpu.memory_space<vmem>>, %arg46: memref<2x8x32xf32, #tpu.memory_space<vmem>>, %arg47: memref<2x8x32xf32, #tpu.memory_space<vmem>>) attributes {dimension_semantics = [], scalar_prefetch = 0 : i64, scratch_operands = 0 : i64, tpu.core_type = #tpu.core_type<tc>} {
    %c0 = arith.constant 0 : index
    %c0_0 = arith.constant 0 : index
    %0 = vector.load %arg4[%c0, %c0_0] : memref<1x32xf32, #tpu.memory_space<vmem>>, vector<1x32xf32>
    %c0_1 = arith.constant 0 : index
    %c0_2 = arith.constant 0 : index
    %1 = vector.load %arg5[%c0_1, %c0_2] : memref<32x32xf32, #tpu.memory_space<vmem>>, vector<32x32xf32>
    %c0_3 = arith.constant 0 : index
    %c0_4 = arith.constant 0 : index
    %2 = vector.load %arg6[%c0_3, %c0_4] : memref<1x32xf32, #tpu.memory_space<vmem>>, vector<1x32xf32>
    %c0_5 = arith.constant 0 : index
    %c0_6 = arith.constant 0 : index
    %3 = vector.load %arg7[%c0_5, %c0_6] : memref<32x32xf32, #tpu.memory_space<vmem>>, vector<32x32xf32>
    %c0_7 = arith.constant 0 : index
    %c0_8 = arith.constant 0 : index
    %4 = vector.load %arg8[%c0_7, %c0_8] : memref<1x32xf32, #tpu.memory_space<vmem>>, vector<1x32xf32>
    %c0_9 = arith.constant 0 : index
    %c0_10 = arith.constant 0 : index
    %5 = vector.load %arg9[%c0_9, %c0_10] : memref<32x32xf32, #tpu.memory_space<vmem>>, vector<32x32xf32>
    %c0_11 = arith.constant 0 : index
    %c0_12 = arith.constant 0 : index
    %6 = vector.load %arg10[%c0_11, %c0_12] : memref<1x32xf32, #tpu.memory_space<vmem>>, vector<1x32xf32>
    %c0_13 = arith.constant 0 : index
    %c0_14 = arith.constant 0 : index
    %7 = vector.load %arg11[%c0_13, %c0_14] : memref<32x32xf32, #tpu.memory_space<vmem>>, vector<32x32xf32>
    %c0_15 = arith.constant 0 : index
    %c0_16 = arith.constant 0 : index
    %8 = vector.load %arg12[%c0_15, %c0_16] : memref<1x32xf32, #tpu.memory_space<vmem>>, vector<1x32xf32>
    %c0_17 = arith.constant 0 : index
    %c0_18 = arith.constant 0 : index
    %9 = vector.load %arg13[%c0_17, %c0_18] : memref<32x32xf32, #tpu.memory_space<vmem>>, vector<32x32xf32>
    %c0_19 = arith.constant 0 : index
    %c0_20 = arith.constant 0 : index
    %10 = vector.load %arg14[%c0_19, %c0_20] : memref<1x32xf32, #tpu.memory_space<vmem>>, vector<1x32xf32>
    %c0_21 = arith.constant 0 : index
    %c0_22 = arith.constant 0 : index
    %11 = vector.load %arg15[%c0_21, %c0_22] : memref<32x32xf32, #tpu.memory_space<vmem>>, vector<32x32xf32>
    %c0_23 = arith.constant 0 : index
    %c0_24 = arith.constant 0 : index
    %12 = vector.load %arg16[%c0_23, %c0_24] : memref<1x32xf32, #tpu.memory_space<vmem>>, vector<1x32xf32>
    %c0_25 = arith.constant 0 : index
    %c0_26 = arith.constant 0 : index
    %13 = vector.load %arg17[%c0_25, %c0_26] : memref<32x32xf32, #tpu.memory_space<vmem>>, vector<32x32xf32>
    %c0_27 = arith.constant 0 : index
    %c0_28 = arith.constant 0 : index
    %14 = vector.load %arg18[%c0_27, %c0_28] : memref<1x32xf32, #tpu.memory_space<vmem>>, vector<1x32xf32>
    %c0_29 = arith.constant 0 : index
    %c0_30 = arith.constant 0 : index
    %15 = vector.load %arg19[%c0_29, %c0_30] : memref<32x32xf32, #tpu.memory_space<vmem>>, vector<32x32xf32>
    %c0_31 = arith.constant 0 : index
    %c0_32 = arith.constant 0 : index
    %16 = vector.load %arg20[%c0_31, %c0_32] : memref<1x32xf32, #tpu.memory_space<vmem>>, vector<1x32xf32>
    %c0_33 = arith.constant 0 : index
    %c0_34 = arith.constant 0 : index
    %17 = vector.load %arg21[%c0_33, %c0_34] : memref<32x32xf32, #tpu.memory_space<vmem>>, vector<32x32xf32>
    %c0_35 = arith.constant 0 : index
    %c0_36 = arith.constant 0 : index
    %18 = vector.load %arg22[%c0_35, %c0_36] : memref<1x32xf32, #tpu.memory_space<vmem>>, vector<1x32xf32>
    %c0_37 = arith.constant 0 : index
    %c0_38 = arith.constant 0 : index
    %19 = vector.load %arg23[%c0_37, %c0_38] : memref<32x32xf32, #tpu.memory_space<vmem>>, vector<32x32xf32>
    %c0_39 = arith.constant 0 : index
    %c0_40 = arith.constant 0 : index
    %20 = vector.load %arg24[%c0_39, %c0_40] : memref<1x32xf32, #tpu.memory_space<vmem>>, vector<1x32xf32>
    %c0_41 = arith.constant 0 : index
    %c0_42 = arith.constant 0 : index
    %21 = vector.load %arg25[%c0_41, %c0_42] : memref<32x32xf32, #tpu.memory_space<vmem>>, vector<32x32xf32>
    %c0_43 = arith.constant 0 : index
    %c0_44 = arith.constant 0 : index
    %22 = vector.load %arg26[%c0_43, %c0_44] : memref<1x32xf32, #tpu.memory_space<vmem>>, vector<1x32xf32>
    %c0_45 = arith.constant 0 : index
    %c0_46 = arith.constant 0 : index
    %23 = vector.load %arg27[%c0_45, %c0_46] : memref<32x32xf32, #tpu.memory_space<vmem>>, vector<32x32xf32>
    %c0_47 = arith.constant 0 : index
    %c0_48 = arith.constant 0 : index
    %24 = vector.load %arg28[%c0_47, %c0_48] : memref<32x32xf32, #tpu.memory_space<vmem>>, vector<32x32xf32>
    %c0_49 = arith.constant 0 : index
    %c0_50 = arith.constant 0 : index
    %25 = vector.load %arg29[%c0_49, %c0_50] : memref<1x32xf32, #tpu.memory_space<vmem>>, vector<1x32xf32>
    %c0_51 = arith.constant 0 : index
    %c0_52 = arith.constant 0 : index
    %26 = vector.load %arg30[%c0_51, %c0_52] : memref<32x32xf32, #tpu.memory_space<vmem>>, vector<32x32xf32>
    %c0_53 = arith.constant 0 : index
    %c0_54 = arith.constant 0 : index
    %27 = vector.load %arg31[%c0_53, %c0_54] : memref<1x32xf32, #tpu.memory_space<vmem>>, vector<1x32xf32>
    %c0_55 = arith.constant 0 : index
    %c0_56 = arith.constant 0 : index
    %28 = vector.load %arg32[%c0_55, %c0_56] : memref<32x32xf32, #tpu.memory_space<vmem>>, vector<32x32xf32>
    %c0_57 = arith.constant 0 : index
    %c0_58 = arith.constant 0 : index
    %29 = vector.load %arg33[%c0_57, %c0_58] : memref<1x32xf32, #tpu.memory_space<vmem>>, vector<1x32xf32>
    %c0_59 = arith.constant 0 : index
    %c0_60 = arith.constant 0 : index
    %30 = vector.load %arg34[%c0_59, %c0_60] : memref<32x32xf32, #tpu.memory_space<vmem>>, vector<32x32xf32>
    %c0_61 = arith.constant 0 : index
    %c0_62 = arith.constant 0 : index
    %31 = vector.load %arg35[%c0_61, %c0_62] : memref<1x32xf32, #tpu.memory_space<vmem>>, vector<1x32xf32>
    %c0_63 = arith.constant 0 : index
    %c0_64 = arith.constant 0 : index
    %32 = vector.load %arg36[%c0_63, %c0_64] : memref<32x32xf32, #tpu.memory_space<vmem>>, vector<32x32xf32>
    %c0_65 = arith.constant 0 : index
    %c0_66 = arith.constant 0 : index
    %33 = vector.load %arg37[%c0_65, %c0_66] : memref<1x32xf32, #tpu.memory_space<vmem>>, vector<1x32xf32>
    %c0_67 = arith.constant 0 : index
    %c0_68 = arith.constant 0 : index
    %34 = vector.load %arg38[%c0_67, %c0_68] : memref<32x32xf32, #tpu.memory_space<vmem>>, vector<32x32xf32>
    %c0_69 = arith.constant 0 : index
    %c0_70 = arith.constant 0 : index
    %35 = vector.load %arg39[%c0_69, %c0_70] : memref<32x32xf32, #tpu.memory_space<vmem>>, vector<32x32xf32>
    %c0_71 = arith.constant 0 : index
    %c0_72 = arith.constant 0 : index
    %36 = vector.load %arg40[%c0_71, %c0_72] : memref<1x32xf32, #tpu.memory_space<vmem>>, vector<1x32xf32>
    %c0_73 = arith.constant 0 : index
    %c0_74 = arith.constant 0 : index
    %37 = vector.load %arg41[%c0_73, %c0_74] : memref<32x32xf32, #tpu.memory_space<vmem>>, vector<32x32xf32>
    %c0_75 = arith.constant 0 : index
    %c0_76 = arith.constant 0 : index
    %38 = vector.load %arg42[%c0_75, %c0_76] : memref<1x32xf32, #tpu.memory_space<vmem>>, vector<1x32xf32>
    %c0_77 = arith.constant 0 : index
    %c0_78 = arith.constant 0 : index
    %39 = vector.load %arg43[%c0_77, %c0_78] : memref<32x32xf32, #tpu.memory_space<vmem>>, vector<32x32xf32>
    %c0_79 = arith.constant 0 : index
    %c0_80 = arith.constant 0 : index
    %40 = vector.load %arg44[%c0_79, %c0_80] : memref<1x32xf32, #tpu.memory_space<vmem>>, vector<1x32xf32>
    %c0_81 = arith.constant 0 : index
    %c0_82 = arith.constant 0 : index
    %41 = vector.load %arg45[%c0_81, %c0_82] : memref<32x32xf32, #tpu.memory_space<vmem>>, vector<32x32xf32>
    %c0_83 = arith.constant 0 : index
    %c0_84 = arith.constant 0 : index
    %c0_85 = arith.constant 0 : index
    %42 = vector.load %arg0[%c0_83, %c0_84, %c0_85] : memref<2x8x32xf32, #tpu.memory_space<vmem>>, vector<2x8x32xf32>
    %c0_86 = arith.constant 0 : index
    %c0_87 = arith.constant 0 : index
    %c0_88 = arith.constant 0 : index
    %43 = vector.load %arg1[%c0_86, %c0_87, %c0_88] : memref<2x8x32xf32, #tpu.memory_space<vmem>>, vector<2x8x32xf32>
    %c0_89 = arith.constant 0 : index
    %c0_90 = arith.constant 0 : index
    %44 = vector.load %arg2[%c0_89, %c0_90] : memref<2x8xf32, #tpu.memory_space<vmem>>, vector<2x8xf32>
    %c0_91 = arith.constant 0 : index
    %c0_92 = arith.constant 0 : index
    %45 = vector.load %arg3[%c0_91, %c0_92] : memref<2x8xf32, #tpu.memory_space<vmem>>, vector<2x8xf32>
    %46 = vector.shape_cast %44 : vector<2x8xf32> to vector<2x8x1xf32>
    %47 = vector.shape_cast %45 : vector<2x8xf32> to vector<2x8x1xf32>
    %cst = arith.constant 1.000000e+00 : f32
    %48 = vector.broadcast %cst : f32 to vector<2x8xf32>
    %49 = arith.subf %48, %44 : vector<2x8xf32>
    %cst_93 = arith.constant -1.000000e+30 : f32
    %50 = vector.broadcast %cst_93 : f32 to vector<2x8xf32>
    %51 = arith.mulf %49, %50 : vector<2x8xf32>
    %52 = vector.shape_cast %51 : vector<2x8xf32> to vector<2x1x8xf32>
    %cst_94 = arith.constant 1.000000e+00 : f32
    %53 = vector.broadcast %cst_94 : f32 to vector<2x8xf32>
    %54 = arith.subf %53, %45 : vector<2x8xf32>
    %cst_95 = arith.constant -1.000000e+30 : f32
    %55 = vector.broadcast %cst_95 : f32 to vector<2x8xf32>
    %56 = arith.mulf %54, %55 : vector<2x8xf32>
    %57 = vector.shape_cast %56 : vector<2x8xf32> to vector<2x1x8xf32>
    %58 = vector.shape_cast %42 : vector<2x8x32xf32> to vector<16x32xf32>
    %cst_96 = arith.constant dense<0.000000e+00> : vector<16x32xf32>
    %59 = tpu.matmul %58, %41, %cst_96 {dimension_numbers = #tpu.dot_dimension_numbers<[1], [0], [0], [1], [0, 0, 1, 1], [], []>} : vector<16x32xf32>, vector<32x32xf32>, vector<16x32xf32> -> vector<16x32xf32>
    %60 = vector.broadcast %40 : vector<1x32xf32> to vector<16x32xf32>
    %61 = arith.addf %59, %60 : vector<16x32xf32>
    %62 = vector.shape_cast %61 : vector<16x32xf32> to vector<2x8x32xf32>
    %63 = vector.shape_cast %43 : vector<2x8x32xf32> to vector<16x32xf32>
    %cst_97 = arith.constant dense<0.000000e+00> : vector<16x32xf32>
    %64 = tpu.matmul %63, %30, %cst_97 {dimension_numbers = #tpu.dot_dimension_numbers<[1], [0], [0], [1], [0, 0, 1, 1], [], []>} : vector<16x32xf32>, vector<32x32xf32>, vector<16x32xf32> -> vector<16x32xf32>
    %65 = vector.broadcast %29 : vector<1x32xf32> to vector<16x32xf32>
    %66 = arith.addf %64, %65 : vector<16x32xf32>
    %67 = vector.shape_cast %66 : vector<16x32xf32> to vector<2x8x32xf32>
    %68 = vector.shape_cast %62 : vector<2x8x32xf32> to vector<16x32xf32>
    %cst_98 = arith.constant dense<0.000000e+00> : vector<16x32xf32>
    %69 = tpu.matmul %68, %32, %cst_98 {dimension_numbers = #tpu.dot_dimension_numbers<[1], [0], [0], [1], [0, 0, 1, 1], [], []>} : vector<16x32xf32>, vector<32x32xf32>, vector<16x32xf32> -> vector<16x32xf32>
    %70 = vector.broadcast %31 : vector<1x32xf32> to vector<16x32xf32>
    %71 = arith.addf %69, %70 : vector<16x32xf32>
    %72 = vector.shape_cast %71 : vector<16x32xf32> to vector<2x8x32xf32>
    %73 = vector.broadcast %46 : vector<2x8x1xf32> to vector<2x8x32xf32>
    %74 = arith.mulf %72, %73 : vector<2x8x32xf32>
    %75 = vector.shape_cast %62 : vector<2x8x32xf32> to vector<16x32xf32>
    %cst_99 = arith.constant dense<0.000000e+00> : vector<16x32xf32>
    %76 = tpu.matmul %75, %39, %cst_99 {dimension_numbers = #tpu.dot_dimension_numbers<[1], [0], [0], [1], [0, 0, 1, 1], [], []>} : vector<16x32xf32>, vector<32x32xf32>, vector<16x32xf32> -> vector<16x32xf32>
    %77 = vector.broadcast %38 : vector<1x32xf32> to vector<16x32xf32>
    %78 = arith.addf %76, %77 : vector<16x32xf32>
    %79 = vector.shape_cast %78 : vector<16x32xf32> to vector<2x8x32xf32>
    %80 = vector.broadcast %46 : vector<2x8x1xf32> to vector<2x8x32xf32>
    %81 = arith.mulf %79, %80 : vector<2x8x32xf32>
    %82 = vector.shape_cast %67 : vector<2x8x32xf32> to vector<16x32xf32>
    %cst_100 = arith.constant dense<0.000000e+00> : vector<16x32xf32>
    %83 = tpu.matmul %82, %37, %cst_100 {dimension_numbers = #tpu.dot_dimension_numbers<[1], [0], [0], [1], [0, 0, 1, 1], [], []>} : vector<16x32xf32>, vector<32x32xf32>, vector<16x32xf32> -> vector<16x32xf32>
    %84 = vector.broadcast %36 : vector<1x32xf32> to vector<16x32xf32>
    %85 = arith.addf %83, %84 : vector<16x32xf32>
    %86 = vector.shape_cast %85 : vector<16x32xf32> to vector<2x8x32xf32>
    %87 = vector.broadcast %47 : vector<2x8x1xf32> to vector<2x8x32xf32>
    %88 = arith.mulf %86, %87 : vector<2x8x32xf32>
    %89 = vector.extract_strided_slice %88 {offsets = [0, 0, 0], sizes = [2, 8, 16], strides = [1, 1, 1]} : vector<2x8x32xf32> to vector<2x8x16xf32>
    %90 = vector.extract_strided_slice %74 {offsets = [0, 0, 0], sizes = [2, 8, 16], strides = [1, 1, 1]} : vector<2x8x32xf32> to vector<2x8x16xf32>
    "tpu.trace_start"() <{level = 10 : i32, message = "btd,bsd->bts"}> : () -> ()
    %cst_101 = arith.constant dense<0.000000e+00> : vector<2x8x8xf32>
    %91 = tpu.matmul %89, %90, %cst_101 {dimension_numbers = #tpu.dot_dimension_numbers<[2], [2], [1], [1], [0, 0, 0, 1, 1, 1], [0], [0]>} : vector<2x8x16xf32>, vector<2x8x16xf32>, vector<2x8x8xf32> -> vector<2x8x8xf32>
    "tpu.trace_stop"() : () -> ()
    %92 = vector.broadcast %52 : vector<2x1x8xf32> to vector<2x8x8xf32>
    %93 = arith.addf %91, %92 : vector<2x8x8xf32>
    %cst_102 = arith.constant dense<0xFF800000> : vector<2x8xf32>
    %94 = vector.multi_reduction <maximumf>, %93, %cst_102 [2] : vector<2x8x8xf32> to vector<2x8xf32>
    %95 = vector.shape_cast %94 : vector<2x8xf32> to vector<2x8x1xf32>
    %96 = vector.broadcast %95 : vector<2x8x1xf32> to vector<2x8x8xf32>
    %97 = arith.subf %93, %96 : vector<2x8x8xf32>
    %98 = math.exp %97 : vector<2x8x8xf32>
    %cst_103 = arith.constant dense<0.000000e+00> : vector<2x8xf32>
    %99 = vector.multi_reduction <add>, %98, %cst_103 [2] : vector<2x8x8xf32> to vector<2x8xf32>
    %100 = vector.shape_cast %99 : vector<2x8xf32> to vector<2x8x1xf32>
    %101 = tpu.reciprocal %100 {approx = true} : vector<2x8x1xf32> -> vector<2x8x1xf32>
    %102 = vector.broadcast %101 : vector<2x8x1xf32> to vector<2x8x8xf32>
    %103 = arith.mulf %98, %102 : vector<2x8x8xf32>
    %104 = vector.extract_strided_slice %81 {offsets = [0, 0, 0], sizes = [2, 8, 16], strides = [1, 1, 1]} : vector<2x8x32xf32> to vector<2x8x16xf32>
    "tpu.trace_start"() <{level = 10 : i32, message = "bts,bsd->btd"}> : () -> ()
    %cst_104 = arith.constant dense<0.000000e+00> : vector<2x8x16xf32>
    %105 = tpu.matmul %103, %104, %cst_104 {dimension_numbers = #tpu.dot_dimension_numbers<[2], [1], [1], [2], [0, 0, 0, 1, 1, 2], [0], [0]>} : vector<2x8x8xf32>, vector<2x8x16xf32>, vector<2x8x16xf32> -> vector<2x8x16xf32>
    "tpu.trace_stop"() : () -> ()
    %106 = vector.extract_strided_slice %88 {offsets = [0, 0, 16], sizes = [2, 8, 16], strides = [1, 1, 1]} : vector<2x8x32xf32> to vector<2x8x16xf32>
    %107 = vector.extract_strided_slice %74 {offsets = [0, 0, 16], sizes = [2, 8, 16], strides = [1, 1, 1]} : vector<2x8x32xf32> to vector<2x8x16xf32>
    "tpu.trace_start"() <{level = 10 : i32, message = "btd,bsd->bts"}> : () -> ()
    %cst_105 = arith.constant dense<0.000000e+00> : vector<2x8x8xf32>
    %108 = tpu.matmul %106, %107, %cst_105 {dimension_numbers = #tpu.dot_dimension_numbers<[2], [2], [1], [1], [0, 0, 0, 1, 1, 1], [0], [0]>} : vector<2x8x16xf32>, vector<2x8x16xf32>, vector<2x8x8xf32> -> vector<2x8x8xf32>
    "tpu.trace_stop"() : () -> ()
    %109 = vector.broadcast %52 : vector<2x1x8xf32> to vector<2x8x8xf32>
    %110 = arith.addf %108, %109 : vector<2x8x8xf32>
    %cst_106 = arith.constant dense<0xFF800000> : vector<2x8xf32>
    %111 = vector.multi_reduction <maximumf>, %110, %cst_106 [2] : vector<2x8x8xf32> to vector<2x8xf32>
    %112 = vector.shape_cast %111 : vector<2x8xf32> to vector<2x8x1xf32>
    %113 = vector.broadcast %112 : vector<2x8x1xf32> to vector<2x8x8xf32>
    %114 = arith.subf %110, %113 : vector<2x8x8xf32>
    %115 = math.exp %114 : vector<2x8x8xf32>
    %cst_107 = arith.constant dense<0.000000e+00> : vector<2x8xf32>
    %116 = vector.multi_reduction <add>, %115, %cst_107 [2] : vector<2x8x8xf32> to vector<2x8xf32>
    %117 = vector.shape_cast %116 : vector<2x8xf32> to vector<2x8x1xf32>
    %118 = tpu.reciprocal %117 {approx = true} : vector<2x8x1xf32> -> vector<2x8x1xf32>
    %119 = vector.broadcast %118 : vector<2x8x1xf32> to vector<2x8x8xf32>
    %120 = arith.mulf %115, %119 : vector<2x8x8xf32>
    %121 = vector.extract_strided_slice %81 {offsets = [0, 0, 16], sizes = [2, 8, 16], strides = [1, 1, 1]} : vector<2x8x32xf32> to vector<2x8x16xf32>
    "tpu.trace_start"() <{level = 10 : i32, message = "bts,bsd->btd"}> : () -> ()
    %cst_108 = arith.constant dense<0.000000e+00> : vector<2x8x16xf32>
    %122 = tpu.matmul %120, %121, %cst_108 {dimension_numbers = #tpu.dot_dimension_numbers<[2], [1], [1], [2], [0, 0, 0, 1, 1, 2], [0], [0]>} : vector<2x8x8xf32>, vector<2x8x16xf32>, vector<2x8x16xf32> -> vector<2x8x16xf32>
    "tpu.trace_stop"() : () -> ()
    %123 = tpu.concatenate %105, %122 in 2 : vector<2x8x16xf32>, vector<2x8x16xf32> -> vector<2x8x32xf32>
    %124 = vector.shape_cast %67 : vector<2x8x32xf32> to vector<16x32xf32>
    %cst_109 = arith.constant dense<0.000000e+00> : vector<16x32xf32>
    %125 = tpu.matmul %124, %34, %cst_109 {dimension_numbers = #tpu.dot_dimension_numbers<[1], [0], [0], [1], [0, 0, 1, 1], [], []>} : vector<16x32xf32>, vector<32x32xf32>, vector<16x32xf32> -> vector<16x32xf32>
    %126 = vector.shape_cast %125 : vector<16x32xf32> to vector<2x8x32xf32>
    %127 = vector.shape_cast %123 : vector<2x8x32xf32> to vector<16x32xf32>
    %cst_110 = arith.constant dense<0.000000e+00> : vector<16x32xf32>
    %128 = tpu.matmul %127, %35, %cst_110 {dimension_numbers = #tpu.dot_dimension_numbers<[1], [0], [0], [1], [0, 0, 1, 1], [], []>} : vector<16x32xf32>, vector<32x32xf32>, vector<16x32xf32> -> vector<16x32xf32>
    %129 = vector.broadcast %33 : vector<1x32xf32> to vector<16x32xf32>
    %130 = arith.addf %128, %129 : vector<16x32xf32>
    %131 = vector.shape_cast %130 : vector<16x32xf32> to vector<2x8x32xf32>
    %132 = arith.addf %126, %131 : vector<2x8x32xf32>
    %133 = arith.addf %132, %67 : vector<2x8x32xf32>
    %134 = vector.shape_cast %133 : vector<2x8x32xf32> to vector<16x32xf32>
    %cst_111 = arith.constant dense<0.000000e+00> : vector<16x32xf32>
    %135 = tpu.matmul %134, %21, %cst_111 {dimension_numbers = #tpu.dot_dimension_numbers<[1], [0], [0], [1], [0, 0, 1, 1], [], []>} : vector<16x32xf32>, vector<32x32xf32>, vector<16x32xf32> -> vector<16x32xf32>
    %136 = vector.broadcast %20 : vector<1x32xf32> to vector<16x32xf32>
    %137 = arith.addf %135, %136 : vector<16x32xf32>
    %138 = vector.shape_cast %137 : vector<16x32xf32> to vector<2x8x32xf32>
    %139 = vector.broadcast %47 : vector<2x8x1xf32> to vector<2x8x32xf32>
    %140 = arith.mulf %138, %139 : vector<2x8x32xf32>
    %141 = vector.shape_cast %133 : vector<2x8x32xf32> to vector<16x32xf32>
    %cst_112 = arith.constant dense<0.000000e+00> : vector<16x32xf32>
    %142 = tpu.matmul %141, %28, %cst_112 {dimension_numbers = #tpu.dot_dimension_numbers<[1], [0], [0], [1], [0, 0, 1, 1], [], []>} : vector<16x32xf32>, vector<32x32xf32>, vector<16x32xf32> -> vector<16x32xf32>
    %143 = vector.broadcast %27 : vector<1x32xf32> to vector<16x32xf32>
    %144 = arith.addf %142, %143 : vector<16x32xf32>
    %145 = vector.shape_cast %144 : vector<16x32xf32> to vector<2x8x32xf32>
    %146 = vector.broadcast %47 : vector<2x8x1xf32> to vector<2x8x32xf32>
    %147 = arith.mulf %145, %146 : vector<2x8x32xf32>
    %148 = vector.shape_cast %62 : vector<2x8x32xf32> to vector<16x32xf32>
    %cst_113 = arith.constant dense<0.000000e+00> : vector<16x32xf32>
    %149 = tpu.matmul %148, %26, %cst_113 {dimension_numbers = #tpu.dot_dimension_numbers<[1], [0], [0], [1], [0, 0, 1, 1], [], []>} : vector<16x32xf32>, vector<32x32xf32>, vector<16x32xf32> -> vector<16x32xf32>
    %150 = vector.broadcast %25 : vector<1x32xf32> to vector<16x32xf32>
    %151 = arith.addf %149, %150 : vector<16x32xf32>
    %152 = vector.shape_cast %151 : vector<16x32xf32> to vector<2x8x32xf32>
    %153 = vector.broadcast %46 : vector<2x8x1xf32> to vector<2x8x32xf32>
    %154 = arith.mulf %152, %153 : vector<2x8x32xf32>
    %155 = vector.extract_strided_slice %154 {offsets = [0, 0, 0], sizes = [2, 8, 16], strides = [1, 1, 1]} : vector<2x8x32xf32> to vector<2x8x16xf32>
    %156 = vector.extract_strided_slice %140 {offsets = [0, 0, 0], sizes = [2, 8, 16], strides = [1, 1, 1]} : vector<2x8x32xf32> to vector<2x8x16xf32>
    "tpu.trace_start"() <{level = 10 : i32, message = "btd,bsd->bts"}> : () -> ()
    %cst_114 = arith.constant dense<0.000000e+00> : vector<2x8x8xf32>
    %157 = tpu.matmul %155, %156, %cst_114 {dimension_numbers = #tpu.dot_dimension_numbers<[2], [2], [1], [1], [0, 0, 0, 1, 1, 1], [0], [0]>} : vector<2x8x16xf32>, vector<2x8x16xf32>, vector<2x8x8xf32> -> vector<2x8x8xf32>
    "tpu.trace_stop"() : () -> ()
    %158 = vector.broadcast %57 : vector<2x1x8xf32> to vector<2x8x8xf32>
    %159 = arith.addf %157, %158 : vector<2x8x8xf32>
    %cst_115 = arith.constant dense<0xFF800000> : vector<2x8xf32>
    %160 = vector.multi_reduction <maximumf>, %159, %cst_115 [2] : vector<2x8x8xf32> to vector<2x8xf32>
    %161 = vector.shape_cast %160 : vector<2x8xf32> to vector<2x8x1xf32>
    %162 = vector.broadcast %161 : vector<2x8x1xf32> to vector<2x8x8xf32>
    %163 = arith.subf %159, %162 : vector<2x8x8xf32>
    %164 = math.exp %163 : vector<2x8x8xf32>
    %cst_116 = arith.constant dense<0.000000e+00> : vector<2x8xf32>
    %165 = vector.multi_reduction <add>, %164, %cst_116 [2] : vector<2x8x8xf32> to vector<2x8xf32>
    %166 = vector.shape_cast %165 : vector<2x8xf32> to vector<2x8x1xf32>
    %167 = tpu.reciprocal %166 {approx = true} : vector<2x8x1xf32> -> vector<2x8x1xf32>
    %168 = vector.broadcast %167 : vector<2x8x1xf32> to vector<2x8x8xf32>
    %169 = arith.mulf %164, %168 : vector<2x8x8xf32>
    %170 = vector.extract_strided_slice %147 {offsets = [0, 0, 0], sizes = [2, 8, 16], strides = [1, 1, 1]} : vector<2x8x32xf32> to vector<2x8x16xf32>
    "tpu.trace_start"() <{level = 10 : i32, message = "bts,bsd->btd"}> : () -> ()
    %cst_117 = arith.constant dense<0.000000e+00> : vector<2x8x16xf32>
    %171 = tpu.matmul %169, %170, %cst_117 {dimension_numbers = #tpu.dot_dimension_numbers<[2], [1], [1], [2], [0, 0, 0, 1, 1, 2], [0], [0]>} : vector<2x8x8xf32>, vector<2x8x16xf32>, vector<2x8x16xf32> -> vector<2x8x16xf32>
    "tpu.trace_stop"() : () -> ()
    %172 = vector.extract_strided_slice %154 {offsets = [0, 0, 16], sizes = [2, 8, 16], strides = [1, 1, 1]} : vector<2x8x32xf32> to vector<2x8x16xf32>
    %173 = vector.extract_strided_slice %140 {offsets = [0, 0, 16], sizes = [2, 8, 16], strides = [1, 1, 1]} : vector<2x8x32xf32> to vector<2x8x16xf32>
    "tpu.trace_start"() <{level = 10 : i32, message = "btd,bsd->bts"}> : () -> ()
    %cst_118 = arith.constant dense<0.000000e+00> : vector<2x8x8xf32>
    %174 = tpu.matmul %172, %173, %cst_118 {dimension_numbers = #tpu.dot_dimension_numbers<[2], [2], [1], [1], [0, 0, 0, 1, 1, 1], [0], [0]>} : vector<2x8x16xf32>, vector<2x8x16xf32>, vector<2x8x8xf32> -> vector<2x8x8xf32>
    "tpu.trace_stop"() : () -> ()
    %175 = vector.broadcast %57 : vector<2x1x8xf32> to vector<2x8x8xf32>
    %176 = arith.addf %174, %175 : vector<2x8x8xf32>
    %cst_119 = arith.constant dense<0xFF800000> : vector<2x8xf32>
    %177 = vector.multi_reduction <maximumf>, %176, %cst_119 [2] : vector<2x8x8xf32> to vector<2x8xf32>
    %178 = vector.shape_cast %177 : vector<2x8xf32> to vector<2x8x1xf32>
    %179 = vector.broadcast %178 : vector<2x8x1xf32> to vector<2x8x8xf32>
    %180 = arith.subf %176, %179 : vector<2x8x8xf32>
    %181 = math.exp %180 : vector<2x8x8xf32>
    %cst_120 = arith.constant dense<0.000000e+00> : vector<2x8xf32>
    %182 = vector.multi_reduction <add>, %181, %cst_120 [2] : vector<2x8x8xf32> to vector<2x8xf32>
    %183 = vector.shape_cast %182 : vector<2x8xf32> to vector<2x8x1xf32>
    %184 = tpu.reciprocal %183 {approx = true} : vector<2x8x1xf32> -> vector<2x8x1xf32>
    %185 = vector.broadcast %184 : vector<2x8x1xf32> to vector<2x8x8xf32>
    %186 = arith.mulf %181, %185 : vector<2x8x8xf32>
    %187 = vector.extract_strided_slice %147 {offsets = [0, 0, 16], sizes = [2, 8, 16], strides = [1, 1, 1]} : vector<2x8x32xf32> to vector<2x8x16xf32>
    "tpu.trace_start"() <{level = 10 : i32, message = "bts,bsd->btd"}> : () -> ()
    %cst_121 = arith.constant dense<0.000000e+00> : vector<2x8x16xf32>
    %188 = tpu.matmul %186, %187, %cst_121 {dimension_numbers = #tpu.dot_dimension_numbers<[2], [1], [1], [2], [0, 0, 0, 1, 1, 2], [0], [0]>} : vector<2x8x8xf32>, vector<2x8x16xf32>, vector<2x8x16xf32> -> vector<2x8x16xf32>
    "tpu.trace_stop"() : () -> ()
    %189 = tpu.concatenate %171, %188 in 2 : vector<2x8x16xf32>, vector<2x8x16xf32> -> vector<2x8x32xf32>
    %190 = vector.shape_cast %62 : vector<2x8x32xf32> to vector<16x32xf32>
    %cst_122 = arith.constant dense<0.000000e+00> : vector<16x32xf32>
    %191 = tpu.matmul %190, %23, %cst_122 {dimension_numbers = #tpu.dot_dimension_numbers<[1], [0], [0], [1], [0, 0, 1, 1], [], []>} : vector<16x32xf32>, vector<32x32xf32>, vector<16x32xf32> -> vector<16x32xf32>
    %192 = vector.shape_cast %191 : vector<16x32xf32> to vector<2x8x32xf32>
    %193 = vector.shape_cast %189 : vector<2x8x32xf32> to vector<16x32xf32>
    %cst_123 = arith.constant dense<0.000000e+00> : vector<16x32xf32>
    %194 = tpu.matmul %193, %24, %cst_123 {dimension_numbers = #tpu.dot_dimension_numbers<[1], [0], [0], [1], [0, 0, 1, 1], [], []>} : vector<16x32xf32>, vector<32x32xf32>, vector<16x32xf32> -> vector<16x32xf32>
    %195 = vector.broadcast %22 : vector<1x32xf32> to vector<16x32xf32>
    %196 = arith.addf %194, %195 : vector<16x32xf32>
    %197 = vector.shape_cast %196 : vector<16x32xf32> to vector<2x8x32xf32>
    %198 = arith.addf %192, %197 : vector<2x8x32xf32>
    %199 = arith.addf %198, %62 : vector<2x8x32xf32>
    %200 = arith.addf %132, %67 : vector<2x8x32xf32>
    %201 = vector.broadcast %46 : vector<2x8x1xf32> to vector<2x8x32xf32>
    %202 = arith.mulf %199, %201 : vector<2x8x32xf32>
    %cst_124 = arith.constant dense<0.000000e+00> : vector<2x32xf32>
    %203 = vector.multi_reduction <add>, %202, %cst_124 [1] : vector<2x8x32xf32> to vector<2x32xf32>
    %cst_125 = arith.constant dense<0.000000e+00> : vector<2xf32>
    %204 = vector.multi_reduction <add>, %44, %cst_125 [1] : vector<2x8xf32> to vector<2xf32>
    %205 = vector.shape_cast %204 : vector<2xf32> to vector<2x1xf32>
    %206 = vector.broadcast %205 : vector<2x1xf32> to vector<2x32xf32>
    %207 = arith.divf %203, %206 : vector<2x32xf32>
    %208 = vector.broadcast %47 : vector<2x8x1xf32> to vector<2x8x32xf32>
    %209 = arith.mulf %200, %208 : vector<2x8x32xf32>
    %cst_126 = arith.constant dense<0.000000e+00> : vector<2x32xf32>
    %210 = vector.multi_reduction <add>, %209, %cst_126 [1] : vector<2x8x32xf32> to vector<2x32xf32>
    %cst_127 = arith.constant dense<0.000000e+00> : vector<2xf32>
    %211 = vector.multi_reduction <add>, %45, %cst_127 [1] : vector<2x8xf32> to vector<2xf32>
    %212 = vector.shape_cast %211 : vector<2xf32> to vector<2x1xf32>
    %213 = vector.broadcast %212 : vector<2x1xf32> to vector<2x32xf32>
    %214 = arith.divf %210, %213 : vector<2x32xf32>
    %cst_128 = arith.constant dense<0.000000e+00> : vector<2x32xf32>
    %215 = tpu.matmul %207, %17, %cst_128 {dimension_numbers = #tpu.dot_dimension_numbers<[1], [0], [0], [1], [0, 0, 1, 1], [], []>} : vector<2x32xf32>, vector<32x32xf32>, vector<2x32xf32> -> vector<2x32xf32>
    %216 = vector.broadcast %16 : vector<1x32xf32> to vector<2x32xf32>
    %217 = arith.addf %215, %216 : vector<2x32xf32>
    %cst_129 = arith.constant 0.000000e+00 : f32
    %218 = vector.broadcast %cst_129 : f32 to vector<2x32xf32>
    %219 = arith.subf %218, %217 : vector<2x32xf32>
    %220 = math.exp %219 : vector<2x32xf32>
    %cst_130 = arith.constant 1.000000e+00 : f32
    %221 = vector.broadcast %cst_130 : f32 to vector<2x32xf32>
    %222 = arith.addf %221, %220 : vector<2x32xf32>
    %223 = tpu.reciprocal %222 {approx = true} : vector<2x32xf32> -> vector<2x32xf32>
    %224 = vector.shape_cast %223 : vector<2x32xf32> to vector<2x1x32xf32>
    %cst_131 = arith.constant dense<0.000000e+00> : vector<2x32xf32>
    %225 = tpu.matmul %214, %7, %cst_131 {dimension_numbers = #tpu.dot_dimension_numbers<[1], [0], [0], [1], [0, 0, 1, 1], [], []>} : vector<2x32xf32>, vector<32x32xf32>, vector<2x32xf32> -> vector<2x32xf32>
    %226 = vector.broadcast %6 : vector<1x32xf32> to vector<2x32xf32>
    %227 = arith.addf %225, %226 : vector<2x32xf32>
    %cst_132 = arith.constant 0.000000e+00 : f32
    %228 = vector.broadcast %cst_132 : f32 to vector<2x32xf32>
    %229 = arith.subf %228, %227 : vector<2x32xf32>
    %230 = math.exp %229 : vector<2x32xf32>
    %cst_133 = arith.constant 1.000000e+00 : f32
    %231 = vector.broadcast %cst_133 : f32 to vector<2x32xf32>
    %232 = arith.addf %231, %230 : vector<2x32xf32>
    %233 = tpu.reciprocal %232 {approx = true} : vector<2x32xf32> -> vector<2x32xf32>
    %234 = vector.shape_cast %233 : vector<2x32xf32> to vector<2x1x32xf32>
    %cst_134 = arith.constant 1.000000e+00 : f32
    %235 = vector.broadcast %cst_134 : f32 to vector<2x1x32xf32>
    %236 = arith.addf %235, %234 : vector<2x1x32xf32>
    %cst_135 = arith.constant 1.000000e+00 : f32
    %237 = vector.broadcast %cst_135 : f32 to vector<2x1x32xf32>
    %238 = arith.addf %237, %224 : vector<2x1x32xf32>
    %239 = vector.shape_cast %199 : vector<2x8x32xf32> to vector<16x32xf32>
    %cst_136 = arith.constant dense<0.000000e+00> : vector<16x32xf32>
    %240 = tpu.matmul %239, %11, %cst_136 {dimension_numbers = #tpu.dot_dimension_numbers<[1], [0], [0], [1], [0, 0, 1, 1], [], []>} : vector<16x32xf32>, vector<32x32xf32>, vector<16x32xf32> -> vector<16x32xf32>
    %241 = vector.broadcast %10 : vector<1x32xf32> to vector<16x32xf32>
    %242 = arith.addf %240, %241 : vector<16x32xf32>
    %243 = vector.shape_cast %242 : vector<16x32xf32> to vector<2x8x32xf32>
    %244 = vector.broadcast %46 : vector<2x8x1xf32> to vector<2x8x32xf32>
    %245 = arith.mulf %243, %244 : vector<2x8x32xf32>
    %246 = vector.broadcast %236 : vector<2x1x32xf32> to vector<2x8x32xf32>
    %247 = arith.mulf %246, %245 : vector<2x8x32xf32>
    %248 = vector.shape_cast %199 : vector<2x8x32xf32> to vector<16x32xf32>
    %cst_137 = arith.constant dense<0.000000e+00> : vector<16x32xf32>
    %249 = tpu.matmul %248, %13, %cst_137 {dimension_numbers = #tpu.dot_dimension_numbers<[1], [0], [0], [1], [0, 0, 1, 1], [], []>} : vector<16x32xf32>, vector<32x32xf32>, vector<16x32xf32> -> vector<16x32xf32>
    %250 = vector.broadcast %12 : vector<1x32xf32> to vector<16x32xf32>
    %251 = arith.addf %249, %250 : vector<16x32xf32>
    %252 = vector.shape_cast %251 : vector<16x32xf32> to vector<2x8x32xf32>
    %253 = vector.broadcast %46 : vector<2x8x1xf32> to vector<2x8x32xf32>
    %254 = arith.mulf %252, %253 : vector<2x8x32xf32>
    %255 = vector.broadcast %236 : vector<2x1x32xf32> to vector<2x8x32xf32>
    %256 = arith.mulf %255, %254 : vector<2x8x32xf32>
    %257 = vector.shape_cast %199 : vector<2x8x32xf32> to vector<16x32xf32>
    %cst_138 = arith.constant dense<0.000000e+00> : vector<16x32xf32>
    %258 = tpu.matmul %257, %15, %cst_138 {dimension_numbers = #tpu.dot_dimension_numbers<[1], [0], [0], [1], [0, 0, 1, 1], [], []>} : vector<16x32xf32>, vector<32x32xf32>, vector<16x32xf32> -> vector<16x32xf32>
    %259 = vector.broadcast %14 : vector<1x32xf32> to vector<16x32xf32>
    %260 = arith.addf %258, %259 : vector<16x32xf32>
    %261 = vector.shape_cast %260 : vector<16x32xf32> to vector<2x8x32xf32>
    %262 = vector.broadcast %46 : vector<2x8x1xf32> to vector<2x8x32xf32>
    %263 = arith.mulf %261, %262 : vector<2x8x32xf32>
    %264 = vector.broadcast %236 : vector<2x1x32xf32> to vector<2x8x32xf32>
    %265 = arith.mulf %264, %263 : vector<2x8x32xf32>
    %266 = vector.shape_cast %200 : vector<2x8x32xf32> to vector<16x32xf32>
    %cst_139 = arith.constant dense<0.000000e+00> : vector<16x32xf32>
    %267 = tpu.matmul %266, %1, %cst_139 {dimension_numbers = #tpu.dot_dimension_numbers<[1], [0], [0], [1], [0, 0, 1, 1], [], []>} : vector<16x32xf32>, vector<32x32xf32>, vector<16x32xf32> -> vector<16x32xf32>
    %268 = vector.broadcast %0 : vector<1x32xf32> to vector<16x32xf32>
    %269 = arith.addf %267, %268 : vector<16x32xf32>
    %270 = vector.shape_cast %269 : vector<16x32xf32> to vector<2x8x32xf32>
    %271 = vector.broadcast %47 : vector<2x8x1xf32> to vector<2x8x32xf32>
    %272 = arith.mulf %270, %271 : vector<2x8x32xf32>
    %273 = vector.broadcast %238 : vector<2x1x32xf32> to vector<2x8x32xf32>
    %274 = arith.mulf %273, %272 : vector<2x8x32xf32>
    %275 = vector.shape_cast %200 : vector<2x8x32xf32> to vector<16x32xf32>
    %cst_140 = arith.constant dense<0.000000e+00> : vector<16x32xf32>
    %276 = tpu.matmul %275, %3, %cst_140 {dimension_numbers = #tpu.dot_dimension_numbers<[1], [0], [0], [1], [0, 0, 1, 1], [], []>} : vector<16x32xf32>, vector<32x32xf32>, vector<16x32xf32> -> vector<16x32xf32>
    %277 = vector.broadcast %2 : vector<1x32xf32> to vector<16x32xf32>
    %278 = arith.addf %276, %277 : vector<16x32xf32>
    %279 = vector.shape_cast %278 : vector<16x32xf32> to vector<2x8x32xf32>
    %280 = vector.broadcast %47 : vector<2x8x1xf32> to vector<2x8x32xf32>
    %281 = arith.mulf %279, %280 : vector<2x8x32xf32>
    %282 = vector.broadcast %238 : vector<2x1x32xf32> to vector<2x8x32xf32>
    %283 = arith.mulf %282, %281 : vector<2x8x32xf32>
    %284 = vector.shape_cast %200 : vector<2x8x32xf32> to vector<16x32xf32>
    %cst_141 = arith.constant dense<0.000000e+00> : vector<16x32xf32>
    %285 = tpu.matmul %284, %5, %cst_141 {dimension_numbers = #tpu.dot_dimension_numbers<[1], [0], [0], [1], [0, 0, 1, 1], [], []>} : vector<16x32xf32>, vector<32x32xf32>, vector<16x32xf32> -> vector<16x32xf32>
    %286 = vector.broadcast %4 : vector<1x32xf32> to vector<16x32xf32>
    %287 = arith.addf %285, %286 : vector<16x32xf32>
    %288 = vector.shape_cast %287 : vector<16x32xf32> to vector<2x8x32xf32>
    %289 = vector.broadcast %47 : vector<2x8x1xf32> to vector<2x8x32xf32>
    %290 = arith.mulf %288, %289 : vector<2x8x32xf32>
    %291 = vector.broadcast %238 : vector<2x1x32xf32> to vector<2x8x32xf32>
    %292 = arith.mulf %291, %290 : vector<2x8x32xf32>
    %293 = vector.extract_strided_slice %256 {offsets = [0, 0, 0], sizes = [2, 8, 16], strides = [1, 1, 1]} : vector<2x8x32xf32> to vector<2x8x16xf32>
    %294 = vector.extract_strided_slice %247 {offsets = [0, 0, 0], sizes = [2, 8, 16], strides = [1, 1, 1]} : vector<2x8x32xf32> to vector<2x8x16xf32>
    "tpu.trace_start"() <{level = 10 : i32, message = "btd,bsd->bts"}> : () -> ()
    %cst_142 = arith.constant dense<0.000000e+00> : vector<2x8x8xf32>
    %295 = tpu.matmul %293, %294, %cst_142 {dimension_numbers = #tpu.dot_dimension_numbers<[2], [2], [1], [1], [0, 0, 0, 1, 1, 1], [0], [0]>} : vector<2x8x16xf32>, vector<2x8x16xf32>, vector<2x8x8xf32> -> vector<2x8x8xf32>
    "tpu.trace_stop"() : () -> ()
    %296 = vector.broadcast %52 : vector<2x1x8xf32> to vector<2x8x8xf32>
    %297 = arith.addf %295, %296 : vector<2x8x8xf32>
    %cst_143 = arith.constant dense<0xFF800000> : vector<2x8xf32>
    %298 = vector.multi_reduction <maximumf>, %297, %cst_143 [2] : vector<2x8x8xf32> to vector<2x8xf32>
    %299 = vector.shape_cast %298 : vector<2x8xf32> to vector<2x8x1xf32>
    %300 = vector.broadcast %299 : vector<2x8x1xf32> to vector<2x8x8xf32>
    %301 = arith.subf %297, %300 : vector<2x8x8xf32>
    %302 = math.exp %301 : vector<2x8x8xf32>
    %cst_144 = arith.constant dense<0.000000e+00> : vector<2x8xf32>
    %303 = vector.multi_reduction <add>, %302, %cst_144 [2] : vector<2x8x8xf32> to vector<2x8xf32>
    %304 = vector.shape_cast %303 : vector<2x8xf32> to vector<2x8x1xf32>
    %305 = tpu.reciprocal %304 {approx = true} : vector<2x8x1xf32> -> vector<2x8x1xf32>
    %306 = vector.broadcast %305 : vector<2x8x1xf32> to vector<2x8x8xf32>
    %307 = arith.mulf %302, %306 : vector<2x8x8xf32>
    %308 = vector.extract_strided_slice %265 {offsets = [0, 0, 0], sizes = [2, 8, 16], strides = [1, 1, 1]} : vector<2x8x32xf32> to vector<2x8x16xf32>
    "tpu.trace_start"() <{level = 10 : i32, message = "bts,bsd->btd"}> : () -> ()
    %cst_145 = arith.constant dense<0.000000e+00> : vector<2x8x16xf32>
    %309 = tpu.matmul %307, %308, %cst_145 {dimension_numbers = #tpu.dot_dimension_numbers<[2], [1], [1], [2], [0, 0, 0, 1, 1, 2], [0], [0]>} : vector<2x8x8xf32>, vector<2x8x16xf32>, vector<2x8x16xf32> -> vector<2x8x16xf32>
    "tpu.trace_stop"() : () -> ()
    %310 = vector.extract_strided_slice %256 {offsets = [0, 0, 16], sizes = [2, 8, 16], strides = [1, 1, 1]} : vector<2x8x32xf32> to vector<2x8x16xf32>
    %311 = vector.extract_strided_slice %247 {offsets = [0, 0, 16], sizes = [2, 8, 16], strides = [1, 1, 1]} : vector<2x8x32xf32> to vector<2x8x16xf32>
    "tpu.trace_start"() <{level = 10 : i32, message = "btd,bsd->bts"}> : () -> ()
    %cst_146 = arith.constant dense<0.000000e+00> : vector<2x8x8xf32>
    %312 = tpu.matmul %310, %311, %cst_146 {dimension_numbers = #tpu.dot_dimension_numbers<[2], [2], [1], [1], [0, 0, 0, 1, 1, 1], [0], [0]>} : vector<2x8x16xf32>, vector<2x8x16xf32>, vector<2x8x8xf32> -> vector<2x8x8xf32>
    "tpu.trace_stop"() : () -> ()
    %313 = vector.broadcast %52 : vector<2x1x8xf32> to vector<2x8x8xf32>
    %314 = arith.addf %312, %313 : vector<2x8x8xf32>
    %cst_147 = arith.constant dense<0xFF800000> : vector<2x8xf32>
    %315 = vector.multi_reduction <maximumf>, %314, %cst_147 [2] : vector<2x8x8xf32> to vector<2x8xf32>
    %316 = vector.shape_cast %315 : vector<2x8xf32> to vector<2x8x1xf32>
    %317 = vector.broadcast %316 : vector<2x8x1xf32> to vector<2x8x8xf32>
    %318 = arith.subf %314, %317 : vector<2x8x8xf32>
    %319 = math.exp %318 : vector<2x8x8xf32>
    %cst_148 = arith.constant dense<0.000000e+00> : vector<2x8xf32>
    %320 = vector.multi_reduction <add>, %319, %cst_148 [2] : vector<2x8x8xf32> to vector<2x8xf32>
    %321 = vector.shape_cast %320 : vector<2x8xf32> to vector<2x8x1xf32>
    %322 = tpu.reciprocal %321 {approx = true} : vector<2x8x1xf32> -> vector<2x8x1xf32>
    %323 = vector.broadcast %322 : vector<2x8x1xf32> to vector<2x8x8xf32>
    %324 = arith.mulf %319, %323 : vector<2x8x8xf32>
    %325 = vector.extract_strided_slice %265 {offsets = [0, 0, 16], sizes = [2, 8, 16], strides = [1, 1, 1]} : vector<2x8x32xf32> to vector<2x8x16xf32>
    "tpu.trace_start"() <{level = 10 : i32, message = "bts,bsd->btd"}> : () -> ()
    %cst_149 = arith.constant dense<0.000000e+00> : vector<2x8x16xf32>
    %326 = tpu.matmul %324, %325, %cst_149 {dimension_numbers = #tpu.dot_dimension_numbers<[2], [1], [1], [2], [0, 0, 0, 1, 1, 2], [0], [0]>} : vector<2x8x8xf32>, vector<2x8x16xf32>, vector<2x8x16xf32> -> vector<2x8x16xf32>
    "tpu.trace_stop"() : () -> ()
    %327 = tpu.concatenate %309, %326 in 2 : vector<2x8x16xf32>, vector<2x8x16xf32> -> vector<2x8x32xf32>
    %328 = vector.extract_strided_slice %283 {offsets = [0, 0, 0], sizes = [2, 8, 16], strides = [1, 1, 1]} : vector<2x8x32xf32> to vector<2x8x16xf32>
    %329 = vector.extract_strided_slice %274 {offsets = [0, 0, 0], sizes = [2, 8, 16], strides = [1, 1, 1]} : vector<2x8x32xf32> to vector<2x8x16xf32>
    "tpu.trace_start"() <{level = 10 : i32, message = "btd,bsd->bts"}> : () -> ()
    %cst_150 = arith.constant dense<0.000000e+00> : vector<2x8x8xf32>
    %330 = tpu.matmul %328, %329, %cst_150 {dimension_numbers = #tpu.dot_dimension_numbers<[2], [2], [1], [1], [0, 0, 0, 1, 1, 1], [0], [0]>} : vector<2x8x16xf32>, vector<2x8x16xf32>, vector<2x8x8xf32> -> vector<2x8x8xf32>
    "tpu.trace_stop"() : () -> ()
    %331 = vector.broadcast %57 : vector<2x1x8xf32> to vector<2x8x8xf32>
    %332 = arith.addf %330, %331 : vector<2x8x8xf32>
    %cst_151 = arith.constant dense<0xFF800000> : vector<2x8xf32>
    %333 = vector.multi_reduction <maximumf>, %332, %cst_151 [2] : vector<2x8x8xf32> to vector<2x8xf32>
    %334 = vector.shape_cast %333 : vector<2x8xf32> to vector<2x8x1xf32>
    %335 = vector.broadcast %334 : vector<2x8x1xf32> to vector<2x8x8xf32>
    %336 = arith.subf %332, %335 : vector<2x8x8xf32>
    %337 = math.exp %336 : vector<2x8x8xf32>
    %cst_152 = arith.constant dense<0.000000e+00> : vector<2x8xf32>
    %338 = vector.multi_reduction <add>, %337, %cst_152 [2] : vector<2x8x8xf32> to vector<2x8xf32>
    %339 = vector.shape_cast %338 : vector<2x8xf32> to vector<2x8x1xf32>
    %340 = tpu.reciprocal %339 {approx = true} : vector<2x8x1xf32> -> vector<2x8x1xf32>
    %341 = vector.broadcast %340 : vector<2x8x1xf32> to vector<2x8x8xf32>
    %342 = arith.mulf %337, %341 : vector<2x8x8xf32>
    %343 = vector.extract_strided_slice %292 {offsets = [0, 0, 0], sizes = [2, 8, 16], strides = [1, 1, 1]} : vector<2x8x32xf32> to vector<2x8x16xf32>
    "tpu.trace_start"() <{level = 10 : i32, message = "bts,bsd->btd"}> : () -> ()
    %cst_153 = arith.constant dense<0.000000e+00> : vector<2x8x16xf32>
    %344 = tpu.matmul %342, %343, %cst_153 {dimension_numbers = #tpu.dot_dimension_numbers<[2], [1], [1], [2], [0, 0, 0, 1, 1, 2], [0], [0]>} : vector<2x8x8xf32>, vector<2x8x16xf32>, vector<2x8x16xf32> -> vector<2x8x16xf32>
    "tpu.trace_stop"() : () -> ()
    %345 = vector.extract_strided_slice %283 {offsets = [0, 0, 16], sizes = [2, 8, 16], strides = [1, 1, 1]} : vector<2x8x32xf32> to vector<2x8x16xf32>
    %346 = vector.extract_strided_slice %274 {offsets = [0, 0, 16], sizes = [2, 8, 16], strides = [1, 1, 1]} : vector<2x8x32xf32> to vector<2x8x16xf32>
    "tpu.trace_start"() <{level = 10 : i32, message = "btd,bsd->bts"}> : () -> ()
    %cst_154 = arith.constant dense<0.000000e+00> : vector<2x8x8xf32>
    %347 = tpu.matmul %345, %346, %cst_154 {dimension_numbers = #tpu.dot_dimension_numbers<[2], [2], [1], [1], [0, 0, 0, 1, 1, 1], [0], [0]>} : vector<2x8x16xf32>, vector<2x8x16xf32>, vector<2x8x8xf32> -> vector<2x8x8xf32>
    "tpu.trace_stop"() : () -> ()
    %348 = vector.broadcast %57 : vector<2x1x8xf32> to vector<2x8x8xf32>
    %349 = arith.addf %347, %348 : vector<2x8x8xf32>
    %cst_155 = arith.constant dense<0xFF800000> : vector<2x8xf32>
    %350 = vector.multi_reduction <maximumf>, %349, %cst_155 [2] : vector<2x8x8xf32> to vector<2x8xf32>
    %351 = vector.shape_cast %350 : vector<2x8xf32> to vector<2x8x1xf32>
    %352 = vector.broadcast %351 : vector<2x8x1xf32> to vector<2x8x8xf32>
    %353 = arith.subf %349, %352 : vector<2x8x8xf32>
    %354 = math.exp %353 : vector<2x8x8xf32>
    %cst_156 = arith.constant dense<0.000000e+00> : vector<2x8xf32>
    %355 = vector.multi_reduction <add>, %354, %cst_156 [2] : vector<2x8x8xf32> to vector<2x8xf32>
    %356 = vector.shape_cast %355 : vector<2x8xf32> to vector<2x8x1xf32>
    %357 = tpu.reciprocal %356 {approx = true} : vector<2x8x1xf32> -> vector<2x8x1xf32>
    %358 = vector.broadcast %357 : vector<2x8x1xf32> to vector<2x8x8xf32>
    %359 = arith.mulf %354, %358 : vector<2x8x8xf32>
    %360 = vector.extract_strided_slice %292 {offsets = [0, 0, 16], sizes = [2, 8, 16], strides = [1, 1, 1]} : vector<2x8x32xf32> to vector<2x8x16xf32>
    "tpu.trace_start"() <{level = 10 : i32, message = "bts,bsd->btd"}> : () -> ()
    %cst_157 = arith.constant dense<0.000000e+00> : vector<2x8x16xf32>
    %361 = tpu.matmul %359, %360, %cst_157 {dimension_numbers = #tpu.dot_dimension_numbers<[2], [1], [1], [2], [0, 0, 0, 1, 1, 2], [0], [0]>} : vector<2x8x8xf32>, vector<2x8x16xf32>, vector<2x8x16xf32> -> vector<2x8x16xf32>
    "tpu.trace_stop"() : () -> ()
    %362 = tpu.concatenate %344, %361 in 2 : vector<2x8x16xf32>, vector<2x8x16xf32> -> vector<2x8x32xf32>
    %363 = arith.addf %199, %327 : vector<2x8x32xf32>
    %364 = vector.shape_cast %363 : vector<2x8x32xf32> to vector<16x32xf32>
    %cst_158 = arith.constant dense<0.000000e+00> : vector<16x32xf32>
    %365 = tpu.matmul %364, %19, %cst_158 {dimension_numbers = #tpu.dot_dimension_numbers<[1], [0], [0], [1], [0, 0, 1, 1], [], []>} : vector<16x32xf32>, vector<32x32xf32>, vector<16x32xf32> -> vector<16x32xf32>
    %366 = vector.broadcast %18 : vector<1x32xf32> to vector<16x32xf32>
    %367 = arith.addf %365, %366 : vector<16x32xf32>
    %368 = vector.shape_cast %367 : vector<16x32xf32> to vector<2x8x32xf32>
    %369 = arith.addf %200, %362 : vector<2x8x32xf32>
    %370 = vector.shape_cast %369 : vector<2x8x32xf32> to vector<16x32xf32>
    %cst_159 = arith.constant dense<0.000000e+00> : vector<16x32xf32>
    %371 = tpu.matmul %370, %9, %cst_159 {dimension_numbers = #tpu.dot_dimension_numbers<[1], [0], [0], [1], [0, 0, 1, 1], [], []>} : vector<16x32xf32>, vector<32x32xf32>, vector<16x32xf32> -> vector<16x32xf32>
    %372 = vector.broadcast %8 : vector<1x32xf32> to vector<16x32xf32>
    %373 = arith.addf %371, %372 : vector<16x32xf32>
    %374 = vector.shape_cast %373 : vector<16x32xf32> to vector<2x8x32xf32>
    %375 = arith.addf %62, %198 : vector<2x8x32xf32>
    %376 = arith.addf %375, %368 : vector<2x8x32xf32>
    %377 = arith.addf %67, %132 : vector<2x8x32xf32>
    %378 = arith.addf %377, %374 : vector<2x8x32xf32>
    %c0_160 = arith.constant 0 : index
    %c0_161 = arith.constant 0 : index
    %c0_162 = arith.constant 0 : index
    %379 = vector.load %arg46[%c0_160, %c0_161, %c0_162] : memref<2x8x32xf32, #tpu.memory_space<vmem>>, vector<2x8x32xf32>
    tpu.vector_store %arg46[%c0_160, %c0_161, %c0_162], %376 {strides = array<i32>} : memref<2x8x32xf32, #tpu.memory_space<vmem>>, vector<2x8x32xf32>,
    %c0_163 = arith.constant 0 : index
    %c0_164 = arith.constant 0 : index
    %c0_165 = arith.constant 0 : index
    %380 = vector.load %arg47[%c0_163, %c0_164, %c0_165] : memref<2x8x32xf32, #tpu.memory_space<vmem>>, vector<2x8x32xf32>
    tpu.vector_store %arg47[%c0_163, %c0_164, %c0_165], %378 {strides = array<i32>} : memref<2x8x32xf32, #tpu.memory_space<vmem>>, vector<2x8x32xf32>,
    return
  }
}

</mosaic_0001>

<llo_original>
// kernel: single_block_forward.1
$region0: #{single_block_forward.1}
  #allocation0 [shape = 'u32[]', space=smem, size = 0x4, offset = 0x4, fixed_abs, tag = 'smem constant byte address 0x4 - core index']
  #allocation1 [shape = 'u32[144,128]{1,0:T(1,128)}', space=vmem, size = 0x12000, scoped, tag = 'internal scratch']
  %s0 = inlined_call_operand.smem [shape: u32[48], index: -1, kind: input, shape index: {}]
  %s1 = sld [smem:[%s0]]
  %s2 = scalar_lea.smem %s0, 1
  %s3 = sld [smem:[%s2]]
  %s4 = scalar_lea.smem %s0, 2
  %s5 = sld [smem:[%s4]]
  %s6 = scalar_lea.smem %s0, 3
  %s7 = sld [smem:[%s6]]
  %s8 = scalar_lea.smem %s0, 4
  %s9 = sld [smem:[%s8]]
  %s10 = scalar_lea.smem %s0, 5
  %s11 = sld [smem:[%s10]]
  %s12 = scalar_lea.smem %s0, 6
  %s13 = sld [smem:[%s12]]
  %s14 = scalar_lea.smem %s0, 7
  %s15 = sld [smem:[%s14]]
  %s16 = scalar_lea.smem %s0, 8
  %s17 = sld [smem:[%s16]]
  %s18 = scalar_lea.smem %s0, 9
  %s19 = sld [smem:[%s18]]
  %s20 = scalar_lea.smem %s0, 10
  %s21 = sld [smem:[%s20]]
  %s22 = scalar_lea.smem %s0, 11
  %s23 = sld [smem:[%s22]]
  %s24 = scalar_lea.smem %s0, 12
  %s25 = sld [smem:[%s24]]
  %s26 = scalar_lea.smem %s0, 13
  %s27 = sld [smem:[%s26]]
  %s28 = scalar_lea.smem %s0, 14
  %s29 = sld [smem:[%s28]]
  %s30 = scalar_lea.smem %s0, 15
  %s31 = sld [smem:[%s30]]
  %s32 = scalar_lea.smem %s0, 16
  %s33 = sld [smem:[%s32]]
  %s34 = scalar_lea.smem %s0, 17
  %s35 = sld [smem:[%s34]]
  %s36 = scalar_lea.smem %s0, 18
  %s37 = sld [smem:[%s36]]
  %s38 = scalar_lea.smem %s0, 19
  %s39 = sld [smem:[%s38]]
  %s40 = scalar_lea.smem %s0, 20
  %s41 = sld [smem:[%s40]]
  %s42 = scalar_lea.smem %s0, 21
  %s43 = sld [smem:[%s42]]
  %s44 = scalar_lea.smem %s0, 22
  %s45 = sld [smem:[%s44]]
  %s46 = scalar_lea.smem %s0, 23
  %s47 = sld [smem:[%s46]]
  %s48 = scalar_lea.smem %s0, 24
  %s49 = sld [smem:[%s48]]
  %s50 = scalar_lea.smem %s0, 25
  %s51 = sld [smem:[%s50]]
  %s52 = scalar_lea.smem %s0, 26
  %s53 = sld [smem:[%s52]]
  %s54 = scalar_lea.smem %s0, 27
  %s55 = sld [smem:[%s54]]
  %s56 = scalar_lea.smem %s0, 28
  %s57 = sld [smem:[%s56]]
  %s58 = scalar_lea.smem %s0, 29
  %s59 = sld [smem:[%s58]]
  %s60 = scalar_lea.smem %s0, 30
  %s61 = sld [smem:[%s60]]
  %s62 = scalar_lea.smem %s0, 31
  %s63 = sld [smem:[%s62]]
  %s64 = scalar_lea.smem %s0, 32
  %s65 = sld [smem:[%s64]]
  %s66 = scalar_lea.smem %s0, 33
  %s67 = sld [smem:[%s66]]
  %s68 = scalar_lea.smem %s0, 34
  %s69 = sld [smem:[%s68]]
  %s70 = scalar_lea.smem %s0, 35
  %s71 = sld [smem:[%s70]]
  %s72 = scalar_lea.smem %s0, 36
  %s73 = sld [smem:[%s72]]
  %s74 = scalar_lea.smem %s0, 37
  %s75 = sld [smem:[%s74]]
  %s76 = scalar_lea.smem %s0, 38
  %s77 = sld [smem:[%s76]]
  %s78 = scalar_lea.smem %s0, 39
  %s79 = sld [smem:[%s78]]
  %s80 = scalar_lea.smem %s0, 40
  %s81 = sld [smem:[%s80]]
  %s82 = scalar_lea.smem %s0, 41
  %s83 = sld [smem:[%s82]]
  %s84 = scalar_lea.smem %s0, 42
  %s85 = sld [smem:[%s84]]
  %s86 = scalar_lea.smem %s0, 43
  %s87 = sld [smem:[%s86]]
  %s88 = scalar_lea.smem %s0, 44
  %s89 = sld [smem:[%s88]]
  %s90 = scalar_lea.smem %s0, 45
  %s91 = sld [smem:[%s90]]
  %s92 = scalar_lea.smem %s0, 46
  %s93 = sld [smem:[%s92]]
  %s94 = scalar_lea.smem %s0, 47
  %s95 = sld [smem:[%s94]]
  %96 = xla_tuple %s93, %s95
  %s97 = sld [smem:[#allocation0]]
  $region354: #{single_block_forward.1} parent=0
    _
  %s99 = ssub.s32 1, %s97
  %s100 = scalar_select 0, %s99, %s97
  $region1: #{single_block_forward.1} parent=0
    #allocation2 [shape = 'u8[512]{0}', space=vmem, size = 0x400, scoped, tag = 'input window, operand 4, single buffered']
    #allocation3 [shape = 's32[1]{0}', space=sflag, size = 0x4, scoped, tag = 'scoped memory for single_block_forward.1']
    #allocation4 [shape = 's32[1]{0}', space=sflag, size = 0x4, scoped, tag = 'scoped memory for single_block_forward.1']
    #allocation5 [shape = 'u8[16384]{0}', space=vmem, size = 0x4000, scoped, tag = 'input window, operand 5, single buffered']
    #allocation6 [shape = 's32[1]{0}', space=sflag, size = 0x4, scoped, tag = 'scoped memory for single_block_forward.1']
    #allocation7 [shape = 'u8[512]{0}', space=vmem, size = 0x400, scoped, tag = 'input window, operand 6, single buffered']
    #allocation8 [shape = 'u8[16384]{0}', space=vmem, size = 0x4000, scoped, tag = 'input window, operand 7, single buffered']
    #allocation9 [shape = 's32[1]{0}', space=sflag, size = 0x4, scoped, tag = 'scoped memory for single_block_forward.1']
    #allocation10 [shape = 'u8[512]{0}', space=vmem, size = 0x400, scoped, tag = 'input window, operand 8, single buffered']
    #allocation11 [shape = 'u8[16384]{0}', space=vmem, size = 0x4000, scoped, tag = 'input window, operand 9, single buffered']
    #allocation12 [shape = 's32[1]{0}', space=sflag, size = 0x4, scoped, tag = 'scoped memory for single_block_forward.1']
    #allocation13 [shape = 'u8[512]{0}', space=vmem, size = 0x400, scoped, tag = 'input window, operand 10, single buffered']
    #allocation14 [shape = 'u8[16384]{0}', space=vmem, size = 0x4000, scoped, tag = 'input window, operand 11, single buffered']
    #allocation15 [shape = 's32[1]{0}', space=sflag, size = 0x4, scoped, tag = 'scoped memory for single_block_forward.1']
    #allocation16 [shape = 'u8[512]{0}', space=vmem, size = 0x400, scoped, tag = 'input window, operand 12, single buffered']
    #allocation17 [shape = 'u8[512]{0}', space=vmem, size = 0x400, scoped, tag = 'input window, operand 14, single buffered']
    #allocation18 [shape = 's32[1]{0}', space=sflag, size = 0x4, scoped, tag = 'scoped memory for single_block_forward.1']
    #allocation19 [shape = 'u8[16384]{0}', space=vmem, size = 0x4000, scoped, tag = 'input window, operand 15, single buffered']
    #allocation20 [shape = 'u8[512]{0}', space=vmem, size = 0x400, scoped, tag = 'input window, operand 16, single buffered']
    #allocation21 [shape = 's32[1]{0}', space=sflag, size = 0x4, scoped, tag = 'scoped memory for single_block_forward.1']
    #allocation22 [shape = 'u8[16384]{0}', space=vmem, size = 0x4000, scoped, tag = 'input window, operand 17, single buffered']
    #allocation23 [shape = 'u8[512]{0}', space=vmem, size = 0x400, scoped, tag = 'input window, operand 18, single buffered']
    #allocation24 [shape = 's32[1]{0}', space=sflag, size = 0x4, scoped, tag = 'scoped memory for single_block_forward.1']
    #allocation25 [shape = 'u8[16384]{0}', space=vmem, size = 0x4000, scoped, tag = 'input window, operand 19, single buffered']
    #allocation26 [shape = 'u8[512]{0}', space=vmem, size = 0x400, scoped, tag = 'input window, operand 20, single buffered']
    #allocation27 [shape = 's32[1]{0}', space=sflag, size = 0x4, scoped, tag = 'scoped memory for single_block_forward.1']
    #allocation28 [shape = 'u8[512]{0}', space=vmem, size = 0x400, scoped, tag = 'input window, operand 22, single buffered']
    #allocation29 [shape = 'u8[16384]{0}', space=vmem, size = 0x4000, scoped, tag = 'input window, operand 23, single buffered']
    #allocation30 [shape = 's32[1]{0}', space=sflag, size = 0x4, scoped, tag = 'scoped memory for single_block_forward.1']
    #allocation31 [shape = 'u8[512]{0}', space=vmem, size = 0x400, scoped, tag = 'input window, operand 24, single buffered']
    #allocation32 [shape = 'u8[16384]{0}', space=vmem, size = 0x4000, scoped, tag = 'input window, operand 25, single buffered']
    #allocation33 [shape = 's32[1]{0}', space=sflag, size = 0x4, scoped, tag = 'scoped memory for single_block_forward.1']
    #allocation34 [shape = 'u8[512]{0}', space=vmem, size = 0x400, scoped, tag = 'input window, operand 26, single buffered']
    #allocation35 [shape = 'u8[16384]{0}', space=vmem, size = 0x4000, scoped, tag = 'input window, operand 27, single buffered']
    #allocation36 [shape = 's32[1]{0}', space=sflag, size = 0x4, scoped, tag = 'scoped memory for single_block_forward.1']
    #allocation37 [shape = 'u8[16384]{0}', space=vmem, size = 0x4000, scoped, tag = 'input window, operand 28, single buffered']
    #allocation38 [shape = 'u8[512]{0}', space=vmem, size = 0x400, scoped, tag = 'input window, operand 29, single buffered']
    #allocation39 [shape = 's32[1]{0}', space=sflag, size = 0x4, scoped, tag = 'scoped memory for single_block_forward.1']
    #allocation40 [shape = 'u8[512]{0}', space=vmem, size = 0x400, scoped, tag = 'input window, operand 31, single buffered']
    #allocation41 [shape = 'u8[16384]{0}', space=vmem, size = 0x4000, scoped, tag = 'input window, operand 32, single buffered']
    #allocation42 [shape = 's32[1]{0}', space=sflag, size = 0x4, scoped, tag = 'scoped memory for single_block_forward.1']
    #allocation43 [shape = 'u8[512]{0}', space=vmem, size = 0x400, scoped, tag = 'input window, operand 33, single buffered']
    #allocation44 [shape = 'u8[16384]{0}', space=vmem, size = 0x4000, scoped, tag = 'input window, operand 34, single buffered']
    #allocation45 [shape = 's32[1]{0}', space=sflag, size = 0x4, scoped, tag = 'scoped memory for single_block_forward.1']
    #allocation46 [shape = 'u8[512]{0}', space=vmem, size = 0x400, scoped, tag = 'input window, operand 35, single buffered']
    #allocation47 [shape = 'u8[16384]{0}', space=vmem, size = 0x4000, scoped, tag = 'input window, operand 36, single buffered']
    #allocation48 [shape = 's32[1]{0}', space=sflag, size = 0x4, scoped, tag = 'scoped memory for single_block_forward.1']
    #allocation49 [shape = 'u8[512]{0}', space=vmem, size = 0x400, scoped, tag = 'input window, operand 37, single buffered']
    #allocation50 [shape = 'u8[16384]{0}', space=vmem, size = 0x4000, scoped, tag = 'input window, operand 39, single buffered']
    #allocation51 [shape = 's32[1]{0}', space=sflag, size = 0x4, scoped, tag = 'scoped memory for single_block_forward.1']
    #allocation52 [shape = 'u8[512]{0}', space=vmem, size = 0x400, scoped, tag = 'input window, operand 40, single buffered']
    #allocation53 [shape = 'u8[16384]{0}', space=vmem, size = 0x4000, scoped, tag = 'input window, operand 41, single buffered']
    #allocation54 [shape = 's32[1]{0}', space=sflag, size = 0x4, scoped, tag = 'scoped memory for single_block_forward.1']
    #allocation55 [shape = 'u8[512]{0}', space=vmem, size = 0x400, scoped, tag = 'input window, operand 42, single buffered']
    #allocation56 [shape = 'u8[16384]{0}', space=vmem, size = 0x4000, scoped, tag = 'input window, operand 43, single buffered']
    #allocation57 [shape = 's32[1]{0}', space=sflag, size = 0x4, scoped, tag = 'scoped memory for single_block_forward.1']
    #allocation58 [shape = 'u8[512]{0}', space=vmem, size = 0x400, scoped, tag = 'input window, operand 44, single buffered']
    #allocation59 [shape = 'u8[16384]{0}', space=vmem, size = 0x4000, scoped, tag = 'input window, operand 45, single buffered']
    #allocation60 [shape = 's32[1]{0}', space=sflag, size = 0x4, scoped, tag = 'scoped memory for single_block_forward.1']
    #allocation61 [shape = 'u8[8192]{0}', space=vmem, size = 0x2000, scoped, tag = 'output window, operand 0, single buffered']
    #allocation62 [shape = 'u8[8192]{0}', space=vmem, size = 0x2000, scoped, tag = 'output window, operand 1, single buffered']
    #allocation63 [shape = 's32[1]{0}', space=sflag, size = 0x4, scoped, tag = 'scoped memory for single_block_forward.1']
    %101 = vsyncpa [#allocation3], 0
    %102 = vsyncpa [#allocation6], 0
    %103 = vsyncpa [#allocation9], 0
    %104 = vsyncpa [#allocation12], 0
    %105 = vsyncpa [#allocation15], 0
    %106 = vsyncpa [#allocation18], 0
    %107 = vsyncpa [#allocation21], 0
    %108 = vsyncpa [#allocation24], 0
    %109 = vsyncpa [#allocation27], 0
    %110 = vsyncpa [#allocation30], 0
    %111 = vsyncpa [#allocation33], 0
    %112 = vsyncpa [#allocation36], 0
    %113 = vsyncpa [#allocation39], 0
    %114 = vsyncpa [#allocation42], 0
    %115 = vsyncpa [#allocation45], 0
    %116 = vsyncpa [#allocation48], 0
    %117 = vsyncpa [#allocation51], 0
    %118 = vsyncpa [#allocation54], 0
    %119 = vsyncpa [#allocation57], 0
    %120 = vsyncpa [#allocation60], 0
    %121 = vsyncpa [#allocation4], 0
    %122 = vsyncpa [#allocation63], 0
    // Predicated region
    $region2: #{single_block_forward.1} parent=1 // pred_check
      _
    $region3: #{single_block_forward.1} parent=1 // pred_check_branch
      %124 = sbr.rel (0) target = $region5
    $region4: #{single_block_forward.1} parent=1 // pred_region
      _
    $region5: #{single_block_forward.1} parent=1 // pred_fallthru
      _
    // Predicated region
    $region6: #{single_block_forward.1} parent=1 // pred_check
      _
    $region7: #{single_block_forward.1} parent=1 // pred_check_branch
      %126 = sbr.rel (0) target = $region9
    $region8: #{single_block_forward.1} parent=1 // pred_region
      _
    $region9: #{single_block_forward.1} parent=1 // pred_fallthru
      _
    // Predicated region
    $region10: #{single_block_forward.1} parent=1 // pred_check
      _
    $region11: #{single_block_forward.1} parent=1 // pred_check_branch
      %128 = sbr.rel (0) target = $region13
    $region12: #{single_block_forward.1} parent=1 // pred_region
      _
    $region13: #{single_block_forward.1} parent=1 // pred_fallthru
      _
    // Predicated region
    $region14: #{single_block_forward.1} parent=1 // pred_check
      _
    $region15: #{single_block_forward.1} parent=1 // pred_check_branch
      %130 = sbr.rel (0) target = $region17
    $region16: #{single_block_forward.1} parent=1 // pred_region
      _
    $region17: #{single_block_forward.1} parent=1 // pred_fallthru
      _
    // Predicated region
    $region18: #{single_block_forward.1} parent=1 // pred_check
      _
    $region19: #{single_block_forward.1} parent=1 // pred_check_branch
      %132 = sbr.rel (0) target = $region21
    $region20: #{single_block_forward.1} parent=1 // pred_region
      %s134 = ssub.s32 16, 16
      %135 = vsyncadd [#allocation3], %s134
      %s137 = sshll.u32 [#allocation2], 4
      %s138 = int_to_ptr.vmem [resolvable:$true] %s137
      %140 = dma.hbm_to_vmem [thread:$0]  %s9, 16, %s138, [#allocation3]
    $region21: #{single_block_forward.1} parent=1 // pred_fallthru
      _
    // Predicated region
    $region22: #{single_block_forward.1} parent=1 // pred_check
      _
    $region23: #{single_block_forward.1} parent=1 // pred_check_branch
      %142 = sbr.rel (0) target = $region25
    $region24: #{single_block_forward.1} parent=1 // pred_region
      %s144 = ssub.s32 512, 512
      %145 = vsyncadd [#allocation6], %s144
      %s146 = sshll.u32 [#allocation5], 4
      %s147 = int_to_ptr.vmem [resolvable:$true] %s146
      %152 = dma.hbm_to_vmem [thread:$0]  %s11, 512, %s147, [#allocation6], 128, 128, 8
    $region25: #{single_block_forward.1} parent=1 // pred_fallthru
      _
    // Predicated region
    $region26: #{single_block_forward.1} parent=1 // pred_check
      _
    $region27: #{single_block_forward.1} parent=1 // pred_check_branch
      %154 = sbr.rel (0) target = $region29
    $region28: #{single_block_forward.1} parent=1 // pred_region
      %s156 = ssub.s32 16, 16
      %157 = vsyncadd [#allocation6], %s156
      %s159 = sshll.u32 [#allocation7], 4
      %s160 = int_to_ptr.vmem [resolvable:$true] %s159
      %162 = dma.hbm_to_vmem [thread:$0]  %s13, 16, %s160, [#allocation6]
    $region29: #{single_block_forward.1} parent=1 // pred_fallthru
      _
    // Predicated region
    $region30: #{single_block_forward.1} parent=1 // pred_check
      _
    $region31: #{single_block_forward.1} parent=1 // pred_check_branch
      %164 = sbr.rel (0) target = $region33
    $region32: #{single_block_forward.1} parent=1 // pred_region
      %s166 = ssub.s32 512, 512
      %167 = vsyncadd [#allocation9], %s166
      %s168 = sshll.u32 [#allocation8], 4
      %s169 = int_to_ptr.vmem [resolvable:$true] %s168
      %174 = dma.hbm_to_vmem [thread:$0]  %s15, 512, %s169, [#allocation9], 128, 128, 8
    $region33: #{single_block_forward.1} parent=1 // pred_fallthru
      _
    // Predicated region
    $region34: #{single_block_forward.1} parent=1 // pred_check
      _
    $region35: #{single_block_forward.1} parent=1 // pred_check_branch
      %176 = sbr.rel (0) target = $region37
    $region36: #{single_block_forward.1} parent=1 // pred_region
      %s178 = ssub.s32 16, 16
      %179 = vsyncadd [#allocation9], %s178
      %s181 = sshll.u32 [#allocation10], 4
      %s182 = int_to_ptr.vmem [resolvable:$true] %s181
      %184 = dma.hbm_to_vmem [thread:$0]  %s17, 16, %s182, [#allocation9]
    $region37: #{single_block_forward.1} parent=1 // pred_fallthru
      _
    // Predicated region
    $region38: #{single_block_forward.1} parent=1 // pred_check
      _
    $region39: #{single_block_forward.1} parent=1 // pred_check_branch
      %186 = sbr.rel (0) target = $region41
    $region40: #{single_block_forward.1} parent=1 // pred_region
      %s188 = ssub.s32 512, 512
      %189 = vsyncadd [#allocation12], %s188
      %s190 = sshll.u32 [#allocation11], 4
      %s191 = int_to_ptr.vmem [resolvable:$true] %s190
      %196 = dma.hbm_to_vmem [thread:$0]  %s19, 512, %s191, [#allocation12], 128, 128, 8
    $region41: #{single_block_forward.1} parent=1 // pred_fallthru
      _
    // Predicated region
    $region42: #{single_block_forward.1} parent=1 // pred_check
      _
    $region43: #{single_block_forward.1} parent=1 // pred_check_branch
      %198 = sbr.rel (0) target = $region45
    $region44: #{single_block_forward.1} parent=1 // pred_region
      %s200 = ssub.s32 16, 16
      %201 = vsyncadd [#allocation12], %s200
      %s203 = sshll.u32 [#allocation13], 4
      %s204 = int_to_ptr.vmem [resolvable:$true] %s203
      %206 = dma.hbm_to_vmem [thread:$0]  %s21, 16, %s204, [#allocation12]
    $region45: #{single_block_forward.1} parent=1 // pred_fallthru
      _
    // Predicated region
    $region46: #{single_block_forward.1} parent=1 // pred_check
      _
    $region47: #{single_block_forward.1} parent=1 // pred_check_branch
      %208 = sbr.rel (0) target = $region49
    $region48: #{single_block_forward.1} parent=1 // pred_region
      %s210 = ssub.s32 512, 512
      %211 = vsyncadd [#allocation15], %s210
      %s212 = sshll.u32 [#allocation14], 4
      %s213 = int_to_ptr.vmem [resolvable:$true] %s212
      %218 = dma.hbm_to_vmem [thread:$0]  %s23, 512, %s213, [#allocation15], 128, 128, 8
    $region49: #{single_block_forward.1} parent=1 // pred_fallthru
      _
    // Predicated region
    $region50: #{single_block_forward.1} parent=1 // pred_check
      _
    $region51: #{single_block_forward.1} parent=1 // pred_check_branch
      %220 = sbr.rel (0) target = $region53
    $region52: #{single_block_forward.1} parent=1 // pred_region
      %s222 = ssub.s32 16, 16
      %223 = vsyncadd [#allocation15], %s222
      %s225 = sshll.u32 [#allocation16], 4
      %s226 = int_to_ptr.vmem [resolvable:$true] %s225
      %228 = dma.hbm_to_vmem [thread:$0]  %s25, 16, %s226, [#allocation15]
    $region53: #{single_block_forward.1} parent=1 // pred_fallthru
      _
    // Predicated region
    $region54: #{single_block_forward.1} parent=1 // pred_check
      _
    $region55: #{single_block_forward.1} parent=1 // pred_check_branch
      %230 = sbr.rel (0) target = $region57
    $region56: #{single_block_forward.1} parent=1 // pred_region
      _
    $region57: #{single_block_forward.1} parent=1 // pred_fallthru
      _
    // Predicated region
    $region58: #{single_block_forward.1} parent=1 // pred_check
      _
    $region59: #{single_block_forward.1} parent=1 // pred_check_branch
      %232 = sbr.rel (0) target = $region61
    $region60: #{single_block_forward.1} parent=1 // pred_region
      %s234 = ssub.s32 16, 16
      %235 = vsyncadd [#allocation18], %s234
      %s237 = sshll.u32 [#allocation17], 4
      %s238 = int_to_ptr.vmem [resolvable:$true] %s237
      %240 = dma.hbm_to_vmem [thread:$0]  %s29, 16, %s238, [#allocation18]
    $region61: #{single_block_forward.1} parent=1 // pred_fallthru
      _
    // Predicated region
    $region62: #{single_block_forward.1} parent=1 // pred_check
      _
    $region63: #{single_block_forward.1} parent=1 // pred_check_branch
      %242 = sbr.rel (0) target = $region65
    $region64: #{single_block_forward.1} parent=1 // pred_region
      %s244 = ssub.s32 512, 512
      %245 = vsyncadd [#allocation18], %s244
      %s246 = sshll.u32 [#allocation19], 4
      %s247 = int_to_ptr.vmem [resolvable:$true] %s246
      %252 = dma.hbm_to_vmem [thread:$0]  %s31, 512, %s247, [#allocation18], 128, 128, 8
    $region65: #{single_block_forward.1} parent=1 // pred_fallthru
      _
    // Predicated region
    $region66: #{single_block_forward.1} parent=1 // pred_check
      _
    $region67: #{single_block_forward.1} parent=1 // pred_check_branch
      %254 = sbr.rel (0) target = $region69
    $region68: #{single_block_forward.1} parent=1 // pred_region
      %s256 = ssub.s32 16, 16
      %257 = vsyncadd [#allocation21], %s256
      %s259 = sshll.u32 [#allocation20], 4
      %s260 = int_to_ptr.vmem [resolvable:$true] %s259
      %262 = dma.hbm_to_vmem [thread:$0]  %s33, 16, %s260, [#allocation21]
    $region69: #{single_block_forward.1} parent=1 // pred_fallthru
      _
    // Predicated region
    $region70: #{single_block_forward.1} parent=1 // pred_check
      _
    $region71: #{single_block_forward.1} parent=1 // pred_check_branch
      %264 = sbr.rel (0) target = $region73
    $region72: #{single_block_forward.1} parent=1 // pred_region
      %s266 = ssub.s32 512, 512
      %267 = vsyncadd [#allocation21], %s266
      %s268 = sshll.u32 [#allocation22], 4
      %s269 = int_to_ptr.vmem [resolvable:$true] %s268
      %274 = dma.hbm_to_vmem [thread:$0]  %s35, 512, %s269, [#allocation21], 128, 128, 8
    $region73: #{single_block_forward.1} parent=1 // pred_fallthru
      _
    // Predicated region
    $region74: #{single_block_forward.1} parent=1 // pred_check
      _
    $region75: #{single_block_forward.1} parent=1 // pred_check_branch
      %276 = sbr.rel (0) target = $region77
    $region76: #{single_block_forward.1} parent=1 // pred_region
      %s278 = ssub.s32 16, 16
      %279 = vsyncadd [#allocation24], %s278
      %s281 = sshll.u32 [#allocation23], 4
      %s282 = int_to_ptr.vmem [resolvable:$true] %s281
      %284 = dma.hbm_to_vmem [thread:$0]  %s37, 16, %s282, [#allocation24]
    $region77: #{single_block_forward.1} parent=1 // pred_fallthru
      _
    // Predicated region
    $region78: #{single_block_forward.1} parent=1 // pred_check
      _
    $region79: #{single_block_forward.1} parent=1 // pred_check_branch
      %286 = sbr.rel (0) target = $region81
    $region80: #{single_block_forward.1} parent=1 // pred_region
      %s288 = ssub.s32 512, 512
      %289 = vsyncadd [#allocation24], %s288
      %s290 = sshll.u32 [#allocation25], 4
      %s291 = int_to_ptr.vmem [resolvable:$true] %s290
      %296 = dma.hbm_to_vmem [thread:$0]  %s39, 512, %s291, [#allocation24], 128, 128, 8
    $region81: #{single_block_forward.1} parent=1 // pred_fallthru
      _
    // Predicated region
    $region82: #{single_block_forward.1} parent=1 // pred_check
      _
    $region83: #{single_block_forward.1} parent=1 // pred_check_branch
      %298 = sbr.rel (0) target = $region85
    $region84: #{single_block_forward.1} parent=1 // pred_region
      %s300 = ssub.s32 16, 16
      %301 = vsyncadd [#allocation27], %s300
      %s303 = sshll.u32 [#allocation26], 4
      %s304 = int_to_ptr.vmem [resolvable:$true] %s303
      %306 = dma.hbm_to_vmem [thread:$0]  %s41, 16, %s304, [#allocation27]
    $region85: #{single_block_forward.1} parent=1 // pred_fallthru
      _
    // Predicated region
    $region86: #{single_block_forward.1} parent=1 // pred_check
      _
    $region87: #{single_block_forward.1} parent=1 // pred_check_branch
      %308 = sbr.rel (0) target = $region89
    $region88: #{single_block_forward.1} parent=1 // pred_region
      _
    $region89: #{single_block_forward.1} parent=1 // pred_fallthru
      _
    // Predicated region
    $region90: #{single_block_forward.1} parent=1 // pred_check
      _
    $region91: #{single_block_forward.1} parent=1 // pred_check_branch
      %310 = sbr.rel (0) target = $region93
    $region92: #{single_block_forward.1} parent=1 // pred_region
      %s312 = ssub.s32 16, 16
      %313 = vsyncadd [#allocation27], %s312
      %s315 = sshll.u32 [#allocation28], 4
      %s316 = int_to_ptr.vmem [resolvable:$true] %s315
      %318 = dma.hbm_to_vmem [thread:$0]  %s45, 16, %s316, [#allocation27]
    $region93: #{single_block_forward.1} parent=1 // pred_fallthru
      _
    // Predicated region
    $region94: #{single_block_forward.1} parent=1 // pred_check
      _
    $region95: #{single_block_forward.1} parent=1 // pred_check_branch
      %320 = sbr.rel (0) target = $region97
    $region96: #{single_block_forward.1} parent=1 // pred_region
      %s322 = ssub.s32 512, 512
      %323 = vsyncadd [#allocation30], %s322
      %s324 = sshll.u32 [#allocation29], 4
      %s325 = int_to_ptr.vmem [resolvable:$true] %s324
      %330 = dma.hbm_to_vmem [thread:$0]  %s47, 512, %s325, [#allocation30], 128, 128, 8
    $region97: #{single_block_forward.1} parent=1 // pred_fallthru
      _
    // Predicated region
    $region98: #{single_block_forward.1} parent=1 // pred_check
      _
    $region99: #{single_block_forward.1} parent=1 // pred_check_branch
      %332 = sbr.rel (0) target = $region101
    $region100: #{single_block_forward.1} parent=1 // pred_region
      %s334 = ssub.s32 16, 16
      %335 = vsyncadd [#allocation30], %s334
      %s337 = sshll.u32 [#allocation31], 4
      %s338 = int_to_ptr.vmem [resolvable:$true] %s337
      %340 = dma.hbm_to_vmem [thread:$0]  %s49, 16, %s338, [#allocation30]
    $region101: #{single_block_forward.1} parent=1 // pred_fallthru
      _
    // Predicated region
    $region102: #{single_block_forward.1} parent=1 // pred_check
      _
    $region103: #{single_block_forward.1} parent=1 // pred_check_branch
      %342 = sbr.rel (0) target = $region105
    $region104: #{single_block_forward.1} parent=1 // pred_region
      %s344 = ssub.s32 512, 512
      %345 = vsyncadd [#allocation33], %s344
      %s346 = sshll.u32 [#allocation32], 4
      %s347 = int_to_ptr.vmem [resolvable:$true] %s346
      %352 = dma.hbm_to_vmem [thread:$0]  %s51, 512, %s347, [#allocation33], 128, 128, 8
    $region105: #{single_block_forward.1} parent=1 // pred_fallthru
      _
    // Predicated region
    $region106: #{single_block_forward.1} parent=1 // pred_check
      _
    $region107: #{single_block_forward.1} parent=1 // pred_check_branch
      %354 = sbr.rel (0) target = $region109
    $region108: #{single_block_forward.1} parent=1 // pred_region
      %s356 = ssub.s32 16, 16
      %357 = vsyncadd [#allocation33], %s356
      %s359 = sshll.u32 [#allocation34], 4
      %s360 = int_to_ptr.vmem [resolvable:$true] %s359
      %362 = dma.hbm_to_vmem [thread:$0]  %s53, 16, %s360, [#allocation33]
    $region109: #{single_block_forward.1} parent=1 // pred_fallthru
      _
    // Predicated region
    $region110: #{single_block_forward.1} parent=1 // pred_check
      _
    $region111: #{single_block_forward.1} parent=1 // pred_check_branch
      %364 = sbr.rel (0) target = $region113
    $region112: #{single_block_forward.1} parent=1 // pred_region
      %s366 = ssub.s32 512, 512
      %367 = vsyncadd [#allocation36], %s366
      %s368 = sshll.u32 [#allocation35], 4
      %s369 = int_to_ptr.vmem [resolvable:$true] %s368
      %374 = dma.hbm_to_vmem [thread:$0]  %s55, 512, %s369, [#allocation36], 128, 128, 8
    $region113: #{single_block_forward.1} parent=1 // pred_fallthru
      _
    // Predicated region
    $region114: #{single_block_forward.1} parent=1 // pred_check
      _
    $region115: #{single_block_forward.1} parent=1 // pred_check_branch
      %376 = sbr.rel (0) target = $region117
    $region116: #{single_block_forward.1} parent=1 // pred_region
      %s378 = ssub.s32 512, 512
      %379 = vsyncadd [#allocation36], %s378
      %s380 = sshll.u32 [#allocation37], 4
      %s381 = int_to_ptr.vmem [resolvable:$true] %s380
      %386 = dma.hbm_to_vmem [thread:$0]  %s57, 512, %s381, [#allocation36], 128, 128, 8
    $region117: #{single_block_forward.1} parent=1 // pred_fallthru
      _
    // Predicated region
    $region118: #{single_block_forward.1} parent=1 // pred_check
      _
    $region119: #{single_block_forward.1} parent=1 // pred_check_branch
      %388 = sbr.rel (0) target = $region121
    $region120: #{single_block_forward.1} parent=1 // pred_region
      %s390 = ssub.s32 16, 16
      %391 = vsyncadd [#allocation39], %s390
      %s393 = sshll.u32 [#allocation38], 4
      %s394 = int_to_ptr.vmem [resolvable:$true] %s393
      %396 = dma.hbm_to_vmem [thread:$0]  %s59, 16, %s394, [#allocation39]
    $region121: #{single_block_forward.1} parent=1 // pred_fallthru
      _
    // Predicated region
    $region122: #{single_block_forward.1} parent=1 // pred_check
      _
    $region123: #{single_block_forward.1} parent=1 // pred_check_branch
      %398 = sbr.rel (0) target = $region125
    $region124: #{single_block_forward.1} parent=1 // pred_region
      _
    $region125: #{single_block_forward.1} parent=1 // pred_fallthru
      _
    // Predicated region
    $region126: #{single_block_forward.1} parent=1 // pred_check
      _
    $region127: #{single_block_forward.1} parent=1 // pred_check_branch
      %400 = sbr.rel (0) target = $region129
    $region128: #{single_block_forward.1} parent=1 // pred_region
      %s402 = ssub.s32 16, 16
      %403 = vsyncadd [#allocation39], %s402
      %s405 = sshll.u32 [#allocation40], 4
      %s406 = int_to_ptr.vmem [resolvable:$true] %s405
      %408 = dma.hbm_to_vmem [thread:$0]  %s63, 16, %s406, [#allocation39]
    $region129: #{single_block_forward.1} parent=1 // pred_fallthru
      _
    // Predicated region
    $region130: #{single_block_forward.1} parent=1 // pred_check
      _
    $region131: #{single_block_forward.1} parent=1 // pred_check_branch
      %410 = sbr.rel (0) target = $region133
    $region132: #{single_block_forward.1} parent=1 // pred_region
      %s412 = ssub.s32 512, 512
      %413 = vsyncadd [#allocation42], %s412
      %s414 = sshll.u32 [#allocation41], 4
      %s415 = int_to_ptr.vmem [resolvable:$true] %s414
      %420 = dma.hbm_to_vmem [thread:$0]  %s65, 512, %s415, [#allocation42], 128, 128, 8
    $region133: #{single_block_forward.1} parent=1 // pred_fallthru
      _
    // Predicated region
    $region134: #{single_block_forward.1} parent=1 // pred_check
      _
    $region135: #{single_block_forward.1} parent=1 // pred_check_branch
      %422 = sbr.rel (0) target = $region137
    $region136: #{single_block_forward.1} parent=1 // pred_region
      %s424 = ssub.s32 16, 16
      %425 = vsyncadd [#allocation42], %s424
      %s427 = sshll.u32 [#allocation43], 4
      %s428 = int_to_ptr.vmem [resolvable:$true] %s427
      %430 = dma.hbm_to_vmem [thread:$0]  %s67, 16, %s428, [#allocation42]
    $region137: #{single_block_forward.1} parent=1 // pred_fallthru
      _
    // Predicated region
    $region138: #{single_block_forward.1} parent=1 // pred_check
      _
    $region139: #{single_block_forward.1} parent=1 // pred_check_branch
      %432 = sbr.rel (0) target = $region141
    $region140: #{single_block_forward.1} parent=1 // pred_region
      %s434 = ssub.s32 512, 512
      %435 = vsyncadd [#allocation45], %s434
      %s436 = sshll.u32 [#allocation44], 4
      %s437 = int_to_ptr.vmem [resolvable:$true] %s436
      %442 = dma.hbm_to_vmem [thread:$0]  %s69, 512, %s437, [#allocation45], 128, 128, 8
    $region141: #{single_block_forward.1} parent=1 // pred_fallthru
      _
    // Predicated region
    $region142: #{single_block_forward.1} parent=1 // pred_check
      _
    $region143: #{single_block_forward.1} parent=1 // pred_check_branch
      %444 = sbr.rel (0) target = $region145
    $region144: #{single_block_forward.1} parent=1 // pred_region
      %s446 = ssub.s32 16, 16
      %447 = vsyncadd [#allocation45], %s446
      %s449 = sshll.u32 [#allocation46], 4
      %s450 = int_to_ptr.vmem [resolvable:$true] %s449
      %452 = dma.hbm_to_vmem [thread:$0]  %s71, 16, %s450, [#allocation45]
    $region145: #{single_block_forward.1} parent=1 // pred_fallthru
      _
    // Predicated region
    $region146: #{single_block_forward.1} parent=1 // pred_check
      _
    $region147: #{single_block_forward.1} parent=1 // pred_check_branch
      %454 = sbr.rel (0) target = $region149
    $region148: #{single_block_forward.1} parent=1 // pred_region
      %s456 = ssub.s32 512, 512
      %457 = vsyncadd [#allocation48], %s456
      %s458 = sshll.u32 [#allocation47], 4
      %s459 = int_to_ptr.vmem [resolvable:$true] %s458
      %464 = dma.hbm_to_vmem [thread:$0]  %s73, 512, %s459, [#allocation48], 128, 128, 8
    $region149: #{single_block_forward.1} parent=1 // pred_fallthru
      _
    // Predicated region
    $region150: #{single_block_forward.1} parent=1 // pred_check
      _
    $region151: #{single_block_forward.1} parent=1 // pred_check_branch
      %466 = sbr.rel (0) target = $region153
    $region152: #{single_block_forward.1} parent=1 // pred_region
      %s468 = ssub.s32 16, 16
      %469 = vsyncadd [#allocation48], %s468
      %s471 = sshll.u32 [#allocation49], 4
      %s472 = int_to_ptr.vmem [resolvable:$true] %s471
      %474 = dma.hbm_to_vmem [thread:$0]  %s75, 16, %s472, [#allocation48]
    $region153: #{single_block_forward.1} parent=1 // pred_fallthru
      _
    // Predicated region
    $region154: #{single_block_forward.1} parent=1 // pred_check
      _
    $region155: #{single_block_forward.1} parent=1 // pred_check_branch
      %476 = sbr.rel (0) target = $region157
    $region156: #{single_block_forward.1} parent=1 // pred_region
      _
    $region157: #{single_block_forward.1} parent=1 // pred_fallthru
      _
    // Predicated region
    $region158: #{single_block_forward.1} parent=1 // pred_check
      _
    $region159: #{single_block_forward.1} parent=1 // pred_check_branch
      %478 = sbr.rel (0) target = $region161
    $region160: #{single_block_forward.1} parent=1 // pred_region
      %s480 = ssub.s32 512, 512
      %481 = vsyncadd [#allocation51], %s480
      %s482 = sshll.u32 [#allocation50], 4
      %s483 = int_to_ptr.vmem [resolvable:$true] %s482
      %488 = dma.hbm_to_vmem [thread:$0]  %s79, 512, %s483, [#allocation51], 128, 128, 8
    $region161: #{single_block_forward.1} parent=1 // pred_fallthru
      _
    // Predicated region
    $region162: #{single_block_forward.1} parent=1 // pred_check
      _
    $region163: #{single_block_forward.1} parent=1 // pred_check_branch
      %490 = sbr.rel (0) target = $region165
    $region164: #{single_block_forward.1} parent=1 // pred_region
      %s492 = ssub.s32 16, 16
      %493 = vsyncadd [#allocation51], %s492
      %s495 = sshll.u32 [#allocation52], 4
      %s496 = int_to_ptr.vmem [resolvable:$true] %s495
      %498 = dma.hbm_to_vmem [thread:$0]  %s81, 16, %s496, [#allocation51]
    $region165: #{single_block_forward.1} parent=1 // pred_fallthru
      _
    // Predicated region
    $region166: #{single_block_forward.1} parent=1 // pred_check
      _
    $region167: #{single_block_forward.1} parent=1 // pred_check_branch
      %500 = sbr.rel (0) target = $region169
    $region168: #{single_block_forward.1} parent=1 // pred_region
      %s502 = ssub.s32 512, 512
      %503 = vsyncadd [#allocation54], %s502
      %s504 = sshll.u32 [#allocation53], 4
      %s505 = int_to_ptr.vmem [resolvable:$true] %s504
      %510 = dma.hbm_to_vmem [thread:$0]  %s83, 512, %s505, [#allocation54], 128, 128, 8
    $region169: #{single_block_forward.1} parent=1 // pred_fallthru
      _
    // Predicated region
    $region170: #{single_block_forward.1} parent=1 // pred_check
      _
    $region171: #{single_block_forward.1} parent=1 // pred_check_branch
      %512 = sbr.rel (0) target = $region173
    $region172: #{single_block_forward.1} parent=1 // pred_region
      %s514 = ssub.s32 16, 16
      %515 = vsyncadd [#allocation54], %s514
      %s517 = sshll.u32 [#allocation55], 4
      %s518 = int_to_ptr.vmem [resolvable:$true] %s517
      %520 = dma.hbm_to_vmem [thread:$0]  %s85, 16, %s518, [#allocation54]
    $region173: #{single_block_forward.1} parent=1 // pred_fallthru
      _
    // Predicated region
    $region174: #{single_block_forward.1} parent=1 // pred_check
      _
    $region175: #{single_block_forward.1} parent=1 // pred_check_branch
      %522 = sbr.rel (0) target = $region177
    $region176: #{single_block_forward.1} parent=1 // pred_region
      %s524 = ssub.s32 512, 512
      %525 = vsyncadd [#allocation57], %s524
      %s526 = sshll.u32 [#allocation56], 4
      %s527 = int_to_ptr.vmem [resolvable:$true] %s526
      %532 = dma.hbm_to_vmem [thread:$0]  %s87, 512, %s527, [#allocation57], 128, 128, 8
    $region177: #{single_block_forward.1} parent=1 // pred_fallthru
      _
    // Predicated region
    $region178: #{single_block_forward.1} parent=1 // pred_check
      _
    $region179: #{single_block_forward.1} parent=1 // pred_check_branch
      %534 = sbr.rel (0) target = $region181
    $region180: #{single_block_forward.1} parent=1 // pred_region
      %s536 = ssub.s32 16, 16
      %537 = vsyncadd [#allocation57], %s536
      %s539 = sshll.u32 [#allocation58], 4
      %s540 = int_to_ptr.vmem [resolvable:$true] %s539
      %542 = dma.hbm_to_vmem [thread:$0]  %s89, 16, %s540, [#allocation57]
    $region181: #{single_block_forward.1} parent=1 // pred_fallthru
      _
    // Predicated region
    $region182: #{single_block_forward.1} parent=1 // pred_check
      _
    $region183: #{single_block_forward.1} parent=1 // pred_check_branch
      %544 = sbr.rel (0) target = $region185
    $region184: #{single_block_forward.1} parent=1 // pred_region
      %s546 = ssub.s32 512, 512
      %547 = vsyncadd [#allocation60], %s546
      %s548 = sshll.u32 [#allocation59], 4
      %s549 = int_to_ptr.vmem [resolvable:$true] %s548
      %554 = dma.hbm_to_vmem [thread:$0]  %s91, 512, %s549, [#allocation60], 128, 128, 8
    $region185: #{single_block_forward.1} parent=1 // pred_fallthru
      _
    // Predicated region
    $region186: #{single_block_forward.1} parent=1 // pred_check
      _
    $region187: #{single_block_forward.1} parent=1 // pred_check_branch
      %556 = sbr.rel (0) target = $region189
    $region188: #{single_block_forward.1} parent=1 // pred_region
      %557 = dma.done [#allocation3], 16
    $region189: #{single_block_forward.1} parent=1 // pred_fallthru
      _
    // Predicated region
    $region190: #{single_block_forward.1} parent=1 // pred_check
      _
    $region191: #{single_block_forward.1} parent=1 // pred_check_branch
      %559 = sbr.rel (0) target = $region193
    $region192: #{single_block_forward.1} parent=1 // pred_region
      %560 = dma.done [#allocation6], 512
    $region193: #{single_block_forward.1} parent=1 // pred_fallthru
      _
    // Predicated region
    $region194: #{single_block_forward.1} parent=1 // pred_check
      _
    $region195: #{single_block_forward.1} parent=1 // pred_check_branch
      %562 = sbr.rel (0) target = $region197
    $region196: #{single_block_forward.1} parent=1 // pred_region
      %563 = dma.done [#allocation6], 16
    $region197: #{single_block_forward.1} parent=1 // pred_fallthru
      _
    // Predicated region
    $region198: #{single_block_forward.1} parent=1 // pred_check
      _
    $region199: #{single_block_forward.1} parent=1 // pred_check_branch
      %565 = sbr.rel (0) target = $region201
    $region200: #{single_block_forward.1} parent=1 // pred_region
      %566 = dma.done [#allocation9], 512
    $region201: #{single_block_forward.1} parent=1 // pred_fallthru
      _
    // Predicated region
    $region202: #{single_block_forward.1} parent=1 // pred_check
      _
    $region203: #{single_block_forward.1} parent=1 // pred_check_branch
      %568 = sbr.rel (0) target = $region205
    $region204: #{single_block_forward.1} parent=1 // pred_region
      %569 = dma.done [#allocation9], 16
    $region205: #{single_block_forward.1} parent=1 // pred_fallthru
      _
    // Predicated region
    $region206: #{single_block_forward.1} parent=1 // pred_check
      _
    $region207: #{single_block_forward.1} parent=1 // pred_check_branch
      %571 = sbr.rel (0) target = $region209
    $region208: #{single_block_forward.1} parent=1 // pred_region
      %572 = dma.done [#allocation12], 512
    $region209: #{single_block_forward.1} parent=1 // pred_fallthru
      _
    // Predicated region
    $region210: #{single_block_forward.1} parent=1 // pred_check
      _
    $region211: #{single_block_forward.1} parent=1 // pred_check_branch
      %574 = sbr.rel (0) target = $region213
    $region212: #{single_block_forward.1} parent=1 // pred_region
      %575 = dma.done [#allocation12], 16
    $region213: #{single_block_forward.1} parent=1 // pred_fallthru
      _
    // Predicated region
    $region214: #{single_block_forward.1} parent=1 // pred_check
      _
    $region215: #{single_block_forward.1} parent=1 // pred_check_branch
      %577 = sbr.rel (0) target = $region217
    $region216: #{single_block_forward.1} parent=1 // pred_region
      %578 = dma.done [#allocation15], 512
    $region217: #{single_block_forward.1} parent=1 // pred_fallthru
      _
    // Predicated region
    $region218: #{single_block_forward.1} parent=1 // pred_check
      _
    $region219: #{single_block_forward.1} parent=1 // pred_check_branch
      %580 = sbr.rel (0) target = $region221
    $region220: #{single_block_forward.1} parent=1 // pred_region
      %581 = dma.done [#allocation15], 16
    $region221: #{single_block_forward.1} parent=1 // pred_fallthru
      _
    // Predicated region
    $region222: #{single_block_forward.1} parent=1 // pred_check
      _
    $region223: #{single_block_forward.1} parent=1 // pred_check_branch
      %583 = sbr.rel (0) target = $region225
    $region224: #{single_block_forward.1} parent=1 // pred_region
      %584 = dma.done [#allocation18], 16
    $region225: #{single_block_forward.1} parent=1 // pred_fallthru
      _
    // Predicated region
    $region226: #{single_block_forward.1} parent=1 // pred_check
      _
    $region227: #{single_block_forward.1} parent=1 // pred_check_branch
      %586 = sbr.rel (0) target = $region229
    $region228: #{single_block_forward.1} parent=1 // pred_region
      %587 = dma.done [#allocation18], 512
    $region229: #{single_block_forward.1} parent=1 // pred_fallthru
      _
    // Predicated region
    $region230: #{single_block_forward.1} parent=1 // pred_check
      _
    $region231: #{single_block_forward.1} parent=1 // pred_check_branch
      %589 = sbr.rel (0) target = $region233
    $region232: #{single_block_forward.1} parent=1 // pred_region
      %590 = dma.done [#allocation21], 16
    $region233: #{single_block_forward.1} parent=1 // pred_fallthru
      _
    // Predicated region
    $region234: #{single_block_forward.1} parent=1 // pred_check
      _
    $region235: #{single_block_forward.1} parent=1 // pred_check_branch
      %592 = sbr.rel (0) target = $region237
    $region236: #{single_block_forward.1} parent=1 // pred_region
      %593 = dma.done [#allocation21], 512
    $region237: #{single_block_forward.1} parent=1 // pred_fallthru
      _
    // Predicated region
    $region238: #{single_block_forward.1} parent=1 // pred_check
      _
    $region239: #{single_block_forward.1} parent=1 // pred_check_branch
      %595 = sbr.rel (0) target = $region241
    $region240: #{single_block_forward.1} parent=1 // pred_region
      %596 = dma.done [#allocation24], 16
    $region241: #{single_block_forward.1} parent=1 // pred_fallthru
      _
    // Predicated region
    $region242: #{single_block_forward.1} parent=1 // pred_check
      _
    $region243: #{single_block_forward.1} parent=1 // pred_check_branch
      %598 = sbr.rel (0) target = $region245
    $region244: #{single_block_forward.1} parent=1 // pred_region
      %599 = dma.done [#allocation24], 512
    $region245: #{single_block_forward.1} parent=1 // pred_fallthru
      _
    // Predicated region
    $region246: #{single_block_forward.1} parent=1 // pred_check
      _
    $region247: #{single_block_forward.1} parent=1 // pred_check_branch
      %601 = sbr.rel (0) target = $region249
    $region248: #{single_block_forward.1} parent=1 // pred_region
      %602 = dma.done [#allocation27], 16
    $region249: #{single_block_forward.1} parent=1 // pred_fallthru
      _
    // Predicated region
    $region250: #{single_block_forward.1} parent=1 // pred_check
      _
    $region251: #{single_block_forward.1} parent=1 // pred_check_branch
      %604 = sbr.rel (0) target = $region253
    $region252: #{single_block_forward.1} parent=1 // pred_region
      %605 = dma.done [#allocation27], 16
    $region253: #{single_block_forward.1} parent=1 // pred_fallthru
      _
    // Predicated region
    $region254: #{single_block_forward.1} parent=1 // pred_check
      _
    $region255: #{single_block_forward.1} parent=1 // pred_check_branch
      %607 = sbr.rel (0) target = $region257
    $region256: #{single_block_forward.1} parent=1 // pred_region
      %608 = dma.done [#allocation30], 512
    $region257: #{single_block_forward.1} parent=1 // pred_fallthru
      _
    // Predicated region
    $region258: #{single_block_forward.1} parent=1 // pred_check
      _
    $region259: #{single_block_forward.1} parent=1 // pred_check_branch
      %610 = sbr.rel (0) target = $region261
    $region260: #{single_block_forward.1} parent=1 // pred_region
      %611 = dma.done [#allocation30], 16
    $region261: #{single_block_forward.1} parent=1 // pred_fallthru
      _
    // Predicated region
    $region262: #{single_block_forward.1} parent=1 // pred_check
      _
    $region263: #{single_block_forward.1} parent=1 // pred_check_branch
      %613 = sbr.rel (0) target = $region265
    $region264: #{single_block_forward.1} parent=1 // pred_region
      %614 = dma.done [#allocation33], 512
    $region265: #{single_block_forward.1} parent=1 // pred_fallthru
      _
    // Predicated region
    $region266: #{single_block_forward.1} parent=1 // pred_check
      _
    $region267: #{single_block_forward.1} parent=1 // pred_check_branch
      %616 = sbr.rel (0) target = $region269
    $region268: #{single_block_forward.1} parent=1 // pred_region
      %617 = dma.done [#allocation33], 16
    $region269: #{single_block_forward.1} parent=1 // pred_fallthru
      _
    // Predicated region
    $region270: #{single_block_forward.1} parent=1 // pred_check
      _
    $region271: #{single_block_forward.1} parent=1 // pred_check_branch
      %619 = sbr.rel (0) target = $region273
    $region272: #{single_block_forward.1} parent=1 // pred_region
      %620 = dma.done [#allocation36], 512
    $region273: #{single_block_forward.1} parent=1 // pred_fallthru
      _
    // Predicated region
    $region274: #{single_block_forward.1} parent=1 // pred_check
      _
    $region275: #{single_block_forward.1} parent=1 // pred_check_branch
      %622 = sbr.rel (0) target = $region277
    $region276: #{single_block_forward.1} parent=1 // pred_region
      %623 = dma.done [#allocation36], 512
    $region277: #{single_block_forward.1} parent=1 // pred_fallthru
      _
    // Predicated region
    $region278: #{single_block_forward.1} parent=1 // pred_check
      _
    $region279: #{single_block_forward.1} parent=1 // pred_check_branch
      %625 = sbr.rel (0) target = $region281
    $region280: #{single_block_forward.1} parent=1 // pred_region
      %626 = dma.done [#allocation39], 16
    $region281: #{single_block_forward.1} parent=1 // pred_fallthru
      _
    // Predicated region
    $region282: #{single_block_forward.1} parent=1 // pred_check
      _
    $region283: #{single_block_forward.1} parent=1 // pred_check_branch
      %628 = sbr.rel (0) target = $region285
    $region284: #{single_block_forward.1} parent=1 // pred_region
      %629 = dma.done [#allocation39], 16
    $region285: #{single_block_forward.1} parent=1 // pred_fallthru
      _
    // Predicated region
    $region286: #{single_block_forward.1} parent=1 // pred_check
      _
    $region287: #{single_block_forward.1} parent=1 // pred_check_branch
      %631 = sbr.rel (0) target = $region289
    $region288: #{single_block_forward.1} parent=1 // pred_region
      %632 = dma.done [#allocation42], 512
    $region289: #{single_block_forward.1} parent=1 // pred_fallthru
      _
    // Predicated region
    $region290: #{single_block_forward.1} parent=1 // pred_check
      _
    $region291: #{single_block_forward.1} parent=1 // pred_check_branch
      %634 = sbr.rel (0) target = $region293
    $region292: #{single_block_forward.1} parent=1 // pred_region
      %635 = dma.done [#allocation42], 16
    $region293: #{single_block_forward.1} parent=1 // pred_fallthru
      _
    // Predicated region
    $region294: #{single_block_forward.1} parent=1 // pred_check
      _
    $region295: #{single_block_forward.1} parent=1 // pred_check_branch
      %637 = sbr.rel (0) target = $region297
    $region296: #{single_block_forward.1} parent=1 // pred_region
      %638 = dma.done [#allocation45], 512
    $region297: #{single_block_forward.1} parent=1 // pred_fallthru
      _
    // Predicated region
    $region298: #{single_block_forward.1} parent=1 // pred_check
      _
    $region299: #{single_block_forward.1} parent=1 // pred_check_branch
      %640 = sbr.rel (0) target = $region301
    $region300: #{single_block_forward.1} parent=1 // pred_region
      %641 = dma.done [#allocation45], 16
    $region301: #{single_block_forward.1} parent=1 // pred_fallthru
      _
    // Predicated region
    $region302: #{single_block_forward.1} parent=1 // pred_check
      _
    $region303: #{single_block_forward.1} parent=1 // pred_check_branch
      %643 = sbr.rel (0) target = $region305
    $region304: #{single_block_forward.1} parent=1 // pred_region
      %644 = dma.done [#allocation48], 512
    $region305: #{single_block_forward.1} parent=1 // pred_fallthru
      _
    // Predicated region
    $region306: #{single_block_forward.1} parent=1 // pred_check
      _
    $region307: #{single_block_forward.1} parent=1 // pred_check_branch
      %646 = sbr.rel (0) target = $region309
    $region308: #{single_block_forward.1} parent=1 // pred_region
      %647 = dma.done [#allocation48], 16
    $region309: #{single_block_forward.1} parent=1 // pred_fallthru
      _
    // Predicated region
    $region310: #{single_block_forward.1} parent=1 // pred_check
      _
    $region311: #{single_block_forward.1} parent=1 // pred_check_branch
      %649 = sbr.rel (0) target = $region313
    $region312: #{single_block_forward.1} parent=1 // pred_region
      %650 = dma.done [#allocation51], 512
    $region313: #{single_block_forward.1} parent=1 // pred_fallthru
      _
    // Predicated region
    $region314: #{single_block_forward.1} parent=1 // pred_check
      _
    $region315: #{single_block_forward.1} parent=1 // pred_check_branch
      %652 = sbr.rel (0) target = $region317
    $region316: #{single_block_forward.1} parent=1 // pred_region
      %653 = dma.done [#allocation51], 16
    $region317: #{single_block_forward.1} parent=1 // pred_fallthru
      _
    // Predicated region
    $region318: #{single_block_forward.1} parent=1 // pred_check
      _
    $region319: #{single_block_forward.1} parent=1 // pred_check_branch
      %655 = sbr.rel (0) target = $region321
    $region320: #{single_block_forward.1} parent=1 // pred_region
      %656 = dma.done [#allocation54], 512
    $region321: #{single_block_forward.1} parent=1 // pred_fallthru
      _
    // Predicated region
    $region322: #{single_block_forward.1} parent=1 // pred_check
      _
    $region323: #{single_block_forward.1} parent=1 // pred_check_branch
      %658 = sbr.rel (0) target = $region325
    $region324: #{single_block_forward.1} parent=1 // pred_region
      %659 = dma.done [#allocation54], 16
    $region325: #{single_block_forward.1} parent=1 // pred_fallthru
      _
    // Predicated region
    $region326: #{single_block_forward.1} parent=1 // pred_check
      _
    $region327: #{single_block_forward.1} parent=1 // pred_check_branch
      %661 = sbr.rel (0) target = $region329
    $region328: #{single_block_forward.1} parent=1 // pred_region
      %662 = dma.done [#allocation57], 512
    $region329: #{single_block_forward.1} parent=1 // pred_fallthru
      _
    // Predicated region
    $region330: #{single_block_forward.1} parent=1 // pred_check
      _
    $region331: #{single_block_forward.1} parent=1 // pred_check_branch
      %664 = sbr.rel (0) target = $region333
    $region332: #{single_block_forward.1} parent=1 // pred_region
      %665 = dma.done [#allocation57], 16
    $region333: #{single_block_forward.1} parent=1 // pred_fallthru
      _
    // Predicated region
    $region334: #{single_block_forward.1} parent=1 // pred_check
      _
    $region335: #{single_block_forward.1} parent=1 // pred_check_branch
      %667 = sbr.rel (0) target = $region337
    $region336: #{single_block_forward.1} parent=1 // pred_region
      %668 = dma.done [#allocation60], 512
    $region337: #{single_block_forward.1} parent=1 // pred_fallthru
      _
    %v669 = vld [vmem:[#allocation2] sm:$0x1]
    %v670 = vld [vmem:[#allocation5] sm:$0xff]
    %v671 = vld [vmem:[#allocation5 + $0x8] sm:$0xff]
    %v672 = vld [vmem:[#allocation5 + $0x10] sm:$0xff]
    %v673 = vld [vmem:[#allocation5 + $0x18] sm:$0xff]
    %v674 = vld [vmem:[#allocation7] sm:$0x1]
    %v675 = vld [vmem:[#allocation8] sm:$0xff]
    %v676 = vld [vmem:[#allocation8 + $0x8] sm:$0xff]
    %v677 = vld [vmem:[#allocation8 + $0x10] sm:$0xff]
    %v678 = vld [vmem:[#allocation8 + $0x18] sm:$0xff]
    %v679 = vld [vmem:[#allocation10] sm:$0x1]
    %v680 = vld [vmem:[#allocation11] sm:$0xff]
    %v681 = vld [vmem:[#allocation11 + $0x8] sm:$0xff]
    %v682 = vld [vmem:[#allocation11 + $0x10] sm:$0xff]
    %v683 = vld [vmem:[#allocation11 + $0x18] sm:$0xff]
    %v684 = vld [vmem:[#allocation13] sm:$0x1]
    %v685 = vld [vmem:[#allocation14] sm:$0xff]
    %v686 = vld [vmem:[#allocation14 + $0x8] sm:$0xff]
    %v687 = vld [vmem:[#allocation14 + $0x10] sm:$0xff]
    %v688 = vld [vmem:[#allocation14 + $0x18] sm:$0xff]
    %v689 = vld [vmem:[#allocation16] sm:$0x1]
    %v690 = vld [vmem:[%s27] sm:$0xff]
    %v691 = vld [vmem:[%s27 + $0x8] sm:$0xff]
    %v692 = vld [vmem:[%s27 + $0x10] sm:$0xff]
    %v693 = vld [vmem:[%s27 + $0x18] sm:$0xff]
    %v694 = vld [vmem:[#allocation17] sm:$0x1]
    %v695 = vld [vmem:[#allocation19] sm:$0xff]
    %v696 = vld [vmem:[#allocation19 + $0x8] sm:$0xff]
    %v697 = vld [vmem:[#allocation19 + $0x10] sm:$0xff]
    %v698 = vld [vmem:[#allocation19 + $0x18] sm:$0xff]
    %v699 = vld [vmem:[#allocation20] sm:$0x1]
    %v700 = vld [vmem:[#allocation22] sm:$0xff]
    %v701 = vld [vmem:[#allocation22 + $0x8] sm:$0xff]
    %v702 = vld [vmem:[#allocation22 + $0x10] sm:$0xff]
    %v703 = vld [vmem:[#allocation22 + $0x18] sm:$0xff]
    %v704 = vld [vmem:[#allocation23] sm:$0x1]
    %v705 = vld [vmem:[#allocation25] sm:$0xff]
    %v706 = vld [vmem:[#allocation25 + $0x8] sm:$0xff]
    %v707 = vld [vmem:[#allocation25 + $0x10] sm:$0xff]
    %v708 = vld [vmem:[#allocation25 + $0x18] sm:$0xff]
    %v709 = vld [vmem:[#allocation26] sm:$0x1]
    %v710 = vld [vmem:[%s43] sm:$0xff]
    %v711 = vld [vmem:[%s43 + $0x8] sm:$0xff]
    %v712 = vld [vmem:[%s43 + $0x10] sm:$0xff]
    %v713 = vld [vmem:[%s43 + $0x18] sm:$0xff]
    %v714 = vld [vmem:[#allocation28] sm:$0x1]
    %v715 = vld [vmem:[#allocation29] sm:$0xff]
    %v716 = vld [vmem:[#allocation29 + $0x8] sm:$0xff]
    %v717 = vld [vmem:[#allocation29 + $0x10] sm:$0xff]
    %v718 = vld [vmem:[#allocation29 + $0x18] sm:$0xff]
    %v719 = vld [vmem:[#allocation31] sm:$0x1]
    %v720 = vld [vmem:[#allocation32] sm:$0xff]
    %v721 = vld [vmem:[#allocation32 + $0x8] sm:$0xff]
    %v722 = vld [vmem:[#allocation32 + $0x10] sm:$0xff]
    %v723 = vld [vmem:[#allocation32 + $0x18] sm:$0xff]
    %v724 = vld [vmem:[#allocation34] sm:$0x1]
    %v725 = vld [vmem:[#allocation35] sm:$0xff]
    %v726 = vld [vmem:[#allocation35 + $0x8] sm:$0xff]
    %v727 = vld [vmem:[#allocation35 + $0x10] sm:$0xff]
    %v728 = vld [vmem:[#allocation35 + $0x18] sm:$0xff]
    %v729 = vld [vmem:[#allocation37] sm:$0xff]
    %v730 = vld [vmem:[#allocation37 + $0x8] sm:$0xff]
    %v731 = vld [vmem:[#allocation37 + $0x10] sm:$0xff]
    %v732 = vld [vmem:[#allocation37 + $0x18] sm:$0xff]
    %v733 = vld [vmem:[#allocation38] sm:$0x1]
    %v734 = vld [vmem:[%s61] sm:$0xff]
    %v735 = vld [vmem:[%s61 + $0x8] sm:$0xff]
    %v736 = vld [vmem:[%s61 + $0x10] sm:$0xff]
    %v737 = vld [vmem:[%s61 + $0x18] sm:$0xff]
    %v738 = vld [vmem:[#allocation40] sm:$0x1]
    %v739 = vld [vmem:[#allocation41] sm:$0xff]
    %v740 = vld [vmem:[#allocation41 + $0x8] sm:$0xff]
    %v741 = vld [vmem:[#allocation41 + $0x10] sm:$0xff]
    %v742 = vld [vmem:[#allocation41 + $0x18] sm:$0xff]
    %v743 = vld [vmem:[#allocation43] sm:$0x1]
    %v744 = vld [vmem:[#allocation44] sm:$0xff]
    %v745 = vld [vmem:[#allocation44 + $0x8] sm:$0xff]
    %v746 = vld [vmem:[#allocation44 + $0x10] sm:$0xff]
    %v747 = vld [vmem:[#allocation44 + $0x18] sm:$0xff]
    %v748 = vld [vmem:[#allocation46] sm:$0x1]
    %v749 = vld [vmem:[#allocation47] sm:$0xff]
    %v750 = vld [vmem:[#allocation47 + $0x8] sm:$0xff]
    %v751 = vld [vmem:[#allocation47 + $0x10] sm:$0xff]
    %v752 = vld [vmem:[#allocation47 + $0x18] sm:$0xff]
    %v753 = vld [vmem:[#allocation49] sm:$0x1]
    %v754 = vld [vmem:[%s77] sm:$0xff]
    %v755 = vld [vmem:[%s77 + $0x8] sm:$0xff]
    %v756 = vld [vmem:[%s77 + $0x10] sm:$0xff]
    %v757 = vld [vmem:[%s77 + $0x18] sm:$0xff]
    %v758 = vld [vmem:[#allocation50] sm:$0xff]
    %v759 = vld [vmem:[#allocation50 + $0x8] sm:$0xff]
    %v760 = vld [vmem:[#allocation50 + $0x10] sm:$0xff]
    %v761 = vld [vmem:[#allocation50 + $0x18] sm:$0xff]
    %v762 = vld [vmem:[#allocation52] sm:$0x1]
    %v763 = vld [vmem:[#allocation53] sm:$0xff]
    %v764 = vld [vmem:[#allocation53 + $0x8] sm:$0xff]
    %v765 = vld [vmem:[#allocation53 + $0x10] sm:$0xff]
    %v766 = vld [vmem:[#allocation53 + $0x18] sm:$0xff]
    %v767 = vld [vmem:[#allocation55] sm:$0x1]
    %v768 = vld [vmem:[#allocation56] sm:$0xff]
    %v769 = vld [vmem:[#allocation56 + $0x8] sm:$0xff]
    %v770 = vld [vmem:[#allocation56 + $0x10] sm:$0xff]
    %v771 = vld [vmem:[#allocation56 + $0x18] sm:$0xff]
    %v772 = vld [vmem:[#allocation58] sm:$0x1]
    %v773 = vld [vmem:[#allocation59] sm:$0xff]
    %v774 = vld [vmem:[#allocation59 + $0x8] sm:$0xff]
    %v775 = vld [vmem:[#allocation59 + $0x10] sm:$0xff]
    %v776 = vld [vmem:[#allocation59 + $0x18] sm:$0xff]
    %v777 = vld [vmem:[%s1] sm:$0xff]
    %v778 = vld [vmem:[%s1 + $0x8] sm:$0xff]
    %v779 = vld [vmem:[%s3] sm:$0xff]
    %v780 = vld [vmem:[%s3 + $0x8] sm:$0xff]
    %v781 = vld [vmem:[%s5] sm:$0x3]
    %v782 = vld [vmem:[%s7] sm:$0x3]
    %v783 = vlaneseq
    %v784 = vshrl.u32 %v783, 7
    %v785 = vsub.s32 0, %v784
    %v786 = vrot.slane %v781, %v785
    %788 = vbcast.lane.b32.xlu0 %v786, 256
    %v789 = vpop.permute.xlu0 %788
    %v790 = vlaneseq
    %v791 = vshrl.u32 %v790, 7
    %v792 = vsub.s32 1, %v791
    %v793 = vrot.slane %v781, %v792
    %795 = vbcast.lane.b32.xlu0 %v793, 256
    %v796 = vpop.permute.xlu0 %795
    %v797 = vlaneseq
    %v798 = vshrl.u32 %v797, 7
    %v799 = vsub.s32 0, %v798
    %v800 = vrot.slane %v782, %v799
    %802 = vbcast.lane.b32.xlu0 %v800, 256
    %v803 = vpop.permute.xlu0 %802
    %v804 = vlaneseq
    %v805 = vshrl.u32 %v804, 7
    %v806 = vsub.s32 1, %v805
    %v807 = vrot.slane %v782, %v806
    %809 = vbcast.lane.b32.xlu0 %v807, 256
    %v810 = vpop.permute.xlu0 %809
    %v811 = vsub.f32 1.0, %v781
    %v812 = vmul.f32 %v811, -1e+30
    %v815 = vunpack.c.l.s4 1966171168
    %v816 = vunpack.c.0.s8 %v815
    %v817 = vlaneseq
    %v818 = vshrl.u32 %v817, 7
    %v819 = vsub.s32 %v816, %v818
    %v820 = vrot.slane %v812, %v819
    %v821 = vcombine.high %v820, %v820
    %v823 = vunpack.c.l.s4 1966171168
    %v824 = vunpack.c.0.s8 %v823
    %v825 = vlaneseq
    %v826 = vshrl.u32 %v825, 7
    %v827 = vsub.s32 %v824, %v826
    %v828 = vrot.slane %v820, %v827
    %v830 = vunpack.c.l.s4 1966171168
    %v831 = vunpack.c.0.s8 %v830
    %v832 = vlaneseq
    %v833 = vshrl.u32 %v832, 7
    %v834 = vsub.s32 %v831, %v833
    %v835 = vrot.slane %v821, %v834
    %v836 = vsub.f32 1.0, %v782
    %v837 = vmul.f32 %v836, -1e+30
    %v840 = vunpack.c.l.s4 1966171168
    %v841 = vunpack.c.0.s8 %v840
    %v842 = vlaneseq
    %v843 = vshrl.u32 %v842, 7
    %v844 = vsub.s32 %v841, %v843
    %v845 = vrot.slane %v837, %v844
    %v846 = vcombine.high %v845, %v845
    %v848 = vunpack.c.l.s4 1966171168
    %v849 = vunpack.c.0.s8 %v848
    %v850 = vlaneseq
    %v851 = vshrl.u32 %v850, 7
    %v852 = vsub.s32 %v849, %v851
    %v853 = vrot.slane %v845, %v852
    %v855 = vunpack.c.l.s4 1966171168
    %v856 = vunpack.c.0.s8 %v855
    %v857 = vlaneseq
    %v858 = vshrl.u32 %v857, 7
    %v859 = vsub.s32 %v856, %v858
    %v860 = vrot.slane %v846, %v859
    %v862 = vlaneseq
    %v863 = vshrl.u32 %v862, 7
    %v864 = vsub.s32 0, %v863
    %v865 = vrot.slane %v772, %v864
    %vm867 = vcmask 261120
    %v869 = vsel %vm867, %v777, 0
    %v872 = vsel %vm867, %v778, 0
    %874 = vmatprep.subr.mxu0 0.0
    %875 = vmatpush1.msra.mxu0 %v773
    %876 = vmatprep.subr.mxu0 0.0
    %877 = vmatpush1.msra.mxu0 %v774
    %878 = vmatprep.subr.mxu0 0.0
    %879 = vmatpush1.msra.mxu0 %v775
    %880 = vmatprep.subr.mxu0 0.0
    %881 = vmatpush1.msra.mxu0 %v776
    %882 = vmatprep.subr.mxu0 0.0
    %883 = vmatpush1.msra.mxu0 0.0
    %884 = vmatprep.subr.mxu0 0.0
    %885 = vmatpush1.msra.mxu0 0.0
    %886 = vmatprep.subr.mxu0 0.0
    %887 = vmatpush1.msra.mxu0 0.0
    %888 = vmatprep.subr.mxu0 0.0
    %889 = vmatpush1.msra.mxu0 0.0
    %890 = vmatprep.subr.mxu0 0.0
    %891 = vmatpush1.msra.mxu0 0.0
    %892 = vmatprep.subr.mxu0 0.0
    %893 = vmatpush1.msra.mxu0 0.0
    %894 = vmatprep.subr.mxu0 0.0
    %895 = vmatpush1.msra.mxu0 0.0
    %896 = vmatprep.subr.mxu0 0.0
    %897 = vmatpush1.msra.mxu0 0.0
    %898 = vmatprep.subr.mxu0 0.0
    %899 = vmatpush1.msra.mxu0 0.0
    %900 = vmatprep.subr.mxu0 0.0
    %901 = vmatpush1.msra.mxu0 0.0
    %902 = vmatprep.subr.mxu0 0.0
    %903 = vmatpush1.msra.mxu0 0.0
    %904 = vmatprep.subr.mxu0 0.0
    %905 = vmatpush1.msra.mxu0 0.0
    %906 = vmatprep.subr.mxu0 0.0
    %907 = vmatpush1.msra.mxu0 0.0
    %908 = vmatprep.subr.mxu0 0.0
    %909 = vmatpush1.msra.mxu0 0.0
    %910 = vmatprep.subr.mxu0 0.0
    %911 = vmatpush1.msra.mxu0 0.0
    %912 = vmatprep.subr.mxu0 0.0
    %913 = vmatpush1.msra.mxu0 0.0
    %914 = vmatprep.subr.mxu0 0.0
    %915 = vmatpush1.msra.mxu0 0.0
    %916 = vmatprep.subr.mxu0 0.0
    %917 = vmatpush1.msra.mxu0 0.0
    %918 = vmatprep.subr.mxu0 0.0
    %919 = vmatpush1.msra.mxu0 0.0
    %920 = vmatprep.subr.mxu0 0.0
    %921 = vmatpush1.msra.mxu0 0.0
    %922 = vmatprep.subr.mxu0 0.0
    %923 = vmatpush1.msra.mxu0 0.0
    %924 = vmatprep.subr.mxu0 0.0
    %925 = vmatpush1.msra.mxu0 0.0
    %926 = vmatprep.subr.mxu0 0.0
    %927 = vmatpush1.msra.mxu0 0.0
    %928 = vmatprep.subr.mxu0 0.0
    %929 = vmatpush1.msra.mxu0 0.0
    %930 = vmatprep.subr.mxu0 0.0
    %931 = vmatpush1.msra.mxu0 0.0
    %932 = vmatprep.subr.mxu0 0.0
    %933 = vmatpush1.msra.mxu0 0.0
    %934 = vmatprep.subr.mxu0 0.0
    %935 = vmatpush1.msra.mxu0 0.0
    %936 = vmatprep.subr.mxu0 0.0
    %937 = vmatpush1.msra.mxu0 0.0
    %938 = vmatprep.mubr.f32.mxu0 0.0
    %939 = vmatmul.mubr.f32.gmra.mrb[0].mxu0 %v869
    %v940 = vpop.f32.mrb[0].mxu0
    %v941 = vadd.f32 %v865, %v940
    %v942 = vpop.f32.mrb[0].mxu0
    %943 = vmatprep.mubr.f32.mxu0 0.0
    %944 = vmatmul.mubr.f32.gmra.mrb[0].mxu0 %v872
    %v945 = vpop.f32.mrb[0].mxu0
    %v946 = vadd.f32 %v865, %v945
    %v947 = vpop.f32.mrb[0].mxu0
    %948 = vdwg.mxu0
    %v950 = vlaneseq
    %v951 = vshrl.u32 %v950, 7
    %v952 = vsub.s32 0, %v951
    %v953 = vrot.slane %v743, %v952
    %v956 = vsel %vm867, %v779, 0
    %v959 = vsel %vm867, %v780, 0
    %961 = vmatprep.subr.mxu0 0.0
    %962 = vmatpush1.msra.mxu0 %v744
    %963 = vmatprep.subr.mxu0 0.0
    %964 = vmatpush1.msra.mxu0 %v745
    %965 = vmatprep.subr.mxu0 0.0
    %966 = vmatpush1.msra.mxu0 %v746
    %967 = vmatprep.subr.mxu0 0.0
    %968 = vmatpush1.msra.mxu0 %v747
    %969 = vmatprep.subr.mxu0 0.0
    %970 = vmatpush1.msra.mxu0 0.0
    %971 = vmatprep.subr.mxu0 0.0
    %972 = vmatpush1.msra.mxu0 0.0
    %973 = vmatprep.subr.mxu0 0.0
    %974 = vmatpush1.msra.mxu0 0.0
    %975 = vmatprep.subr.mxu0 0.0
    %976 = vmatpush1.msra.mxu0 0.0
    %977 = vmatprep.subr.mxu0 0.0
    %978 = vmatpush1.msra.mxu0 0.0
    %979 = vmatprep.subr.mxu0 0.0
    %980 = vmatpush1.msra.mxu0 0.0
    %981 = vmatprep.subr.mxu0 0.0
    %982 = vmatpush1.msra.mxu0 0.0
    %983 = vmatprep.subr.mxu0 0.0
    %984 = vmatpush1.msra.mxu0 0.0
    %985 = vmatprep.subr.mxu0 0.0
    %986 = vmatpush1.msra.mxu0 0.0
    %987 = vmatprep.subr.mxu0 0.0
    %988 = vmatpush1.msra.mxu0 0.0
    %989 = vmatprep.subr.mxu0 0.0
    %990 = vmatpush1.msra.mxu0 0.0
    %991 = vmatprep.subr.mxu0 0.0
    %992 = vmatpush1.msra.mxu0 0.0
    %993 = vmatprep.subr.mxu0 0.0
    %994 = vmatpush1.msra.mxu0 0.0
    %995 = vmatprep.subr.mxu0 0.0
    %996 = vmatpush1.msra.mxu0 0.0
    %997 = vmatprep.subr.mxu0 0.0
    %998 = vmatpush1.msra.mxu0 0.0
    %999 = vmatprep.subr.mxu0 0.0
    %1000 = vmatpush1.msra.mxu0 0.0
    %1001 = vmatprep.subr.mxu0 0.0
    %1002 = vmatpush1.msra.mxu0 0.0
    %1003 = vmatprep.subr.mxu0 0.0
    %1004 = vmatpush1.msra.mxu0 0.0
    %1005 = vmatprep.subr.mxu0 0.0
    %1006 = vmatpush1.msra.mxu0 0.0
    %1007 = vmatprep.subr.mxu0 0.0
    %1008 = vmatpush1.msra.mxu0 0.0
    %1009 = vmatprep.subr.mxu0 0.0
    %1010 = vmatpush1.msra.mxu0 0.0
    %1011 = vmatprep.subr.mxu0 0.0
    %1012 = vmatpush1.msra.mxu0 0.0
    %1013 = vmatprep.subr.mxu0 0.0
    %1014 = vmatpush1.msra.mxu0 0.0
    %1015 = vmatprep.subr.mxu0 0.0
    %1016 = vmatpush1.msra.mxu0 0.0
    %1017 = vmatprep.subr.mxu0 0.0
    %1018 = vmatpush1.msra.mxu0 0.0
    %1019 = vmatprep.subr.mxu0 0.0
    %1020 = vmatpush1.msra.mxu0 0.0
    %1021 = vmatprep.subr.mxu0 0.0
    %1022 = vmatpush1.msra.mxu0 0.0
    %1023 = vmatprep.subr.mxu0 0.0
    %1024 = vmatpush1.msra.mxu0 0.0
    %1025 = vmatprep.mubr.f32.mxu0 0.0
    %1026 = vmatmul.mubr.f32.gmra.mrb[0].mxu0 %v956
    %v1027 = vpop.f32.mrb[0].mxu0
    %v1028 = vadd.f32 %v953, %v1027
    %v1029 = vpop.f32.mrb[0].mxu0
    %1030 = vmatprep.mubr.f32.mxu0 0.0
    %1031 = vmatmul.mubr.f32.gmra.mrb[0].mxu0 %v959
    %v1032 = vpop.f32.mrb[0].mxu0
    %v1033 = vadd.f32 %v953, %v1032
    %v1034 = vpop.f32.mrb[0].mxu0
    %1035 = vdwg.mxu0
    %v1037 = vlaneseq
    %v1038 = vshrl.u32 %v1037, 7
    %v1039 = vsub.s32 0, %v1038
    %v1040 = vrot.slane %v748, %v1039
    %v1043 = vsel %vm867, %v941, 0
    %v1046 = vsel %vm867, %v946, 0
    %1048 = vmatprep.subr.mxu0 0.0
    %1049 = vmatpush1.msra.mxu0 %v749
    %1050 = vmatprep.subr.mxu0 0.0
    %1051 = vmatpush1.msra.mxu0 %v750
    %1052 = vmatprep.subr.mxu0 0.0
    %1053 = vmatpush1.msra.mxu0 %v751
    %1054 = vmatprep.subr.mxu0 0.0
    %1055 = vmatpush1.msra.mxu0 %v752
    %1056 = vmatprep.subr.mxu0 0.0
    %1057 = vmatpush1.msra.mxu0 0.0
    %1058 = vmatprep.subr.mxu0 0.0
    %1059 = vmatpush1.msra.mxu0 0.0
    %1060 = vmatprep.subr.mxu0 0.0
    %1061 = vmatpush1.msra.mxu0 0.0
    %1062 = vmatprep.subr.mxu0 0.0
    %1063 = vmatpush1.msra.mxu0 0.0
    %1064 = vmatprep.subr.mxu0 0.0
    %1065 = vmatpush1.msra.mxu0 0.0
    %1066 = vmatprep.subr.mxu0 0.0
    %1067 = vmatpush1.msra.mxu0 0.0
    %1068 = vmatprep.subr.mxu0 0.0
    %1069 = vmatpush1.msra.mxu0 0.0
    %1070 = vmatprep.subr.mxu0 0.0
    %1071 = vmatpush1.msra.mxu0 0.0
    %1072 = vmatprep.subr.mxu0 0.0
    %1073 = vmatpush1.msra.mxu0 0.0
    %1074 = vmatprep.subr.mxu0 0.0
    %1075 = vmatpush1.msra.mxu0 0.0
    %1076 = vmatprep.subr.mxu0 0.0
    %1077 = vmatpush1.msra.mxu0 0.0
    %1078 = vmatprep.subr.mxu0 0.0
    %1079 = vmatpush1.msra.mxu0 0.0
    %1080 = vmatprep.subr.mxu0 0.0
    %1081 = vmatpush1.msra.mxu0 0.0
    %1082 = vmatprep.subr.mxu0 0.0
    %1083 = vmatpush1.msra.mxu0 0.0
    %1084 = vmatprep.subr.mxu0 0.0
    %1085 = vmatpush1.msra.mxu0 0.0
    %1086 = vmatprep.subr.mxu0 0.0
    %1087 = vmatpush1.msra.mxu0 0.0
    %1088 = vmatprep.subr.mxu0 0.0
    %1089 = vmatpush1.msra.mxu0 0.0
    %1090 = vmatprep.subr.mxu0 0.0
    %1091 = vmatpush1.msra.mxu0 0.0
    %1092 = vmatprep.subr.mxu0 0.0
    %1093 = vmatpush1.msra.mxu0 0.0
    %1094 = vmatprep.subr.mxu0 0.0
    %1095 = vmatpush1.msra.mxu0 0.0
    %1096 = vmatprep.subr.mxu0 0.0
    %1097 = vmatpush1.msra.mxu0 0.0
    %1098 = vmatprep.subr.mxu0 0.0
    %1099 = vmatpush1.msra.mxu0 0.0
    %1100 = vmatprep.subr.mxu0 0.0
    %1101 = vmatpush1.msra.mxu0 0.0
    %1102 = vmatprep.subr.mxu0 0.0
    %1103 = vmatpush1.msra.mxu0 0.0
    %1104 = vmatprep.subr.mxu0 0.0
    %1105 = vmatpush1.msra.mxu0 0.0
    %1106 = vmatprep.subr.mxu0 0.0
    %1107 = vmatpush1.msra.mxu0 0.0
    %1108 = vmatprep.subr.mxu0 0.0
    %1109 = vmatpush1.msra.mxu0 0.0
    %1110 = vmatprep.subr.mxu0 0.0
    %1111 = vmatpush1.msra.mxu0 0.0
    %1112 = vmatprep.mubr.f32.mxu0 0.0
    %1113 = vmatmul.mubr.f32.gmra.mrb[0].mxu0 %v1043
    %v1114 = vpop.f32.mrb[0].mxu0
    %v1115 = vadd.f32 %v1040, %v1114
    %v1116 = vpop.f32.mrb[0].mxu0
    %1117 = vmatprep.mubr.f32.mxu0 0.0
    %1118 = vmatmul.mubr.f32.gmra.mrb[0].mxu0 %v1046
    %v1119 = vpop.f32.mrb[0].mxu0
    %v1120 = vadd.f32 %v1040, %v1119
    %v1121 = vpop.f32.mrb[0].mxu0
    %1122 = vdwg.mxu0
    %v1123 = vmul.f32 %v1115, %v789
    %v1124 = vmul.f32 %v1120, %v796
    %v1126 = vlaneseq
    %v1127 = vshrl.u32 %v1126, 7
    %v1128 = vsub.s32 0, %v1127
    %v1129 = vrot.slane %v767, %v1128
    %1131 = vmatprep.subr.mxu0 0.0
    %1132 = vmatpush1.msra.mxu0 %v768
    %1133 = vmatprep.subr.mxu0 0.0
    %1134 = vmatpush1.msra.mxu0 %v769
    %1135 = vmatprep.subr.mxu0 0.0
    %1136 = vmatpush1.msra.mxu0 %v770
    %1137 = vmatprep.subr.mxu0 0.0
    %1138 = vmatpush1.msra.mxu0 %v771
    %1139 = vmatprep.subr.mxu0 0.0
    %1140 = vmatpush1.msra.mxu0 0.0
    %1141 = vmatprep.subr.mxu0 0.0
    %1142 = vmatpush1.msra.mxu0 0.0
    %1143 = vmatprep.subr.mxu0 0.0
    %1144 = vmatpush1.msra.mxu0 0.0
    %1145 = vmatprep.subr.mxu0 0.0
    %1146 = vmatpush1.msra.mxu0 0.0
    %1147 = vmatprep.subr.mxu0 0.0
    %1148 = vmatpush1.msra.mxu0 0.0
    %1149 = vmatprep.subr.mxu0 0.0
    %1150 = vmatpush1.msra.mxu0 0.0
    %1151 = vmatprep.subr.mxu0 0.0
    %1152 = vmatpush1.msra.mxu0 0.0
    %1153 = vmatprep.subr.mxu0 0.0
    %1154 = vmatpush1.msra.mxu0 0.0
    %1155 = vmatprep.subr.mxu0 0.0
    %1156 = vmatpush1.msra.mxu0 0.0
    %1157 = vmatprep.subr.mxu0 0.0
    %1158 = vmatpush1.msra.mxu0 0.0
    %1159 = vmatprep.subr.mxu0 0.0
    %1160 = vmatpush1.msra.mxu0 0.0
    %1161 = vmatprep.subr.mxu0 0.0
    %1162 = vmatpush1.msra.mxu0 0.0
    %1163 = vmatprep.subr.mxu0 0.0
    %1164 = vmatpush1.msra.mxu0 0.0
    %1165 = vmatprep.subr.mxu0 0.0
    %1166 = vmatpush1.msra.mxu0 0.0
    %1167 = vmatprep.subr.mxu0 0.0
    %1168 = vmatpush1.msra.mxu0 0.0
    %1169 = vmatprep.subr.mxu0 0.0
    %1170 = vmatpush1.msra.mxu0 0.0
    %1171 = vmatprep.subr.mxu0 0.0
    %1172 = vmatpush1.msra.mxu0 0.0
    %1173 = vmatprep.subr.mxu0 0.0
    %1174 = vmatpush1.msra.mxu0 0.0
    %1175 = vmatprep.subr.mxu0 0.0
    %1176 = vmatpush1.msra.mxu0 0.0
    %1177 = vmatprep.subr.mxu0 0.0
    %1178 = vmatpush1.msra.mxu0 0.0
    %1179 = vmatprep.subr.mxu0 0.0
    %1180 = vmatpush1.msra.mxu0 0.0
    %1181 = vmatprep.subr.mxu0 0.0
    %1182 = vmatpush1.msra.mxu0 0.0
    %1183 = vmatprep.subr.mxu0 0.0
    %1184 = vmatpush1.msra.mxu0 0.0
    %1185 = vmatprep.subr.mxu0 0.0
    %1186 = vmatpush1.msra.mxu0 0.0
    %1187 = vmatprep.subr.mxu0 0.0
    %1188 = vmatpush1.msra.mxu0 0.0
    %1189 = vmatprep.subr.mxu0 0.0
    %1190 = vmatpush1.msra.mxu0 0.0
    %1191 = vmatprep.subr.mxu0 0.0
    %1192 = vmatpush1.msra.mxu0 0.0
    %1193 = vmatprep.subr.mxu0 0.0
    %1194 = vmatpush1.msra.mxu0 0.0
    %1195 = vmatprep.mubr.f32.mxu0 0.0
    %1196 = vmatmul.mubr.f32.gmra.mrb[0].mxu0 %v1043
    %v1197 = vpop.f32.mrb[0].mxu0
    %v1198 = vadd.f32 %v1129, %v1197
    %v1199 = vpop.f32.mrb[0].mxu0
    %1200 = vmatprep.mubr.f32.mxu0 0.0
    %1201 = vmatmul.mubr.f32.gmra.mrb[0].mxu0 %v1046
    %v1202 = vpop.f32.mrb[0].mxu0
    %v1203 = vadd.f32 %v1129, %v1202
    %v1204 = vpop.f32.mrb[0].mxu0
    %1205 = vdwg.mxu0
    %v1206 = vmul.f32 %v1198, %v789
    %v1207 = vmul.f32 %v1203, %v796
    %v1209 = vlaneseq
    %v1210 = vshrl.u32 %v1209, 7
    %v1211 = vsub.s32 0, %v1210
    %v1212 = vrot.slane %v762, %v1211
    %v1215 = vsel %vm867, %v1028, 0
    %v1218 = vsel %vm867, %v1033, 0
    %1220 = vmatprep.subr.mxu0 0.0
    %1221 = vmatpush1.msra.mxu0 %v763
    %1222 = vmatprep.subr.mxu0 0.0
    %1223 = vmatpush1.msra.mxu0 %v764
    %1224 = vmatprep.subr.mxu0 0.0
    %1225 = vmatpush1.msra.mxu0 %v765
    %1226 = vmatprep.subr.mxu0 0.0
    %1227 = vmatpush1.msra.mxu0 %v766
    %1228 = vmatprep.subr.mxu0 0.0
    %1229 = vmatpush1.msra.mxu0 0.0
    %1230 = vmatprep.subr.mxu0 0.0
    %1231 = vmatpush1.msra.mxu0 0.0
    %1232 = vmatprep.subr.mxu0 0.0
    %1233 = vmatpush1.msra.mxu0 0.0
    %1234 = vmatprep.subr.mxu0 0.0
    %1235 = vmatpush1.msra.mxu0 0.0
    %1236 = vmatprep.subr.mxu0 0.0
    %1237 = vmatpush1.msra.mxu0 0.0
    %1238 = vmatprep.subr.mxu0 0.0
    %1239 = vmatpush1.msra.mxu0 0.0
    %1240 = vmatprep.subr.mxu0 0.0
    %1241 = vmatpush1.msra.mxu0 0.0
    %1242 = vmatprep.subr.mxu0 0.0
    %1243 = vmatpush1.msra.mxu0 0.0
    %1244 = vmatprep.subr.mxu0 0.0
    %1245 = vmatpush1.msra.mxu0 0.0
    %1246 = vmatprep.subr.mxu0 0.0
    %1247 = vmatpush1.msra.mxu0 0.0
    %1248 = vmatprep.subr.mxu0 0.0
    %1249 = vmatpush1.msra.mxu0 0.0
    %1250 = vmatprep.subr.mxu0 0.0
    %1251 = vmatpush1.msra.mxu0 0.0
    %1252 = vmatprep.subr.mxu0 0.0
    %1253 = vmatpush1.msra.mxu0 0.0
    %1254 = vmatprep.subr.mxu0 0.0
    %1255 = vmatpush1.msra.mxu0 0.0
    %1256 = vmatprep.subr.mxu0 0.0
    %1257 = vmatpush1.msra.mxu0 0.0
    %1258 = vmatprep.subr.mxu0 0.0
    %1259 = vmatpush1.msra.mxu0 0.0
    %1260 = vmatprep.subr.mxu0 0.0
    %1261 = vmatpush1.msra.mxu0 0.0
    %1262 = vmatprep.subr.mxu0 0.0
    %1263 = vmatpush1.msra.mxu0 0.0
    %1264 = vmatprep.subr.mxu0 0.0
    %1265 = vmatpush1.msra.mxu0 0.0
    %1266 = vmatprep.subr.mxu0 0.0
    %1267 = vmatpush1.msra.mxu0 0.0
    %1268 = vmatprep.subr.mxu0 0.0
    %1269 = vmatpush1.msra.mxu0 0.0
    %1270 = vmatprep.subr.mxu0 0.0
    %1271 = vmatpush1.msra.mxu0 0.0
    %1272 = vmatprep.subr.mxu0 0.0
    %1273 = vmatpush1.msra.mxu0 0.0
    %1274 = vmatprep.subr.mxu0 0.0
    %1275 = vmatpush1.msra.mxu0 0.0
    %1276 = vmatprep.subr.mxu0 0.0
    %1277 = vmatpush1.msra.mxu0 0.0
    %1278 = vmatprep.subr.mxu0 0.0
    %1279 = vmatpush1.msra.mxu0 0.0
    %1280 = vmatprep.subr.mxu0 0.0
    %1281 = vmatpush1.msra.mxu0 0.0
    %1282 = vmatprep.subr.mxu0 0.0
    %1283 = vmatpush1.msra.mxu0 0.0
    %1284 = vmatprep.mubr.f32.mxu0 0.0
    %1285 = vmatmul.mubr.f32.gmra.mrb[0].mxu0 %v1215
    %v1286 = vpop.f32.mrb[0].mxu0
    %v1287 = vadd.f32 %v1212, %v1286
    %v1288 = vpop.f32.mrb[0].mxu0
    %1289 = vmatprep.mubr.f32.mxu0 0.0
    %1290 = vmatmul.mubr.f32.gmra.mrb[0].mxu0 %v1218
    %v1291 = vpop.f32.mrb[0].mxu0
    %v1292 = vadd.f32 %v1212, %v1291
    %v1293 = vpop.f32.mrb[0].mxu0
    %1294 = vdwg.mxu0
    %v1295 = vmul.f32 %v1287, %v803
    %v1296 = vmul.f32 %v1292, %v810
    %v1297 = vlaneseq
    %v1298 = vshrl.u32 %v1297, 7
    %v1299 = vsub.s32 0, %v1298
    %v1300 = vrot.slane %v828, %v1299
    %v1301 = vlaneseq
    %v1302 = vshrl.u32 %v1301, 7
    %v1303 = vsub.s32 0, %v1302
    %v1304 = vrot.slane %v835, %v1303
    %vm1307 = vcmask 130048
    %v1309 = vsel %vm1307, %v1295, 0
    %v1312 = vsel %vm1307, %v1123, 0
    %1314 = vmatprep.subr.mxu0 0.0
    %1315 = vmatpush1.xpose.msra.mxu0 %v1312
    %1316 = vmatprep.subr.mxu0 0.0
    %1317 = vmatpush1.xpose.msra.mxu0 0.0
    %1318 = vmatprep.subr.mxu0 0.0
    %1319 = vmatpush1.xpose.msra.mxu0 0.0
    %1320 = vmatprep.subr.mxu0 0.0
    %1321 = vmatpush1.xpose.msra.mxu0 0.0
    %1322 = vmatprep.subr.mxu0 0.0
    %1323 = vmatpush1.xpose.msra.mxu0 0.0
    %1324 = vmatprep.subr.mxu0 0.0
    %1325 = vmatpush1.xpose.msra.mxu0 0.0
    %1326 = vmatprep.subr.mxu0 0.0
    %1327 = vmatpush1.xpose.msra.mxu0 0.0
    %1328 = vmatprep.subr.mxu0 0.0
    %1329 = vmatpush1.xpose.msra.mxu0 0.0
    %1330 = vmatprep.subr.mxu0 0.0
    %1331 = vmatpush1.xpose.msra.mxu0 0.0
    %1332 = vmatprep.subr.mxu0 0.0
    %1333 = vmatpush1.xpose.msra.mxu0 0.0
    %1334 = vmatprep.subr.mxu0 0.0
    %1335 = vmatpush1.xpose.msra.mxu0 0.0
    %1336 = vmatprep.subr.mxu0 0.0
    %1337 = vmatpush1.xpose.msra.mxu0 0.0
    %1338 = vmatprep.subr.mxu0 0.0
    %1339 = vmatpush1.xpose.msra.mxu0 0.0
    %1340 = vmatprep.subr.mxu0 0.0
    %1341 = vmatpush1.xpose.msra.mxu0 0.0
    %1342 = vmatprep.subr.mxu0 0.0
    %1343 = vmatpush1.xpose.msra.mxu0 0.0
    %1344 = vmatprep.subr.mxu0 0.0
    %1345 = vmatpush1.xpose.msra.mxu0 0.0
    %1346 = vmatprep.subr.mxu0 0.0
    %1347 = vmatpush1.xpose.msra.mxu0 0.0
    %1348 = vmatprep.subr.mxu0 0.0
    %1349 = vmatpush1.xpose.msra.mxu0 0.0
    %1350 = vmatprep.subr.mxu0 0.0
    %1351 = vmatpush1.xpose.msra.mxu0 0.0
    %1352 = vmatprep.subr.mxu0 0.0
    %1353 = vmatpush1.xpose.msra.mxu0 0.0
    %1354 = vmatprep.subr.mxu0 0.0
    %1355 = vmatpush1.xpose.msra.mxu0 0.0
    %1356 = vmatprep.subr.mxu0 0.0
    %1357 = vmatpush1.xpose.msra.mxu0 0.0
    %1358 = vmatprep.subr.mxu0 0.0
    %1359 = vmatpush1.xpose.msra.mxu0 0.0
    %1360 = vmatprep.subr.mxu0 0.0
    %1361 = vmatpush1.xpose.msra.mxu0 0.0
    %1362 = vmatprep.subr.mxu0 0.0
    %1363 = vmatpush1.xpose.msra.mxu0 0.0
    %1364 = vmatprep.subr.mxu0 0.0
    %1365 = vmatpush1.xpose.msra.mxu0 0.0
    %1366 = vmatprep.subr.mxu0 0.0
    %1367 = vmatpush1.xpose.msra.mxu0 0.0
    %1368 = vmatprep.subr.mxu0 0.0
    %1369 = vmatpush1.xpose.msra.mxu0 0.0
    %1370 = vmatprep.subr.mxu0 0.0
    %1371 = vmatpush1.xpose.msra.mxu0 0.0
    %1372 = vmatprep.subr.mxu0 0.0
    %1373 = vmatpush1.xpose.msra.mxu0 0.0
    %1374 = vmatprep.subr.mxu0 0.0
    %1375 = vmatpush1.xpose.msra.mxu0 0.0
    %1376 = vmatprep.subr.mxu0 0.0
    %1377 = vmatpush1.xpose.msra.mxu0 0.0
    %1378 = vmatprep.mubr.f32.mxu0 0.0
    %1379 = vmatmul.mubr.f32.gmra.mrb[0].mxu0 %v1309
    %v1380 = vpop.f32.mrb[0].mxu0
    %v1381 = vadd.f32 %v1300, %v1380
    %v1382 = vpop.f32.mrb[0].mxu0
    %1383 = vdwg.mxu0
    %v1385 = vsel %vm1307, %v1296, 0
    %v1388 = vsel %vm1307, %v1124, 0
    %1390 = vmatprep.subr.mxu0 0.0
    %1391 = vmatpush1.xpose.msra.mxu0 %v1388
    %1392 = vmatprep.subr.mxu0 0.0
    %1393 = vmatpush1.xpose.msra.mxu0 0.0
    %1394 = vmatprep.subr.mxu0 0.0
    %1395 = vmatpush1.xpose.msra.mxu0 0.0
    %1396 = vmatprep.subr.mxu0 0.0
    %1397 = vmatpush1.xpose.msra.mxu0 0.0
    %1398 = vmatprep.subr.mxu0 0.0
    %1399 = vmatpush1.xpose.msra.mxu0 0.0
    %1400 = vmatprep.subr.mxu0 0.0
    %1401 = vmatpush1.xpose.msra.mxu0 0.0
    %1402 = vmatprep.subr.mxu0 0.0
    %1403 = vmatpush1.xpose.msra.mxu0 0.0
    %1404 = vmatprep.subr.mxu0 0.0
    %1405 = vmatpush1.xpose.msra.mxu0 0.0
    %1406 = vmatprep.subr.mxu0 0.0
    %1407 = vmatpush1.xpose.msra.mxu0 0.0
    %1408 = vmatprep.subr.mxu0 0.0
    %1409 = vmatpush1.xpose.msra.mxu0 0.0
    %1410 = vmatprep.subr.mxu0 0.0
    %1411 = vmatpush1.xpose.msra.mxu0 0.0
    %1412 = vmatprep.subr.mxu0 0.0
    %1413 = vmatpush1.xpose.msra.mxu0 0.0
    %1414 = vmatprep.subr.mxu0 0.0
    %1415 = vmatpush1.xpose.msra.mxu0 0.0
    %1416 = vmatprep.subr.mxu0 0.0
    %1417 = vmatpush1.xpose.msra.mxu0 0.0
    %1418 = vmatprep.subr.mxu0 0.0
    %1419 = vmatpush1.xpose.msra.mxu0 0.0
    %1420 = vmatprep.subr.mxu0 0.0
    %1421 = vmatpush1.xpose.msra.mxu0 0.0
    %1422 = vmatprep.subr.mxu0 0.0
    %1423 = vmatpush1.xpose.msra.mxu0 0.0
    %1424 = vmatprep.subr.mxu0 0.0
    %1425 = vmatpush1.xpose.msra.mxu0 0.0
    %1426 = vmatprep.subr.mxu0 0.0
    %1427 = vmatpush1.xpose.msra.mxu0 0.0
    %1428 = vmatprep.subr.mxu0 0.0
    %1429 = vmatpush1.xpose.msra.mxu0 0.0
    %1430 = vmatprep.subr.mxu0 0.0
    %1431 = vmatpush1.xpose.msra.mxu0 0.0
    %1432 = vmatprep.subr.mxu0 0.0
    %1433 = vmatpush1.xpose.msra.mxu0 0.0
    %1434 = vmatprep.subr.mxu0 0.0
    %1435 = vmatpush1.xpose.msra.mxu0 0.0
    %1436 = vmatprep.subr.mxu0 0.0
    %1437 = vmatpush1.xpose.msra.mxu0 0.0
    %1438 = vmatprep.subr.mxu0 0.0
    %1439 = vmatpush1.xpose.msra.mxu0 0.0
    %1440 = vmatprep.subr.mxu0 0.0
    %1441 = vmatpush1.xpose.msra.mxu0 0.0
    %1442 = vmatprep.subr.mxu0 0.0
    %1443 = vmatpush1.xpose.msra.mxu0 0.0
    %1444 = vmatprep.subr.mxu0 0.0
    %1445 = vmatpush1.xpose.msra.mxu0 0.0
    %1446 = vmatprep.subr.mxu0 0.0
    %1447 = vmatpush1.xpose.msra.mxu0 0.0
    %1448 = vmatprep.subr.mxu0 0.0
    %1449 = vmatpush1.xpose.msra.mxu0 0.0
    %1450 = vmatprep.subr.mxu0 0.0
    %1451 = vmatpush1.xpose.msra.mxu0 0.0
    %1452 = vmatprep.subr.mxu0 0.0
    %1453 = vmatpush1.xpose.msra.mxu0 0.0
    %1454 = vmatprep.mubr.f32.mxu0 0.0
    %1455 = vmatmul.mubr.f32.gmra.mrb[0].mxu0 %v1385
    %v1456 = vpop.f32.mrb[0].mxu0
    %v1457 = vadd.f32 %v1304, %v1456
    %v1458 = vpop.f32.mrb[0].mxu0
    %1459 = vdwg.mxu0
    %vm1460 = vcmask 64512
    %v1461 = vsel %vm1460, %v1381, -inf
    %1462 = vmax.xlane.f32.xlu0 %v1461
    %v1463 = vpop.xlane.xlu0 %1462
    %v1464 = vsel %vm1460, %v1457, -inf
    %1465 = vmax.xlane.f32.xlu0 %v1464
    %v1466 = vpop.xlane.xlu0 %1465
    %v1467 = vsub.f32 %v1381, %v1463
    %v1468 = vsub.f32 %v1457, %v1466
    %v1469 = vmul.f32 %v1467, 1.442695
    %v1470 = vpow.pop %v1469
    %v1471 = vmul.f32 %v1468, 1.442695
    %v1472 = vpow.pop %v1471
    %v1473 = vsel %vm1460, %v1470, 0.0
    %1474 = vadd.xlane.f32.xlu0 %v1473
    %v1475 = vpop.xlane.xlu0 %1474
    %v1476 = vsel %vm1460, %v1472, 0.0
    %1477 = vadd.xlane.f32.xlu0 %v1476
    %v1478 = vpop.xlane.xlu0 %1477
    %v1479 = vrcp.pop %v1475
    %v1480 = vrcp.pop %v1478
    %v1481 = vmul.f32 %v1470, %v1479
    %v1482 = vmul.f32 %v1472, %v1480
    %v1484 = vsel %vm1460, %v1481, 0
    %1486 = vmatprep.subr.mxu0 0.0
    %1487 = vmatpush1.msra.mxu0 %v1206
    %1488 = vmatprep.subr.mxu0 0.0
    %1489 = vmatpush1.msra.mxu0 0.0
    %1490 = vmatprep.subr.mxu0 0.0
    %1491 = vmatpush1.msra.mxu0 0.0
    %1492 = vmatprep.subr.mxu0 0.0
    %1493 = vmatpush1.msra.mxu0 0.0
    %1494 = vmatprep.subr.mxu0 0.0
    %1495 = vmatpush1.msra.mxu0 0.0
    %1496 = vmatprep.subr.mxu0 0.0
    %1497 = vmatpush1.msra.mxu0 0.0
    %1498 = vmatprep.subr.mxu0 0.0
    %1499 = vmatpush1.msra.mxu0 0.0
    %1500 = vmatprep.subr.mxu0 0.0
    %1501 = vmatpush1.msra.mxu0 0.0
    %1502 = vmatprep.subr.mxu0 0.0
    %1503 = vmatpush1.msra.mxu0 0.0
    %1504 = vmatprep.subr.mxu0 0.0
    %1505 = vmatpush1.msra.mxu0 0.0
    %1506 = vmatprep.subr.mxu0 0.0
    %1507 = vmatpush1.msra.mxu0 0.0
    %1508 = vmatprep.subr.mxu0 0.0
    %1509 = vmatpush1.msra.mxu0 0.0
    %1510 = vmatprep.subr.mxu0 0.0
    %1511 = vmatpush1.msra.mxu0 0.0
    %1512 = vmatprep.subr.mxu0 0.0
    %1513 = vmatpush1.msra.mxu0 0.0
    %1514 = vmatprep.subr.mxu0 0.0
    %1515 = vmatpush1.msra.mxu0 0.0
    %1516 = vmatprep.subr.mxu0 0.0
    %1517 = vmatpush1.msra.mxu0 0.0
    %1518 = vmatprep.subr.mxu0 0.0
    %1519 = vmatpush1.msra.mxu0 0.0
    %1520 = vmatprep.subr.mxu0 0.0
    %1521 = vmatpush1.msra.mxu0 0.0
    %1522 = vmatprep.subr.mxu0 0.0
    %1523 = vmatpush1.msra.mxu0 0.0
    %1524 = vmatprep.subr.mxu0 0.0
    %1525 = vmatpush1.msra.mxu0 0.0
    %1526 = vmatprep.subr.mxu0 0.0
    %1527 = vmatpush1.msra.mxu0 0.0
    %1528 = vmatprep.subr.mxu0 0.0
    %1529 = vmatpush1.msra.mxu0 0.0
    %1530 = vmatprep.subr.mxu0 0.0
    %1531 = vmatpush1.msra.mxu0 0.0
    %1532 = vmatprep.subr.mxu0 0.0
    %1533 = vmatpush1.msra.mxu0 0.0
    %1534 = vmatprep.subr.mxu0 0.0
    %1535 = vmatpush1.msra.mxu0 0.0
    %1536 = vmatprep.subr.mxu0 0.0
    %1537 = vmatpush1.msra.mxu0 0.0
    %1538 = vmatprep.subr.mxu0 0.0
    %1539 = vmatpush1.msra.mxu0 0.0
    %1540 = vmatprep.subr.mxu0 0.0
    %1541 = vmatpush1.msra.mxu0 0.0
    %1542 = vmatprep.subr.mxu0 0.0
    %1543 = vmatpush1.msra.mxu0 0.0
    %1544 = vmatprep.subr.mxu0 0.0
    %1545 = vmatpush1.msra.mxu0 0.0
    %1546 = vmatprep.subr.mxu0 0.0
    %1547 = vmatpush1.msra.mxu0 0.0
    %1548 = vmatprep.subr.mxu0 0.0
    %1549 = vmatpush1.msra.mxu0 0.0
    %1550 = vmatprep.mubr.f32.mxu0 0.0
    %1551 = vmatmul.mubr.f32.gmra.mrb[0].mxu0 %v1484
    %v1552 = vpop.f32.mrb[0].mxu0
    %v1553 = vadd.f32 0.0, %v1552
    %v1554 = vpop.f32.mrb[0].mxu0
    %1555 = vdwg.mxu0
    %v1557 = vsel %vm1460, %v1482, 0
    %1559 = vmatprep.subr.mxu0 0.0
    %1560 = vmatpush1.msra.mxu0 %v1207
    %1561 = vmatprep.subr.mxu0 0.0
    %1562 = vmatpush1.msra.mxu0 0.0
    %1563 = vmatprep.subr.mxu0 0.0
    %1564 = vmatpush1.msra.mxu0 0.0
    %1565 = vmatprep.subr.mxu0 0.0
    %1566 = vmatpush1.msra.mxu0 0.0
    %1567 = vmatprep.subr.mxu0 0.0
    %1568 = vmatpush1.msra.mxu0 0.0
    %1569 = vmatprep.subr.mxu0 0.0
    %1570 = vmatpush1.msra.mxu0 0.0
    %1571 = vmatprep.subr.mxu0 0.0
    %1572 = vmatpush1.msra.mxu0 0.0
    %1573 = vmatprep.subr.mxu0 0.0
    %1574 = vmatpush1.msra.mxu0 0.0
    %1575 = vmatprep.subr.mxu0 0.0
    %1576 = vmatpush1.msra.mxu0 0.0
    %1577 = vmatprep.subr.mxu0 0.0
    %1578 = vmatpush1.msra.mxu0 0.0
    %1579 = vmatprep.subr.mxu0 0.0
    %1580 = vmatpush1.msra.mxu0 0.0
    %1581 = vmatprep.subr.mxu0 0.0
    %1582 = vmatpush1.msra.mxu0 0.0
    %1583 = vmatprep.subr.mxu0 0.0
    %1584 = vmatpush1.msra.mxu0 0.0
    %1585 = vmatprep.subr.mxu0 0.0
    %1586 = vmatpush1.msra.mxu0 0.0
    %1587 = vmatprep.subr.mxu0 0.0
    %1588 = vmatpush1.msra.mxu0 0.0
    %1589 = vmatprep.subr.mxu0 0.0
    %1590 = vmatpush1.msra.mxu0 0.0
    %1591 = vmatprep.subr.mxu0 0.0
    %1592 = vmatpush1.msra.mxu0 0.0
    %1593 = vmatprep.subr.mxu0 0.0
    %1594 = vmatpush1.msra.mxu0 0.0
    %1595 = vmatprep.subr.mxu0 0.0
    %1596 = vmatpush1.msra.mxu0 0.0
    %1597 = vmatprep.subr.mxu0 0.0
    %1598 = vmatpush1.msra.mxu0 0.0
    %1599 = vmatprep.subr.mxu0 0.0
    %1600 = vmatpush1.msra.mxu0 0.0
    %1601 = vmatprep.subr.mxu0 0.0
    %1602 = vmatpush1.msra.mxu0 0.0
    %1603 = vmatprep.subr.mxu0 0.0
    %1604 = vmatpush1.msra.mxu0 0.0
    %1605 = vmatprep.subr.mxu0 0.0
    %1606 = vmatpush1.msra.mxu0 0.0
    %1607 = vmatprep.subr.mxu0 0.0
    %1608 = vmatpush1.msra.mxu0 0.0
    %1609 = vmatprep.subr.mxu0 0.0
    %1610 = vmatpush1.msra.mxu0 0.0
    %1611 = vmatprep.subr.mxu0 0.0
    %1612 = vmatpush1.msra.mxu0 0.0
    %1613 = vmatprep.subr.mxu0 0.0
    %1614 = vmatpush1.msra.mxu0 0.0
    %1615 = vmatprep.subr.mxu0 0.0
    %1616 = vmatpush1.msra.mxu0 0.0
    %1617 = vmatprep.subr.mxu0 0.0
    %1618 = vmatpush1.msra.mxu0 0.0
    %1619 = vmatprep.subr.mxu0 0.0
    %1620 = vmatpush1.msra.mxu0 0.0
    %1621 = vmatprep.subr.mxu0 0.0
    %1622 = vmatpush1.msra.mxu0 0.0
    %1623 = vmatprep.mubr.f32.mxu0 0.0
    %1624 = vmatmul.mubr.f32.gmra.mrb[0].mxu0 %v1557
    %v1625 = vpop.f32.mrb[0].mxu0
    %v1626 = vadd.f32 0.0, %v1625
    %v1627 = vpop.f32.mrb[0].mxu0
    %1628 = vdwg.mxu0
    %1629 = vrot.lane.b32.xlu0 %v1295, 112
    %v1630 = vpop.permute.xlu0 %1629
    %1631 = vrot.lane.b32.xlu0 %v1123, 112
    %v1632 = vpop.permute.xlu0 %1631
    %v1633 = vsel %vm1307, %v1630, 0
    %v1635 = vsel %vm1307, %v1632, 0
    %1637 = vmatprep.subr.mxu0 0.0
    %1638 = vmatpush1.xpose.msra.mxu0 %v1635
    %1639 = vmatprep.subr.mxu0 0.0
    %1640 = vmatpush1.xpose.msra.mxu0 0.0
    %1641 = vmatprep.subr.mxu0 0.0
    %1642 = vmatpush1.xpose.msra.mxu0 0.0
    %1643 = vmatprep.subr.mxu0 0.0
    %1644 = vmatpush1.xpose.msra.mxu0 0.0
    %1645 = vmatprep.subr.mxu0 0.0
    %1646 = vmatpush1.xpose.msra.mxu0 0.0
    %1647 = vmatprep.subr.mxu0 0.0
    %1648 = vmatpush1.xpose.msra.mxu0 0.0
    %1649 = vmatprep.subr.mxu0 0.0
    %1650 = vmatpush1.xpose.msra.mxu0 0.0
    %1651 = vmatprep.subr.mxu0 0.0
    %1652 = vmatpush1.xpose.msra.mxu0 0.0
    %1653 = vmatprep.subr.mxu0 0.0
    %1654 = vmatpush1.xpose.msra.mxu0 0.0
    %1655 = vmatprep.subr.mxu0 0.0
    %1656 = vmatpush1.xpose.msra.mxu0 0.0
    %1657 = vmatprep.subr.mxu0 0.0
    %1658 = vmatpush1.xpose.msra.mxu0 0.0
    %1659 = vmatprep.subr.mxu0 0.0
    %1660 = vmatpush1.xpose.msra.mxu0 0.0
    %1661 = vmatprep.subr.mxu0 0.0
    %1662 = vmatpush1.xpose.msra.mxu0 0.0
    %1663 = vmatprep.subr.mxu0 0.0
    %1664 = vmatpush1.xpose.msra.mxu0 0.0
    %1665 = vmatprep.subr.mxu0 0.0
    %1666 = vmatpush1.xpose.msra.mxu0 0.0
    %1667 = vmatprep.subr.mxu0 0.0
    %1668 = vmatpush1.xpose.msra.mxu0 0.0
    %1669 = vmatprep.subr.mxu0 0.0
    %1670 = vmatpush1.xpose.msra.mxu0 0.0
    %1671 = vmatprep.subr.mxu0 0.0
    %1672 = vmatpush1.xpose.msra.mxu0 0.0
    %1673 = vmatprep.subr.mxu0 0.0
    %1674 = vmatpush1.xpose.msra.mxu0 0.0
    %1675 = vmatprep.subr.mxu0 0.0
    %1676 = vmatpush1.xpose.msra.mxu0 0.0
    %1677 = vmatprep.subr.mxu0 0.0
    %1678 = vmatpush1.xpose.msra.mxu0 0.0
    %1679 = vmatprep.subr.mxu0 0.0
    %1680 = vmatpush1.xpose.msra.mxu0 0.0
    %1681 = vmatprep.subr.mxu0 0.0
    %1682 = vmatpush1.xpose.msra.mxu0 0.0
    %1683 = vmatprep.subr.mxu0 0.0
    %1684 = vmatpush1.xpose.msra.mxu0 0.0
    %1685 = vmatprep.subr.mxu0 0.0
    %1686 = vmatpush1.xpose.msra.mxu0 0.0
    %1687 = vmatprep.subr.mxu0 0.0
    %1688 = vmatpush1.xpose.msra.mxu0 0.0
    %1689 = vmatprep.subr.mxu0 0.0
    %1690 = vmatpush1.xpose.msra.mxu0 0.0
    %1691 = vmatprep.subr.mxu0 0.0
    %1692 = vmatpush1.xpose.msra.mxu0 0.0
    %1693 = vmatprep.subr.mxu0 0.0
    %1694 = vmatpush1.xpose.msra.mxu0 0.0
    %1695 = vmatprep.subr.mxu0 0.0
    %1696 = vmatpush1.xpose.msra.mxu0 0.0
    %1697 = vmatprep.subr.mxu0 0.0
    %1698 = vmatpush1.xpose.msra.mxu0 0.0
    %1699 = vmatprep.subr.mxu0 0.0
    %1700 = vmatpush1.xpose.msra.mxu0 0.0
    %1701 = vmatprep.mubr.f32.mxu0 0.0
    %1702 = vmatmul.mubr.f32.gmra.mrb[0].mxu0 %v1633
    %v1703 = vpop.f32.mrb[0].mxu0
    %v1704 = vadd.f32 %v1300, %v1703
    %v1705 = vpop.f32.mrb[0].mxu0
    %1706 = vdwg.mxu0
    %1707 = vrot.lane.b32.xlu0 %v1296, 112
    %v1708 = vpop.permute.xlu0 %1707
    %1709 = vrot.lane.b32.xlu0 %v1124, 112
    %v1710 = vpop.permute.xlu0 %1709
    %v1711 = vsel %vm1307, %v1708, 0
    %v1713 = vsel %vm1307, %v1710, 0
    %1715 = vmatprep.subr.mxu0 0.0
    %1716 = vmatpush1.xpose.msra.mxu0 %v1713
    %1717 = vmatprep.subr.mxu0 0.0
    %1718 = vmatpush1.xpose.msra.mxu0 0.0
    %1719 = vmatprep.subr.mxu0 0.0
    %1720 = vmatpush1.xpose.msra.mxu0 0.0
    %1721 = vmatprep.subr.mxu0 0.0
    %1722 = vmatpush1.xpose.msra.mxu0 0.0
    %1723 = vmatprep.subr.mxu0 0.0
    %1724 = vmatpush1.xpose.msra.mxu0 0.0
    %1725 = vmatprep.subr.mxu0 0.0
    %1726 = vmatpush1.xpose.msra.mxu0 0.0
    %1727 = vmatprep.subr.mxu0 0.0
    %1728 = vmatpush1.xpose.msra.mxu0 0.0
    %1729 = vmatprep.subr.mxu0 0.0
    %1730 = vmatpush1.xpose.msra.mxu0 0.0
    %1731 = vmatprep.subr.mxu0 0.0
    %1732 = vmatpush1.xpose.msra.mxu0 0.0
    %1733 = vmatprep.subr.mxu0 0.0
    %1734 = vmatpush1.xpose.msra.mxu0 0.0
    %1735 = vmatprep.subr.mxu0 0.0
    %1736 = vmatpush1.xpose.msra.mxu0 0.0
    %1737 = vmatprep.subr.mxu0 0.0
    %1738 = vmatpush1.xpose.msra.mxu0 0.0
    %1739 = vmatprep.subr.mxu0 0.0
    %1740 = vmatpush1.xpose.msra.mxu0 0.0
    %1741 = vmatprep.subr.mxu0 0.0
    %1742 = vmatpush1.xpose.msra.mxu0 0.0
    %1743 = vmatprep.subr.mxu0 0.0
    %1744 = vmatpush1.xpose.msra.mxu0 0.0
    %1745 = vmatprep.subr.mxu0 0.0
    %1746 = vmatpush1.xpose.msra.mxu0 0.0
    %1747 = vmatprep.subr.mxu0 0.0
    %1748 = vmatpush1.xpose.msra.mxu0 0.0
    %1749 = vmatprep.subr.mxu0 0.0
    %1750 = vmatpush1.xpose.msra.mxu0 0.0
    %1751 = vmatprep.subr.mxu0 0.0
    %1752 = vmatpush1.xpose.msra.mxu0 0.0
    %1753 = vmatprep.subr.mxu0 0.0
    %1754 = vmatpush1.xpose.msra.mxu0 0.0
    %1755 = vmatprep.subr.mxu0 0.0
    %1756 = vmatpush1.xpose.msra.mxu0 0.0
    %1757 = vmatprep.subr.mxu0 0.0
    %1758 = vmatpush1.xpose.msra.mxu0 0.0
    %1759 = vmatprep.subr.mxu0 0.0
    %1760 = vmatpush1.xpose.msra.mxu0 0.0
    %1761 = vmatprep.subr.mxu0 0.0
    %1762 = vmatpush1.xpose.msra.mxu0 0.0
    %1763 = vmatprep.subr.mxu0 0.0
    %1764 = vmatpush1.xpose.msra.mxu0 0.0
    %1765 = vmatprep.subr.mxu0 0.0
    %1766 = vmatpush1.xpose.msra.mxu0 0.0
    %1767 = vmatprep.subr.mxu0 0.0
    %1768 = vmatpush1.xpose.msra.mxu0 0.0
    %1769 = vmatprep.subr.mxu0 0.0
    %1770 = vmatpush1.xpose.msra.mxu0 0.0
    %1771 = vmatprep.subr.mxu0 0.0
    %1772 = vmatpush1.xpose.msra.mxu0 0.0
    %1773 = vmatprep.subr.mxu0 0.0
    %1774 = vmatpush1.xpose.msra.mxu0 0.0
    %1775 = vmatprep.subr.mxu0 0.0
    %1776 = vmatpush1.xpose.msra.mxu0 0.0
    %1777 = vmatprep.subr.mxu0 0.0
    %1778 = vmatpush1.xpose.msra.mxu0 0.0
    %1779 = vmatprep.mubr.f32.mxu0 0.0
    %1780 = vmatmul.mubr.f32.gmra.mrb[0].mxu0 %v1711
    %v1781 = vpop.f32.mrb[0].mxu0
    %v1782 = vadd.f32 %v1304, %v1781
    %v1783 = vpop.f32.mrb[0].mxu0
    %1784 = vdwg.mxu0
    %v1785 = vsel %vm1460, %v1704, -inf
    %1786 = vmax.xlane.f32.xlu0 %v1785
    %v1787 = vpop.xlane.xlu0 %1786
    %v1788 = vsel %vm1460, %v1782, -inf
    %1789 = vmax.xlane.f32.xlu0 %v1788
    %v1790 = vpop.xlane.xlu0 %1789
    %v1791 = vsub.f32 %v1704, %v1787
    %v1792 = vsub.f32 %v1782, %v1790
    %v1793 = vmul.f32 %v1791, 1.442695
    %v1794 = vpow.pop %v1793
    %v1795 = vmul.f32 %v1792, 1.442695
    %v1796 = vpow.pop %v1795
    %v1797 = vsel %vm1460, %v1794, 0.0
    %1798 = vadd.xlane.f32.xlu0 %v1797
    %v1799 = vpop.xlane.xlu0 %1798
    %v1800 = vsel %vm1460, %v1796, 0.0
    %1801 = vadd.xlane.f32.xlu0 %v1800
    %v1802 = vpop.xlane.xlu0 %1801
    %v1803 = vrcp.pop %v1799
    %v1804 = vrcp.pop %v1802
    %v1805 = vmul.f32 %v1794, %v1803
    %v1806 = vmul.f32 %v1796, %v1804
    %1808 = vrot.lane.b32.xlu0 %v1206, 112
    %v1809 = vpop.permute.xlu0 %1808
    %v1812 = vsel %vm1460, %v1805, 0
    %1814 = vmatprep.subr.mxu0 0.0
    %1815 = vmatpush1.msra.mxu0 %v1809
    %1816 = vmatprep.subr.mxu0 0.0
    %1817 = vmatpush1.msra.mxu0 0.0
    %1818 = vmatprep.subr.mxu0 0.0
    %1819 = vmatpush1.msra.mxu0 0.0
    %1820 = vmatprep.subr.mxu0 0.0
    %1821 = vmatpush1.msra.mxu0 0.0
    %1822 = vmatprep.subr.mxu0 0.0
    %1823 = vmatpush1.msra.mxu0 0.0
    %1824 = vmatprep.subr.mxu0 0.0
    %1825 = vmatpush1.msra.mxu0 0.0
    %1826 = vmatprep.subr.mxu0 0.0
    %1827 = vmatpush1.msra.mxu0 0.0
    %1828 = vmatprep.subr.mxu0 0.0
    %1829 = vmatpush1.msra.mxu0 0.0
    %1830 = vmatprep.subr.mxu0 0.0
    %1831 = vmatpush1.msra.mxu0 0.0
    %1832 = vmatprep.subr.mxu0 0.0
    %1833 = vmatpush1.msra.mxu0 0.0
    %1834 = vmatprep.subr.mxu0 0.0
    %1835 = vmatpush1.msra.mxu0 0.0
    %1836 = vmatprep.subr.mxu0 0.0
    %1837 = vmatpush1.msra.mxu0 0.0
    %1838 = vmatprep.subr.mxu0 0.0
    %1839 = vmatpush1.msra.mxu0 0.0
    %1840 = vmatprep.subr.mxu0 0.0
    %1841 = vmatpush1.msra.mxu0 0.0
    %1842 = vmatprep.subr.mxu0 0.0
    %1843 = vmatpush1.msra.mxu0 0.0
    %1844 = vmatprep.subr.mxu0 0.0
    %1845 = vmatpush1.msra.mxu0 0.0
    %1846 = vmatprep.subr.mxu0 0.0
    %1847 = vmatpush1.msra.mxu0 0.0
    %1848 = vmatprep.subr.mxu0 0.0
    %1849 = vmatpush1.msra.mxu0 0.0
    %1850 = vmatprep.subr.mxu0 0.0
    %1851 = vmatpush1.msra.mxu0 0.0
    %1852 = vmatprep.subr.mxu0 0.0
    %1853 = vmatpush1.msra.mxu0 0.0
    %1854 = vmatprep.subr.mxu0 0.0
    %1855 = vmatpush1.msra.mxu0 0.0
    %1856 = vmatprep.subr.mxu0 0.0
    %1857 = vmatpush1.msra.mxu0 0.0
    %1858 = vmatprep.subr.mxu0 0.0
    %1859 = vmatpush1.msra.mxu0 0.0
    %1860 = vmatprep.subr.mxu0 0.0
    %1861 = vmatpush1.msra.mxu0 0.0
    %1862 = vmatprep.subr.mxu0 0.0
    %1863 = vmatpush1.msra.mxu0 0.0
    %1864 = vmatprep.subr.mxu0 0.0
    %1865 = vmatpush1.msra.mxu0 0.0
    %1866 = vmatprep.subr.mxu0 0.0
    %1867 = vmatpush1.msra.mxu0 0.0
    %1868 = vmatprep.subr.mxu0 0.0
    %1869 = vmatpush1.msra.mxu0 0.0
    %1870 = vmatprep.subr.mxu0 0.0
    %1871 = vmatpush1.msra.mxu0 0.0
    %1872 = vmatprep.subr.mxu0 0.0
    %1873 = vmatpush1.msra.mxu0 0.0
    %1874 = vmatprep.subr.mxu0 0.0
    %1875 = vmatpush1.msra.mxu0 0.0
    %1876 = vmatprep.subr.mxu0 0.0
    %1877 = vmatpush1.msra.mxu0 0.0
    %1878 = vmatprep.mubr.f32.mxu0 0.0
    %1879 = vmatmul.mubr.f32.gmra.mrb[0].mxu0 %v1812
    %v1880 = vpop.f32.mrb[0].mxu0
    %v1881 = vadd.f32 0.0, %v1880
    %v1882 = vpop.f32.mrb[0].mxu0
    %1883 = vdwg.mxu0
    %1885 = vrot.lane.b32.xlu0 %v1207, 112
    %v1886 = vpop.permute.xlu0 %1885
    %v1889 = vsel %vm1460, %v1806, 0
    %1891 = vmatprep.subr.mxu0 0.0
    %1892 = vmatpush1.msra.mxu0 %v1886
    %1893 = vmatprep.subr.mxu0 0.0
    %1894 = vmatpush1.msra.mxu0 0.0
    %1895 = vmatprep.subr.mxu0 0.0
    %1896 = vmatpush1.msra.mxu0 0.0
    %1897 = vmatprep.subr.mxu0 0.0
    %1898 = vmatpush1.msra.mxu0 0.0
    %1899 = vmatprep.subr.mxu0 0.0
    %1900 = vmatpush1.msra.mxu0 0.0
    %1901 = vmatprep.subr.mxu0 0.0
    %1902 = vmatpush1.msra.mxu0 0.0
    %1903 = vmatprep.subr.mxu0 0.0
    %1904 = vmatpush1.msra.mxu0 0.0
    %1905 = vmatprep.subr.mxu0 0.0
    %1906 = vmatpush1.msra.mxu0 0.0
    %1907 = vmatprep.subr.mxu0 0.0
    %1908 = vmatpush1.msra.mxu0 0.0
    %1909 = vmatprep.subr.mxu0 0.0
    %1910 = vmatpush1.msra.mxu0 0.0
    %1911 = vmatprep.subr.mxu0 0.0
    %1912 = vmatpush1.msra.mxu0 0.0
    %1913 = vmatprep.subr.mxu0 0.0
    %1914 = vmatpush1.msra.mxu0 0.0
    %1915 = vmatprep.subr.mxu0 0.0
    %1916 = vmatpush1.msra.mxu0 0.0
    %1917 = vmatprep.subr.mxu0 0.0
    %1918 = vmatpush1.msra.mxu0 0.0
    %1919 = vmatprep.subr.mxu0 0.0
    %1920 = vmatpush1.msra.mxu0 0.0
    %1921 = vmatprep.subr.mxu0 0.0
    %1922 = vmatpush1.msra.mxu0 0.0
    %1923 = vmatprep.subr.mxu0 0.0
    %1924 = vmatpush1.msra.mxu0 0.0
    %1925 = vmatprep.subr.mxu0 0.0
    %1926 = vmatpush1.msra.mxu0 0.0
    %1927 = vmatprep.subr.mxu0 0.0
    %1928 = vmatpush1.msra.mxu0 0.0
    %1929 = vmatprep.subr.mxu0 0.0
    %1930 = vmatpush1.msra.mxu0 0.0
    %1931 = vmatprep.subr.mxu0 0.0
    %1932 = vmatpush1.msra.mxu0 0.0
    %1933 = vmatprep.subr.mxu0 0.0
    %1934 = vmatpush1.msra.mxu0 0.0
    %1935 = vmatprep.subr.mxu0 0.0
    %1936 = vmatpush1.msra.mxu0 0.0
    %1937 = vmatprep.subr.mxu0 0.0
    %1938 = vmatpush1.msra.mxu0 0.0
    %1939 = vmatprep.subr.mxu0 0.0
    %1940 = vmatpush1.msra.mxu0 0.0
    %1941 = vmatprep.subr.mxu0 0.0
    %1942 = vmatpush1.msra.mxu0 0.0
    %1943 = vmatprep.subr.mxu0 0.0
    %1944 = vmatpush1.msra.mxu0 0.0
    %1945 = vmatprep.subr.mxu0 0.0
    %1946 = vmatpush1.msra.mxu0 0.0
    %1947 = vmatprep.subr.mxu0 0.0
    %1948 = vmatpush1.msra.mxu0 0.0
    %1949 = vmatprep.subr.mxu0 0.0
    %1950 = vmatpush1.msra.mxu0 0.0
    %1951 = vmatprep.subr.mxu0 0.0
    %1952 = vmatpush1.msra.mxu0 0.0
    %1953 = vmatprep.subr.mxu0 0.0
    %1954 = vmatpush1.msra.mxu0 0.0
    %1955 = vmatprep.mubr.f32.mxu0 0.0
    %1956 = vmatmul.mubr.f32.gmra.mrb[0].mxu0 %v1889
    %v1957 = vpop.f32.mrb[0].mxu0
    %v1958 = vadd.f32 0.0, %v1957
    %v1959 = vpop.f32.mrb[0].mxu0
    %1960 = vdwg.mxu0
    %1963 = vrot.lane.b32.xlu0 %v1881, 16
    %v1964 = vpop.permute.xlu0 %1963
    %1965 = vrot.lane.b32.xlu0 %v1958, 16
    %v1966 = vpop.permute.xlu0 %1965
    %v1969 = vsel %vm1307, %v1553, %v1964
    %v1970 = vsel %vm1307, %v1626, %v1966
    %1971 = vmatprep.subr.mxu0 0.0
    %1972 = vmatpush1.msra.mxu0 %v754
    %1973 = vmatprep.subr.mxu0 0.0
    %1974 = vmatpush1.msra.mxu0 %v755
    %1975 = vmatprep.subr.mxu0 0.0
    %1976 = vmatpush1.msra.mxu0 %v756
    %1977 = vmatprep.subr.mxu0 0.0
    %1978 = vmatpush1.msra.mxu0 %v757
    %1979 = vmatprep.subr.mxu0 0.0
    %1980 = vmatpush1.msra.mxu0 0.0
    %1981 = vmatprep.subr.mxu0 0.0
    %1982 = vmatpush1.msra.mxu0 0.0
    %1983 = vmatprep.subr.mxu0 0.0
    %1984 = vmatpush1.msra.mxu0 0.0
    %1985 = vmatprep.subr.mxu0 0.0
    %1986 = vmatpush1.msra.mxu0 0.0
    %1987 = vmatprep.subr.mxu0 0.0
    %1988 = vmatpush1.msra.mxu0 0.0
    %1989 = vmatprep.subr.mxu0 0.0
    %1990 = vmatpush1.msra.mxu0 0.0
    %1991 = vmatprep.subr.mxu0 0.0
    %1992 = vmatpush1.msra.mxu0 0.0
    %1993 = vmatprep.subr.mxu0 0.0
    %1994 = vmatpush1.msra.mxu0 0.0
    %1995 = vmatprep.subr.mxu0 0.0
    %1996 = vmatpush1.msra.mxu0 0.0
    %1997 = vmatprep.subr.mxu0 0.0
    %1998 = vmatpush1.msra.mxu0 0.0
    %1999 = vmatprep.subr.mxu0 0.0
    %2000 = vmatpush1.msra.mxu0 0.0
    %2001 = vmatprep.subr.mxu0 0.0
    %2002 = vmatpush1.msra.mxu0 0.0
    %2003 = vmatprep.subr.mxu0 0.0
    %2004 = vmatpush1.msra.mxu0 0.0
    %2005 = vmatprep.subr.mxu0 0.0
    %2006 = vmatpush1.msra.mxu0 0.0
    %2007 = vmatprep.subr.mxu0 0.0
    %2008 = vmatpush1.msra.mxu0 0.0
    %2009 = vmatprep.subr.mxu0 0.0
    %2010 = vmatpush1.msra.mxu0 0.0
    %2011 = vmatprep.subr.mxu0 0.0
    %2012 = vmatpush1.msra.mxu0 0.0
    %2013 = vmatprep.subr.mxu0 0.0
    %2014 = vmatpush1.msra.mxu0 0.0
    %2015 = vmatprep.subr.mxu0 0.0
    %2016 = vmatpush1.msra.mxu0 0.0
    %2017 = vmatprep.subr.mxu0 0.0
    %2018 = vmatpush1.msra.mxu0 0.0
    %2019 = vmatprep.subr.mxu0 0.0
    %2020 = vmatpush1.msra.mxu0 0.0
    %2021 = vmatprep.subr.mxu0 0.0
    %2022 = vmatpush1.msra.mxu0 0.0
    %2023 = vmatprep.subr.mxu0 0.0
    %2024 = vmatpush1.msra.mxu0 0.0
    %2025 = vmatprep.subr.mxu0 0.0
    %2026 = vmatpush1.msra.mxu0 0.0
    %2027 = vmatprep.subr.mxu0 0.0
    %2028 = vmatpush1.msra.mxu0 0.0
    %2029 = vmatprep.subr.mxu0 0.0
    %2030 = vmatpush1.msra.mxu0 0.0
    %2031 = vmatprep.subr.mxu0 0.0
    %2032 = vmatpush1.msra.mxu0 0.0
    %2033 = vmatprep.subr.mxu0 0.0
    %2034 = vmatpush1.msra.mxu0 0.0
    %2035 = vmatprep.mubr.f32.mxu0 0.0
    %2036 = vmatmul.mubr.f32.gmra.mrb[0].mxu0 %v1215
    %v2037 = vpop.f32.mrb[0].mxu0
    %v2038 = vadd.f32 0.0, %v2037
    %v2039 = vpop.f32.mrb[0].mxu0
    %2040 = vmatprep.mubr.f32.mxu0 0.0
    %2041 = vmatmul.mubr.f32.gmra.mrb[0].mxu0 %v1218
    %v2042 = vpop.f32.mrb[0].mxu0
    %v2043 = vadd.f32 0.0, %v2042
    %v2044 = vpop.f32.mrb[0].mxu0
    %2045 = vdwg.mxu0
    %v2047 = vlaneseq
    %v2048 = vshrl.u32 %v2047, 7
    %v2049 = vsub.s32 0, %v2048
    %v2050 = vrot.slane %v753, %v2049
    %v2053 = vsel %vm867, %v1969, 0
    %v2056 = vsel %vm867, %v1970, 0
    %2058 = vmatprep.subr.mxu0 0.0
    %2059 = vmatpush1.msra.mxu0 %v758
    %2060 = vmatprep.subr.mxu0 0.0
    %2061 = vmatpush1.msra.mxu0 %v759
    %2062 = vmatprep.subr.mxu0 0.0
    %2063 = vmatpush1.msra.mxu0 %v760
    %2064 = vmatprep.subr.mxu0 0.0
    %2065 = vmatpush1.msra.mxu0 %v761
    %2066 = vmatprep.subr.mxu0 0.0
    %2067 = vmatpush1.msra.mxu0 0.0
    %2068 = vmatprep.subr.mxu0 0.0
    %2069 = vmatpush1.msra.mxu0 0.0
    %2070 = vmatprep.subr.mxu0 0.0
    %2071 = vmatpush1.msra.mxu0 0.0
    %2072 = vmatprep.subr.mxu0 0.0
    %2073 = vmatpush1.msra.mxu0 0.0
    %2074 = vmatprep.subr.mxu0 0.0
    %2075 = vmatpush1.msra.mxu0 0.0
    %2076 = vmatprep.subr.mxu0 0.0
    %2077 = vmatpush1.msra.mxu0 0.0
    %2078 = vmatprep.subr.mxu0 0.0
    %2079 = vmatpush1.msra.mxu0 0.0
    %2080 = vmatprep.subr.mxu0 0.0
    %2081 = vmatpush1.msra.mxu0 0.0
    %2082 = vmatprep.subr.mxu0 0.0
    %2083 = vmatpush1.msra.mxu0 0.0
    %2084 = vmatprep.subr.mxu0 0.0
    %2085 = vmatpush1.msra.mxu0 0.0
    %2086 = vmatprep.subr.mxu0 0.0
    %2087 = vmatpush1.msra.mxu0 0.0
    %2088 = vmatprep.subr.mxu0 0.0
    %2089 = vmatpush1.msra.mxu0 0.0
    %2090 = vmatprep.subr.mxu0 0.0
    %2091 = vmatpush1.msra.mxu0 0.0
    %2092 = vmatprep.subr.mxu0 0.0
    %2093 = vmatpush1.msra.mxu0 0.0
    %2094 = vmatprep.subr.mxu0 0.0
    %2095 = vmatpush1.msra.mxu0 0.0
    %2096 = vmatprep.subr.mxu0 0.0
    %2097 = vmatpush1.msra.mxu0 0.0
    %2098 = vmatprep.subr.mxu0 0.0
    %2099 = vmatpush1.msra.mxu0 0.0
    %2100 = vmatprep.subr.mxu0 0.0
    %2101 = vmatpush1.msra.mxu0 0.0
    %2102 = vmatprep.subr.mxu0 0.0
    %2103 = vmatpush1.msra.mxu0 0.0
    %2104 = vmatprep.subr.mxu0 0.0
    %2105 = vmatpush1.msra.mxu0 0.0
    %2106 = vmatprep.subr.mxu0 0.0
    %2107 = vmatpush1.msra.mxu0 0.0
    %2108 = vmatprep.subr.mxu0 0.0
    %2109 = vmatpush1.msra.mxu0 0.0
    %2110 = vmatprep.subr.mxu0 0.0
    %2111 = vmatpush1.msra.mxu0 0.0
    %2112 = vmatprep.subr.mxu0 0.0
    %2113 = vmatpush1.msra.mxu0 0.0
    %2114 = vmatprep.subr.mxu0 0.0
    %2115 = vmatpush1.msra.mxu0 0.0
    %2116 = vmatprep.subr.mxu0 0.0
    %2117 = vmatpush1.msra.mxu0 0.0
    %2118 = vmatprep.subr.mxu0 0.0
    %2119 = vmatpush1.msra.mxu0 0.0
    %2120 = vmatprep.subr.mxu0 0.0
    %2121 = vmatpush1.msra.mxu0 0.0
    %2122 = vmatprep.mubr.f32.mxu0 0.0
    %2123 = vmatmul.mubr.f32.gmra.mrb[0].mxu0 %v2053
    %v2124 = vpop.f32.mrb[0].mxu0
    %v2125 = vadd.f32 %v2050, %v2124
    %v2126 = vpop.f32.mrb[0].mxu0
    %2127 = vmatprep.mubr.f32.mxu0 0.0
    %2128 = vmatmul.mubr.f32.gmra.mrb[0].mxu0 %v2056
    %v2129 = vpop.f32.mrb[0].mxu0
    %v2130 = vadd.f32 %v2050, %v2129
    %v2131 = vpop.f32.mrb[0].mxu0
    %2132 = vdwg.mxu0
    %v2133 = vadd.f32 %v2038, %v2125
    %v2134 = vadd.f32 %v2043, %v2130
    %v2135 = vadd.f32 %v2133, %v1028
    %v2136 = vadd.f32 %v2134, %v1033
    %v2138 = vlaneseq
    %v2139 = vshrl.u32 %v2138, 7
    %v2140 = vsub.s32 0, %v2139
    %v2141 = vrot.slane %v719, %v2140
    %v2144 = vsel %vm867, %v2135, 0
    %v2147 = vsel %vm867, %v2136, 0
    %2149 = vmatprep.subr.mxu0 0.0
    %2150 = vmatpush1.msra.mxu0 %v720
    %2151 = vmatprep.subr.mxu0 0.0
    %2152 = vmatpush1.msra.mxu0 %v721
    %2153 = vmatprep.subr.mxu0 0.0
    %2154 = vmatpush1.msra.mxu0 %v722
    %2155 = vmatprep.subr.mxu0 0.0
    %2156 = vmatpush1.msra.mxu0 %v723
    %2157 = vmatprep.subr.mxu0 0.0
    %2158 = vmatpush1.msra.mxu0 0.0
    %2159 = vmatprep.subr.mxu0 0.0
    %2160 = vmatpush1.msra.mxu0 0.0
    %2161 = vmatprep.subr.mxu0 0.0
    %2162 = vmatpush1.msra.mxu0 0.0
    %2163 = vmatprep.subr.mxu0 0.0
    %2164 = vmatpush1.msra.mxu0 0.0
    %2165 = vmatprep.subr.mxu0 0.0
    %2166 = vmatpush1.msra.mxu0 0.0
    %2167 = vmatprep.subr.mxu0 0.0
    %2168 = vmatpush1.msra.mxu0 0.0
    %2169 = vmatprep.subr.mxu0 0.0
    %2170 = vmatpush1.msra.mxu0 0.0
    %2171 = vmatprep.subr.mxu0 0.0
    %2172 = vmatpush1.msra.mxu0 0.0
    %2173 = vmatprep.subr.mxu0 0.0
    %2174 = vmatpush1.msra.mxu0 0.0
    %2175 = vmatprep.subr.mxu0 0.0
    %2176 = vmatpush1.msra.mxu0 0.0
    %2177 = vmatprep.subr.mxu0 0.0
    %2178 = vmatpush1.msra.mxu0 0.0
    %2179 = vmatprep.subr.mxu0 0.0
    %2180 = vmatpush1.msra.mxu0 0.0
    %2181 = vmatprep.subr.mxu0 0.0
    %2182 = vmatpush1.msra.mxu0 0.0
    %2183 = vmatprep.subr.mxu0 0.0
    %2184 = vmatpush1.msra.mxu0 0.0
    %2185 = vmatprep.subr.mxu0 0.0
    %2186 = vmatpush1.msra.mxu0 0.0
    %2187 = vmatprep.subr.mxu0 0.0
    %2188 = vmatpush1.msra.mxu0 0.0
    %2189 = vmatprep.subr.mxu0 0.0
    %2190 = vmatpush1.msra.mxu0 0.0
    %2191 = vmatprep.subr.mxu0 0.0
    %2192 = vmatpush1.msra.mxu0 0.0
    %2193 = vmatprep.subr.mxu0 0.0
    %2194 = vmatpush1.msra.mxu0 0.0
    %2195 = vmatprep.subr.mxu0 0.0
    %2196 = vmatpush1.msra.mxu0 0.0
    %2197 = vmatprep.subr.mxu0 0.0
    %2198 = vmatpush1.msra.mxu0 0.0
    %2199 = vmatprep.subr.mxu0 0.0
    %2200 = vmatpush1.msra.mxu0 0.0
    %2201 = vmatprep.subr.mxu0 0.0
    %2202 = vmatpush1.msra.mxu0 0.0
    %2203 = vmatprep.subr.mxu0 0.0
    %2204 = vmatpush1.msra.mxu0 0.0
    %2205 = vmatprep.subr.mxu0 0.0
    %2206 = vmatpush1.msra.mxu0 0.0
    %2207 = vmatprep.subr.mxu0 0.0
    %2208 = vmatpush1.msra.mxu0 0.0
    %2209 = vmatprep.subr.mxu0 0.0
    %2210 = vmatpush1.msra.mxu0 0.0
    %2211 = vmatprep.subr.mxu0 0.0
    %2212 = vmatpush1.msra.mxu0 0.0
    %2213 = vmatprep.mubr.f32.mxu0 0.0
    %2214 = vmatmul.mubr.f32.gmra.mrb[0].mxu0 %v2144
    %v2215 = vpop.f32.mrb[0].mxu0
    %v2216 = vadd.f32 %v2141, %v2215
    %v2217 = vpop.f32.mrb[0].mxu0
    %2218 = vmatprep.mubr.f32.mxu0 0.0
    %2219 = vmatmul.mubr.f32.gmra.mrb[0].mxu0 %v2147
    %v2220 = vpop.f32.mrb[0].mxu0
    %v2221 = vadd.f32 %v2141, %v2220
    %v2222 = vpop.f32.mrb[0].mxu0
    %2223 = vdwg.mxu0
    %v2224 = vmul.f32 %v2216, %v803
    %v2225 = vmul.f32 %v2221, %v810
    %v2227 = vlaneseq
    %v2228 = vshrl.u32 %v2227, 7
    %v2229 = vsub.s32 0, %v2228
    %v2230 = vrot.slane %v738, %v2229
    %2232 = vmatprep.subr.mxu0 0.0
    %2233 = vmatpush1.msra.mxu0 %v739
    %2234 = vmatprep.subr.mxu0 0.0
    %2235 = vmatpush1.msra.mxu0 %v740
    %2236 = vmatprep.subr.mxu0 0.0
    %2237 = vmatpush1.msra.mxu0 %v741
    %2238 = vmatprep.subr.mxu0 0.0
    %2239 = vmatpush1.msra.mxu0 %v742
    %2240 = vmatprep.subr.mxu0 0.0
    %2241 = vmatpush1.msra.mxu0 0.0
    %2242 = vmatprep.subr.mxu0 0.0
    %2243 = vmatpush1.msra.mxu0 0.0
    %2244 = vmatprep.subr.mxu0 0.0
    %2245 = vmatpush1.msra.mxu0 0.0
    %2246 = vmatprep.subr.mxu0 0.0
    %2247 = vmatpush1.msra.mxu0 0.0
    %2248 = vmatprep.subr.mxu0 0.0
    %2249 = vmatpush1.msra.mxu0 0.0
    %2250 = vmatprep.subr.mxu0 0.0
    %2251 = vmatpush1.msra.mxu0 0.0
    %2252 = vmatprep.subr.mxu0 0.0
    %2253 = vmatpush1.msra.mxu0 0.0
    %2254 = vmatprep.subr.mxu0 0.0
    %2255 = vmatpush1.msra.mxu0 0.0
    %2256 = vmatprep.subr.mxu0 0.0
    %2257 = vmatpush1.msra.mxu0 0.0
    %2258 = vmatprep.subr.mxu0 0.0
    %2259 = vmatpush1.msra.mxu0 0.0
    %2260 = vmatprep.subr.mxu0 0.0
    %2261 = vmatpush1.msra.mxu0 0.0
    %2262 = vmatprep.subr.mxu0 0.0
    %2263 = vmatpush1.msra.mxu0 0.0
    %2264 = vmatprep.subr.mxu0 0.0
    %2265 = vmatpush1.msra.mxu0 0.0
    %2266 = vmatprep.subr.mxu0 0.0
    %2267 = vmatpush1.msra.mxu0 0.0
    %2268 = vmatprep.subr.mxu0 0.0
    %2269 = vmatpush1.msra.mxu0 0.0
    %2270 = vmatprep.subr.mxu0 0.0
    %2271 = vmatpush1.msra.mxu0 0.0
    %2272 = vmatprep.subr.mxu0 0.0
    %2273 = vmatpush1.msra.mxu0 0.0
    %2274 = vmatprep.subr.mxu0 0.0
    %2275 = vmatpush1.msra.mxu0 0.0
    %2276 = vmatprep.subr.mxu0 0.0
    %2277 = vmatpush1.msra.mxu0 0.0
    %2278 = vmatprep.subr.mxu0 0.0
    %2279 = vmatpush1.msra.mxu0 0.0
    %2280 = vmatprep.subr.mxu0 0.0
    %2281 = vmatpush1.msra.mxu0 0.0
    %2282 = vmatprep.subr.mxu0 0.0
    %2283 = vmatpush1.msra.mxu0 0.0
    %2284 = vmatprep.subr.mxu0 0.0
    %2285 = vmatpush1.msra.mxu0 0.0
    %2286 = vmatprep.subr.mxu0 0.0
    %2287 = vmatpush1.msra.mxu0 0.0
    %2288 = vmatprep.subr.mxu0 0.0
    %2289 = vmatpush1.msra.mxu0 0.0
    %2290 = vmatprep.subr.mxu0 0.0
    %2291 = vmatpush1.msra.mxu0 0.0
    %2292 = vmatprep.subr.mxu0 0.0
    %2293 = vmatpush1.msra.mxu0 0.0
    %2294 = vmatprep.subr.mxu0 0.0
    %2295 = vmatpush1.msra.mxu0 0.0
    %2296 = vmatprep.mubr.f32.mxu0 0.0
    %2297 = vmatmul.mubr.f32.gmra.mrb[0].mxu0 %v2144
    %v2298 = vpop.f32.mrb[0].mxu0
    %v2299 = vadd.f32 %v2230, %v2298
    %v2300 = vpop.f32.mrb[0].mxu0
    %2301 = vmatprep.mubr.f32.mxu0 0.0
    %2302 = vmatmul.mubr.f32.gmra.mrb[0].mxu0 %v2147
    %v2303 = vpop.f32.mrb[0].mxu0
    %v2304 = vadd.f32 %v2230, %v2303
    %v2305 = vpop.f32.mrb[0].mxu0
    %2306 = vdwg.mxu0
    %v2307 = vmul.f32 %v2299, %v803
    %v2308 = vmul.f32 %v2304, %v810
    %v2310 = vlaneseq
    %v2311 = vshrl.u32 %v2310, 7
    %v2312 = vsub.s32 0, %v2311
    %v2313 = vrot.slane %v733, %v2312
    %2315 = vmatprep.subr.mxu0 0.0
    %2316 = vmatpush1.msra.mxu0 %v734
    %2317 = vmatprep.subr.mxu0 0.0
    %2318 = vmatpush1.msra.mxu0 %v735
    %2319 = vmatprep.subr.mxu0 0.0
    %2320 = vmatpush1.msra.mxu0 %v736
    %2321 = vmatprep.subr.mxu0 0.0
    %2322 = vmatpush1.msra.mxu0 %v737
    %2323 = vmatprep.subr.mxu0 0.0
    %2324 = vmatpush1.msra.mxu0 0.0
    %2325 = vmatprep.subr.mxu0 0.0
    %2326 = vmatpush1.msra.mxu0 0.0
    %2327 = vmatprep.subr.mxu0 0.0
    %2328 = vmatpush1.msra.mxu0 0.0
    %2329 = vmatprep.subr.mxu0 0.0
    %2330 = vmatpush1.msra.mxu0 0.0
    %2331 = vmatprep.subr.mxu0 0.0
    %2332 = vmatpush1.msra.mxu0 0.0
    %2333 = vmatprep.subr.mxu0 0.0
    %2334 = vmatpush1.msra.mxu0 0.0
    %2335 = vmatprep.subr.mxu0 0.0
    %2336 = vmatpush1.msra.mxu0 0.0
    %2337 = vmatprep.subr.mxu0 0.0
    %2338 = vmatpush1.msra.mxu0 0.0
    %2339 = vmatprep.subr.mxu0 0.0
    %2340 = vmatpush1.msra.mxu0 0.0
    %2341 = vmatprep.subr.mxu0 0.0
    %2342 = vmatpush1.msra.mxu0 0.0
    %2343 = vmatprep.subr.mxu0 0.0
    %2344 = vmatpush1.msra.mxu0 0.0
    %2345 = vmatprep.subr.mxu0 0.0
    %2346 = vmatpush1.msra.mxu0 0.0
    %2347 = vmatprep.subr.mxu0 0.0
    %2348 = vmatpush1.msra.mxu0 0.0
    %2349 = vmatprep.subr.mxu0 0.0
    %2350 = vmatpush1.msra.mxu0 0.0
    %2351 = vmatprep.subr.mxu0 0.0
    %2352 = vmatpush1.msra.mxu0 0.0
    %2353 = vmatprep.subr.mxu0 0.0
    %2354 = vmatpush1.msra.mxu0 0.0
    %2355 = vmatprep.subr.mxu0 0.0
    %2356 = vmatpush1.msra.mxu0 0.0
    %2357 = vmatprep.subr.mxu0 0.0
    %2358 = vmatpush1.msra.mxu0 0.0
    %2359 = vmatprep.subr.mxu0 0.0
    %2360 = vmatpush1.msra.mxu0 0.0
    %2361 = vmatprep.subr.mxu0 0.0
    %2362 = vmatpush1.msra.mxu0 0.0
    %2363 = vmatprep.subr.mxu0 0.0
    %2364 = vmatpush1.msra.mxu0 0.0
    %2365 = vmatprep.subr.mxu0 0.0
    %2366 = vmatpush1.msra.mxu0 0.0
    %2367 = vmatprep.subr.mxu0 0.0
    %2368 = vmatpush1.msra.mxu0 0.0
    %2369 = vmatprep.subr.mxu0 0.0
    %2370 = vmatpush1.msra.mxu0 0.0
    %2371 = vmatprep.subr.mxu0 0.0
    %2372 = vmatpush1.msra.mxu0 0.0
    %2373 = vmatprep.subr.mxu0 0.0
    %2374 = vmatpush1.msra.mxu0 0.0
    %2375 = vmatprep.subr.mxu0 0.0
    %2376 = vmatpush1.msra.mxu0 0.0
    %2377 = vmatprep.subr.mxu0 0.0
    %2378 = vmatpush1.msra.mxu0 0.0
    %2379 = vmatprep.mubr.f32.mxu0 0.0
    %2380 = vmatmul.mubr.f32.gmra.mrb[0].mxu0 %v1043
    %v2381 = vpop.f32.mrb[0].mxu0
    %v2382 = vadd.f32 %v2313, %v2381
    %v2383 = vpop.f32.mrb[0].mxu0
    %2384 = vmatprep.mubr.f32.mxu0 0.0
    %2385 = vmatmul.mubr.f32.gmra.mrb[0].mxu0 %v1046
    %v2386 = vpop.f32.mrb[0].mxu0
    %v2387 = vadd.f32 %v2313, %v2386
    %v2388 = vpop.f32.mrb[0].mxu0
    %2389 = vdwg.mxu0
    %v2390 = vmul.f32 %v2382, %v789
    %v2391 = vmul.f32 %v2387, %v796
    %v2392 = vlaneseq
    %v2393 = vshrl.u32 %v2392, 7
    %v2394 = vsub.s32 0, %v2393
    %v2395 = vrot.slane %v853, %v2394
    %v2396 = vlaneseq
    %v2397 = vshrl.u32 %v2396, 7
    %v2398 = vsub.s32 0, %v2397
    %v2399 = vrot.slane %v860, %v2398
    %v2403 = vsel %vm1307, %v2390, 0
    %v2406 = vsel %vm1307, %v2224, 0
    %2408 = vmatprep.subr.mxu0 0.0
    %2409 = vmatpush1.xpose.msra.mxu0 %v2406
    %2410 = vmatprep.subr.mxu0 0.0
    %2411 = vmatpush1.xpose.msra.mxu0 0.0
    %2412 = vmatprep.subr.mxu0 0.0
    %2413 = vmatpush1.xpose.msra.mxu0 0.0
    %2414 = vmatprep.subr.mxu0 0.0
    %2415 = vmatpush1.xpose.msra.mxu0 0.0
    %2416 = vmatprep.subr.mxu0 0.0
    %2417 = vmatpush1.xpose.msra.mxu0 0.0
    %2418 = vmatprep.subr.mxu0 0.0
    %2419 = vmatpush1.xpose.msra.mxu0 0.0
    %2420 = vmatprep.subr.mxu0 0.0
    %2421 = vmatpush1.xpose.msra.mxu0 0.0
    %2422 = vmatprep.subr.mxu0 0.0
    %2423 = vmatpush1.xpose.msra.mxu0 0.0
    %2424 = vmatprep.subr.mxu0 0.0
    %2425 = vmatpush1.xpose.msra.mxu0 0.0
    %2426 = vmatprep.subr.mxu0 0.0
    %2427 = vmatpush1.xpose.msra.mxu0 0.0
    %2428 = vmatprep.subr.mxu0 0.0
    %2429 = vmatpush1.xpose.msra.mxu0 0.0
    %2430 = vmatprep.subr.mxu0 0.0
    %2431 = vmatpush1.xpose.msra.mxu0 0.0
    %2432 = vmatprep.subr.mxu0 0.0
    %2433 = vmatpush1.xpose.msra.mxu0 0.0
    %2434 = vmatprep.subr.mxu0 0.0
    %2435 = vmatpush1.xpose.msra.mxu0 0.0
    %2436 = vmatprep.subr.mxu0 0.0
    %2437 = vmatpush1.xpose.msra.mxu0 0.0
    %2438 = vmatprep.subr.mxu0 0.0
    %2439 = vmatpush1.xpose.msra.mxu0 0.0
    %2440 = vmatprep.subr.mxu0 0.0
    %2441 = vmatpush1.xpose.msra.mxu0 0.0
    %2442 = vmatprep.subr.mxu0 0.0
    %2443 = vmatpush1.xpose.msra.mxu0 0.0
    %2444 = vmatprep.subr.mxu0 0.0
    %2445 = vmatpush1.xpose.msra.mxu0 0.0
    %2446 = vmatprep.subr.mxu0 0.0
    %2447 = vmatpush1.xpose.msra.mxu0 0.0
    %2448 = vmatprep.subr.mxu0 0.0
    %2449 = vmatpush1.xpose.msra.mxu0 0.0
    %2450 = vmatprep.subr.mxu0 0.0
    %2451 = vmatpush1.xpose.msra.mxu0 0.0
    %2452 = vmatprep.subr.mxu0 0.0
    %2453 = vmatpush1.xpose.msra.mxu0 0.0
    %2454 = vmatprep.subr.mxu0 0.0
    %2455 = vmatpush1.xpose.msra.mxu0 0.0
    %2456 = vmatprep.subr.mxu0 0.0
    %2457 = vmatpush1.xpose.msra.mxu0 0.0
    %2458 = vmatprep.subr.mxu0 0.0
    %2459 = vmatpush1.xpose.msra.mxu0 0.0
    %2460 = vmatprep.subr.mxu0 0.0
    %2461 = vmatpush1.xpose.msra.mxu0 0.0
    %2462 = vmatprep.subr.mxu0 0.0
    %2463 = vmatpush1.xpose.msra.mxu0 0.0
    %2464 = vmatprep.subr.mxu0 0.0
    %2465 = vmatpush1.xpose.msra.mxu0 0.0
    %2466 = vmatprep.subr.mxu0 0.0
    %2467 = vmatpush1.xpose.msra.mxu0 0.0
    %2468 = vmatprep.subr.mxu0 0.0
    %2469 = vmatpush1.xpose.msra.mxu0 0.0
    %2470 = vmatprep.subr.mxu0 0.0
    %2471 = vmatpush1.xpose.msra.mxu0 0.0
    %2472 = vmatprep.mubr.f32.mxu0 0.0
    %2473 = vmatmul.mubr.f32.gmra.mrb[0].mxu0 %v2403
    %v2474 = vpop.f32.mrb[0].mxu0
    %v2475 = vadd.f32 %v2395, %v2474
    %v2476 = vpop.f32.mrb[0].mxu0
    %2477 = vdwg.mxu0
    %v2479 = vsel %vm1307, %v2391, 0
    %v2482 = vsel %vm1307, %v2225, 0
    %2484 = vmatprep.subr.mxu0 0.0
    %2485 = vmatpush1.xpose.msra.mxu0 %v2482
    %2486 = vmatprep.subr.mxu0 0.0
    %2487 = vmatpush1.xpose.msra.mxu0 0.0
    %2488 = vmatprep.subr.mxu0 0.0
    %2489 = vmatpush1.xpose.msra.mxu0 0.0
    %2490 = vmatprep.subr.mxu0 0.0
    %2491 = vmatpush1.xpose.msra.mxu0 0.0
    %2492 = vmatprep.subr.mxu0 0.0
    %2493 = vmatpush1.xpose.msra.mxu0 0.0
    %2494 = vmatprep.subr.mxu0 0.0
    %2495 = vmatpush1.xpose.msra.mxu0 0.0
    %2496 = vmatprep.subr.mxu0 0.0
    %2497 = vmatpush1.xpose.msra.mxu0 0.0
    %2498 = vmatprep.subr.mxu0 0.0
    %2499 = vmatpush1.xpose.msra.mxu0 0.0
    %2500 = vmatprep.subr.mxu0 0.0
    %2501 = vmatpush1.xpose.msra.mxu0 0.0
    %2502 = vmatprep.subr.mxu0 0.0
    %2503 = vmatpush1.xpose.msra.mxu0 0.0
    %2504 = vmatprep.subr.mxu0 0.0
    %2505 = vmatpush1.xpose.msra.mxu0 0.0
    %2506 = vmatprep.subr.mxu0 0.0
    %2507 = vmatpush1.xpose.msra.mxu0 0.0
    %2508 = vmatprep.subr.mxu0 0.0
    %2509 = vmatpush1.xpose.msra.mxu0 0.0
    %2510 = vmatprep.subr.mxu0 0.0
    %2511 = vmatpush1.xpose.msra.mxu0 0.0
    %2512 = vmatprep.subr.mxu0 0.0
    %2513 = vmatpush1.xpose.msra.mxu0 0.0
    %2514 = vmatprep.subr.mxu0 0.0
    %2515 = vmatpush1.xpose.msra.mxu0 0.0
    %2516 = vmatprep.subr.mxu0 0.0
    %2517 = vmatpush1.xpose.msra.mxu0 0.0
    %2518 = vmatprep.subr.mxu0 0.0
    %2519 = vmatpush1.xpose.msra.mxu0 0.0
    %2520 = vmatprep.subr.mxu0 0.0
    %2521 = vmatpush1.xpose.msra.mxu0 0.0
    %2522 = vmatprep.subr.mxu0 0.0
    %2523 = vmatpush1.xpose.msra.mxu0 0.0
    %2524 = vmatprep.subr.mxu0 0.0
    %2525 = vmatpush1.xpose.msra.mxu0 0.0
    %2526 = vmatprep.subr.mxu0 0.0
    %2527 = vmatpush1.xpose.msra.mxu0 0.0
    %2528 = vmatprep.subr.mxu0 0.0
    %2529 = vmatpush1.xpose.msra.mxu0 0.0
    %2530 = vmatprep.subr.mxu0 0.0
    %2531 = vmatpush1.xpose.msra.mxu0 0.0
    %2532 = vmatprep.subr.mxu0 0.0
    %2533 = vmatpush1.xpose.msra.mxu0 0.0
    %2534 = vmatprep.subr.mxu0 0.0
    %2535 = vmatpush1.xpose.msra.mxu0 0.0
    %2536 = vmatprep.subr.mxu0 0.0
    %2537 = vmatpush1.xpose.msra.mxu0 0.0
    %2538 = vmatprep.subr.mxu0 0.0
    %2539 = vmatpush1.xpose.msra.mxu0 0.0
    %2540 = vmatprep.subr.mxu0 0.0
    %2541 = vmatpush1.xpose.msra.mxu0 0.0
    %2542 = vmatprep.subr.mxu0 0.0
    %2543 = vmatpush1.xpose.msra.mxu0 0.0
    %2544 = vmatprep.subr.mxu0 0.0
    %2545 = vmatpush1.xpose.msra.mxu0 0.0
    %2546 = vmatprep.subr.mxu0 0.0
    %2547 = vmatpush1.xpose.msra.mxu0 0.0
    %2548 = vmatprep.mubr.f32.mxu0 0.0
    %2549 = vmatmul.mubr.f32.gmra.mrb[0].mxu0 %v2479
    %v2550 = vpop.f32.mrb[0].mxu0
    %v2551 = vadd.f32 %v2399, %v2550
    %v2552 = vpop.f32.mrb[0].mxu0
    %2553 = vdwg.mxu0
    %v2554 = vsel %vm1460, %v2475, -inf
    %2555 = vmax.xlane.f32.xlu0 %v2554
    %v2556 = vpop.xlane.xlu0 %2555
    %v2557 = vsel %vm1460, %v2551, -inf
    %2558 = vmax.xlane.f32.xlu0 %v2557
    %v2559 = vpop.xlane.xlu0 %2558
    %v2560 = vsub.f32 %v2475, %v2556
    %v2561 = vsub.f32 %v2551, %v2559
    %v2562 = vmul.f32 %v2560, 1.442695
    %v2563 = vpow.pop %v2562
    %v2564 = vmul.f32 %v2561, 1.442695
    %v2565 = vpow.pop %v2564
    %v2566 = vsel %vm1460, %v2563, 0.0
    %2567 = vadd.xlane.f32.xlu0 %v2566
    %v2568 = vpop.xlane.xlu0 %2567
    %v2569 = vsel %vm1460, %v2565, 0.0
    %2570 = vadd.xlane.f32.xlu0 %v2569
    %v2571 = vpop.xlane.xlu0 %2570
    %v2572 = vrcp.pop %v2568
    %v2573 = vrcp.pop %v2571
    %v2574 = vmul.f32 %v2563, %v2572
    %v2575 = vmul.f32 %v2565, %v2573
    %v2577 = vsel %vm1460, %v2574, 0
    %2579 = vmatprep.subr.mxu0 0.0
    %2580 = vmatpush1.msra.mxu0 %v2307
    %2581 = vmatprep.subr.mxu0 0.0
    %2582 = vmatpush1.msra.mxu0 0.0
    %2583 = vmatprep.subr.mxu0 0.0
    %2584 = vmatpush1.msra.mxu0 0.0
    %2585 = vmatprep.subr.mxu0 0.0
    %2586 = vmatpush1.msra.mxu0 0.0
    %2587 = vmatprep.subr.mxu0 0.0
    %2588 = vmatpush1.msra.mxu0 0.0
    %2589 = vmatprep.subr.mxu0 0.0
    %2590 = vmatpush1.msra.mxu0 0.0
    %2591 = vmatprep.subr.mxu0 0.0
    %2592 = vmatpush1.msra.mxu0 0.0
    %2593 = vmatprep.subr.mxu0 0.0
    %2594 = vmatpush1.msra.mxu0 0.0
    %2595 = vmatprep.subr.mxu0 0.0
    %2596 = vmatpush1.msra.mxu0 0.0
    %2597 = vmatprep.subr.mxu0 0.0
    %2598 = vmatpush1.msra.mxu0 0.0
    %2599 = vmatprep.subr.mxu0 0.0
    %2600 = vmatpush1.msra.mxu0 0.0
    %2601 = vmatprep.subr.mxu0 0.0
    %2602 = vmatpush1.msra.mxu0 0.0
    %2603 = vmatprep.subr.mxu0 0.0
    %2604 = vmatpush1.msra.mxu0 0.0
    %2605 = vmatprep.subr.mxu0 0.0
    %2606 = vmatpush1.msra.mxu0 0.0
    %2607 = vmatprep.subr.mxu0 0.0
    %2608 = vmatpush1.msra.mxu0 0.0
    %2609 = vmatprep.subr.mxu0 0.0
    %2610 = vmatpush1.msra.mxu0 0.0
    %2611 = vmatprep.subr.mxu0 0.0
    %2612 = vmatpush1.msra.mxu0 0.0
    %2613 = vmatprep.subr.mxu0 0.0
    %2614 = vmatpush1.msra.mxu0 0.0
    %2615 = vmatprep.subr.mxu0 0.0
    %2616 = vmatpush1.msra.mxu0 0.0
    %2617 = vmatprep.subr.mxu0 0.0
    %2618 = vmatpush1.msra.mxu0 0.0
    %2619 = vmatprep.subr.mxu0 0.0
    %2620 = vmatpush1.msra.mxu0 0.0
    %2621 = vmatprep.subr.mxu0 0.0
    %2622 = vmatpush1.msra.mxu0 0.0
    %2623 = vmatprep.subr.mxu0 0.0
    %2624 = vmatpush1.msra.mxu0 0.0
    %2625 = vmatprep.subr.mxu0 0.0
    %2626 = vmatpush1.msra.mxu0 0.0
    %2627 = vmatprep.subr.mxu0 0.0
    %2628 = vmatpush1.msra.mxu0 0.0
    %2629 = vmatprep.subr.mxu0 0.0
    %2630 = vmatpush1.msra.mxu0 0.0
    %2631 = vmatprep.subr.mxu0 0.0
    %2632 = vmatpush1.msra.mxu0 0.0
    %2633 = vmatprep.subr.mxu0 0.0
    %2634 = vmatpush1.msra.mxu0 0.0
    %2635 = vmatprep.subr.mxu0 0.0
    %2636 = vmatpush1.msra.mxu0 0.0
    %2637 = vmatprep.subr.mxu0 0.0
    %2638 = vmatpush1.msra.mxu0 0.0
    %2639 = vmatprep.subr.mxu0 0.0
    %2640 = vmatpush1.msra.mxu0 0.0
    %2641 = vmatprep.subr.mxu0 0.0
    %2642 = vmatpush1.msra.mxu0 0.0
    %2643 = vmatprep.mubr.f32.mxu0 0.0
    %2644 = vmatmul.mubr.f32.gmra.mrb[0].mxu0 %v2577
    %v2645 = vpop.f32.mrb[0].mxu0
    %v2646 = vadd.f32 0.0, %v2645
    %v2647 = vpop.f32.mrb[0].mxu0
    %2648 = vdwg.mxu0
    %v2650 = vsel %vm1460, %v2575, 0
    %2652 = vmatprep.subr.mxu0 0.0
    %2653 = vmatpush1.msra.mxu0 %v2308
    %2654 = vmatprep.subr.mxu0 0.0
    %2655 = vmatpush1.msra.mxu0 0.0
    %2656 = vmatprep.subr.mxu0 0.0
    %2657 = vmatpush1.msra.mxu0 0.0
    %2658 = vmatprep.subr.mxu0 0.0
    %2659 = vmatpush1.msra.mxu0 0.0
    %2660 = vmatprep.subr.mxu0 0.0
    %2661 = vmatpush1.msra.mxu0 0.0
    %2662 = vmatprep.subr.mxu0 0.0
    %2663 = vmatpush1.msra.mxu0 0.0
    %2664 = vmatprep.subr.mxu0 0.0
    %2665 = vmatpush1.msra.mxu0 0.0
    %2666 = vmatprep.subr.mxu0 0.0
    %2667 = vmatpush1.msra.mxu0 0.0
    %2668 = vmatprep.subr.mxu0 0.0
    %2669 = vmatpush1.msra.mxu0 0.0
    %2670 = vmatprep.subr.mxu0 0.0
    %2671 = vmatpush1.msra.mxu0 0.0
    %2672 = vmatprep.subr.mxu0 0.0
    %2673 = vmatpush1.msra.mxu0 0.0
    %2674 = vmatprep.subr.mxu0 0.0
    %2675 = vmatpush1.msra.mxu0 0.0
    %2676 = vmatprep.subr.mxu0 0.0
    %2677 = vmatpush1.msra.mxu0 0.0
    %2678 = vmatprep.subr.mxu0 0.0
    %2679 = vmatpush1.msra.mxu0 0.0
    %2680 = vmatprep.subr.mxu0 0.0
    %2681 = vmatpush1.msra.mxu0 0.0
    %2682 = vmatprep.subr.mxu0 0.0
    %2683 = vmatpush1.msra.mxu0 0.0
    %2684 = vmatprep.subr.mxu0 0.0
    %2685 = vmatpush1.msra.mxu0 0.0
    %2686 = vmatprep.subr.mxu0 0.0
    %2687 = vmatpush1.msra.mxu0 0.0
    %2688 = vmatprep.subr.mxu0 0.0
    %2689 = vmatpush1.msra.mxu0 0.0
    %2690 = vmatprep.subr.mxu0 0.0
    %2691 = vmatpush1.msra.mxu0 0.0
    %2692 = vmatprep.subr.mxu0 0.0
    %2693 = vmatpush1.msra.mxu0 0.0
    %2694 = vmatprep.subr.mxu0 0.0
    %2695 = vmatpush1.msra.mxu0 0.0
    %2696 = vmatprep.subr.mxu0 0.0
    %2697 = vmatpush1.msra.mxu0 0.0
    %2698 = vmatprep.subr.mxu0 0.0
    %2699 = vmatpush1.msra.mxu0 0.0
    %2700 = vmatprep.subr.mxu0 0.0
    %2701 = vmatpush1.msra.mxu0 0.0
    %2702 = vmatprep.subr.mxu0 0.0
    %2703 = vmatpush1.msra.mxu0 0.0
    %2704 = vmatprep.subr.mxu0 0.0
    %2705 = vmatpush1.msra.mxu0 0.0
    %2706 = vmatprep.subr.mxu0 0.0
    %2707 = vmatpush1.msra.mxu0 0.0
    %2708 = vmatprep.subr.mxu0 0.0
    %2709 = vmatpush1.msra.mxu0 0.0
    %2710 = vmatprep.subr.mxu0 0.0
    %2711 = vmatpush1.msra.mxu0 0.0
    %2712 = vmatprep.subr.mxu0 0.0
    %2713 = vmatpush1.msra.mxu0 0.0
    %2714 = vmatprep.subr.mxu0 0.0
    %2715 = vmatpush1.msra.mxu0 0.0
    %2716 = vmatprep.mubr.f32.mxu0 0.0
    %2717 = vmatmul.mubr.f32.gmra.mrb[0].mxu0 %v2650
    %v2718 = vpop.f32.mrb[0].mxu0
    %v2719 = vadd.f32 0.0, %v2718
    %v2720 = vpop.f32.mrb[0].mxu0
    %2721 = vdwg.mxu0
    %2722 = vrot.lane.b32.xlu0 %v2390, 112
    %v2723 = vpop.permute.xlu0 %2722
    %2724 = vrot.lane.b32.xlu0 %v2224, 112
    %v2725 = vpop.permute.xlu0 %2724
    %v2726 = vsel %vm1307, %v2723, 0
    %v2728 = vsel %vm1307, %v2725, 0
    %2730 = vmatprep.subr.mxu0 0.0
    %2731 = vmatpush1.xpose.msra.mxu0 %v2728
    %2732 = vmatprep.subr.mxu0 0.0
    %2733 = vmatpush1.xpose.msra.mxu0 0.0
    %2734 = vmatprep.subr.mxu0 0.0
    %2735 = vmatpush1.xpose.msra.mxu0 0.0
    %2736 = vmatprep.subr.mxu0 0.0
    %2737 = vmatpush1.xpose.msra.mxu0 0.0
    %2738 = vmatprep.subr.mxu0 0.0
    %2739 = vmatpush1.xpose.msra.mxu0 0.0
    %2740 = vmatprep.subr.mxu0 0.0
    %2741 = vmatpush1.xpose.msra.mxu0 0.0
    %2742 = vmatprep.subr.mxu0 0.0
    %2743 = vmatpush1.xpose.msra.mxu0 0.0
    %2744 = vmatprep.subr.mxu0 0.0
    %2745 = vmatpush1.xpose.msra.mxu0 0.0
    %2746 = vmatprep.subr.mxu0 0.0
    %2747 = vmatpush1.xpose.msra.mxu0 0.0
    %2748 = vmatprep.subr.mxu0 0.0
    %2749 = vmatpush1.xpose.msra.mxu0 0.0
    %2750 = vmatprep.subr.mxu0 0.0
    %2751 = vmatpush1.xpose.msra.mxu0 0.0
    %2752 = vmatprep.subr.mxu0 0.0
    %2753 = vmatpush1.xpose.msra.mxu0 0.0
    %2754 = vmatprep.subr.mxu0 0.0
    %2755 = vmatpush1.xpose.msra.mxu0 0.0
    %2756 = vmatprep.subr.mxu0 0.0
    %2757 = vmatpush1.xpose.msra.mxu0 0.0
    %2758 = vmatprep.subr.mxu0 0.0
    %2759 = vmatpush1.xpose.msra.mxu0 0.0
    %2760 = vmatprep.subr.mxu0 0.0
    %2761 = vmatpush1.xpose.msra.mxu0 0.0
    %2762 = vmatprep.subr.mxu0 0.0
    %2763 = vmatpush1.xpose.msra.mxu0 0.0
    %2764 = vmatprep.subr.mxu0 0.0
    %2765 = vmatpush1.xpose.msra.mxu0 0.0
    %2766 = vmatprep.subr.mxu0 0.0
    %2767 = vmatpush1.xpose.msra.mxu0 0.0
    %2768 = vmatprep.subr.mxu0 0.0
    %2769 = vmatpush1.xpose.msra.mxu0 0.0
    %2770 = vmatprep.subr.mxu0 0.0
    %2771 = vmatpush1.xpose.msra.mxu0 0.0
    %2772 = vmatprep.subr.mxu0 0.0
    %2773 = vmatpush1.xpose.msra.mxu0 0.0
    %2774 = vmatprep.subr.mxu0 0.0
    %2775 = vmatpush1.xpose.msra.mxu0 0.0
    %2776 = vmatprep.subr.mxu0 0.0
    %2777 = vmatpush1.xpose.msra.mxu0 0.0
    %2778 = vmatprep.subr.mxu0 0.0
    %2779 = vmatpush1.xpose.msra.mxu0 0.0
    %2780 = vmatprep.subr.mxu0 0.0
    %2781 = vmatpush1.xpose.msra.mxu0 0.0
    %2782 = vmatprep.subr.mxu0 0.0
    %2783 = vmatpush1.xpose.msra.mxu0 0.0
    %2784 = vmatprep.subr.mxu0 0.0
    %2785 = vmatpush1.xpose.msra.mxu0 0.0
    %2786 = vmatprep.subr.mxu0 0.0
    %2787 = vmatpush1.xpose.msra.mxu0 0.0
    %2788 = vmatprep.subr.mxu0 0.0
    %2789 = vmatpush1.xpose.msra.mxu0 0.0
    %2790 = vmatprep.subr.mxu0 0.0
    %2791 = vmatpush1.xpose.msra.mxu0 0.0
    %2792 = vmatprep.subr.mxu0 0.0
    %2793 = vmatpush1.xpose.msra.mxu0 0.0
    %2794 = vmatprep.mubr.f32.mxu0 0.0
    %2795 = vmatmul.mubr.f32.gmra.mrb[0].mxu0 %v2726
    %v2796 = vpop.f32.mrb[0].mxu0
    %v2797 = vadd.f32 %v2395, %v2796
    %v2798 = vpop.f32.mrb[0].mxu0
    %2799 = vdwg.mxu0
    %2800 = vrot.lane.b32.xlu0 %v2391, 112
    %v2801 = vpop.permute.xlu0 %2800
    %2802 = vrot.lane.b32.xlu0 %v2225, 112
    %v2803 = vpop.permute.xlu0 %2802
    %v2804 = vsel %vm1307, %v2801, 0
    %v2806 = vsel %vm1307, %v2803, 0
    %2808 = vmatprep.subr.mxu0 0.0
    %2809 = vmatpush1.xpose.msra.mxu0 %v2806
    %2810 = vmatprep.subr.mxu0 0.0
    %2811 = vmatpush1.xpose.msra.mxu0 0.0
    %2812 = vmatprep.subr.mxu0 0.0
    %2813 = vmatpush1.xpose.msra.mxu0 0.0
    %2814 = vmatprep.subr.mxu0 0.0
    %2815 = vmatpush1.xpose.msra.mxu0 0.0
    %2816 = vmatprep.subr.mxu0 0.0
    %2817 = vmatpush1.xpose.msra.mxu0 0.0
    %2818 = vmatprep.subr.mxu0 0.0
    %2819 = vmatpush1.xpose.msra.mxu0 0.0
    %2820 = vmatprep.subr.mxu0 0.0
    %2821 = vmatpush1.xpose.msra.mxu0 0.0
    %2822 = vmatprep.subr.mxu0 0.0
    %2823 = vmatpush1.xpose.msra.mxu0 0.0
    %2824 = vmatprep.subr.mxu0 0.0
    %2825 = vmatpush1.xpose.msra.mxu0 0.0
    %2826 = vmatprep.subr.mxu0 0.0
    %2827 = vmatpush1.xpose.msra.mxu0 0.0
    %2828 = vmatprep.subr.mxu0 0.0
    %2829 = vmatpush1.xpose.msra.mxu0 0.0
    %2830 = vmatprep.subr.mxu0 0.0
    %2831 = vmatpush1.xpose.msra.mxu0 0.0
    %2832 = vmatprep.subr.mxu0 0.0
    %2833 = vmatpush1.xpose.msra.mxu0 0.0
    %2834 = vmatprep.subr.mxu0 0.0
    %2835 = vmatpush1.xpose.msra.mxu0 0.0
    %2836 = vmatprep.subr.mxu0 0.0
    %2837 = vmatpush1.xpose.msra.mxu0 0.0
    %2838 = vmatprep.subr.mxu0 0.0
    %2839 = vmatpush1.xpose.msra.mxu0 0.0
    %2840 = vmatprep.subr.mxu0 0.0
    %2841 = vmatpush1.xpose.msra.mxu0 0.0
    %2842 = vmatprep.subr.mxu0 0.0
    %2843 = vmatpush1.xpose.msra.mxu0 0.0
    %2844 = vmatprep.subr.mxu0 0.0
    %2845 = vmatpush1.xpose.msra.mxu0 0.0
    %2846 = vmatprep.subr.mxu0 0.0
    %2847 = vmatpush1.xpose.msra.mxu0 0.0
    %2848 = vmatprep.subr.mxu0 0.0
    %2849 = vmatpush1.xpose.msra.mxu0 0.0
    %2850 = vmatprep.subr.mxu0 0.0
    %2851 = vmatpush1.xpose.msra.mxu0 0.0
    %2852 = vmatprep.subr.mxu0 0.0
    %2853 = vmatpush1.xpose.msra.mxu0 0.0
    %2854 = vmatprep.subr.mxu0 0.0
    %2855 = vmatpush1.xpose.msra.mxu0 0.0
    %2856 = vmatprep.subr.mxu0 0.0
    %2857 = vmatpush1.xpose.msra.mxu0 0.0
    %2858 = vmatprep.subr.mxu0 0.0
    %2859 = vmatpush1.xpose.msra.mxu0 0.0
    %2860 = vmatprep.subr.mxu0 0.0
    %2861 = vmatpush1.xpose.msra.mxu0 0.0
    %2862 = vmatprep.subr.mxu0 0.0
    %2863 = vmatpush1.xpose.msra.mxu0 0.0
    %2864 = vmatprep.subr.mxu0 0.0
    %2865 = vmatpush1.xpose.msra.mxu0 0.0
    %2866 = vmatprep.subr.mxu0 0.0
    %2867 = vmatpush1.xpose.msra.mxu0 0.0
    %2868 = vmatprep.subr.mxu0 0.0
    %2869 = vmatpush1.xpose.msra.mxu0 0.0
    %2870 = vmatprep.subr.mxu0 0.0
    %2871 = vmatpush1.xpose.msra.mxu0 0.0
    %2872 = vmatprep.mubr.f32.mxu0 0.0
    %2873 = vmatmul.mubr.f32.gmra.mrb[0].mxu0 %v2804
    %v2874 = vpop.f32.mrb[0].mxu0
    %v2875 = vadd.f32 %v2399, %v2874
    %v2876 = vpop.f32.mrb[0].mxu0
    %2877 = vdwg.mxu0
    %v2878 = vsel %vm1460, %v2797, -inf
    %2879 = vmax.xlane.f32.xlu0 %v2878
    %v2880 = vpop.xlane.xlu0 %2879
    %v2881 = vsel %vm1460, %v2875, -inf
    %2882 = vmax.xlane.f32.xlu0 %v2881
    %v2883 = vpop.xlane.xlu0 %2882
    %v2884 = vsub.f32 %v2797, %v2880
    %v2885 = vsub.f32 %v2875, %v2883
    %v2886 = vmul.f32 %v2884, 1.442695
    %v2887 = vpow.pop %v2886
    %v2888 = vmul.f32 %v2885, 1.442695
    %v2889 = vpow.pop %v2888
    %v2890 = vsel %vm1460, %v2887, 0.0
    %2891 = vadd.xlane.f32.xlu0 %v2890
    %v2892 = vpop.xlane.xlu0 %2891
    %v2893 = vsel %vm1460, %v2889, 0.0
    %2894 = vadd.xlane.f32.xlu0 %v2893
    %v2895 = vpop.xlane.xlu0 %2894
    %v2896 = vrcp.pop %v2892
    %v2897 = vrcp.pop %v2895
    %v2898 = vmul.f32 %v2887, %v2896
    %v2899 = vmul.f32 %v2889, %v2897
    %2901 = vrot.lane.b32.xlu0 %v2307, 112
    %v2902 = vpop.permute.xlu0 %2901
    %v2905 = vsel %vm1460, %v2898, 0
    %2907 = vmatprep.subr.mxu0 0.0
    %2908 = vmatpush1.msra.mxu0 %v2902
    %2909 = vmatprep.subr.mxu0 0.0
    %2910 = vmatpush1.msra.mxu0 0.0
    %2911 = vmatprep.subr.mxu0 0.0
    %2912 = vmatpush1.msra.mxu0 0.0
    %2913 = vmatprep.subr.mxu0 0.0
    %2914 = vmatpush1.msra.mxu0 0.0
    %2915 = vmatprep.subr.mxu0 0.0
    %2916 = vmatpush1.msra.mxu0 0.0
    %2917 = vmatprep.subr.mxu0 0.0
    %2918 = vmatpush1.msra.mxu0 0.0
    %2919 = vmatprep.subr.mxu0 0.0
    %2920 = vmatpush1.msra.mxu0 0.0
    %2921 = vmatprep.subr.mxu0 0.0
    %2922 = vmatpush1.msra.mxu0 0.0
    %2923 = vmatprep.subr.mxu0 0.0
    %2924 = vmatpush1.msra.mxu0 0.0
    %2925 = vmatprep.subr.mxu0 0.0
    %2926 = vmatpush1.msra.mxu0 0.0
    %2927 = vmatprep.subr.mxu0 0.0
    %2928 = vmatpush1.msra.mxu0 0.0
    %2929 = vmatprep.subr.mxu0 0.0
    %2930 = vmatpush1.msra.mxu0 0.0
    %2931 = vmatprep.subr.mxu0 0.0
    %2932 = vmatpush1.msra.mxu0 0.0
    %2933 = vmatprep.subr.mxu0 0.0
    %2934 = vmatpush1.msra.mxu0 0.0
    %2935 = vmatprep.subr.mxu0 0.0
    %2936 = vmatpush1.msra.mxu0 0.0
    %2937 = vmatprep.subr.mxu0 0.0
    %2938 = vmatpush1.msra.mxu0 0.0
    %2939 = vmatprep.subr.mxu0 0.0
    %2940 = vmatpush1.msra.mxu0 0.0
    %2941 = vmatprep.subr.mxu0 0.0
    %2942 = vmatpush1.msra.mxu0 0.0
    %2943 = vmatprep.subr.mxu0 0.0
    %2944 = vmatpush1.msra.mxu0 0.0
    %2945 = vmatprep.subr.mxu0 0.0
    %2946 = vmatpush1.msra.mxu0 0.0
    %2947 = vmatprep.subr.mxu0 0.0
    %2948 = vmatpush1.msra.mxu0 0.0
    %2949 = vmatprep.subr.mxu0 0.0
    %2950 = vmatpush1.msra.mxu0 0.0
    %2951 = vmatprep.subr.mxu0 0.0
    %2952 = vmatpush1.msra.mxu0 0.0
    %2953 = vmatprep.subr.mxu0 0.0
    %2954 = vmatpush1.msra.mxu0 0.0
    %2955 = vmatprep.subr.mxu0 0.0
    %2956 = vmatpush1.msra.mxu0 0.0
    %2957 = vmatprep.subr.mxu0 0.0
    %2958 = vmatpush1.msra.mxu0 0.0
    %2959 = vmatprep.subr.mxu0 0.0
    %2960 = vmatpush1.msra.mxu0 0.0
    %2961 = vmatprep.subr.mxu0 0.0
    %2962 = vmatpush1.msra.mxu0 0.0
    %2963 = vmatprep.subr.mxu0 0.0
    %2964 = vmatpush1.msra.mxu0 0.0
    %2965 = vmatprep.subr.mxu0 0.0
    %2966 = vmatpush1.msra.mxu0 0.0
    %2967 = vmatprep.subr.mxu0 0.0
    %2968 = vmatpush1.msra.mxu0 0.0
    %2969 = vmatprep.subr.mxu0 0.0
    %2970 = vmatpush1.msra.mxu0 0.0
    %2971 = vmatprep.mubr.f32.mxu0 0.0
    %2972 = vmatmul.mubr.f32.gmra.mrb[0].mxu0 %v2905
    %v2973 = vpop.f32.mrb[0].mxu0
    %v2974 = vadd.f32 0.0, %v2973
    %v2975 = vpop.f32.mrb[0].mxu0
    %2976 = vdwg.mxu0
    %2978 = vrot.lane.b32.xlu0 %v2308, 112
    %v2979 = vpop.permute.xlu0 %2978
    %v2982 = vsel %vm1460, %v2899, 0
    %2984 = vmatprep.subr.mxu0 0.0
    %2985 = vmatpush1.msra.mxu0 %v2979
    %2986 = vmatprep.subr.mxu0 0.0
    %2987 = vmatpush1.msra.mxu0 0.0
    %2988 = vmatprep.subr.mxu0 0.0
    %2989 = vmatpush1.msra.mxu0 0.0
    %2990 = vmatprep.subr.mxu0 0.0
    %2991 = vmatpush1.msra.mxu0 0.0
    %2992 = vmatprep.subr.mxu0 0.0
    %2993 = vmatpush1.msra.mxu0 0.0
    %2994 = vmatprep.subr.mxu0 0.0
    %2995 = vmatpush1.msra.mxu0 0.0
    %2996 = vmatprep.subr.mxu0 0.0
    %2997 = vmatpush1.msra.mxu0 0.0
    %2998 = vmatprep.subr.mxu0 0.0
    %2999 = vmatpush1.msra.mxu0 0.0
    %3000 = vmatprep.subr.mxu0 0.0
    %3001 = vmatpush1.msra.mxu0 0.0
    %3002 = vmatprep.subr.mxu0 0.0
    %3003 = vmatpush1.msra.mxu0 0.0
    %3004 = vmatprep.subr.mxu0 0.0
    %3005 = vmatpush1.msra.mxu0 0.0
    %3006 = vmatprep.subr.mxu0 0.0
    %3007 = vmatpush1.msra.mxu0 0.0
    %3008 = vmatprep.subr.mxu0 0.0
    %3009 = vmatpush1.msra.mxu0 0.0
    %3010 = vmatprep.subr.mxu0 0.0
    %3011 = vmatpush1.msra.mxu0 0.0
    %3012 = vmatprep.subr.mxu0 0.0
    %3013 = vmatpush1.msra.mxu0 0.0
    %3014 = vmatprep.subr.mxu0 0.0
    %3015 = vmatpush1.msra.mxu0 0.0
    %3016 = vmatprep.subr.mxu0 0.0
    %3017 = vmatpush1.msra.mxu0 0.0
    %3018 = vmatprep.subr.mxu0 0.0
    %3019 = vmatpush1.msra.mxu0 0.0
    %3020 = vmatprep.subr.mxu0 0.0
    %3021 = vmatpush1.msra.mxu0 0.0
    %3022 = vmatprep.subr.mxu0 0.0
    %3023 = vmatpush1.msra.mxu0 0.0
    %3024 = vmatprep.subr.mxu0 0.0
    %3025 = vmatpush1.msra.mxu0 0.0
    %3026 = vmatprep.subr.mxu0 0.0
    %3027 = vmatpush1.msra.mxu0 0.0
    %3028 = vmatprep.subr.mxu0 0.0
    %3029 = vmatpush1.msra.mxu0 0.0
    %3030 = vmatprep.subr.mxu0 0.0
    %3031 = vmatpush1.msra.mxu0 0.0
    %3032 = vmatprep.subr.mxu0 0.0
    %3033 = vmatpush1.msra.mxu0 0.0
    %3034 = vmatprep.subr.mxu0 0.0
    %3035 = vmatpush1.msra.mxu0 0.0
    %3036 = vmatprep.subr.mxu0 0.0
    %3037 = vmatpush1.msra.mxu0 0.0
    %3038 = vmatprep.subr.mxu0 0.0
    %3039 = vmatpush1.msra.mxu0 0.0
    %3040 = vmatprep.subr.mxu0 0.0
    %3041 = vmatpush1.msra.mxu0 0.0
    %3042 = vmatprep.subr.mxu0 0.0
    %3043 = vmatpush1.msra.mxu0 0.0
    %3044 = vmatprep.subr.mxu0 0.0
    %3045 = vmatpush1.msra.mxu0 0.0
    %3046 = vmatprep.subr.mxu0 0.0
    %3047 = vmatpush1.msra.mxu0 0.0
    %3048 = vmatprep.mubr.f32.mxu0 0.0
    %3049 = vmatmul.mubr.f32.gmra.mrb[0].mxu0 %v2982
    %v3050 = vpop.f32.mrb[0].mxu0
    %v3051 = vadd.f32 0.0, %v3050
    %v3052 = vpop.f32.mrb[0].mxu0
    %3053 = vdwg.mxu0
    %3056 = vrot.lane.b32.xlu0 %v2974, 16
    %v3057 = vpop.permute.xlu0 %3056
    %3058 = vrot.lane.b32.xlu0 %v3051, 16
    %v3059 = vpop.permute.xlu0 %3058
    %v3062 = vsel %vm1307, %v2646, %v3057
    %v3063 = vsel %vm1307, %v2719, %v3059
    %3064 = vmatprep.subr.mxu0 0.0
    %3065 = vmatpush1.msra.mxu0 %v725
    %3066 = vmatprep.subr.mxu0 0.0
    %3067 = vmatpush1.msra.mxu0 %v726
    %3068 = vmatprep.subr.mxu0 0.0
    %3069 = vmatpush1.msra.mxu0 %v727
    %3070 = vmatprep.subr.mxu0 0.0
    %3071 = vmatpush1.msra.mxu0 %v728
    %3072 = vmatprep.subr.mxu0 0.0
    %3073 = vmatpush1.msra.mxu0 0.0
    %3074 = vmatprep.subr.mxu0 0.0
    %3075 = vmatpush1.msra.mxu0 0.0
    %3076 = vmatprep.subr.mxu0 0.0
    %3077 = vmatpush1.msra.mxu0 0.0
    %3078 = vmatprep.subr.mxu0 0.0
    %3079 = vmatpush1.msra.mxu0 0.0
    %3080 = vmatprep.subr.mxu0 0.0
    %3081 = vmatpush1.msra.mxu0 0.0
    %3082 = vmatprep.subr.mxu0 0.0
    %3083 = vmatpush1.msra.mxu0 0.0
    %3084 = vmatprep.subr.mxu0 0.0
    %3085 = vmatpush1.msra.mxu0 0.0
    %3086 = vmatprep.subr.mxu0 0.0
    %3087 = vmatpush1.msra.mxu0 0.0
    %3088 = vmatprep.subr.mxu0 0.0
    %3089 = vmatpush1.msra.mxu0 0.0
    %3090 = vmatprep.subr.mxu0 0.0
    %3091 = vmatpush1.msra.mxu0 0.0
    %3092 = vmatprep.subr.mxu0 0.0
    %3093 = vmatpush1.msra.mxu0 0.0
    %3094 = vmatprep.subr.mxu0 0.0
    %3095 = vmatpush1.msra.mxu0 0.0
    %3096 = vmatprep.subr.mxu0 0.0
    %3097 = vmatpush1.msra.mxu0 0.0
    %3098 = vmatprep.subr.mxu0 0.0
    %3099 = vmatpush1.msra.mxu0 0.0
    %3100 = vmatprep.subr.mxu0 0.0
    %3101 = vmatpush1.msra.mxu0 0.0
    %3102 = vmatprep.subr.mxu0 0.0
    %3103 = vmatpush1.msra.mxu0 0.0
    %3104 = vmatprep.subr.mxu0 0.0
    %3105 = vmatpush1.msra.mxu0 0.0
    %3106 = vmatprep.subr.mxu0 0.0
    %3107 = vmatpush1.msra.mxu0 0.0
    %3108 = vmatprep.subr.mxu0 0.0
    %3109 = vmatpush1.msra.mxu0 0.0
    %3110 = vmatprep.subr.mxu0 0.0
    %3111 = vmatpush1.msra.mxu0 0.0
    %3112 = vmatprep.subr.mxu0 0.0
    %3113 = vmatpush1.msra.mxu0 0.0
    %3114 = vmatprep.subr.mxu0 0.0
    %3115 = vmatpush1.msra.mxu0 0.0
    %3116 = vmatprep.subr.mxu0 0.0
    %3117 = vmatpush1.msra.mxu0 0.0
    %3118 = vmatprep.subr.mxu0 0.0
    %3119 = vmatpush1.msra.mxu0 0.0
    %3120 = vmatprep.subr.mxu0 0.0
    %3121 = vmatpush1.msra.mxu0 0.0
    %3122 = vmatprep.subr.mxu0 0.0
    %3123 = vmatpush1.msra.mxu0 0.0
    %3124 = vmatprep.subr.mxu0 0.0
    %3125 = vmatpush1.msra.mxu0 0.0
    %3126 = vmatprep.subr.mxu0 0.0
    %3127 = vmatpush1.msra.mxu0 0.0
    %3128 = vmatprep.mubr.f32.mxu0 0.0
    %3129 = vmatmul.mubr.f32.gmra.mrb[0].mxu0 %v1043
    %v3130 = vpop.f32.mrb[0].mxu0
    %v3131 = vadd.f32 0.0, %v3130
    %v3132 = vpop.f32.mrb[0].mxu0
    %3133 = vmatprep.mubr.f32.mxu0 0.0
    %3134 = vmatmul.mubr.f32.gmra.mrb[0].mxu0 %v1046
    %v3135 = vpop.f32.mrb[0].mxu0
    %v3136 = vadd.f32 0.0, %v3135
    %v3137 = vpop.f32.mrb[0].mxu0
    %3138 = vdwg.mxu0
    %v3140 = vlaneseq
    %v3141 = vshrl.u32 %v3140, 7
    %v3142 = vsub.s32 0, %v3141
    %v3143 = vrot.slane %v724, %v3142
    %v3146 = vsel %vm867, %v3062, 0
    %v3149 = vsel %vm867, %v3063, 0
    %3151 = vmatprep.subr.mxu0 0.0
    %3152 = vmatpush1.msra.mxu0 %v729
    %3153 = vmatprep.subr.mxu0 0.0
    %3154 = vmatpush1.msra.mxu0 %v730
    %3155 = vmatprep.subr.mxu0 0.0
    %3156 = vmatpush1.msra.mxu0 %v731
    %3157 = vmatprep.subr.mxu0 0.0
    %3158 = vmatpush1.msra.mxu0 %v732
    %3159 = vmatprep.subr.mxu0 0.0
    %3160 = vmatpush1.msra.mxu0 0.0
    %3161 = vmatprep.subr.mxu0 0.0
    %3162 = vmatpush1.msra.mxu0 0.0
    %3163 = vmatprep.subr.mxu0 0.0
    %3164 = vmatpush1.msra.mxu0 0.0
    %3165 = vmatprep.subr.mxu0 0.0
    %3166 = vmatpush1.msra.mxu0 0.0
    %3167 = vmatprep.subr.mxu0 0.0
    %3168 = vmatpush1.msra.mxu0 0.0
    %3169 = vmatprep.subr.mxu0 0.0
    %3170 = vmatpush1.msra.mxu0 0.0
    %3171 = vmatprep.subr.mxu0 0.0
    %3172 = vmatpush1.msra.mxu0 0.0
    %3173 = vmatprep.subr.mxu0 0.0
    %3174 = vmatpush1.msra.mxu0 0.0
    %3175 = vmatprep.subr.mxu0 0.0
    %3176 = vmatpush1.msra.mxu0 0.0
    %3177 = vmatprep.subr.mxu0 0.0
    %3178 = vmatpush1.msra.mxu0 0.0
    %3179 = vmatprep.subr.mxu0 0.0
    %3180 = vmatpush1.msra.mxu0 0.0
    %3181 = vmatprep.subr.mxu0 0.0
    %3182 = vmatpush1.msra.mxu0 0.0
    %3183 = vmatprep.subr.mxu0 0.0
    %3184 = vmatpush1.msra.mxu0 0.0
    %3185 = vmatprep.subr.mxu0 0.0
    %3186 = vmatpush1.msra.mxu0 0.0
    %3187 = vmatprep.subr.mxu0 0.0
    %3188 = vmatpush1.msra.mxu0 0.0
    %3189 = vmatprep.subr.mxu0 0.0
    %3190 = vmatpush1.msra.mxu0 0.0
    %3191 = vmatprep.subr.mxu0 0.0
    %3192 = vmatpush1.msra.mxu0 0.0
    %3193 = vmatprep.subr.mxu0 0.0
    %3194 = vmatpush1.msra.mxu0 0.0
    %3195 = vmatprep.subr.mxu0 0.0
    %3196 = vmatpush1.msra.mxu0 0.0
    %3197 = vmatprep.subr.mxu0 0.0
    %3198 = vmatpush1.msra.mxu0 0.0
    %3199 = vmatprep.subr.mxu0 0.0
    %3200 = vmatpush1.msra.mxu0 0.0
    %3201 = vmatprep.subr.mxu0 0.0
    %3202 = vmatpush1.msra.mxu0 0.0
    %3203 = vmatprep.subr.mxu0 0.0
    %3204 = vmatpush1.msra.mxu0 0.0
    %3205 = vmatprep.subr.mxu0 0.0
    %3206 = vmatpush1.msra.mxu0 0.0
    %3207 = vmatprep.subr.mxu0 0.0
    %3208 = vmatpush1.msra.mxu0 0.0
    %3209 = vmatprep.subr.mxu0 0.0
    %3210 = vmatpush1.msra.mxu0 0.0
    %3211 = vmatprep.subr.mxu0 0.0
    %3212 = vmatpush1.msra.mxu0 0.0
    %3213 = vmatprep.subr.mxu0 0.0
    %3214 = vmatpush1.msra.mxu0 0.0
    %3215 = vmatprep.mubr.f32.mxu0 0.0
    %3216 = vmatmul.mubr.f32.gmra.mrb[0].mxu0 %v3146
    %v3217 = vpop.f32.mrb[0].mxu0
    %v3218 = vadd.f32 %v3143, %v3217
    %v3219 = vpop.f32.mrb[0].mxu0
    %3220 = vmatprep.mubr.f32.mxu0 0.0
    %3221 = vmatmul.mubr.f32.gmra.mrb[0].mxu0 %v3149
    %v3222 = vpop.f32.mrb[0].mxu0
    %v3223 = vadd.f32 %v3143, %v3222
    %v3224 = vpop.f32.mrb[0].mxu0
    %3225 = vdwg.mxu0
    %v3226 = vadd.f32 %v3131, %v3218
    %v3227 = vadd.f32 %v3136, %v3223
    %v3228 = vadd.f32 %v3226, %v941
    %v3229 = vadd.f32 %v3227, %v946
    %v3230 = vmul.f32 %v3228, %v789
    %v3231 = vmul.f32 %v3229, %v796
    %v3232 = vsel %vm867, %v3230, 0.0
    %v3233 = vrot.slane %v3232, 4
    %v3234 = vadd.f32 %v3232, %v3233
    %v3235 = vrot.slane %v3234, 2
    %v3236 = vadd.f32 %v3234, %v3235
    %v3237 = vrot.slane %v3236, 1
    %v3238 = vadd.f32 %v3236, %v3237
    %v3239 = vsel %vm867, %v3231, 0.0
    %v3240 = vrot.slane %v3239, 4
    %v3241 = vadd.f32 %v3239, %v3240
    %v3242 = vrot.slane %v3241, 2
    %v3243 = vadd.f32 %v3241, %v3242
    %v3244 = vrot.slane %v3243, 1
    %v3245 = vadd.f32 %v3243, %v3244
    %vm3246 = vcmask 58368
    %v3247 = vsel %vm3246, %v781, 0.0
    %3248 = vadd.xlane.f32.xlu0 %v3247
    %v3249 = vpop.xlane.xlu0 %3248
    %v3251 = vrot.slane %v3249, 1
    %v3254 = vrcp.pop %v3249
    %v3255 = vmul.f32 %v3238, %v3254
    %v3256 = vrcp.pop %v3251
    %v3257 = vmul.f32 %v3245, %v3256
    %v3258 = vmul.f32 %v2135, %v803
    %v3259 = vmul.f32 %v2136, %v810
    %v3260 = vsel %vm867, %v3258, 0.0
    %v3261 = vrot.slane %v3260, 4
    %v3262 = vadd.f32 %v3260, %v3261
    %v3263 = vrot.slane %v3262, 2
    %v3264 = vadd.f32 %v3262, %v3263
    %v3265 = vrot.slane %v3264, 1
    %v3266 = vadd.f32 %v3264, %v3265
    %v3267 = vsel %vm867, %v3259, 0.0
    %v3268 = vrot.slane %v3267, 4
    %v3269 = vadd.f32 %v3267, %v3268
    %v3270 = vrot.slane %v3269, 2
    %v3271 = vadd.f32 %v3269, %v3270
    %v3272 = vrot.slane %v3271, 1
    %v3273 = vadd.f32 %v3271, %v3272
    %v3274 = vsel %vm3246, %v782, 0.0
    %3275 = vadd.xlane.f32.xlu0 %v3274
    %v3276 = vpop.xlane.xlu0 %3275
    %v3278 = vrot.slane %v3276, 1
    %v3281 = vrcp.pop %v3276
    %v3282 = vmul.f32 %v3266, %v3281
    %v3283 = vrcp.pop %v3278
    %v3284 = vmul.f32 %v3273, %v3283
    %v3286 = vlaneseq
    %v3287 = vshrl.u32 %v3286, 7
    %v3288 = vsub.s32 0, %v3287
    %v3289 = vrot.slane %v709, %v3288
    %v3293 = vrot.slane %v3257, 7
    %vm3294 = vcmask 1041409
    %v3295 = vsel %vm3294, %v3293, %v3255
    %v3296 = vsel %vm867, %v3295, 0
    %3298 = vmatprep.subr.mxu0 0.0
    %3299 = vmatpush1.msra.mxu0 %v710
    %3300 = vmatprep.subr.mxu0 0.0
    %3301 = vmatpush1.msra.mxu0 %v711
    %3302 = vmatprep.subr.mxu0 0.0
    %3303 = vmatpush1.msra.mxu0 %v712
    %3304 = vmatprep.subr.mxu0 0.0
    %3305 = vmatpush1.msra.mxu0 %v713
    %3306 = vmatprep.subr.mxu0 0.0
    %3307 = vmatpush1.msra.mxu0 0.0
    %3308 = vmatprep.subr.mxu0 0.0
    %3309 = vmatpush1.msra.mxu0 0.0
    %3310 = vmatprep.subr.mxu0 0.0
    %3311 = vmatpush1.msra.mxu0 0.0
    %3312 = vmatprep.subr.mxu0 0.0
    %3313 = vmatpush1.msra.mxu0 0.0
    %3314 = vmatprep.subr.mxu0 0.0
    %3315 = vmatpush1.msra.mxu0 0.0
    %3316 = vmatprep.subr.mxu0 0.0
    %3317 = vmatpush1.msra.mxu0 0.0
    %3318 = vmatprep.subr.mxu0 0.0
    %3319 = vmatpush1.msra.mxu0 0.0
    %3320 = vmatprep.subr.mxu0 0.0
    %3321 = vmatpush1.msra.mxu0 0.0
    %3322 = vmatprep.subr.mxu0 0.0
    %3323 = vmatpush1.msra.mxu0 0.0
    %3324 = vmatprep.subr.mxu0 0.0
    %3325 = vmatpush1.msra.mxu0 0.0
    %3326 = vmatprep.subr.mxu0 0.0
    %3327 = vmatpush1.msra.mxu0 0.0
    %3328 = vmatprep.subr.mxu0 0.0
    %3329 = vmatpush1.msra.mxu0 0.0
    %3330 = vmatprep.subr.mxu0 0.0
    %3331 = vmatpush1.msra.mxu0 0.0
    %3332 = vmatprep.subr.mxu0 0.0
    %3333 = vmatpush1.msra.mxu0 0.0
    %3334 = vmatprep.subr.mxu0 0.0
    %3335 = vmatpush1.msra.mxu0 0.0
    %3336 = vmatprep.subr.mxu0 0.0
    %3337 = vmatpush1.msra.mxu0 0.0
    %3338 = vmatprep.subr.mxu0 0.0
    %3339 = vmatpush1.msra.mxu0 0.0
    %3340 = vmatprep.subr.mxu0 0.0
    %3341 = vmatpush1.msra.mxu0 0.0
    %3342 = vmatprep.subr.mxu0 0.0
    %3343 = vmatpush1.msra.mxu0 0.0
    %3344 = vmatprep.subr.mxu0 0.0
    %3345 = vmatpush1.msra.mxu0 0.0
    %3346 = vmatprep.subr.mxu0 0.0
    %3347 = vmatpush1.msra.mxu0 0.0
    %3348 = vmatprep.subr.mxu0 0.0
    %3349 = vmatpush1.msra.mxu0 0.0
    %3350 = vmatprep.subr.mxu0 0.0
    %3351 = vmatpush1.msra.mxu0 0.0
    %3352 = vmatprep.subr.mxu0 0.0
    %3353 = vmatpush1.msra.mxu0 0.0
    %3354 = vmatprep.subr.mxu0 0.0
    %3355 = vmatpush1.msra.mxu0 0.0
    %3356 = vmatprep.subr.mxu0 0.0
    %3357 = vmatpush1.msra.mxu0 0.0
    %3358 = vmatprep.subr.mxu0 0.0
    %3359 = vmatpush1.msra.mxu0 0.0
    %3360 = vmatprep.subr.mxu0 0.0
    %3361 = vmatpush1.msra.mxu0 0.0
    %3362 = vmatprep.mubr.f32.mxu0 0.0
    %3363 = vmatmul.mubr.f32.gmra.mrb[0].mxu0 %v3296
    %v3364 = vpop.f32.mrb[0].mxu0
    %v3365 = vadd.f32 %v3289, %v3364
    %v3366 = vpop.f32.mrb[0].mxu0
    %3367 = vdwg.mxu0
    %v3368 = vsub.f32 0.0, %v3365
    %v3369 = vmul.f32 %v3368, 1.442695
    %v3370 = vpow.pop %v3369
    %v3371 = vadd.f32 %v3370, 1.0
    %v3372 = vrcp.pop %v3371
    %v3375 = vunpack.c.l.s4 1966171168
    %v3376 = vunpack.c.0.s8 %v3375
    %v3377 = vlaneseq
    %v3378 = vshrl.u32 %v3377, 7
    %v3379 = vsub.s32 %v3376, %v3378
    %v3380 = vrot.slane %v3372, %v3379
    %v3381 = vcombine.high %v3380, %v3380
    %v3383 = vunpack.c.l.s4 1966171168
    %v3384 = vunpack.c.0.s8 %v3383
    %v3385 = vlaneseq
    %v3386 = vshrl.u32 %v3385, 7
    %v3387 = vsub.s32 %v3384, %v3386
    %v3388 = vrot.slane %v3380, %v3387
    %v3390 = vunpack.c.l.s4 1966171168
    %v3391 = vunpack.c.0.s8 %v3390
    %v3392 = vlaneseq
    %v3393 = vshrl.u32 %v3392, 7
    %v3394 = vsub.s32 %v3391, %v3393
    %v3395 = vrot.slane %v3381, %v3394
    %v3399 = vlaneseq
    %v3400 = vshrl.u32 %v3399, 7
    %v3401 = vsub.s32 0, %v3400
    %v3402 = vrot.slane %v684, %v3401
    %v3406 = vrot.slane %v3284, 7
    %v3407 = vsel %vm3294, %v3406, %v3282
    %v3408 = vsel %vm867, %v3407, 0
    %3410 = vmatprep.subr.mxu0 0.0
    %3411 = vmatpush1.msra.mxu0 %v685
    %3412 = vmatprep.subr.mxu0 0.0
    %3413 = vmatpush1.msra.mxu0 %v686
    %3414 = vmatprep.subr.mxu0 0.0
    %3415 = vmatpush1.msra.mxu0 %v687
    %3416 = vmatprep.subr.mxu0 0.0
    %3417 = vmatpush1.msra.mxu0 %v688
    %3418 = vmatprep.subr.mxu0 0.0
    %3419 = vmatpush1.msra.mxu0 0.0
    %3420 = vmatprep.subr.mxu0 0.0
    %3421 = vmatpush1.msra.mxu0 0.0
    %3422 = vmatprep.subr.mxu0 0.0
    %3423 = vmatpush1.msra.mxu0 0.0
    %3424 = vmatprep.subr.mxu0 0.0
    %3425 = vmatpush1.msra.mxu0 0.0
    %3426 = vmatprep.subr.mxu0 0.0
    %3427 = vmatpush1.msra.mxu0 0.0
    %3428 = vmatprep.subr.mxu0 0.0
    %3429 = vmatpush1.msra.mxu0 0.0
    %3430 = vmatprep.subr.mxu0 0.0
    %3431 = vmatpush1.msra.mxu0 0.0
    %3432 = vmatprep.subr.mxu0 0.0
    %3433 = vmatpush1.msra.mxu0 0.0
    %3434 = vmatprep.subr.mxu0 0.0
    %3435 = vmatpush1.msra.mxu0 0.0
    %3436 = vmatprep.subr.mxu0 0.0
    %3437 = vmatpush1.msra.mxu0 0.0
    %3438 = vmatprep.subr.mxu0 0.0
    %3439 = vmatpush1.msra.mxu0 0.0
    %3440 = vmatprep.subr.mxu0 0.0
    %3441 = vmatpush1.msra.mxu0 0.0
    %3442 = vmatprep.subr.mxu0 0.0
    %3443 = vmatpush1.msra.mxu0 0.0
    %3444 = vmatprep.subr.mxu0 0.0
    %3445 = vmatpush1.msra.mxu0 0.0
    %3446 = vmatprep.subr.mxu0 0.0
    %3447 = vmatpush1.msra.mxu0 0.0
    %3448 = vmatprep.subr.mxu0 0.0
    %3449 = vmatpush1.msra.mxu0 0.0
    %3450 = vmatprep.subr.mxu0 0.0
    %3451 = vmatpush1.msra.mxu0 0.0
    %3452 = vmatprep.subr.mxu0 0.0
    %3453 = vmatpush1.msra.mxu0 0.0
    %3454 = vmatprep.subr.mxu0 0.0
    %3455 = vmatpush1.msra.mxu0 0.0
    %3456 = vmatprep.subr.mxu0 0.0
    %3457 = vmatpush1.msra.mxu0 0.0
    %3458 = vmatprep.subr.mxu0 0.0
    %3459 = vmatpush1.msra.mxu0 0.0
    %3460 = vmatprep.subr.mxu0 0.0
    %3461 = vmatpush1.msra.mxu0 0.0
    %3462 = vmatprep.subr.mxu0 0.0
    %3463 = vmatpush1.msra.mxu0 0.0
    %3464 = vmatprep.subr.mxu0 0.0
    %3465 = vmatpush1.msra.mxu0 0.0
    %3466 = vmatprep.subr.mxu0 0.0
    %3467 = vmatpush1.msra.mxu0 0.0
    %3468 = vmatprep.subr.mxu0 0.0
    %3469 = vmatpush1.msra.mxu0 0.0
    %3470 = vmatprep.subr.mxu0 0.0
    %3471 = vmatpush1.msra.mxu0 0.0
    %3472 = vmatprep.subr.mxu0 0.0
    %3473 = vmatpush1.msra.mxu0 0.0
    %3474 = vmatprep.mubr.f32.mxu0 0.0
    %3475 = vmatmul.mubr.f32.gmra.mrb[0].mxu0 %v3408
    %v3476 = vpop.f32.mrb[0].mxu0
    %v3477 = vadd.f32 %v3402, %v3476
    %v3478 = vpop.f32.mrb[0].mxu0
    %3479 = vdwg.mxu0
    %v3480 = vsub.f32 0.0, %v3477
    %v3481 = vmul.f32 %v3480, 1.442695
    %v3482 = vpow.pop %v3481
    %v3483 = vadd.f32 %v3482, 1.0
    %v3484 = vrcp.pop %v3483
    %v3487 = vunpack.c.l.s4 1966171168
    %v3488 = vunpack.c.0.s8 %v3487
    %v3489 = vlaneseq
    %v3490 = vshrl.u32 %v3489, 7
    %v3491 = vsub.s32 %v3488, %v3490
    %v3492 = vrot.slane %v3484, %v3491
    %v3493 = vcombine.high %v3492, %v3492
    %v3495 = vunpack.c.l.s4 1966171168
    %v3496 = vunpack.c.0.s8 %v3495
    %v3497 = vlaneseq
    %v3498 = vshrl.u32 %v3497, 7
    %v3499 = vsub.s32 %v3496, %v3498
    %v3500 = vrot.slane %v3492, %v3499
    %v3502 = vunpack.c.l.s4 1966171168
    %v3503 = vunpack.c.0.s8 %v3502
    %v3504 = vlaneseq
    %v3505 = vshrl.u32 %v3504, 7
    %v3506 = vsub.s32 %v3503, %v3505
    %v3507 = vrot.slane %v3493, %v3506
    %v3510 = vadd.f32 %v3500, 1.0
    %v3511 = vadd.f32 %v3507, 1.0
    %v3512 = vadd.f32 %v3388, 1.0
    %v3513 = vadd.f32 %v3395, 1.0
    %v3515 = vlaneseq
    %v3516 = vshrl.u32 %v3515, 7
    %v3517 = vsub.s32 0, %v3516
    %v3518 = vrot.slane %v694, %v3517
    %v3521 = vsel %vm867, %v3228, 0
    %v3524 = vsel %vm867, %v3229, 0
    %3526 = vmatprep.subr.mxu0 0.0
    %3527 = vmatpush1.msra.mxu0 %v695
    %3528 = vmatprep.subr.mxu0 0.0
    %3529 = vmatpush1.msra.mxu0 %v696
    %3530 = vmatprep.subr.mxu0 0.0
    %3531 = vmatpush1.msra.mxu0 %v697
    %3532 = vmatprep.subr.mxu0 0.0
    %3533 = vmatpush1.msra.mxu0 %v698
    %3534 = vmatprep.subr.mxu0 0.0
    %3535 = vmatpush1.msra.mxu0 0.0
    %3536 = vmatprep.subr.mxu0 0.0
    %3537 = vmatpush1.msra.mxu0 0.0
    %3538 = vmatprep.subr.mxu0 0.0
    %3539 = vmatpush1.msra.mxu0 0.0
    %3540 = vmatprep.subr.mxu0 0.0
    %3541 = vmatpush1.msra.mxu0 0.0
    %3542 = vmatprep.subr.mxu0 0.0
    %3543 = vmatpush1.msra.mxu0 0.0
    %3544 = vmatprep.subr.mxu0 0.0
    %3545 = vmatpush1.msra.mxu0 0.0
    %3546 = vmatprep.subr.mxu0 0.0
    %3547 = vmatpush1.msra.mxu0 0.0
    %3548 = vmatprep.subr.mxu0 0.0
    %3549 = vmatpush1.msra.mxu0 0.0
    %3550 = vmatprep.subr.mxu0 0.0
    %3551 = vmatpush1.msra.mxu0 0.0
    %3552 = vmatprep.subr.mxu0 0.0
    %3553 = vmatpush1.msra.mxu0 0.0
    %3554 = vmatprep.subr.mxu0 0.0
    %3555 = vmatpush1.msra.mxu0 0.0
    %3556 = vmatprep.subr.mxu0 0.0
    %3557 = vmatpush1.msra.mxu0 0.0
    %3558 = vmatprep.subr.mxu0 0.0
    %3559 = vmatpush1.msra.mxu0 0.0
    %3560 = vmatprep.subr.mxu0 0.0
    %3561 = vmatpush1.msra.mxu0 0.0
    %3562 = vmatprep.subr.mxu0 0.0
    %3563 = vmatpush1.msra.mxu0 0.0
    %3564 = vmatprep.subr.mxu0 0.0
    %3565 = vmatpush1.msra.mxu0 0.0
    %3566 = vmatprep.subr.mxu0 0.0
    %3567 = vmatpush1.msra.mxu0 0.0
    %3568 = vmatprep.subr.mxu0 0.0
    %3569 = vmatpush1.msra.mxu0 0.0
    %3570 = vmatprep.subr.mxu0 0.0
    %3571 = vmatpush1.msra.mxu0 0.0
    %3572 = vmatprep.subr.mxu0 0.0
    %3573 = vmatpush1.msra.mxu0 0.0
    %3574 = vmatprep.subr.mxu0 0.0
    %3575 = vmatpush1.msra.mxu0 0.0
    %3576 = vmatprep.subr.mxu0 0.0
    %3577 = vmatpush1.msra.mxu0 0.0
    %3578 = vmatprep.subr.mxu0 0.0
    %3579 = vmatpush1.msra.mxu0 0.0
    %3580 = vmatprep.subr.mxu0 0.0
    %3581 = vmatpush1.msra.mxu0 0.0
    %3582 = vmatprep.subr.mxu0 0.0
    %3583 = vmatpush1.msra.mxu0 0.0
    %3584 = vmatprep.subr.mxu0 0.0
    %3585 = vmatpush1.msra.mxu0 0.0
    %3586 = vmatprep.subr.mxu0 0.0
    %3587 = vmatpush1.msra.mxu0 0.0
    %3588 = vmatprep.subr.mxu0 0.0
    %3589 = vmatpush1.msra.mxu0 0.0
    %3590 = vmatprep.mubr.f32.mxu0 0.0
    %3591 = vmatmul.mubr.f32.gmra.mrb[0].mxu0 %v3521
    %v3592 = vpop.f32.mrb[0].mxu0
    %v3593 = vadd.f32 %v3518, %v3592
    %v3594 = vpop.f32.mrb[0].mxu0
    %3595 = vmatprep.mubr.f32.mxu0 0.0
    %3596 = vmatmul.mubr.f32.gmra.mrb[0].mxu0 %v3524
    %v3597 = vpop.f32.mrb[0].mxu0
    %v3598 = vadd.f32 %v3518, %v3597
    %v3599 = vpop.f32.mrb[0].mxu0
    %3600 = vdwg.mxu0
    %v3601 = vmul.f32 %v3593, %v789
    %v3602 = vmul.f32 %v3598, %v796
    %v3605 = vlaneseq
    %v3606 = vshrl.u32 %v3605, 7
    %v3607 = vsub.s32 0, %v3606
    %v3608 = vrot.slane %v3510, %v3607
    %v3609 = vlaneseq
    %v3610 = vshrl.u32 %v3609, 7
    %v3611 = vsub.s32 0, %v3610
    %v3612 = vrot.slane %v3511, %v3611
    %v3615 = vmul.f32 %v3608, %v3601
    %v3616 = vmul.f32 %v3612, %v3602
    %v3618 = vlaneseq
    %v3619 = vshrl.u32 %v3618, 7
    %v3620 = vsub.s32 0, %v3619
    %v3621 = vrot.slane %v699, %v3620
    %3623 = vmatprep.subr.mxu0 0.0
    %3624 = vmatpush1.msra.mxu0 %v700
    %3625 = vmatprep.subr.mxu0 0.0
    %3626 = vmatpush1.msra.mxu0 %v701
    %3627 = vmatprep.subr.mxu0 0.0
    %3628 = vmatpush1.msra.mxu0 %v702
    %3629 = vmatprep.subr.mxu0 0.0
    %3630 = vmatpush1.msra.mxu0 %v703
    %3631 = vmatprep.subr.mxu0 0.0
    %3632 = vmatpush1.msra.mxu0 0.0
    %3633 = vmatprep.subr.mxu0 0.0
    %3634 = vmatpush1.msra.mxu0 0.0
    %3635 = vmatprep.subr.mxu0 0.0
    %3636 = vmatpush1.msra.mxu0 0.0
    %3637 = vmatprep.subr.mxu0 0.0
    %3638 = vmatpush1.msra.mxu0 0.0
    %3639 = vmatprep.subr.mxu0 0.0
    %3640 = vmatpush1.msra.mxu0 0.0
    %3641 = vmatprep.subr.mxu0 0.0
    %3642 = vmatpush1.msra.mxu0 0.0
    %3643 = vmatprep.subr.mxu0 0.0
    %3644 = vmatpush1.msra.mxu0 0.0
    %3645 = vmatprep.subr.mxu0 0.0
    %3646 = vmatpush1.msra.mxu0 0.0
    %3647 = vmatprep.subr.mxu0 0.0
    %3648 = vmatpush1.msra.mxu0 0.0
    %3649 = vmatprep.subr.mxu0 0.0
    %3650 = vmatpush1.msra.mxu0 0.0
    %3651 = vmatprep.subr.mxu0 0.0
    %3652 = vmatpush1.msra.mxu0 0.0
    %3653 = vmatprep.subr.mxu0 0.0
    %3654 = vmatpush1.msra.mxu0 0.0
    %3655 = vmatprep.subr.mxu0 0.0
    %3656 = vmatpush1.msra.mxu0 0.0
    %3657 = vmatprep.subr.mxu0 0.0
    %3658 = vmatpush1.msra.mxu0 0.0
    %3659 = vmatprep.subr.mxu0 0.0
    %3660 = vmatpush1.msra.mxu0 0.0
    %3661 = vmatprep.subr.mxu0 0.0
    %3662 = vmatpush1.msra.mxu0 0.0
    %3663 = vmatprep.subr.mxu0 0.0
    %3664 = vmatpush1.msra.mxu0 0.0
    %3665 = vmatprep.subr.mxu0 0.0
    %3666 = vmatpush1.msra.mxu0 0.0
    %3667 = vmatprep.subr.mxu0 0.0
    %3668 = vmatpush1.msra.mxu0 0.0
    %3669 = vmatprep.subr.mxu0 0.0
    %3670 = vmatpush1.msra.mxu0 0.0
    %3671 = vmatprep.subr.mxu0 0.0
    %3672 = vmatpush1.msra.mxu0 0.0
    %3673 = vmatprep.subr.mxu0 0.0
    %3674 = vmatpush1.msra.mxu0 0.0
    %3675 = vmatprep.subr.mxu0 0.0
    %3676 = vmatpush1.msra.mxu0 0.0
    %3677 = vmatprep.subr.mxu0 0.0
    %3678 = vmatpush1.msra.mxu0 0.0
    %3679 = vmatprep.subr.mxu0 0.0
    %3680 = vmatpush1.msra.mxu0 0.0
    %3681 = vmatprep.subr.mxu0 0.0
    %3682 = vmatpush1.msra.mxu0 0.0
    %3683 = vmatprep.subr.mxu0 0.0
    %3684 = vmatpush1.msra.mxu0 0.0
    %3685 = vmatprep.subr.mxu0 0.0
    %3686 = vmatpush1.msra.mxu0 0.0
    %3687 = vmatprep.mubr.f32.mxu0 0.0
    %3688 = vmatmul.mubr.f32.gmra.mrb[0].mxu0 %v3521
    %v3689 = vpop.f32.mrb[0].mxu0
    %v3690 = vadd.f32 %v3621, %v3689
    %v3691 = vpop.f32.mrb[0].mxu0
    %3692 = vmatprep.mubr.f32.mxu0 0.0
    %3693 = vmatmul.mubr.f32.gmra.mrb[0].mxu0 %v3524
    %v3694 = vpop.f32.mrb[0].mxu0
    %v3695 = vadd.f32 %v3621, %v3694
    %v3696 = vpop.f32.mrb[0].mxu0
    %3697 = vdwg.mxu0
    %v3698 = vmul.f32 %v3690, %v789
    %v3699 = vmul.f32 %v3695, %v796
    %v3700 = vmul.f32 %v3608, %v3698
    %v3701 = vmul.f32 %v3612, %v3699
    %v3703 = vlaneseq
    %v3704 = vshrl.u32 %v3703, 7
    %v3705 = vsub.s32 0, %v3704
    %v3706 = vrot.slane %v704, %v3705
    %3708 = vmatprep.subr.mxu0 0.0
    %3709 = vmatpush1.msra.mxu0 %v705
    %3710 = vmatprep.subr.mxu0 0.0
    %3711 = vmatpush1.msra.mxu0 %v706
    %3712 = vmatprep.subr.mxu0 0.0
    %3713 = vmatpush1.msra.mxu0 %v707
    %3714 = vmatprep.subr.mxu0 0.0
    %3715 = vmatpush1.msra.mxu0 %v708
    %3716 = vmatprep.subr.mxu0 0.0
    %3717 = vmatpush1.msra.mxu0 0.0
    %3718 = vmatprep.subr.mxu0 0.0
    %3719 = vmatpush1.msra.mxu0 0.0
    %3720 = vmatprep.subr.mxu0 0.0
    %3721 = vmatpush1.msra.mxu0 0.0
    %3722 = vmatprep.subr.mxu0 0.0
    %3723 = vmatpush1.msra.mxu0 0.0
    %3724 = vmatprep.subr.mxu0 0.0
    %3725 = vmatpush1.msra.mxu0 0.0
    %3726 = vmatprep.subr.mxu0 0.0
    %3727 = vmatpush1.msra.mxu0 0.0
    %3728 = vmatprep.subr.mxu0 0.0
    %3729 = vmatpush1.msra.mxu0 0.0
    %3730 = vmatprep.subr.mxu0 0.0
    %3731 = vmatpush1.msra.mxu0 0.0
    %3732 = vmatprep.subr.mxu0 0.0
    %3733 = vmatpush1.msra.mxu0 0.0
    %3734 = vmatprep.subr.mxu0 0.0
    %3735 = vmatpush1.msra.mxu0 0.0
    %3736 = vmatprep.subr.mxu0 0.0
    %3737 = vmatpush1.msra.mxu0 0.0
    %3738 = vmatprep.subr.mxu0 0.0
    %3739 = vmatpush1.msra.mxu0 0.0
    %3740 = vmatprep.subr.mxu0 0.0
    %3741 = vmatpush1.msra.mxu0 0.0
    %3742 = vmatprep.subr.mxu0 0.0
    %3743 = vmatpush1.msra.mxu0 0.0
    %3744 = vmatprep.subr.mxu0 0.0
    %3745 = vmatpush1.msra.mxu0 0.0
    %3746 = vmatprep.subr.mxu0 0.0
    %3747 = vmatpush1.msra.mxu0 0.0
    %3748 = vmatprep.subr.mxu0 0.0
    %3749 = vmatpush1.msra.mxu0 0.0
    %3750 = vmatprep.subr.mxu0 0.0
    %3751 = vmatpush1.msra.mxu0 0.0
    %3752 = vmatprep.subr.mxu0 0.0
    %3753 = vmatpush1.msra.mxu0 0.0
    %3754 = vmatprep.subr.mxu0 0.0
    %3755 = vmatpush1.msra.mxu0 0.0
    %3756 = vmatprep.subr.mxu0 0.0
    %3757 = vmatpush1.msra.mxu0 0.0
    %3758 = vmatprep.subr.mxu0 0.0
    %3759 = vmatpush1.msra.mxu0 0.0
    %3760 = vmatprep.subr.mxu0 0.0
    %3761 = vmatpush1.msra.mxu0 0.0
    %3762 = vmatprep.subr.mxu0 0.0
    %3763 = vmatpush1.msra.mxu0 0.0
    %3764 = vmatprep.subr.mxu0 0.0
    %3765 = vmatpush1.msra.mxu0 0.0
    %3766 = vmatprep.subr.mxu0 0.0
    %3767 = vmatpush1.msra.mxu0 0.0
    %3768 = vmatprep.subr.mxu0 0.0
    %3769 = vmatpush1.msra.mxu0 0.0
    %3770 = vmatprep.subr.mxu0 0.0
    %3771 = vmatpush1.msra.mxu0 0.0
    %3772 = vmatprep.mubr.f32.mxu0 0.0
    %3773 = vmatmul.mubr.f32.gmra.mrb[0].mxu0 %v3521
    %v3774 = vpop.f32.mrb[0].mxu0
    %v3775 = vadd.f32 %v3706, %v3774
    %v3776 = vpop.f32.mrb[0].mxu0
    %3777 = vmatprep.mubr.f32.mxu0 0.0
    %3778 = vmatmul.mubr.f32.gmra.mrb[0].mxu0 %v3524
    %v3779 = vpop.f32.mrb[0].mxu0
    %v3780 = vadd.f32 %v3706, %v3779
    %v3781 = vpop.f32.mrb[0].mxu0
    %3782 = vdwg.mxu0
    %v3783 = vmul.f32 %v3775, %v789
    %v3784 = vmul.f32 %v3780, %v796
    %v3785 = vmul.f32 %v3608, %v3783
    %v3786 = vmul.f32 %v3612, %v3784
    %v3788 = vlaneseq
    %v3789 = vshrl.u32 %v3788, 7
    %v3790 = vsub.s32 0, %v3789
    %v3791 = vrot.slane %v669, %v3790
    %3793 = vmatprep.subr.mxu0 0.0
    %3794 = vmatpush1.msra.mxu0 %v670
    %3795 = vmatprep.subr.mxu0 0.0
    %3796 = vmatpush1.msra.mxu0 %v671
    %3797 = vmatprep.subr.mxu0 0.0
    %3798 = vmatpush1.msra.mxu0 %v672
    %3799 = vmatprep.subr.mxu0 0.0
    %3800 = vmatpush1.msra.mxu0 %v673
    %3801 = vmatprep.subr.mxu0 0.0
    %3802 = vmatpush1.msra.mxu0 0.0
    %3803 = vmatprep.subr.mxu0 0.0
    %3804 = vmatpush1.msra.mxu0 0.0
    %3805 = vmatprep.subr.mxu0 0.0
    %3806 = vmatpush1.msra.mxu0 0.0
    %3807 = vmatprep.subr.mxu0 0.0
    %3808 = vmatpush1.msra.mxu0 0.0
    %3809 = vmatprep.subr.mxu0 0.0
    %3810 = vmatpush1.msra.mxu0 0.0
    %3811 = vmatprep.subr.mxu0 0.0
    %3812 = vmatpush1.msra.mxu0 0.0
    %3813 = vmatprep.subr.mxu0 0.0
    %3814 = vmatpush1.msra.mxu0 0.0
    %3815 = vmatprep.subr.mxu0 0.0
    %3816 = vmatpush1.msra.mxu0 0.0
    %3817 = vmatprep.subr.mxu0 0.0
    %3818 = vmatpush1.msra.mxu0 0.0
    %3819 = vmatprep.subr.mxu0 0.0
    %3820 = vmatpush1.msra.mxu0 0.0
    %3821 = vmatprep.subr.mxu0 0.0
    %3822 = vmatpush1.msra.mxu0 0.0
    %3823 = vmatprep.subr.mxu0 0.0
    %3824 = vmatpush1.msra.mxu0 0.0
    %3825 = vmatprep.subr.mxu0 0.0
    %3826 = vmatpush1.msra.mxu0 0.0
    %3827 = vmatprep.subr.mxu0 0.0
    %3828 = vmatpush1.msra.mxu0 0.0
    %3829 = vmatprep.subr.mxu0 0.0
    %3830 = vmatpush1.msra.mxu0 0.0
    %3831 = vmatprep.subr.mxu0 0.0
    %3832 = vmatpush1.msra.mxu0 0.0
    %3833 = vmatprep.subr.mxu0 0.0
    %3834 = vmatpush1.msra.mxu0 0.0
    %3835 = vmatprep.subr.mxu0 0.0
    %3836 = vmatpush1.msra.mxu0 0.0
    %3837 = vmatprep.subr.mxu0 0.0
    %3838 = vmatpush1.msra.mxu0 0.0
    %3839 = vmatprep.subr.mxu0 0.0
    %3840 = vmatpush1.msra.mxu0 0.0
    %3841 = vmatprep.subr.mxu0 0.0
    %3842 = vmatpush1.msra.mxu0 0.0
    %3843 = vmatprep.subr.mxu0 0.0
    %3844 = vmatpush1.msra.mxu0 0.0
    %3845 = vmatprep.subr.mxu0 0.0
    %3846 = vmatpush1.msra.mxu0 0.0
    %3847 = vmatprep.subr.mxu0 0.0
    %3848 = vmatpush1.msra.mxu0 0.0
    %3849 = vmatprep.subr.mxu0 0.0
    %3850 = vmatpush1.msra.mxu0 0.0
    %3851 = vmatprep.subr.mxu0 0.0
    %3852 = vmatpush1.msra.mxu0 0.0
    %3853 = vmatprep.subr.mxu0 0.0
    %3854 = vmatpush1.msra.mxu0 0.0
    %3855 = vmatprep.subr.mxu0 0.0
    %3856 = vmatpush1.msra.mxu0 0.0
    %3857 = vmatprep.mubr.f32.mxu0 0.0
    %3858 = vmatmul.mubr.f32.gmra.mrb[0].mxu0 %v2144
    %v3859 = vpop.f32.mrb[0].mxu0
    %v3860 = vadd.f32 %v3791, %v3859
    %v3861 = vpop.f32.mrb[0].mxu0
    %3862 = vmatprep.mubr.f32.mxu0 0.0
    %3863 = vmatmul.mubr.f32.gmra.mrb[0].mxu0 %v2147
    %v3864 = vpop.f32.mrb[0].mxu0
    %v3865 = vadd.f32 %v3791, %v3864
    %v3866 = vpop.f32.mrb[0].mxu0
    %3867 = vdwg.mxu0
    %v3868 = vmul.f32 %v3860, %v803
    %v3869 = vmul.f32 %v3865, %v810
    %v3872 = vlaneseq
    %v3873 = vshrl.u32 %v3872, 7
    %v3874 = vsub.s32 0, %v3873
    %v3875 = vrot.slane %v3512, %v3874
    %v3876 = vlaneseq
    %v3877 = vshrl.u32 %v3876, 7
    %v3878 = vsub.s32 0, %v3877
    %v3879 = vrot.slane %v3513, %v3878
    %v3882 = vmul.f32 %v3875, %v3868
    %v3883 = vmul.f32 %v3879, %v3869
    %v3885 = vlaneseq
    %v3886 = vshrl.u32 %v3885, 7
    %v3887 = vsub.s32 0, %v3886
    %v3888 = vrot.slane %v674, %v3887
    %3890 = vmatprep.subr.mxu0 0.0
    %3891 = vmatpush1.msra.mxu0 %v675
    %3892 = vmatprep.subr.mxu0 0.0
    %3893 = vmatpush1.msra.mxu0 %v676
    %3894 = vmatprep.subr.mxu0 0.0
    %3895 = vmatpush1.msra.mxu0 %v677
    %3896 = vmatprep.subr.mxu0 0.0
    %3897 = vmatpush1.msra.mxu0 %v678
    %3898 = vmatprep.subr.mxu0 0.0
    %3899 = vmatpush1.msra.mxu0 0.0
    %3900 = vmatprep.subr.mxu0 0.0
    %3901 = vmatpush1.msra.mxu0 0.0
    %3902 = vmatprep.subr.mxu0 0.0
    %3903 = vmatpush1.msra.mxu0 0.0
    %3904 = vmatprep.subr.mxu0 0.0
    %3905 = vmatpush1.msra.mxu0 0.0
    %3906 = vmatprep.subr.mxu0 0.0
    %3907 = vmatpush1.msra.mxu0 0.0
    %3908 = vmatprep.subr.mxu0 0.0
    %3909 = vmatpush1.msra.mxu0 0.0
    %3910 = vmatprep.subr.mxu0 0.0
    %3911 = vmatpush1.msra.mxu0 0.0
    %3912 = vmatprep.subr.mxu0 0.0
    %3913 = vmatpush1.msra.mxu0 0.0
    %3914 = vmatprep.subr.mxu0 0.0
    %3915 = vmatpush1.msra.mxu0 0.0
    %3916 = vmatprep.subr.mxu0 0.0
    %3917 = vmatpush1.msra.mxu0 0.0
    %3918 = vmatprep.subr.mxu0 0.0
    %3919 = vmatpush1.msra.mxu0 0.0
    %3920 = vmatprep.subr.mxu0 0.0
    %3921 = vmatpush1.msra.mxu0 0.0
    %3922 = vmatprep.subr.mxu0 0.0
    %3923 = vmatpush1.msra.mxu0 0.0
    %3924 = vmatprep.subr.mxu0 0.0
    %3925 = vmatpush1.msra.mxu0 0.0
    %3926 = vmatprep.subr.mxu0 0.0
    %3927 = vmatpush1.msra.mxu0 0.0
    %3928 = vmatprep.subr.mxu0 0.0
    %3929 = vmatpush1.msra.mxu0 0.0
    %3930 = vmatprep.subr.mxu0 0.0
    %3931 = vmatpush1.msra.mxu0 0.0
    %3932 = vmatprep.subr.mxu0 0.0
    %3933 = vmatpush1.msra.mxu0 0.0
    %3934 = vmatprep.subr.mxu0 0.0
    %3935 = vmatpush1.msra.mxu0 0.0
    %3936 = vmatprep.subr.mxu0 0.0
    %3937 = vmatpush1.msra.mxu0 0.0
    %3938 = vmatprep.subr.mxu0 0.0
    %3939 = vmatpush1.msra.mxu0 0.0
    %3940 = vmatprep.subr.mxu0 0.0
    %3941 = vmatpush1.msra.mxu0 0.0
    %3942 = vmatprep.subr.mxu0 0.0
    %3943 = vmatpush1.msra.mxu0 0.0
    %3944 = vmatprep.subr.mxu0 0.0
    %3945 = vmatpush1.msra.mxu0 0.0
    %3946 = vmatprep.subr.mxu0 0.0
    %3947 = vmatpush1.msra.mxu0 0.0
    %3948 = vmatprep.subr.mxu0 0.0
    %3949 = vmatpush1.msra.mxu0 0.0
    %3950 = vmatprep.subr.mxu0 0.0
    %3951 = vmatpush1.msra.mxu0 0.0
    %3952 = vmatprep.subr.mxu0 0.0
    %3953 = vmatpush1.msra.mxu0 0.0
    %3954 = vmatprep.mubr.f32.mxu0 0.0
    %3955 = vmatmul.mubr.f32.gmra.mrb[0].mxu0 %v2144
    %v3956 = vpop.f32.mrb[0].mxu0
    %v3957 = vadd.f32 %v3888, %v3956
    %v3958 = vpop.f32.mrb[0].mxu0
    %3959 = vmatprep.mubr.f32.mxu0 0.0
    %3960 = vmatmul.mubr.f32.gmra.mrb[0].mxu0 %v2147
    %v3961 = vpop.f32.mrb[0].mxu0
    %v3962 = vadd.f32 %v3888, %v3961
    %v3963 = vpop.f32.mrb[0].mxu0
    %3964 = vdwg.mxu0
    %v3965 = vmul.f32 %v3957, %v803
    %v3966 = vmul.f32 %v3962, %v810
    %v3967 = vmul.f32 %v3875, %v3965
    %v3968 = vmul.f32 %v3879, %v3966
    %v3970 = vlaneseq
    %v3971 = vshrl.u32 %v3970, 7
    %v3972 = vsub.s32 0, %v3971
    %v3973 = vrot.slane %v679, %v3972
    %3975 = vmatprep.subr.mxu0 0.0
    %3976 = vmatpush1.msra.mxu0 %v680
    %3977 = vmatprep.subr.mxu0 0.0
    %3978 = vmatpush1.msra.mxu0 %v681
    %3979 = vmatprep.subr.mxu0 0.0
    %3980 = vmatpush1.msra.mxu0 %v682
    %3981 = vmatprep.subr.mxu0 0.0
    %3982 = vmatpush1.msra.mxu0 %v683
    %3983 = vmatprep.subr.mxu0 0.0
    %3984 = vmatpush1.msra.mxu0 0.0
    %3985 = vmatprep.subr.mxu0 0.0
    %3986 = vmatpush1.msra.mxu0 0.0
    %3987 = vmatprep.subr.mxu0 0.0
    %3988 = vmatpush1.msra.mxu0 0.0
    %3989 = vmatprep.subr.mxu0 0.0
    %3990 = vmatpush1.msra.mxu0 0.0
    %3991 = vmatprep.subr.mxu0 0.0
    %3992 = vmatpush1.msra.mxu0 0.0
    %3993 = vmatprep.subr.mxu0 0.0
    %3994 = vmatpush1.msra.mxu0 0.0
    %3995 = vmatprep.subr.mxu0 0.0
    %3996 = vmatpush1.msra.mxu0 0.0
    %3997 = vmatprep.subr.mxu0 0.0
    %3998 = vmatpush1.msra.mxu0 0.0
    %3999 = vmatprep.subr.mxu0 0.0
    %4000 = vmatpush1.msra.mxu0 0.0
    %4001 = vmatprep.subr.mxu0 0.0
    %4002 = vmatpush1.msra.mxu0 0.0
    %4003 = vmatprep.subr.mxu0 0.0
    %4004 = vmatpush1.msra.mxu0 0.0
    %4005 = vmatprep.subr.mxu0 0.0
    %4006 = vmatpush1.msra.mxu0 0.0
    %4007 = vmatprep.subr.mxu0 0.0
    %4008 = vmatpush1.msra.mxu0 0.0
    %4009 = vmatprep.subr.mxu0 0.0
    %4010 = vmatpush1.msra.mxu0 0.0
    %4011 = vmatprep.subr.mxu0 0.0
    %4012 = vmatpush1.msra.mxu0 0.0
    %4013 = vmatprep.subr.mxu0 0.0
    %4014 = vmatpush1.msra.mxu0 0.0
    %4015 = vmatprep.subr.mxu0 0.0
    %4016 = vmatpush1.msra.mxu0 0.0
    %4017 = vmatprep.subr.mxu0 0.0
    %4018 = vmatpush1.msra.mxu0 0.0
    %4019 = vmatprep.subr.mxu0 0.0
    %4020 = vmatpush1.msra.mxu0 0.0
    %4021 = vmatprep.subr.mxu0 0.0
    %4022 = vmatpush1.msra.mxu0 0.0
    %4023 = vmatprep.subr.mxu0 0.0
    %4024 = vmatpush1.msra.mxu0 0.0
    %4025 = vmatprep.subr.mxu0 0.0
    %4026 = vmatpush1.msra.mxu0 0.0
    %4027 = vmatprep.subr.mxu0 0.0
    %4028 = vmatpush1.msra.mxu0 0.0
    %4029 = vmatprep.subr.mxu0 0.0
    %4030 = vmatpush1.msra.mxu0 0.0
    %4031 = vmatprep.subr.mxu0 0.0
    %4032 = vmatpush1.msra.mxu0 0.0
    %4033 = vmatprep.subr.mxu0 0.0
    %4034 = vmatpush1.msra.mxu0 0.0
    %4035 = vmatprep.subr.mxu0 0.0
    %4036 = vmatpush1.msra.mxu0 0.0
    %4037 = vmatprep.subr.mxu0 0.0
    %4038 = vmatpush1.msra.mxu0 0.0
    %4039 = vmatprep.mubr.f32.mxu0 0.0
    %4040 = vmatmul.mubr.f32.gmra.mrb[0].mxu0 %v2144
    %v4041 = vpop.f32.mrb[0].mxu0
    %v4042 = vadd.f32 %v3973, %v4041
    %v4043 = vpop.f32.mrb[0].mxu0
    %4044 = vmatprep.mubr.f32.mxu0 0.0
    %4045 = vmatmul.mubr.f32.gmra.mrb[0].mxu0 %v2147
    %v4046 = vpop.f32.mrb[0].mxu0
    %v4047 = vadd.f32 %v3973, %v4046
    %v4048 = vpop.f32.mrb[0].mxu0
    %4049 = vdwg.mxu0
    %v4050 = vmul.f32 %v4042, %v803
    %v4051 = vmul.f32 %v4047, %v810
    %v4052 = vmul.f32 %v3875, %v4050
    %v4053 = vmul.f32 %v3879, %v4051
    %v4055 = vsel %vm1307, %v3700, 0
    %v4058 = vsel %vm1307, %v3615, 0
    %4060 = vmatprep.subr.mxu0 0.0
    %4061 = vmatpush1.xpose.msra.mxu0 %v4058
    %4062 = vmatprep.subr.mxu0 0.0
    %4063 = vmatpush1.xpose.msra.mxu0 0.0
    %4064 = vmatprep.subr.mxu0 0.0
    %4065 = vmatpush1.xpose.msra.mxu0 0.0
    %4066 = vmatprep.subr.mxu0 0.0
    %4067 = vmatpush1.xpose.msra.mxu0 0.0
    %4068 = vmatprep.subr.mxu0 0.0
    %4069 = vmatpush1.xpose.msra.mxu0 0.0
    %4070 = vmatprep.subr.mxu0 0.0
    %4071 = vmatpush1.xpose.msra.mxu0 0.0
    %4072 = vmatprep.subr.mxu0 0.0
    %4073 = vmatpush1.xpose.msra.mxu0 0.0
    %4074 = vmatprep.subr.mxu0 0.0
    %4075 = vmatpush1.xpose.msra.mxu0 0.0
    %4076 = vmatprep.subr.mxu0 0.0
    %4077 = vmatpush1.xpose.msra.mxu0 0.0
    %4078 = vmatprep.subr.mxu0 0.0
    %4079 = vmatpush1.xpose.msra.mxu0 0.0
    %4080 = vmatprep.subr.mxu0 0.0
    %4081 = vmatpush1.xpose.msra.mxu0 0.0
    %4082 = vmatprep.subr.mxu0 0.0
    %4083 = vmatpush1.xpose.msra.mxu0 0.0
    %4084 = vmatprep.subr.mxu0 0.0
    %4085 = vmatpush1.xpose.msra.mxu0 0.0
    %4086 = vmatprep.subr.mxu0 0.0
    %4087 = vmatpush1.xpose.msra.mxu0 0.0
    %4088 = vmatprep.subr.mxu0 0.0
    %4089 = vmatpush1.xpose.msra.mxu0 0.0
    %4090 = vmatprep.subr.mxu0 0.0
    %4091 = vmatpush1.xpose.msra.mxu0 0.0
    %4092 = vmatprep.subr.mxu0 0.0
    %4093 = vmatpush1.xpose.msra.mxu0 0.0
    %4094 = vmatprep.subr.mxu0 0.0
    %4095 = vmatpush1.xpose.msra.mxu0 0.0
    %4096 = vmatprep.subr.mxu0 0.0
    %4097 = vmatpush1.xpose.msra.mxu0 0.0
    %4098 = vmatprep.subr.mxu0 0.0
    %4099 = vmatpush1.xpose.msra.mxu0 0.0
    %4100 = vmatprep.subr.mxu0 0.0
    %4101 = vmatpush1.xpose.msra.mxu0 0.0
    %4102 = vmatprep.subr.mxu0 0.0
    %4103 = vmatpush1.xpose.msra.mxu0 0.0
    %4104 = vmatprep.subr.mxu0 0.0
    %4105 = vmatpush1.xpose.msra.mxu0 0.0
    %4106 = vmatprep.subr.mxu0 0.0
    %4107 = vmatpush1.xpose.msra.mxu0 0.0
    %4108 = vmatprep.subr.mxu0 0.0
    %4109 = vmatpush1.xpose.msra.mxu0 0.0
    %4110 = vmatprep.subr.mxu0 0.0
    %4111 = vmatpush1.xpose.msra.mxu0 0.0
    %4112 = vmatprep.subr.mxu0 0.0
    %4113 = vmatpush1.xpose.msra.mxu0 0.0
    %4114 = vmatprep.subr.mxu0 0.0
    %4115 = vmatpush1.xpose.msra.mxu0 0.0
    %4116 = vmatprep.subr.mxu0 0.0
    %4117 = vmatpush1.xpose.msra.mxu0 0.0
    %4118 = vmatprep.subr.mxu0 0.0
    %4119 = vmatpush1.xpose.msra.mxu0 0.0
    %4120 = vmatprep.subr.mxu0 0.0
    %4121 = vmatpush1.xpose.msra.mxu0 0.0
    %4122 = vmatprep.subr.mxu0 0.0
    %4123 = vmatpush1.xpose.msra.mxu0 0.0
    %4124 = vmatprep.mubr.f32.mxu0 0.0
    %4125 = vmatmul.mubr.f32.gmra.mrb[0].mxu0 %v4055
    %v4126 = vpop.f32.mrb[0].mxu0
    %v4127 = vadd.f32 %v1300, %v4126
    %v4128 = vpop.f32.mrb[0].mxu0
    %4129 = vdwg.mxu0
    %v4131 = vsel %vm1307, %v3701, 0
    %v4134 = vsel %vm1307, %v3616, 0
    %4136 = vmatprep.subr.mxu0 0.0
    %4137 = vmatpush1.xpose.msra.mxu0 %v4134
    %4138 = vmatprep.subr.mxu0 0.0
    %4139 = vmatpush1.xpose.msra.mxu0 0.0
    %4140 = vmatprep.subr.mxu0 0.0
    %4141 = vmatpush1.xpose.msra.mxu0 0.0
    %4142 = vmatprep.subr.mxu0 0.0
    %4143 = vmatpush1.xpose.msra.mxu0 0.0
    %4144 = vmatprep.subr.mxu0 0.0
    %4145 = vmatpush1.xpose.msra.mxu0 0.0
    %4146 = vmatprep.subr.mxu0 0.0
    %4147 = vmatpush1.xpose.msra.mxu0 0.0
    %4148 = vmatprep.subr.mxu0 0.0
    %4149 = vmatpush1.xpose.msra.mxu0 0.0
    %4150 = vmatprep.subr.mxu0 0.0
    %4151 = vmatpush1.xpose.msra.mxu0 0.0
    %4152 = vmatprep.subr.mxu0 0.0
    %4153 = vmatpush1.xpose.msra.mxu0 0.0
    %4154 = vmatprep.subr.mxu0 0.0
    %4155 = vmatpush1.xpose.msra.mxu0 0.0
    %4156 = vmatprep.subr.mxu0 0.0
    %4157 = vmatpush1.xpose.msra.mxu0 0.0
    %4158 = vmatprep.subr.mxu0 0.0
    %4159 = vmatpush1.xpose.msra.mxu0 0.0
    %4160 = vmatprep.subr.mxu0 0.0
    %4161 = vmatpush1.xpose.msra.mxu0 0.0
    %4162 = vmatprep.subr.mxu0 0.0
    %4163 = vmatpush1.xpose.msra.mxu0 0.0
    %4164 = vmatprep.subr.mxu0 0.0
    %4165 = vmatpush1.xpose.msra.mxu0 0.0
    %4166 = vmatprep.subr.mxu0 0.0
    %4167 = vmatpush1.xpose.msra.mxu0 0.0
    %4168 = vmatprep.subr.mxu0 0.0
    %4169 = vmatpush1.xpose.msra.mxu0 0.0
    %4170 = vmatprep.subr.mxu0 0.0
    %4171 = vmatpush1.xpose.msra.mxu0 0.0
    %4172 = vmatprep.subr.mxu0 0.0
    %4173 = vmatpush1.xpose.msra.mxu0 0.0
    %4174 = vmatprep.subr.mxu0 0.0
    %4175 = vmatpush1.xpose.msra.mxu0 0.0
    %4176 = vmatprep.subr.mxu0 0.0
    %4177 = vmatpush1.xpose.msra.mxu0 0.0
    %4178 = vmatprep.subr.mxu0 0.0
    %4179 = vmatpush1.xpose.msra.mxu0 0.0
    %4180 = vmatprep.subr.mxu0 0.0
    %4181 = vmatpush1.xpose.msra.mxu0 0.0
    %4182 = vmatprep.subr.mxu0 0.0
    %4183 = vmatpush1.xpose.msra.mxu0 0.0
    %4184 = vmatprep.subr.mxu0 0.0
    %4185 = vmatpush1.xpose.msra.mxu0 0.0
    %4186 = vmatprep.subr.mxu0 0.0
    %4187 = vmatpush1.xpose.msra.mxu0 0.0
    %4188 = vmatprep.subr.mxu0 0.0
    %4189 = vmatpush1.xpose.msra.mxu0 0.0
    %4190 = vmatprep.subr.mxu0 0.0
    %4191 = vmatpush1.xpose.msra.mxu0 0.0
    %4192 = vmatprep.subr.mxu0 0.0
    %4193 = vmatpush1.xpose.msra.mxu0 0.0
    %4194 = vmatprep.subr.mxu0 0.0
    %4195 = vmatpush1.xpose.msra.mxu0 0.0
    %4196 = vmatprep.subr.mxu0 0.0
    %4197 = vmatpush1.xpose.msra.mxu0 0.0
    %4198 = vmatprep.subr.mxu0 0.0
    %4199 = vmatpush1.xpose.msra.mxu0 0.0
    %4200 = vmatprep.mubr.f32.mxu0 0.0
    %4201 = vmatmul.mubr.f32.gmra.mrb[0].mxu0 %v4131
    %v4202 = vpop.f32.mrb[0].mxu0
    %v4203 = vadd.f32 %v1304, %v4202
    %v4204 = vpop.f32.mrb[0].mxu0
    %4205 = vdwg.mxu0
    %v4206 = vsel %vm1460, %v4127, -inf
    %4207 = vmax.xlane.f32.xlu0 %v4206
    %v4208 = vpop.xlane.xlu0 %4207
    %v4209 = vsel %vm1460, %v4203, -inf
    %4210 = vmax.xlane.f32.xlu0 %v4209
    %v4211 = vpop.xlane.xlu0 %4210
    %v4212 = vsub.f32 %v4127, %v4208
    %v4213 = vsub.f32 %v4203, %v4211
    %v4214 = vmul.f32 %v4212, 1.442695
    %v4215 = vpow.pop %v4214
    %v4216 = vmul.f32 %v4213, 1.442695
    %v4217 = vpow.pop %v4216
    %v4218 = vsel %vm1460, %v4215, 0.0
    %4219 = vadd.xlane.f32.xlu0 %v4218
    %v4220 = vpop.xlane.xlu0 %4219
    %v4221 = vsel %vm1460, %v4217, 0.0
    %4222 = vadd.xlane.f32.xlu0 %v4221
    %v4223 = vpop.xlane.xlu0 %4222
    %v4224 = vrcp.pop %v4220
    %v4225 = vrcp.pop %v4223
    %v4226 = vmul.f32 %v4215, %v4224
    %v4227 = vmul.f32 %v4217, %v4225
    %v4229 = vsel %vm1460, %v4226, 0
    %4231 = vmatprep.subr.mxu0 0.0
    %4232 = vmatpush1.msra.mxu0 %v3785
    %4233 = vmatprep.subr.mxu0 0.0
    %4234 = vmatpush1.msra.mxu0 0.0
    %4235 = vmatprep.subr.mxu0 0.0
    %4236 = vmatpush1.msra.mxu0 0.0
    %4237 = vmatprep.subr.mxu0 0.0
    %4238 = vmatpush1.msra.mxu0 0.0
    %4239 = vmatprep.subr.mxu0 0.0
    %4240 = vmatpush1.msra.mxu0 0.0
    %4241 = vmatprep.subr.mxu0 0.0
    %4242 = vmatpush1.msra.mxu0 0.0
    %4243 = vmatprep.subr.mxu0 0.0
    %4244 = vmatpush1.msra.mxu0 0.0
    %4245 = vmatprep.subr.mxu0 0.0
    %4246 = vmatpush1.msra.mxu0 0.0
    %4247 = vmatprep.subr.mxu0 0.0
    %4248 = vmatpush1.msra.mxu0 0.0
    %4249 = vmatprep.subr.mxu0 0.0
    %4250 = vmatpush1.msra.mxu0 0.0
    %4251 = vmatprep.subr.mxu0 0.0
    %4252 = vmatpush1.msra.mxu0 0.0
    %4253 = vmatprep.subr.mxu0 0.0
    %4254 = vmatpush1.msra.mxu0 0.0
    %4255 = vmatprep.subr.mxu0 0.0
    %4256 = vmatpush1.msra.mxu0 0.0
    %4257 = vmatprep.subr.mxu0 0.0
    %4258 = vmatpush1.msra.mxu0 0.0
    %4259 = vmatprep.subr.mxu0 0.0
    %4260 = vmatpush1.msra.mxu0 0.0
    %4261 = vmatprep.subr.mxu0 0.0
    %4262 = vmatpush1.msra.mxu0 0.0
    %4263 = vmatprep.subr.mxu0 0.0
    %4264 = vmatpush1.msra.mxu0 0.0
    %4265 = vmatprep.subr.mxu0 0.0
    %4266 = vmatpush1.msra.mxu0 0.0
    %4267 = vmatprep.subr.mxu0 0.0
    %4268 = vmatpush1.msra.mxu0 0.0
    %4269 = vmatprep.subr.mxu0 0.0
    %4270 = vmatpush1.msra.mxu0 0.0
    %4271 = vmatprep.subr.mxu0 0.0
    %4272 = vmatpush1.msra.mxu0 0.0
    %4273 = vmatprep.subr.mxu0 0.0
    %4274 = vmatpush1.msra.mxu0 0.0
    %4275 = vmatprep.subr.mxu0 0.0
    %4276 = vmatpush1.msra.mxu0 0.0
    %4277 = vmatprep.subr.mxu0 0.0
    %4278 = vmatpush1.msra.mxu0 0.0
    %4279 = vmatprep.subr.mxu0 0.0
    %4280 = vmatpush1.msra.mxu0 0.0
    %4281 = vmatprep.subr.mxu0 0.0
    %4282 = vmatpush1.msra.mxu0 0.0
    %4283 = vmatprep.subr.mxu0 0.0
    %4284 = vmatpush1.msra.mxu0 0.0
    %4285 = vmatprep.subr.mxu0 0.0
    %4286 = vmatpush1.msra.mxu0 0.0
    %4287 = vmatprep.subr.mxu0 0.0
    %4288 = vmatpush1.msra.mxu0 0.0
    %4289 = vmatprep.subr.mxu0 0.0
    %4290 = vmatpush1.msra.mxu0 0.0
    %4291 = vmatprep.subr.mxu0 0.0
    %4292 = vmatpush1.msra.mxu0 0.0
    %4293 = vmatprep.subr.mxu0 0.0
    %4294 = vmatpush1.msra.mxu0 0.0
    %4295 = vmatprep.mubr.f32.mxu0 0.0
    %4296 = vmatmul.mubr.f32.gmra.mrb[0].mxu0 %v4229
    %v4297 = vpop.f32.mrb[0].mxu0
    %v4298 = vadd.f32 0.0, %v4297
    %v4299 = vpop.f32.mrb[0].mxu0
    %4300 = vdwg.mxu0
    %v4302 = vsel %vm1460, %v4227, 0
    %4304 = vmatprep.subr.mxu0 0.0
    %4305 = vmatpush1.msra.mxu0 %v3786
    %4306 = vmatprep.subr.mxu0 0.0
    %4307 = vmatpush1.msra.mxu0 0.0
    %4308 = vmatprep.subr.mxu0 0.0
    %4309 = vmatpush1.msra.mxu0 0.0
    %4310 = vmatprep.subr.mxu0 0.0
    %4311 = vmatpush1.msra.mxu0 0.0
    %4312 = vmatprep.subr.mxu0 0.0
    %4313 = vmatpush1.msra.mxu0 0.0
    %4314 = vmatprep.subr.mxu0 0.0
    %4315 = vmatpush1.msra.mxu0 0.0
    %4316 = vmatprep.subr.mxu0 0.0
    %4317 = vmatpush1.msra.mxu0 0.0
    %4318 = vmatprep.subr.mxu0 0.0
    %4319 = vmatpush1.msra.mxu0 0.0
    %4320 = vmatprep.subr.mxu0 0.0
    %4321 = vmatpush1.msra.mxu0 0.0
    %4322 = vmatprep.subr.mxu0 0.0
    %4323 = vmatpush1.msra.mxu0 0.0
    %4324 = vmatprep.subr.mxu0 0.0
    %4325 = vmatpush1.msra.mxu0 0.0
    %4326 = vmatprep.subr.mxu0 0.0
    %4327 = vmatpush1.msra.mxu0 0.0
    %4328 = vmatprep.subr.mxu0 0.0
    %4329 = vmatpush1.msra.mxu0 0.0
    %4330 = vmatprep.subr.mxu0 0.0
    %4331 = vmatpush1.msra.mxu0 0.0
    %4332 = vmatprep.subr.mxu0 0.0
    %4333 = vmatpush1.msra.mxu0 0.0
    %4334 = vmatprep.subr.mxu0 0.0
    %4335 = vmatpush1.msra.mxu0 0.0
    %4336 = vmatprep.subr.mxu0 0.0
    %4337 = vmatpush1.msra.mxu0 0.0
    %4338 = vmatprep.subr.mxu0 0.0
    %4339 = vmatpush1.msra.mxu0 0.0
    %4340 = vmatprep.subr.mxu0 0.0
    %4341 = vmatpush1.msra.mxu0 0.0
    %4342 = vmatprep.subr.mxu0 0.0
    %4343 = vmatpush1.msra.mxu0 0.0
    %4344 = vmatprep.subr.mxu0 0.0
    %4345 = vmatpush1.msra.mxu0 0.0
    %4346 = vmatprep.subr.mxu0 0.0
    %4347 = vmatpush1.msra.mxu0 0.0
    %4348 = vmatprep.subr.mxu0 0.0
    %4349 = vmatpush1.msra.mxu0 0.0
    %4350 = vmatprep.subr.mxu0 0.0
    %4351 = vmatpush1.msra.mxu0 0.0
    %4352 = vmatprep.subr.mxu0 0.0
    %4353 = vmatpush1.msra.mxu0 0.0
    %4354 = vmatprep.subr.mxu0 0.0
    %4355 = vmatpush1.msra.mxu0 0.0
    %4356 = vmatprep.subr.mxu0 0.0
    %4357 = vmatpush1.msra.mxu0 0.0
    %4358 = vmatprep.subr.mxu0 0.0
    %4359 = vmatpush1.msra.mxu0 0.0
    %4360 = vmatprep.subr.mxu0 0.0
    %4361 = vmatpush1.msra.mxu0 0.0
    %4362 = vmatprep.subr.mxu0 0.0
    %4363 = vmatpush1.msra.mxu0 0.0
    %4364 = vmatprep.subr.mxu0 0.0
    %4365 = vmatpush1.msra.mxu0 0.0
    %4366 = vmatprep.subr.mxu0 0.0
    %4367 = vmatpush1.msra.mxu0 0.0
    %4368 = vmatprep.mubr.f32.mxu0 0.0
    %4369 = vmatmul.mubr.f32.gmra.mrb[0].mxu0 %v4302
    %v4370 = vpop.f32.mrb[0].mxu0
    %v4371 = vadd.f32 0.0, %v4370
    %v4372 = vpop.f32.mrb[0].mxu0
    %4373 = vdwg.mxu0
    %4374 = vrot.lane.b32.xlu0 %v3700, 112
    %v4375 = vpop.permute.xlu0 %4374
    %4376 = vrot.lane.b32.xlu0 %v3615, 112
    %v4377 = vpop.permute.xlu0 %4376
    %v4378 = vsel %vm1307, %v4375, 0
    %v4380 = vsel %vm1307, %v4377, 0
    %4382 = vmatprep.subr.mxu0 0.0
    %4383 = vmatpush1.xpose.msra.mxu0 %v4380
    %4384 = vmatprep.subr.mxu0 0.0
    %4385 = vmatpush1.xpose.msra.mxu0 0.0
    %4386 = vmatprep.subr.mxu0 0.0
    %4387 = vmatpush1.xpose.msra.mxu0 0.0
    %4388 = vmatprep.subr.mxu0 0.0
    %4389 = vmatpush1.xpose.msra.mxu0 0.0
    %4390 = vmatprep.subr.mxu0 0.0
    %4391 = vmatpush1.xpose.msra.mxu0 0.0
    %4392 = vmatprep.subr.mxu0 0.0
    %4393 = vmatpush1.xpose.msra.mxu0 0.0
    %4394 = vmatprep.subr.mxu0 0.0
    %4395 = vmatpush1.xpose.msra.mxu0 0.0
    %4396 = vmatprep.subr.mxu0 0.0
    %4397 = vmatpush1.xpose.msra.mxu0 0.0
    %4398 = vmatprep.subr.mxu0 0.0
    %4399 = vmatpush1.xpose.msra.mxu0 0.0
    %4400 = vmatprep.subr.mxu0 0.0
    %4401 = vmatpush1.xpose.msra.mxu0 0.0
    %4402 = vmatprep.subr.mxu0 0.0
    %4403 = vmatpush1.xpose.msra.mxu0 0.0
    %4404 = vmatprep.subr.mxu0 0.0
    %4405 = vmatpush1.xpose.msra.mxu0 0.0
    %4406 = vmatprep.subr.mxu0 0.0
    %4407 = vmatpush1.xpose.msra.mxu0 0.0
    %4408 = vmatprep.subr.mxu0 0.0
    %4409 = vmatpush1.xpose.msra.mxu0 0.0
    %4410 = vmatprep.subr.mxu0 0.0
    %4411 = vmatpush1.xpose.msra.mxu0 0.0
    %4412 = vmatprep.subr.mxu0 0.0
    %4413 = vmatpush1.xpose.msra.mxu0 0.0
    %4414 = vmatprep.subr.mxu0 0.0
    %4415 = vmatpush1.xpose.msra.mxu0 0.0
    %4416 = vmatprep.subr.mxu0 0.0
    %4417 = vmatpush1.xpose.msra.mxu0 0.0
    %4418 = vmatprep.subr.mxu0 0.0
    %4419 = vmatpush1.xpose.msra.mxu0 0.0
    %4420 = vmatprep.subr.mxu0 0.0
    %4421 = vmatpush1.xpose.msra.mxu0 0.0
    %4422 = vmatprep.subr.mxu0 0.0
    %4423 = vmatpush1.xpose.msra.mxu0 0.0
    %4424 = vmatprep.subr.mxu0 0.0
    %4425 = vmatpush1.xpose.msra.mxu0 0.0
    %4426 = vmatprep.subr.mxu0 0.0
    %4427 = vmatpush1.xpose.msra.mxu0 0.0
    %4428 = vmatprep.subr.mxu0 0.0
    %4429 = vmatpush1.xpose.msra.mxu0 0.0
    %4430 = vmatprep.subr.mxu0 0.0
    %4431 = vmatpush1.xpose.msra.mxu0 0.0
    %4432 = vmatprep.subr.mxu0 0.0
    %4433 = vmatpush1.xpose.msra.mxu0 0.0
    %4434 = vmatprep.subr.mxu0 0.0
    %4435 = vmatpush1.xpose.msra.mxu0 0.0
    %4436 = vmatprep.subr.mxu0 0.0
    %4437 = vmatpush1.xpose.msra.mxu0 0.0
    %4438 = vmatprep.subr.mxu0 0.0
    %4439 = vmatpush1.xpose.msra.mxu0 0.0
    %4440 = vmatprep.subr.mxu0 0.0
    %4441 = vmatpush1.xpose.msra.mxu0 0.0
    %4442 = vmatprep.subr.mxu0 0.0
    %4443 = vmatpush1.xpose.msra.mxu0 0.0
    %4444 = vmatprep.subr.mxu0 0.0
    %4445 = vmatpush1.xpose.msra.mxu0 0.0
    %4446 = vmatprep.mubr.f32.mxu0 0.0
    %4447 = vmatmul.mubr.f32.gmra.mrb[0].mxu0 %v4378
    %v4448 = vpop.f32.mrb[0].mxu0
    %v4449 = vadd.f32 %v1300, %v4448
    %v4450 = vpop.f32.mrb[0].mxu0
    %4451 = vdwg.mxu0
    %4452 = vrot.lane.b32.xlu0 %v3701, 112
    %v4453 = vpop.permute.xlu0 %4452
    %4454 = vrot.lane.b32.xlu0 %v3616, 112
    %v4455 = vpop.permute.xlu0 %4454
    %v4456 = vsel %vm1307, %v4453, 0
    %v4458 = vsel %vm1307, %v4455, 0
    %4460 = vmatprep.subr.mxu0 0.0
    %4461 = vmatpush1.xpose.msra.mxu0 %v4458
    %4462 = vmatprep.subr.mxu0 0.0
    %4463 = vmatpush1.xpose.msra.mxu0 0.0
    %4464 = vmatprep.subr.mxu0 0.0
    %4465 = vmatpush1.xpose.msra.mxu0 0.0
    %4466 = vmatprep.subr.mxu0 0.0
    %4467 = vmatpush1.xpose.msra.mxu0 0.0
    %4468 = vmatprep.subr.mxu0 0.0
    %4469 = vmatpush1.xpose.msra.mxu0 0.0
    %4470 = vmatprep.subr.mxu0 0.0
    %4471 = vmatpush1.xpose.msra.mxu0 0.0
    %4472 = vmatprep.subr.mxu0 0.0
    %4473 = vmatpush1.xpose.msra.mxu0 0.0
    %4474 = vmatprep.subr.mxu0 0.0
    %4475 = vmatpush1.xpose.msra.mxu0 0.0
    %4476 = vmatprep.subr.mxu0 0.0
    %4477 = vmatpush1.xpose.msra.mxu0 0.0
    %4478 = vmatprep.subr.mxu0 0.0
    %4479 = vmatpush1.xpose.msra.mxu0 0.0
    %4480 = vmatprep.subr.mxu0 0.0
    %4481 = vmatpush1.xpose.msra.mxu0 0.0
    %4482 = vmatprep.subr.mxu0 0.0
    %4483 = vmatpush1.xpose.msra.mxu0 0.0
    %4484 = vmatprep.subr.mxu0 0.0
    %4485 = vmatpush1.xpose.msra.mxu0 0.0
    %4486 = vmatprep.subr.mxu0 0.0
    %4487 = vmatpush1.xpose.msra.mxu0 0.0
    %4488 = vmatprep.subr.mxu0 0.0
    %4489 = vmatpush1.xpose.msra.mxu0 0.0
    %4490 = vmatprep.subr.mxu0 0.0
    %4491 = vmatpush1.xpose.msra.mxu0 0.0
    %4492 = vmatprep.subr.mxu0 0.0
    %4493 = vmatpush1.xpose.msra.mxu0 0.0
    %4494 = vmatprep.subr.mxu0 0.0
    %4495 = vmatpush1.xpose.msra.mxu0 0.0
    %4496 = vmatprep.subr.mxu0 0.0
    %4497 = vmatpush1.xpose.msra.mxu0 0.0
    %4498 = vmatprep.subr.mxu0 0.0
    %4499 = vmatpush1.xpose.msra.mxu0 0.0
    %4500 = vmatprep.subr.mxu0 0.0
    %4501 = vmatpush1.xpose.msra.mxu0 0.0
    %4502 = vmatprep.subr.mxu0 0.0
    %4503 = vmatpush1.xpose.msra.mxu0 0.0
    %4504 = vmatprep.subr.mxu0 0.0
    %4505 = vmatpush1.xpose.msra.mxu0 0.0
    %4506 = vmatprep.subr.mxu0 0.0
    %4507 = vmatpush1.xpose.msra.mxu0 0.0
    %4508 = vmatprep.subr.mxu0 0.0
    %4509 = vmatpush1.xpose.msra.mxu0 0.0
    %4510 = vmatprep.subr.mxu0 0.0
    %4511 = vmatpush1.xpose.msra.mxu0 0.0
    %4512 = vmatprep.subr.mxu0 0.0
    %4513 = vmatpush1.xpose.msra.mxu0 0.0
    %4514 = vmatprep.subr.mxu0 0.0
    %4515 = vmatpush1.xpose.msra.mxu0 0.0
    %4516 = vmatprep.subr.mxu0 0.0
    %4517 = vmatpush1.xpose.msra.mxu0 0.0
    %4518 = vmatprep.subr.mxu0 0.0
    %4519 = vmatpush1.xpose.msra.mxu0 0.0
    %4520 = vmatprep.subr.mxu0 0.0
    %4521 = vmatpush1.xpose.msra.mxu0 0.0
    %4522 = vmatprep.subr.mxu0 0.0
    %4523 = vmatpush1.xpose.msra.mxu0 0.0
    %4524 = vmatprep.mubr.f32.mxu0 0.0
    %4525 = vmatmul.mubr.f32.gmra.mrb[0].mxu0 %v4456
    %v4526 = vpop.f32.mrb[0].mxu0
    %v4527 = vadd.f32 %v1304, %v4526
    %v4528 = vpop.f32.mrb[0].mxu0
    %4529 = vdwg.mxu0
    %v4530 = vsel %vm1460, %v4449, -inf
    %4531 = vmax.xlane.f32.xlu0 %v4530
    %v4532 = vpop.xlane.xlu0 %4531
    %v4533 = vsel %vm1460, %v4527, -inf
    %4534 = vmax.xlane.f32.xlu0 %v4533
    %v4535 = vpop.xlane.xlu0 %4534
    %v4536 = vsub.f32 %v4449, %v4532
    %v4537 = vsub.f32 %v4527, %v4535
    %v4538 = vmul.f32 %v4536, 1.442695
    %v4539 = vpow.pop %v4538
    %v4540 = vmul.f32 %v4537, 1.442695
    %v4541 = vpow.pop %v4540
    %v4542 = vsel %vm1460, %v4539, 0.0
    %4543 = vadd.xlane.f32.xlu0 %v4542
    %v4544 = vpop.xlane.xlu0 %4543
    %v4545 = vsel %vm1460, %v4541, 0.0
    %4546 = vadd.xlane.f32.xlu0 %v4545
    %v4547 = vpop.xlane.xlu0 %4546
    %v4548 = vrcp.pop %v4544
    %v4549 = vrcp.pop %v4547
    %v4550 = vmul.f32 %v4539, %v4548
    %v4551 = vmul.f32 %v4541, %v4549
    %4553 = vrot.lane.b32.xlu0 %v3785, 112
    %v4554 = vpop.permute.xlu0 %4553
    %v4557 = vsel %vm1460, %v4550, 0
    %4559 = vmatprep.subr.mxu0 0.0
    %4560 = vmatpush1.msra.mxu0 %v4554
    %4561 = vmatprep.subr.mxu0 0.0
    %4562 = vmatpush1.msra.mxu0 0.0
    %4563 = vmatprep.subr.mxu0 0.0
    %4564 = vmatpush1.msra.mxu0 0.0
    %4565 = vmatprep.subr.mxu0 0.0
    %4566 = vmatpush1.msra.mxu0 0.0
    %4567 = vmatprep.subr.mxu0 0.0
    %4568 = vmatpush1.msra.mxu0 0.0
    %4569 = vmatprep.subr.mxu0 0.0
    %4570 = vmatpush1.msra.mxu0 0.0
    %4571 = vmatprep.subr.mxu0 0.0
    %4572 = vmatpush1.msra.mxu0 0.0
    %4573 = vmatprep.subr.mxu0 0.0
    %4574 = vmatpush1.msra.mxu0 0.0
    %4575 = vmatprep.subr.mxu0 0.0
    %4576 = vmatpush1.msra.mxu0 0.0
    %4577 = vmatprep.subr.mxu0 0.0
    %4578 = vmatpush1.msra.mxu0 0.0
    %4579 = vmatprep.subr.mxu0 0.0
    %4580 = vmatpush1.msra.mxu0 0.0
    %4581 = vmatprep.subr.mxu0 0.0
    %4582 = vmatpush1.msra.mxu0 0.0
    %4583 = vmatprep.subr.mxu0 0.0
    %4584 = vmatpush1.msra.mxu0 0.0
    %4585 = vmatprep.subr.mxu0 0.0
    %4586 = vmatpush1.msra.mxu0 0.0
    %4587 = vmatprep.subr.mxu0 0.0
    %4588 = vmatpush1.msra.mxu0 0.0
    %4589 = vmatprep.subr.mxu0 0.0
    %4590 = vmatpush1.msra.mxu0 0.0
    %4591 = vmatprep.subr.mxu0 0.0
    %4592 = vmatpush1.msra.mxu0 0.0
    %4593 = vmatprep.subr.mxu0 0.0
    %4594 = vmatpush1.msra.mxu0 0.0
    %4595 = vmatprep.subr.mxu0 0.0
    %4596 = vmatpush1.msra.mxu0 0.0
    %4597 = vmatprep.subr.mxu0 0.0
    %4598 = vmatpush1.msra.mxu0 0.0
    %4599 = vmatprep.subr.mxu0 0.0
    %4600 = vmatpush1.msra.mxu0 0.0
    %4601 = vmatprep.subr.mxu0 0.0
    %4602 = vmatpush1.msra.mxu0 0.0
    %4603 = vmatprep.subr.mxu0 0.0
    %4604 = vmatpush1.msra.mxu0 0.0
    %4605 = vmatprep.subr.mxu0 0.0
    %4606 = vmatpush1.msra.mxu0 0.0
    %4607 = vmatprep.subr.mxu0 0.0
    %4608 = vmatpush1.msra.mxu0 0.0
    %4609 = vmatprep.subr.mxu0 0.0
    %4610 = vmatpush1.msra.mxu0 0.0
    %4611 = vmatprep.subr.mxu0 0.0
    %4612 = vmatpush1.msra.mxu0 0.0
    %4613 = vmatprep.subr.mxu0 0.0
    %4614 = vmatpush1.msra.mxu0 0.0
    %4615 = vmatprep.subr.mxu0 0.0
    %4616 = vmatpush1.msra.mxu0 0.0
    %4617 = vmatprep.subr.mxu0 0.0
    %4618 = vmatpush1.msra.mxu0 0.0
    %4619 = vmatprep.subr.mxu0 0.0
    %4620 = vmatpush1.msra.mxu0 0.0
    %4621 = vmatprep.subr.mxu0 0.0
    %4622 = vmatpush1.msra.mxu0 0.0
    %4623 = vmatprep.mubr.f32.mxu0 0.0
    %4624 = vmatmul.mubr.f32.gmra.mrb[0].mxu0 %v4557
    %v4625 = vpop.f32.mrb[0].mxu0
    %v4626 = vadd.f32 0.0, %v4625
    %v4627 = vpop.f32.mrb[0].mxu0
    %4628 = vdwg.mxu0
    %4630 = vrot.lane.b32.xlu0 %v3786, 112
    %v4631 = vpop.permute.xlu0 %4630
    %v4634 = vsel %vm1460, %v4551, 0
    %4636 = vmatprep.subr.mxu0 0.0
    %4637 = vmatpush1.msra.mxu0 %v4631
    %4638 = vmatprep.subr.mxu0 0.0
    %4639 = vmatpush1.msra.mxu0 0.0
    %4640 = vmatprep.subr.mxu0 0.0
    %4641 = vmatpush1.msra.mxu0 0.0
    %4642 = vmatprep.subr.mxu0 0.0
    %4643 = vmatpush1.msra.mxu0 0.0
    %4644 = vmatprep.subr.mxu0 0.0
    %4645 = vmatpush1.msra.mxu0 0.0
    %4646 = vmatprep.subr.mxu0 0.0
    %4647 = vmatpush1.msra.mxu0 0.0
    %4648 = vmatprep.subr.mxu0 0.0
    %4649 = vmatpush1.msra.mxu0 0.0
    %4650 = vmatprep.subr.mxu0 0.0
    %4651 = vmatpush1.msra.mxu0 0.0
    %4652 = vmatprep.subr.mxu0 0.0
    %4653 = vmatpush1.msra.mxu0 0.0
    %4654 = vmatprep.subr.mxu0 0.0
    %4655 = vmatpush1.msra.mxu0 0.0
    %4656 = vmatprep.subr.mxu0 0.0
    %4657 = vmatpush1.msra.mxu0 0.0
    %4658 = vmatprep.subr.mxu0 0.0
    %4659 = vmatpush1.msra.mxu0 0.0
    %4660 = vmatprep.subr.mxu0 0.0
    %4661 = vmatpush1.msra.mxu0 0.0
    %4662 = vmatprep.subr.mxu0 0.0
    %4663 = vmatpush1.msra.mxu0 0.0
    %4664 = vmatprep.subr.mxu0 0.0
    %4665 = vmatpush1.msra.mxu0 0.0
    %4666 = vmatprep.subr.mxu0 0.0
    %4667 = vmatpush1.msra.mxu0 0.0
    %4668 = vmatprep.subr.mxu0 0.0
    %4669 = vmatpush1.msra.mxu0 0.0
    %4670 = vmatprep.subr.mxu0 0.0
    %4671 = vmatpush1.msra.mxu0 0.0
    %4672 = vmatprep.subr.mxu0 0.0
    %4673 = vmatpush1.msra.mxu0 0.0
    %4674 = vmatprep.subr.mxu0 0.0
    %4675 = vmatpush1.msra.mxu0 0.0
    %4676 = vmatprep.subr.mxu0 0.0
    %4677 = vmatpush1.msra.mxu0 0.0
    %4678 = vmatprep.subr.mxu0 0.0
    %4679 = vmatpush1.msra.mxu0 0.0
    %4680 = vmatprep.subr.mxu0 0.0
    %4681 = vmatpush1.msra.mxu0 0.0
    %4682 = vmatprep.subr.mxu0 0.0
    %4683 = vmatpush1.msra.mxu0 0.0
    %4684 = vmatprep.subr.mxu0 0.0
    %4685 = vmatpush1.msra.mxu0 0.0
    %4686 = vmatprep.subr.mxu0 0.0
    %4687 = vmatpush1.msra.mxu0 0.0
    %4688 = vmatprep.subr.mxu0 0.0
    %4689 = vmatpush1.msra.mxu0 0.0
    %4690 = vmatprep.subr.mxu0 0.0
    %4691 = vmatpush1.msra.mxu0 0.0
    %4692 = vmatprep.subr.mxu0 0.0
    %4693 = vmatpush1.msra.mxu0 0.0
    %4694 = vmatprep.subr.mxu0 0.0
    %4695 = vmatpush1.msra.mxu0 0.0
    %4696 = vmatprep.subr.mxu0 0.0
    %4697 = vmatpush1.msra.mxu0 0.0
    %4698 = vmatprep.subr.mxu0 0.0
    %4699 = vmatpush1.msra.mxu0 0.0
    %4700 = vmatprep.mubr.f32.mxu0 0.0
    %4701 = vmatmul.mubr.f32.gmra.mrb[0].mxu0 %v4634
    %v4702 = vpop.f32.mrb[0].mxu0
    %v4703 = vadd.f32 0.0, %v4702
    %v4704 = vpop.f32.mrb[0].mxu0
    %4705 = vdwg.mxu0
    %4708 = vrot.lane.b32.xlu0 %v4626, 16
    %v4709 = vpop.permute.xlu0 %4708
    %4710 = vrot.lane.b32.xlu0 %v4703, 16
    %v4711 = vpop.permute.xlu0 %4710
    %v4714 = vsel %vm1307, %v4298, %v4709
    %v4715 = vsel %vm1307, %v4371, %v4711
    %v4717 = vsel %vm1307, %v3967, 0
    %v4720 = vsel %vm1307, %v3882, 0
    %4722 = vmatprep.subr.mxu0 0.0
    %4723 = vmatpush1.xpose.msra.mxu0 %v4720
    %4724 = vmatprep.subr.mxu0 0.0
    %4725 = vmatpush1.xpose.msra.mxu0 0.0
    %4726 = vmatprep.subr.mxu0 0.0
    %4727 = vmatpush1.xpose.msra.mxu0 0.0
    %4728 = vmatprep.subr.mxu0 0.0
    %4729 = vmatpush1.xpose.msra.mxu0 0.0
    %4730 = vmatprep.subr.mxu0 0.0
    %4731 = vmatpush1.xpose.msra.mxu0 0.0
    %4732 = vmatprep.subr.mxu0 0.0
    %4733 = vmatpush1.xpose.msra.mxu0 0.0
    %4734 = vmatprep.subr.mxu0 0.0
    %4735 = vmatpush1.xpose.msra.mxu0 0.0
    %4736 = vmatprep.subr.mxu0 0.0
    %4737 = vmatpush1.xpose.msra.mxu0 0.0
    %4738 = vmatprep.subr.mxu0 0.0
    %4739 = vmatpush1.xpose.msra.mxu0 0.0
    %4740 = vmatprep.subr.mxu0 0.0
    %4741 = vmatpush1.xpose.msra.mxu0 0.0
    %4742 = vmatprep.subr.mxu0 0.0
    %4743 = vmatpush1.xpose.msra.mxu0 0.0
    %4744 = vmatprep.subr.mxu0 0.0
    %4745 = vmatpush1.xpose.msra.mxu0 0.0
    %4746 = vmatprep.subr.mxu0 0.0
    %4747 = vmatpush1.xpose.msra.mxu0 0.0
    %4748 = vmatprep.subr.mxu0 0.0
    %4749 = vmatpush1.xpose.msra.mxu0 0.0
    %4750 = vmatprep.subr.mxu0 0.0
    %4751 = vmatpush1.xpose.msra.mxu0 0.0
    %4752 = vmatprep.subr.mxu0 0.0
    %4753 = vmatpush1.xpose.msra.mxu0 0.0
    %4754 = vmatprep.subr.mxu0 0.0
    %4755 = vmatpush1.xpose.msra.mxu0 0.0
    %4756 = vmatprep.subr.mxu0 0.0
    %4757 = vmatpush1.xpose.msra.mxu0 0.0
    %4758 = vmatprep.subr.mxu0 0.0
    %4759 = vmatpush1.xpose.msra.mxu0 0.0
    %4760 = vmatprep.subr.mxu0 0.0
    %4761 = vmatpush1.xpose.msra.mxu0 0.0
    %4762 = vmatprep.subr.mxu0 0.0
    %4763 = vmatpush1.xpose.msra.mxu0 0.0
    %4764 = vmatprep.subr.mxu0 0.0
    %4765 = vmatpush1.xpose.msra.mxu0 0.0
    %4766 = vmatprep.subr.mxu0 0.0
    %4767 = vmatpush1.xpose.msra.mxu0 0.0
    %4768 = vmatprep.subr.mxu0 0.0
    %4769 = vmatpush1.xpose.msra.mxu0 0.0
    %4770 = vmatprep.subr.mxu0 0.0
    %4771 = vmatpush1.xpose.msra.mxu0 0.0
    %4772 = vmatprep.subr.mxu0 0.0
    %4773 = vmatpush1.xpose.msra.mxu0 0.0
    %4774 = vmatprep.subr.mxu0 0.0
    %4775 = vmatpush1.xpose.msra.mxu0 0.0
    %4776 = vmatprep.subr.mxu0 0.0
    %4777 = vmatpush1.xpose.msra.mxu0 0.0
    %4778 = vmatprep.subr.mxu0 0.0
    %4779 = vmatpush1.xpose.msra.mxu0 0.0
    %4780 = vmatprep.subr.mxu0 0.0
    %4781 = vmatpush1.xpose.msra.mxu0 0.0
    %4782 = vmatprep.subr.mxu0 0.0
    %4783 = vmatpush1.xpose.msra.mxu0 0.0
    %4784 = vmatprep.subr.mxu0 0.0
    %4785 = vmatpush1.xpose.msra.mxu0 0.0
    %4786 = vmatprep.mubr.f32.mxu0 0.0
    %4787 = vmatmul.mubr.f32.gmra.mrb[0].mxu0 %v4717
    %v4788 = vpop.f32.mrb[0].mxu0
    %v4789 = vadd.f32 %v2395, %v4788
    %v4790 = vpop.f32.mrb[0].mxu0
    %4791 = vdwg.mxu0
    %v4793 = vsel %vm1307, %v3968, 0
    %v4796 = vsel %vm1307, %v3883, 0
    %4798 = vmatprep.subr.mxu0 0.0
    %4799 = vmatpush1.xpose.msra.mxu0 %v4796
    %4800 = vmatprep.subr.mxu0 0.0
    %4801 = vmatpush1.xpose.msra.mxu0 0.0
    %4802 = vmatprep.subr.mxu0 0.0
    %4803 = vmatpush1.xpose.msra.mxu0 0.0
    %4804 = vmatprep.subr.mxu0 0.0
    %4805 = vmatpush1.xpose.msra.mxu0 0.0
    %4806 = vmatprep.subr.mxu0 0.0
    %4807 = vmatpush1.xpose.msra.mxu0 0.0
    %4808 = vmatprep.subr.mxu0 0.0
    %4809 = vmatpush1.xpose.msra.mxu0 0.0
    %4810 = vmatprep.subr.mxu0 0.0
    %4811 = vmatpush1.xpose.msra.mxu0 0.0
    %4812 = vmatprep.subr.mxu0 0.0
    %4813 = vmatpush1.xpose.msra.mxu0 0.0
    %4814 = vmatprep.subr.mxu0 0.0
    %4815 = vmatpush1.xpose.msra.mxu0 0.0
    %4816 = vmatprep.subr.mxu0 0.0
    %4817 = vmatpush1.xpose.msra.mxu0 0.0
    %4818 = vmatprep.subr.mxu0 0.0
    %4819 = vmatpush1.xpose.msra.mxu0 0.0
    %4820 = vmatprep.subr.mxu0 0.0
    %4821 = vmatpush1.xpose.msra.mxu0 0.0
    %4822 = vmatprep.subr.mxu0 0.0
    %4823 = vmatpush1.xpose.msra.mxu0 0.0
    %4824 = vmatprep.subr.mxu0 0.0
    %4825 = vmatpush1.xpose.msra.mxu0 0.0
    %4826 = vmatprep.subr.mxu0 0.0
    %4827 = vmatpush1.xpose.msra.mxu0 0.0
    %4828 = vmatprep.subr.mxu0 0.0
    %4829 = vmatpush1.xpose.msra.mxu0 0.0
    %4830 = vmatprep.subr.mxu0 0.0
    %4831 = vmatpush1.xpose.msra.mxu0 0.0
    %4832 = vmatprep.subr.mxu0 0.0
    %4833 = vmatpush1.xpose.msra.mxu0 0.0
    %4834 = vmatprep.subr.mxu0 0.0
    %4835 = vmatpush1.xpose.msra.mxu0 0.0
    %4836 = vmatprep.subr.mxu0 0.0
    %4837 = vmatpush1.xpose.msra.mxu0 0.0
    %4838 = vmatprep.subr.mxu0 0.0
    %4839 = vmatpush1.xpose.msra.mxu0 0.0
    %4840 = vmatprep.subr.mxu0 0.0
    %4841 = vmatpush1.xpose.msra.mxu0 0.0
    %4842 = vmatprep.subr.mxu0 0.0
    %4843 = vmatpush1.xpose.msra.mxu0 0.0
    %4844 = vmatprep.subr.mxu0 0.0
    %4845 = vmatpush1.xpose.msra.mxu0 0.0
    %4846 = vmatprep.subr.mxu0 0.0
    %4847 = vmatpush1.xpose.msra.mxu0 0.0
    %4848 = vmatprep.subr.mxu0 0.0
    %4849 = vmatpush1.xpose.msra.mxu0 0.0
    %4850 = vmatprep.subr.mxu0 0.0
    %4851 = vmatpush1.xpose.msra.mxu0 0.0
    %4852 = vmatprep.subr.mxu0 0.0
    %4853 = vmatpush1.xpose.msra.mxu0 0.0
    %4854 = vmatprep.subr.mxu0 0.0
    %4855 = vmatpush1.xpose.msra.mxu0 0.0
    %4856 = vmatprep.subr.mxu0 0.0
    %4857 = vmatpush1.xpose.msra.mxu0 0.0
    %4858 = vmatprep.subr.mxu0 0.0
    %4859 = vmatpush1.xpose.msra.mxu0 0.0
    %4860 = vmatprep.subr.mxu0 0.0
    %4861 = vmatpush1.xpose.msra.mxu0 0.0
    %4862 = vmatprep.mubr.f32.mxu0 0.0
    %4863 = vmatmul.mubr.f32.gmra.mrb[0].mxu0 %v4793
    %v4864 = vpop.f32.mrb[0].mxu0
    %v4865 = vadd.f32 %v2399, %v4864
    %v4866 = vpop.f32.mrb[0].mxu0
    %4867 = vdwg.mxu0
    %v4868 = vsel %vm1460, %v4789, -inf
    %4869 = vmax.xlane.f32.xlu0 %v4868
    %v4870 = vpop.xlane.xlu0 %4869
    %v4871 = vsel %vm1460, %v4865, -inf
    %4872 = vmax.xlane.f32.xlu0 %v4871
    %v4873 = vpop.xlane.xlu0 %4872
    %v4874 = vsub.f32 %v4789, %v4870
    %v4875 = vsub.f32 %v4865, %v4873
    %v4876 = vmul.f32 %v4874, 1.442695
    %v4877 = vpow.pop %v4876
    %v4878 = vmul.f32 %v4875, 1.442695
    %v4879 = vpow.pop %v4878
    %v4880 = vsel %vm1460, %v4877, 0.0
    %4881 = vadd.xlane.f32.xlu0 %v4880
    %v4882 = vpop.xlane.xlu0 %4881
    %v4883 = vsel %vm1460, %v4879, 0.0
    %4884 = vadd.xlane.f32.xlu0 %v4883
    %v4885 = vpop.xlane.xlu0 %4884
    %v4886 = vrcp.pop %v4882
    %v4887 = vrcp.pop %v4885
    %v4888 = vmul.f32 %v4877, %v4886
    %v4889 = vmul.f32 %v4879, %v4887
    %v4891 = vsel %vm1460, %v4888, 0
    %4893 = vmatprep.subr.mxu0 0.0
    %4894 = vmatpush1.msra.mxu0 %v4052
    %4895 = vmatprep.subr.mxu0 0.0
    %4896 = vmatpush1.msra.mxu0 0.0
    %4897 = vmatprep.subr.mxu0 0.0
    %4898 = vmatpush1.msra.mxu0 0.0
    %4899 = vmatprep.subr.mxu0 0.0
    %4900 = vmatpush1.msra.mxu0 0.0
    %4901 = vmatprep.subr.mxu0 0.0
    %4902 = vmatpush1.msra.mxu0 0.0
    %4903 = vmatprep.subr.mxu0 0.0
    %4904 = vmatpush1.msra.mxu0 0.0
    %4905 = vmatprep.subr.mxu0 0.0
    %4906 = vmatpush1.msra.mxu0 0.0
    %4907 = vmatprep.subr.mxu0 0.0
    %4908 = vmatpush1.msra.mxu0 0.0
    %4909 = vmatprep.subr.mxu0 0.0
    %4910 = vmatpush1.msra.mxu0 0.0
    %4911 = vmatprep.subr.mxu0 0.0
    %4912 = vmatpush1.msra.mxu0 0.0
    %4913 = vmatprep.subr.mxu0 0.0
    %4914 = vmatpush1.msra.mxu0 0.0
    %4915 = vmatprep.subr.mxu0 0.0
    %4916 = vmatpush1.msra.mxu0 0.0
    %4917 = vmatprep.subr.mxu0 0.0
    %4918 = vmatpush1.msra.mxu0 0.0
    %4919 = vmatprep.subr.mxu0 0.0
    %4920 = vmatpush1.msra.mxu0 0.0
    %4921 = vmatprep.subr.mxu0 0.0
    %4922 = vmatpush1.msra.mxu0 0.0
    %4923 = vmatprep.subr.mxu0 0.0
    %4924 = vmatpush1.msra.mxu0 0.0
    %4925 = vmatprep.subr.mxu0 0.0
    %4926 = vmatpush1.msra.mxu0 0.0
    %4927 = vmatprep.subr.mxu0 0.0
    %4928 = vmatpush1.msra.mxu0 0.0
    %4929 = vmatprep.subr.mxu0 0.0
    %4930 = vmatpush1.msra.mxu0 0.0
    %4931 = vmatprep.subr.mxu0 0.0
    %4932 = vmatpush1.msra.mxu0 0.0
    %4933 = vmatprep.subr.mxu0 0.0
    %4934 = vmatpush1.msra.mxu0 0.0
    %4935 = vmatprep.subr.mxu0 0.0
    %4936 = vmatpush1.msra.mxu0 0.0
    %4937 = vmatprep.subr.mxu0 0.0
    %4938 = vmatpush1.msra.mxu0 0.0
    %4939 = vmatprep.subr.mxu0 0.0
    %4940 = vmatpush1.msra.mxu0 0.0
    %4941 = vmatprep.subr.mxu0 0.0
    %4942 = vmatpush1.msra.mxu0 0.0
    %4943 = vmatprep.subr.mxu0 0.0
    %4944 = vmatpush1.msra.mxu0 0.0
    %4945 = vmatprep.subr.mxu0 0.0
    %4946 = vmatpush1.msra.mxu0 0.0
    %4947 = vmatprep.subr.mxu0 0.0
    %4948 = vmatpush1.msra.mxu0 0.0
    %4949 = vmatprep.subr.mxu0 0.0
    %4950 = vmatpush1.msra.mxu0 0.0
    %4951 = vmatprep.subr.mxu0 0.0
    %4952 = vmatpush1.msra.mxu0 0.0
    %4953 = vmatprep.subr.mxu0 0.0
    %4954 = vmatpush1.msra.mxu0 0.0
    %4955 = vmatprep.subr.mxu0 0.0
    %4956 = vmatpush1.msra.mxu0 0.0
    %4957 = vmatprep.mubr.f32.mxu0 0.0
    %4958 = vmatmul.mubr.f32.gmra.mrb[0].mxu0 %v4891
    %v4959 = vpop.f32.mrb[0].mxu0
    %v4960 = vadd.f32 0.0, %v4959
    %v4961 = vpop.f32.mrb[0].mxu0
    %4962 = vdwg.mxu0
    %v4964 = vsel %vm1460, %v4889, 0
    %4966 = vmatprep.subr.mxu0 0.0
    %4967 = vmatpush1.msra.mxu0 %v4053
    %4968 = vmatprep.subr.mxu0 0.0
    %4969 = vmatpush1.msra.mxu0 0.0
    %4970 = vmatprep.subr.mxu0 0.0
    %4971 = vmatpush1.msra.mxu0 0.0
    %4972 = vmatprep.subr.mxu0 0.0
    %4973 = vmatpush1.msra.mxu0 0.0
    %4974 = vmatprep.subr.mxu0 0.0
    %4975 = vmatpush1.msra.mxu0 0.0
    %4976 = vmatprep.subr.mxu0 0.0
    %4977 = vmatpush1.msra.mxu0 0.0
    %4978 = vmatprep.subr.mxu0 0.0
    %4979 = vmatpush1.msra.mxu0 0.0
    %4980 = vmatprep.subr.mxu0 0.0
    %4981 = vmatpush1.msra.mxu0 0.0
    %4982 = vmatprep.subr.mxu0 0.0
    %4983 = vmatpush1.msra.mxu0 0.0
    %4984 = vmatprep.subr.mxu0 0.0
    %4985 = vmatpush1.msra.mxu0 0.0
    %4986 = vmatprep.subr.mxu0 0.0
    %4987 = vmatpush1.msra.mxu0 0.0
    %4988 = vmatprep.subr.mxu0 0.0
    %4989 = vmatpush1.msra.mxu0 0.0
    %4990 = vmatprep.subr.mxu0 0.0
    %4991 = vmatpush1.msra.mxu0 0.0
    %4992 = vmatprep.subr.mxu0 0.0
    %4993 = vmatpush1.msra.mxu0 0.0
    %4994 = vmatprep.subr.mxu0 0.0
    %4995 = vmatpush1.msra.mxu0 0.0
    %4996 = vmatprep.subr.mxu0 0.0
    %4997 = vmatpush1.msra.mxu0 0.0
    %4998 = vmatprep.subr.mxu0 0.0
    %4999 = vmatpush1.msra.mxu0 0.0
    %5000 = vmatprep.subr.mxu0 0.0
    %5001 = vmatpush1.msra.mxu0 0.0
    %5002 = vmatprep.subr.mxu0 0.0
    %5003 = vmatpush1.msra.mxu0 0.0
    %5004 = vmatprep.subr.mxu0 0.0
    %5005 = vmatpush1.msra.mxu0 0.0
    %5006 = vmatprep.subr.mxu0 0.0
    %5007 = vmatpush1.msra.mxu0 0.0
    %5008 = vmatprep.subr.mxu0 0.0
    %5009 = vmatpush1.msra.mxu0 0.0
    %5010 = vmatprep.subr.mxu0 0.0
    %5011 = vmatpush1.msra.mxu0 0.0
    %5012 = vmatprep.subr.mxu0 0.0
    %5013 = vmatpush1.msra.mxu0 0.0
    %5014 = vmatprep.subr.mxu0 0.0
    %5015 = vmatpush1.msra.mxu0 0.0
    %5016 = vmatprep.subr.mxu0 0.0
    %5017 = vmatpush1.msra.mxu0 0.0
    %5018 = vmatprep.subr.mxu0 0.0
    %5019 = vmatpush1.msra.mxu0 0.0
    %5020 = vmatprep.subr.mxu0 0.0
    %5021 = vmatpush1.msra.mxu0 0.0
    %5022 = vmatprep.subr.mxu0 0.0
    %5023 = vmatpush1.msra.mxu0 0.0
    %5024 = vmatprep.subr.mxu0 0.0
    %5025 = vmatpush1.msra.mxu0 0.0
    %5026 = vmatprep.subr.mxu0 0.0
    %5027 = vmatpush1.msra.mxu0 0.0
    %5028 = vmatprep.subr.mxu0 0.0
    %5029 = vmatpush1.msra.mxu0 0.0
    %5030 = vmatprep.mubr.f32.mxu0 0.0
    %5031 = vmatmul.mubr.f32.gmra.mrb[0].mxu0 %v4964
    %v5032 = vpop.f32.mrb[0].mxu0
    %v5033 = vadd.f32 0.0, %v5032
    %v5034 = vpop.f32.mrb[0].mxu0
    %5035 = vdwg.mxu0
    %5036 = vrot.lane.b32.xlu0 %v3967, 112
    %v5037 = vpop.permute.xlu0 %5036
    %5038 = vrot.lane.b32.xlu0 %v3882, 112
    %v5039 = vpop.permute.xlu0 %5038
    %v5040 = vsel %vm1307, %v5037, 0
    %v5042 = vsel %vm1307, %v5039, 0
    %5044 = vmatprep.subr.mxu0 0.0
    %5045 = vmatpush1.xpose.msra.mxu0 %v5042
    %5046 = vmatprep.subr.mxu0 0.0
    %5047 = vmatpush1.xpose.msra.mxu0 0.0
    %5048 = vmatprep.subr.mxu0 0.0
    %5049 = vmatpush1.xpose.msra.mxu0 0.0
    %5050 = vmatprep.subr.mxu0 0.0
    %5051 = vmatpush1.xpose.msra.mxu0 0.0
    %5052 = vmatprep.subr.mxu0 0.0
    %5053 = vmatpush1.xpose.msra.mxu0 0.0
    %5054 = vmatprep.subr.mxu0 0.0
    %5055 = vmatpush1.xpose.msra.mxu0 0.0
    %5056 = vmatprep.subr.mxu0 0.0
    %5057 = vmatpush1.xpose.msra.mxu0 0.0
    %5058 = vmatprep.subr.mxu0 0.0
    %5059 = vmatpush1.xpose.msra.mxu0 0.0
    %5060 = vmatprep.subr.mxu0 0.0
    %5061 = vmatpush1.xpose.msra.mxu0 0.0
    %5062 = vmatprep.subr.mxu0 0.0
    %5063 = vmatpush1.xpose.msra.mxu0 0.0
    %5064 = vmatprep.subr.mxu0 0.0
    %5065 = vmatpush1.xpose.msra.mxu0 0.0
    %5066 = vmatprep.subr.mxu0 0.0
    %5067 = vmatpush1.xpose.msra.mxu0 0.0
    %5068 = vmatprep.subr.mxu0 0.0
    %5069 = vmatpush1.xpose.msra.mxu0 0.0
    %5070 = vmatprep.subr.mxu0 0.0
    %5071 = vmatpush1.xpose.msra.mxu0 0.0
    %5072 = vmatprep.subr.mxu0 0.0
    %5073 = vmatpush1.xpose.msra.mxu0 0.0
    %5074 = vmatprep.subr.mxu0 0.0
    %5075 = vmatpush1.xpose.msra.mxu0 0.0
    %5076 = vmatprep.subr.mxu0 0.0
    %5077 = vmatpush1.xpose.msra.mxu0 0.0
    %5078 = vmatprep.subr.mxu0 0.0
    %5079 = vmatpush1.xpose.msra.mxu0 0.0
    %5080 = vmatprep.subr.mxu0 0.0
    %5081 = vmatpush1.xpose.msra.mxu0 0.0
    %5082 = vmatprep.subr.mxu0 0.0
    %5083 = vmatpush1.xpose.msra.mxu0 0.0
    %5084 = vmatprep.subr.mxu0 0.0
    %5085 = vmatpush1.xpose.msra.mxu0 0.0
    %5086 = vmatprep.subr.mxu0 0.0
    %5087 = vmatpush1.xpose.msra.mxu0 0.0
    %5088 = vmatprep.subr.mxu0 0.0
    %5089 = vmatpush1.xpose.msra.mxu0 0.0
    %5090 = vmatprep.subr.mxu0 0.0
    %5091 = vmatpush1.xpose.msra.mxu0 0.0
    %5092 = vmatprep.subr.mxu0 0.0
    %5093 = vmatpush1.xpose.msra.mxu0 0.0
    %5094 = vmatprep.subr.mxu0 0.0
    %5095 = vmatpush1.xpose.msra.mxu0 0.0
    %5096 = vmatprep.subr.mxu0 0.0
    %5097 = vmatpush1.xpose.msra.mxu0 0.0
    %5098 = vmatprep.subr.mxu0 0.0
    %5099 = vmatpush1.xpose.msra.mxu0 0.0
    %5100 = vmatprep.subr.mxu0 0.0
    %5101 = vmatpush1.xpose.msra.mxu0 0.0
    %5102 = vmatprep.subr.mxu0 0.0
    %5103 = vmatpush1.xpose.msra.mxu0 0.0
    %5104 = vmatprep.subr.mxu0 0.0
    %5105 = vmatpush1.xpose.msra.mxu0 0.0
    %5106 = vmatprep.subr.mxu0 0.0
    %5107 = vmatpush1.xpose.msra.mxu0 0.0
    %5108 = vmatprep.mubr.f32.mxu0 0.0
    %5109 = vmatmul.mubr.f32.gmra.mrb[0].mxu0 %v5040
    %v5110 = vpop.f32.mrb[0].mxu0
    %v5111 = vadd.f32 %v2395, %v5110
    %v5112 = vpop.f32.mrb[0].mxu0
    %5113 = vdwg.mxu0
    %5114 = vrot.lane.b32.xlu0 %v3968, 112
    %v5115 = vpop.permute.xlu0 %5114
    %5116 = vrot.lane.b32.xlu0 %v3883, 112
    %v5117 = vpop.permute.xlu0 %5116
    %v5118 = vsel %vm1307, %v5115, 0
    %v5120 = vsel %vm1307, %v5117, 0
    %5122 = vmatprep.subr.mxu0 0.0
    %5123 = vmatpush1.xpose.msra.mxu0 %v5120
    %5124 = vmatprep.subr.mxu0 0.0
    %5125 = vmatpush1.xpose.msra.mxu0 0.0
    %5126 = vmatprep.subr.mxu0 0.0
    %5127 = vmatpush1.xpose.msra.mxu0 0.0
    %5128 = vmatprep.subr.mxu0 0.0
    %5129 = vmatpush1.xpose.msra.mxu0 0.0
    %5130 = vmatprep.subr.mxu0 0.0
    %5131 = vmatpush1.xpose.msra.mxu0 0.0
    %5132 = vmatprep.subr.mxu0 0.0
    %5133 = vmatpush1.xpose.msra.mxu0 0.0
    %5134 = vmatprep.subr.mxu0 0.0
    %5135 = vmatpush1.xpose.msra.mxu0 0.0
    %5136 = vmatprep.subr.mxu0 0.0
    %5137 = vmatpush1.xpose.msra.mxu0 0.0
    %5138 = vmatprep.subr.mxu0 0.0
    %5139 = vmatpush1.xpose.msra.mxu0 0.0
    %5140 = vmatprep.subr.mxu0 0.0
    %5141 = vmatpush1.xpose.msra.mxu0 0.0
    %5142 = vmatprep.subr.mxu0 0.0
    %5143 = vmatpush1.xpose.msra.mxu0 0.0
    %5144 = vmatprep.subr.mxu0 0.0
    %5145 = vmatpush1.xpose.msra.mxu0 0.0
    %5146 = vmatprep.subr.mxu0 0.0
    %5147 = vmatpush1.xpose.msra.mxu0 0.0
    %5148 = vmatprep.subr.mxu0 0.0
    %5149 = vmatpush1.xpose.msra.mxu0 0.0
    %5150 = vmatprep.subr.mxu0 0.0
    %5151 = vmatpush1.xpose.msra.mxu0 0.0
    %5152 = vmatprep.subr.mxu0 0.0
    %5153 = vmatpush1.xpose.msra.mxu0 0.0
    %5154 = vmatprep.subr.mxu0 0.0
    %5155 = vmatpush1.xpose.msra.mxu0 0.0
    %5156 = vmatprep.subr.mxu0 0.0
    %5157 = vmatpush1.xpose.msra.mxu0 0.0
    %5158 = vmatprep.subr.mxu0 0.0
    %5159 = vmatpush1.xpose.msra.mxu0 0.0
    %5160 = vmatprep.subr.mxu0 0.0
    %5161 = vmatpush1.xpose.msra.mxu0 0.0
    %5162 = vmatprep.subr.mxu0 0.0
    %5163 = vmatpush1.xpose.msra.mxu0 0.0
    %5164 = vmatprep.subr.mxu0 0.0
    %5165 = vmatpush1.xpose.msra.mxu0 0.0
    %5166 = vmatprep.subr.mxu0 0.0
    %5167 = vmatpush1.xpose.msra.mxu0 0.0
    %5168 = vmatprep.subr.mxu0 0.0
    %5169 = vmatpush1.xpose.msra.mxu0 0.0
    %5170 = vmatprep.subr.mxu0 0.0
    %5171 = vmatpush1.xpose.msra.mxu0 0.0
    %5172 = vmatprep.subr.mxu0 0.0
    %5173 = vmatpush1.xpose.msra.mxu0 0.0
    %5174 = vmatprep.subr.mxu0 0.0
    %5175 = vmatpush1.xpose.msra.mxu0 0.0
    %5176 = vmatprep.subr.mxu0 0.0
    %5177 = vmatpush1.xpose.msra.mxu0 0.0
    %5178 = vmatprep.subr.mxu0 0.0
    %5179 = vmatpush1.xpose.msra.mxu0 0.0
    %5180 = vmatprep.subr.mxu0 0.0
    %5181 = vmatpush1.xpose.msra.mxu0 0.0
    %5182 = vmatprep.subr.mxu0 0.0
    %5183 = vmatpush1.xpose.msra.mxu0 0.0
    %5184 = vmatprep.subr.mxu0 0.0
    %5185 = vmatpush1.xpose.msra.mxu0 0.0
    %5186 = vmatprep.mubr.f32.mxu0 0.0
    %5187 = vmatmul.mubr.f32.gmra.mrb[0].mxu0 %v5118
    %v5188 = vpop.f32.mrb[0].mxu0
    %v5189 = vadd.f32 %v2399, %v5188
    %v5190 = vpop.f32.mrb[0].mxu0
    %5191 = vdwg.mxu0
    %v5192 = vsel %vm1460, %v5111, -inf
    %5193 = vmax.xlane.f32.xlu0 %v5192
    %v5194 = vpop.xlane.xlu0 %5193
    %v5195 = vsel %vm1460, %v5189, -inf
    %5196 = vmax.xlane.f32.xlu0 %v5195
    %v5197 = vpop.xlane.xlu0 %5196
    %v5198 = vsub.f32 %v5111, %v5194
    %v5199 = vsub.f32 %v5189, %v5197
    %v5200 = vmul.f32 %v5198, 1.442695
    %v5201 = vpow.pop %v5200
    %v5202 = vmul.f32 %v5199, 1.442695
    %v5203 = vpow.pop %v5202
    %v5204 = vsel %vm1460, %v5201, 0.0
    %5205 = vadd.xlane.f32.xlu0 %v5204
    %v5206 = vpop.xlane.xlu0 %5205
    %v5207 = vsel %vm1460, %v5203, 0.0
    %5208 = vadd.xlane.f32.xlu0 %v5207
    %v5209 = vpop.xlane.xlu0 %5208
    %v5210 = vrcp.pop %v5206
    %v5211 = vrcp.pop %v5209
    %v5212 = vmul.f32 %v5201, %v5210
    %v5213 = vmul.f32 %v5203, %v5211
    %5215 = vrot.lane.b32.xlu0 %v4052, 112
    %v5216 = vpop.permute.xlu0 %5215
    %v5219 = vsel %vm1460, %v5212, 0
    %5221 = vmatprep.subr.mxu0 0.0
    %5222 = vmatpush1.msra.mxu0 %v5216
    %5223 = vmatprep.subr.mxu0 0.0
    %5224 = vmatpush1.msra.mxu0 0.0
    %5225 = vmatprep.subr.mxu0 0.0
    %5226 = vmatpush1.msra.mxu0 0.0
    %5227 = vmatprep.subr.mxu0 0.0
    %5228 = vmatpush1.msra.mxu0 0.0
    %5229 = vmatprep.subr.mxu0 0.0
    %5230 = vmatpush1.msra.mxu0 0.0
    %5231 = vmatprep.subr.mxu0 0.0
    %5232 = vmatpush1.msra.mxu0 0.0
    %5233 = vmatprep.subr.mxu0 0.0
    %5234 = vmatpush1.msra.mxu0 0.0
    %5235 = vmatprep.subr.mxu0 0.0
    %5236 = vmatpush1.msra.mxu0 0.0
    %5237 = vmatprep.subr.mxu0 0.0
    %5238 = vmatpush1.msra.mxu0 0.0
    %5239 = vmatprep.subr.mxu0 0.0
    %5240 = vmatpush1.msra.mxu0 0.0
    %5241 = vmatprep.subr.mxu0 0.0
    %5242 = vmatpush1.msra.mxu0 0.0
    %5243 = vmatprep.subr.mxu0 0.0
    %5244 = vmatpush1.msra.mxu0 0.0
    %5245 = vmatprep.subr.mxu0 0.0
    %5246 = vmatpush1.msra.mxu0 0.0
    %5247 = vmatprep.subr.mxu0 0.0
    %5248 = vmatpush1.msra.mxu0 0.0
    %5249 = vmatprep.subr.mxu0 0.0
    %5250 = vmatpush1.msra.mxu0 0.0
    %5251 = vmatprep.subr.mxu0 0.0
    %5252 = vmatpush1.msra.mxu0 0.0
    %5253 = vmatprep.subr.mxu0 0.0
    %5254 = vmatpush1.msra.mxu0 0.0
    %5255 = vmatprep.subr.mxu0 0.0
    %5256 = vmatpush1.msra.mxu0 0.0
    %5257 = vmatprep.subr.mxu0 0.0
    %5258 = vmatpush1.msra.mxu0 0.0
    %5259 = vmatprep.subr.mxu0 0.0
    %5260 = vmatpush1.msra.mxu0 0.0
    %5261 = vmatprep.subr.mxu0 0.0
    %5262 = vmatpush1.msra.mxu0 0.0
    %5263 = vmatprep.subr.mxu0 0.0
    %5264 = vmatpush1.msra.mxu0 0.0
    %5265 = vmatprep.subr.mxu0 0.0
    %5266 = vmatpush1.msra.mxu0 0.0
    %5267 = vmatprep.subr.mxu0 0.0
    %5268 = vmatpush1.msra.mxu0 0.0
    %5269 = vmatprep.subr.mxu0 0.0
    %5270 = vmatpush1.msra.mxu0 0.0
    %5271 = vmatprep.subr.mxu0 0.0
    %5272 = vmatpush1.msra.mxu0 0.0
    %5273 = vmatprep.subr.mxu0 0.0
    %5274 = vmatpush1.msra.mxu0 0.0
    %5275 = vmatprep.subr.mxu0 0.0
    %5276 = vmatpush1.msra.mxu0 0.0
    %5277 = vmatprep.subr.mxu0 0.0
    %5278 = vmatpush1.msra.mxu0 0.0
    %5279 = vmatprep.subr.mxu0 0.0
    %5280 = vmatpush1.msra.mxu0 0.0
    %5281 = vmatprep.subr.mxu0 0.0
    %5282 = vmatpush1.msra.mxu0 0.0
    %5283 = vmatprep.subr.mxu0 0.0
    %5284 = vmatpush1.msra.mxu0 0.0
    %5285 = vmatprep.mubr.f32.mxu0 0.0
    %5286 = vmatmul.mubr.f32.gmra.mrb[0].mxu0 %v5219
    %v5287 = vpop.f32.mrb[0].mxu0
    %v5288 = vadd.f32 0.0, %v5287
    %v5289 = vpop.f32.mrb[0].mxu0
    %5290 = vdwg.mxu0
    %5292 = vrot.lane.b32.xlu0 %v4053, 112
    %v5293 = vpop.permute.xlu0 %5292
    %v5296 = vsel %vm1460, %v5213, 0
    %5298 = vmatprep.subr.mxu0 0.0
    %5299 = vmatpush1.msra.mxu0 %v5293
    %5300 = vmatprep.subr.mxu0 0.0
    %5301 = vmatpush1.msra.mxu0 0.0
    %5302 = vmatprep.subr.mxu0 0.0
    %5303 = vmatpush1.msra.mxu0 0.0
    %5304 = vmatprep.subr.mxu0 0.0
    %5305 = vmatpush1.msra.mxu0 0.0
    %5306 = vmatprep.subr.mxu0 0.0
    %5307 = vmatpush1.msra.mxu0 0.0
    %5308 = vmatprep.subr.mxu0 0.0
    %5309 = vmatpush1.msra.mxu0 0.0
    %5310 = vmatprep.subr.mxu0 0.0
    %5311 = vmatpush1.msra.mxu0 0.0
    %5312 = vmatprep.subr.mxu0 0.0
    %5313 = vmatpush1.msra.mxu0 0.0
    %5314 = vmatprep.subr.mxu0 0.0
    %5315 = vmatpush1.msra.mxu0 0.0
    %5316 = vmatprep.subr.mxu0 0.0
    %5317 = vmatpush1.msra.mxu0 0.0
    %5318 = vmatprep.subr.mxu0 0.0
    %5319 = vmatpush1.msra.mxu0 0.0
    %5320 = vmatprep.subr.mxu0 0.0
    %5321 = vmatpush1.msra.mxu0 0.0
    %5322 = vmatprep.subr.mxu0 0.0
    %5323 = vmatpush1.msra.mxu0 0.0
    %5324 = vmatprep.subr.mxu0 0.0
    %5325 = vmatpush1.msra.mxu0 0.0
    %5326 = vmatprep.subr.mxu0 0.0
    %5327 = vmatpush1.msra.mxu0 0.0
    %5328 = vmatprep.subr.mxu0 0.0
    %5329 = vmatpush1.msra.mxu0 0.0
    %5330 = vmatprep.subr.mxu0 0.0
    %5331 = vmatpush1.msra.mxu0 0.0
    %5332 = vmatprep.subr.mxu0 0.0
    %5333 = vmatpush1.msra.mxu0 0.0
    %5334 = vmatprep.subr.mxu0 0.0
    %5335 = vmatpush1.msra.mxu0 0.0
    %5336 = vmatprep.subr.mxu0 0.0
    %5337 = vmatpush1.msra.mxu0 0.0
    %5338 = vmatprep.subr.mxu0 0.0
    %5339 = vmatpush1.msra.mxu0 0.0
    %5340 = vmatprep.subr.mxu0 0.0
    %5341 = vmatpush1.msra.mxu0 0.0
    %5342 = vmatprep.subr.mxu0 0.0
    %5343 = vmatpush1.msra.mxu0 0.0
    %5344 = vmatprep.subr.mxu0 0.0
    %5345 = vmatpush1.msra.mxu0 0.0
    %5346 = vmatprep.subr.mxu0 0.0
    %5347 = vmatpush1.msra.mxu0 0.0
    %5348 = vmatprep.subr.mxu0 0.0
    %5349 = vmatpush1.msra.mxu0 0.0
    %5350 = vmatprep.subr.mxu0 0.0
    %5351 = vmatpush1.msra.mxu0 0.0
    %5352 = vmatprep.subr.mxu0 0.0
    %5353 = vmatpush1.msra.mxu0 0.0
    %5354 = vmatprep.subr.mxu0 0.0
    %5355 = vmatpush1.msra.mxu0 0.0
    %5356 = vmatprep.subr.mxu0 0.0
    %5357 = vmatpush1.msra.mxu0 0.0
    %5358 = vmatprep.subr.mxu0 0.0
    %5359 = vmatpush1.msra.mxu0 0.0
    %5360 = vmatprep.subr.mxu0 0.0
    %5361 = vmatpush1.msra.mxu0 0.0
    %5362 = vmatprep.mubr.f32.mxu0 0.0
    %5363 = vmatmul.mubr.f32.gmra.mrb[0].mxu0 %v5296
    %v5364 = vpop.f32.mrb[0].mxu0
    %v5365 = vadd.f32 0.0, %v5364
    %v5366 = vpop.f32.mrb[0].mxu0
    %5367 = vdwg.mxu0
    %5370 = vrot.lane.b32.xlu0 %v5288, 16
    %v5371 = vpop.permute.xlu0 %5370
    %5372 = vrot.lane.b32.xlu0 %v5365, 16
    %v5373 = vpop.permute.xlu0 %5372
    %v5376 = vsel %vm1307, %v4960, %v5371
    %v5377 = vsel %vm1307, %v5033, %v5373
    %v5378 = vadd.f32 %v3228, %v4714
    %v5379 = vadd.f32 %v3229, %v4715
    %v5381 = vlaneseq
    %v5382 = vshrl.u32 %v5381, 7
    %v5383 = vsub.s32 0, %v5382
    %v5384 = vrot.slane %v714, %v5383
    %v5387 = vsel %vm867, %v5378, 0
    %v5390 = vsel %vm867, %v5379, 0
    %5392 = vmatprep.subr.mxu0 0.0
    %5393 = vmatpush1.msra.mxu0 %v715
    %5394 = vmatprep.subr.mxu0 0.0
    %5395 = vmatpush1.msra.mxu0 %v716
    %5396 = vmatprep.subr.mxu0 0.0
    %5397 = vmatpush1.msra.mxu0 %v717
    %5398 = vmatprep.subr.mxu0 0.0
    %5399 = vmatpush1.msra.mxu0 %v718
    %5400 = vmatprep.subr.mxu0 0.0
    %5401 = vmatpush1.msra.mxu0 0.0
    %5402 = vmatprep.subr.mxu0 0.0
    %5403 = vmatpush1.msra.mxu0 0.0
    %5404 = vmatprep.subr.mxu0 0.0
    %5405 = vmatpush1.msra.mxu0 0.0
    %5406 = vmatprep.subr.mxu0 0.0
    %5407 = vmatpush1.msra.mxu0 0.0
    %5408 = vmatprep.subr.mxu0 0.0
    %5409 = vmatpush1.msra.mxu0 0.0
    %5410 = vmatprep.subr.mxu0 0.0
    %5411 = vmatpush1.msra.mxu0 0.0
    %5412 = vmatprep.subr.mxu0 0.0
    %5413 = vmatpush1.msra.mxu0 0.0
    %5414 = vmatprep.subr.mxu0 0.0
    %5415 = vmatpush1.msra.mxu0 0.0
    %5416 = vmatprep.subr.mxu0 0.0
    %5417 = vmatpush1.msra.mxu0 0.0
    %5418 = vmatprep.subr.mxu0 0.0
    %5419 = vmatpush1.msra.mxu0 0.0
    %5420 = vmatprep.subr.mxu0 0.0
    %5421 = vmatpush1.msra.mxu0 0.0
    %5422 = vmatprep.subr.mxu0 0.0
    %5423 = vmatpush1.msra.mxu0 0.0
    %5424 = vmatprep.subr.mxu0 0.0
    %5425 = vmatpush1.msra.mxu0 0.0
    %5426 = vmatprep.subr.mxu0 0.0
    %5427 = vmatpush1.msra.mxu0 0.0
    %5428 = vmatprep.subr.mxu0 0.0
    %5429 = vmatpush1.msra.mxu0 0.0
    %5430 = vmatprep.subr.mxu0 0.0
    %5431 = vmatpush1.msra.mxu0 0.0
    %5432 = vmatprep.subr.mxu0 0.0
    %5433 = vmatpush1.msra.mxu0 0.0
    %5434 = vmatprep.subr.mxu0 0.0
    %5435 = vmatpush1.msra.mxu0 0.0
    %5436 = vmatprep.subr.mxu0 0.0
    %5437 = vmatpush1.msra.mxu0 0.0
    %5438 = vmatprep.subr.mxu0 0.0
    %5439 = vmatpush1.msra.mxu0 0.0
    %5440 = vmatprep.subr.mxu0 0.0
    %5441 = vmatpush1.msra.mxu0 0.0
    %5442 = vmatprep.subr.mxu0 0.0
    %5443 = vmatpush1.msra.mxu0 0.0
    %5444 = vmatprep.subr.mxu0 0.0
    %5445 = vmatpush1.msra.mxu0 0.0
    %5446 = vmatprep.subr.mxu0 0.0
    %5447 = vmatpush1.msra.mxu0 0.0
    %5448 = vmatprep.subr.mxu0 0.0
    %5449 = vmatpush1.msra.mxu0 0.0
    %5450 = vmatprep.subr.mxu0 0.0
    %5451 = vmatpush1.msra.mxu0 0.0
    %5452 = vmatprep.subr.mxu0 0.0
    %5453 = vmatpush1.msra.mxu0 0.0
    %5454 = vmatprep.subr.mxu0 0.0
    %5455 = vmatpush1.msra.mxu0 0.0
    %5456 = vmatprep.mubr.f32.mxu0 0.0
    %5457 = vmatmul.mubr.f32.gmra.mrb[0].mxu0 %v5387
    %v5458 = vpop.f32.mrb[0].mxu0
    %v5459 = vadd.f32 %v5384, %v5458
    %v5460 = vpop.f32.mrb[0].mxu0
    %5461 = vmatprep.mubr.f32.mxu0 0.0
    %5462 = vmatmul.mubr.f32.gmra.mrb[0].mxu0 %v5390
    %v5463 = vpop.f32.mrb[0].mxu0
    %v5464 = vadd.f32 %v5384, %v5463
    %v5465 = vpop.f32.mrb[0].mxu0
    %5466 = vdwg.mxu0
    %v5467 = vadd.f32 %v2135, %v5376
    %v5468 = vadd.f32 %v2136, %v5377
    %v5470 = vlaneseq
    %v5471 = vshrl.u32 %v5470, 7
    %v5472 = vsub.s32 0, %v5471
    %v5473 = vrot.slane %v689, %v5472
    %v5476 = vsel %vm867, %v5467, 0
    %v5479 = vsel %vm867, %v5468, 0
    %5481 = vmatprep.subr.mxu0 0.0
    %5482 = vmatpush1.msra.mxu0 %v690
    %5483 = vmatprep.subr.mxu0 0.0
    %5484 = vmatpush1.msra.mxu0 %v691
    %5485 = vmatprep.subr.mxu0 0.0
    %5486 = vmatpush1.msra.mxu0 %v692
    %5487 = vmatprep.subr.mxu0 0.0
    %5488 = vmatpush1.msra.mxu0 %v693
    %5489 = vmatprep.subr.mxu0 0.0
    %5490 = vmatpush1.msra.mxu0 0.0
    %5491 = vmatprep.subr.mxu0 0.0
    %5492 = vmatpush1.msra.mxu0 0.0
    %5493 = vmatprep.subr.mxu0 0.0
    %5494 = vmatpush1.msra.mxu0 0.0
    %5495 = vmatprep.subr.mxu0 0.0
    %5496 = vmatpush1.msra.mxu0 0.0
    %5497 = vmatprep.subr.mxu0 0.0
    %5498 = vmatpush1.msra.mxu0 0.0
    %5499 = vmatprep.subr.mxu0 0.0
    %5500 = vmatpush1.msra.mxu0 0.0
    %5501 = vmatprep.subr.mxu0 0.0
    %5502 = vmatpush1.msra.mxu0 0.0
    %5503 = vmatprep.subr.mxu0 0.0
    %5504 = vmatpush1.msra.mxu0 0.0
    %5505 = vmatprep.subr.mxu0 0.0
    %5506 = vmatpush1.msra.mxu0 0.0
    %5507 = vmatprep.subr.mxu0 0.0
    %5508 = vmatpush1.msra.mxu0 0.0
    %5509 = vmatprep.subr.mxu0 0.0
    %5510 = vmatpush1.msra.mxu0 0.0
    %5511 = vmatprep.subr.mxu0 0.0
    %5512 = vmatpush1.msra.mxu0 0.0
    %5513 = vmatprep.subr.mxu0 0.0
    %5514 = vmatpush1.msra.mxu0 0.0
    %5515 = vmatprep.subr.mxu0 0.0
    %5516 = vmatpush1.msra.mxu0 0.0
    %5517 = vmatprep.subr.mxu0 0.0
    %5518 = vmatpush1.msra.mxu0 0.0
    %5519 = vmatprep.subr.mxu0 0.0
    %5520 = vmatpush1.msra.mxu0 0.0
    %5521 = vmatprep.subr.mxu0 0.0
    %5522 = vmatpush1.msra.mxu0 0.0
    %5523 = vmatprep.subr.mxu0 0.0
    %5524 = vmatpush1.msra.mxu0 0.0
    %5525 = vmatprep.subr.mxu0 0.0
    %5526 = vmatpush1.msra.mxu0 0.0
    %5527 = vmatprep.subr.mxu0 0.0
    %5528 = vmatpush1.msra.mxu0 0.0
    %5529 = vmatprep.subr.mxu0 0.0
    %5530 = vmatpush1.msra.mxu0 0.0
    %5531 = vmatprep.subr.mxu0 0.0
    %5532 = vmatpush1.msra.mxu0 0.0
    %5533 = vmatprep.subr.mxu0 0.0
    %5534 = vmatpush1.msra.mxu0 0.0
    %5535 = vmatprep.subr.mxu0 0.0
    %5536 = vmatpush1.msra.mxu0 0.0
    %5537 = vmatprep.subr.mxu0 0.0
    %5538 = vmatpush1.msra.mxu0 0.0
    %5539 = vmatprep.subr.mxu0 0.0
    %5540 = vmatpush1.msra.mxu0 0.0
    %5541 = vmatprep.subr.mxu0 0.0
    %5542 = vmatpush1.msra.mxu0 0.0
    %5543 = vmatprep.subr.mxu0 0.0
    %5544 = vmatpush1.msra.mxu0 0.0
    %5545 = vmatprep.mubr.f32.mxu0 0.0
    %5546 = vmatmul.mubr.f32.gmra.mrb[0].mxu0 %v5476
    %v5547 = vpop.f32.mrb[0].mxu0
    %v5548 = vadd.f32 %v5473, %v5547
    %v5549 = vpop.f32.mrb[0].mxu0
    %5550 = vmatprep.mubr.f32.mxu0 0.0
    %5551 = vmatmul.mubr.f32.gmra.mrb[0].mxu0 %v5479
    %v5552 = vpop.f32.mrb[0].mxu0
    %v5553 = vadd.f32 %v5473, %v5552
    %v5554 = vpop.f32.mrb[0].mxu0
    %5555 = vdwg.mxu0
    %v5556 = vadd.f32 %v3228, %v5459
    %v5557 = vadd.f32 %v3229, %v5464
    %v5558 = vadd.f32 %v2135, %v5548
    %v5559 = vadd.f32 %v2136, %v5553
    %5560 = vst.msk [vmem:[#allocation61] sm:$0xff] %vm867, %v5556
    %5561 = vst.msk [vmem:[#allocation61 + $0x8] sm:$0xff] %vm867, %v5557
    %5562 = vst.msk [vmem:[#allocation62] sm:$0xff] %vm867, %v5558
    %5563 = vst.msk [vmem:[#allocation62 + $0x8] sm:$0xff] %vm867, %v5559
    // Predicated region
    $region338: #{single_block_forward.1} parent=1 // pred_check
      _
    $region339: #{single_block_forward.1} parent=1 // pred_check_branch
      %5565 = sbr.rel (0) target = $region341
    $region340: #{single_block_forward.1} parent=1 // pred_region
      %s5567 = ssub.s32 256, 256
      %5568 = vsyncadd [#allocation4], %s5567
      %s5569 = sshll.u32 [#allocation61], 4
      %s5570 = int_to_ptr.vmem [resolvable:$true] %s5569
      %5575 = dma.vmem_to_hbm [thread:$0]  %s5570, 256, %s93, [#allocation4], 128, 128, 8
    $region341: #{single_block_forward.1} parent=1 // pred_fallthru
      _
    // Predicated region
    $region342: #{single_block_forward.1} parent=1 // pred_check
      _
    $region343: #{single_block_forward.1} parent=1 // pred_check_branch
      %5577 = sbr.rel (0) target = $region345
    $region344: #{single_block_forward.1} parent=1 // pred_region
      %s5579 = ssub.s32 256, 256
      %5580 = vsyncadd [#allocation63], %s5579
      %s5581 = sshll.u32 [#allocation62], 4
      %s5582 = int_to_ptr.vmem [resolvable:$true] %s5581
      %5587 = dma.vmem_to_hbm [thread:$0]  %s5582, 256, %s95, [#allocation63], 128, 128, 8
    $region345: #{single_block_forward.1} parent=1 // pred_fallthru
      _
    // Predicated region
    $region346: #{single_block_forward.1} parent=1 // pred_check
      _
    $region347: #{single_block_forward.1} parent=1 // pred_check_branch
      %5589 = sbr.rel (0) target = $region349
    $region348: #{single_block_forward.1} parent=1 // pred_region
      %5590 = dma.done [#allocation4], 256
    $region349: #{single_block_forward.1} parent=1 // pred_fallthru
      _
    // Predicated region
    $region350: #{single_block_forward.1} parent=1 // pred_check
      _
    $region351: #{single_block_forward.1} parent=1 // pred_check_branch
      %5592 = sbr.rel (0) target = $region353
    $region352: #{single_block_forward.1} parent=1 // pred_region
      %5593 = dma.done [#allocation63], 256
    $region353: #{single_block_forward.1} parent=1 // pred_fallthru
      _
    %5594 = vsyncpa [#allocation3], 1
    %5595 = vsyncpa [#allocation6], 1
    %5596 = vsyncpa [#allocation9], 1
    %5597 = vsyncpa [#allocation12], 1
    %5598 = vsyncpa [#allocation15], 1
    %5599 = vsyncpa [#allocation18], 1
    %5600 = vsyncpa [#allocation21], 1
    %5601 = vsyncpa [#allocation24], 1
    %5602 = vsyncpa [#allocation27], 1
    %5603 = vsyncpa [#allocation30], 1
    %5604 = vsyncpa [#allocation33], 1
    %5605 = vsyncpa [#allocation36], 1
    %5606 = vsyncpa [#allocation39], 1
    %5607 = vsyncpa [#allocation42], 1
    %5608 = vsyncpa [#allocation45], 1
    %5609 = vsyncpa [#allocation48], 1
    %5610 = vsyncpa [#allocation51], 1
    %5611 = vsyncpa [#allocation54], 1
    %5612 = vsyncpa [#allocation57], 1
    %5613 = vsyncpa [#allocation60], 1
    %5614 = vsyncpa [#allocation4], 1
    %5615 = vsyncpa [#allocation63], 1

</llo_original>
